<compile_context>
chip_gen: v6e
topology: v6e:2x2x1
jax: 0.10.0
libtpu: 0.0.40
codegen_flags: <defaults>
</compile_context>

<pallas_src>
import jax
import jax.numpy as jnp
from jax.experimental import pallas as pl
from jax.experimental.pallas import tpu as pltpu

EPS = 1e-5
LANE = 128


# ---------------------------------------------------------------------------
# In-kernel helpers
# ---------------------------------------------------------------------------
def _fill_padded(pad_scr, xin, H, W, Cp):
    """Write an (H, W, Cin) f32 sample into the (H+2, W+2, Cp) f32 scratch
    with a zero 1-pixel spatial halo and zero channel extension to Cp."""
    Cin = xin.shape[-1]
    if Cin < Cp:
        xin = jnp.concatenate(
            [xin, jnp.zeros((H, W, Cp - Cin), jnp.float32)], axis=-1)
    # Halo only; the interior is fully overwritten below.  Re-zeroed every
    # step because VMEM scratch is not guaranteed initialized and gating on
    # pl.program_id(0)==0 is unsafe when the parallel axis is split across
    # TensorCores (each core has private scratch).
    pad_scr[0:1, :, :] = jnp.zeros((1, W + 2, Cp), jnp.float32)
    pad_scr[H + 1:H + 2, :, :] = jnp.zeros((1, W + 2, Cp), jnp.float32)
    pad_scr[1:1 + H, 0:1, :] = jnp.zeros((H, 1, Cp), jnp.float32)
    pad_scr[1:1 + H, W + 1:W + 2, :] = jnp.zeros((H, 1, Cp), jnp.float32)
    pad_scr[1:1 + H, 1:1 + W, :] = xin


def _conv3x3(pad_scr, w_ref, H, W, Cp):
    """3x3 stride-1 'same' conv of the padded sample held in pad_scr.

    pad_scr: (H+2, W+2, Cp) f32 VMEM scratch (already spatially padded).
    w_ref:   (3, 3*Cp, Cp) bf16 (taps grouped per kernel row)  OR
             (9, Cp, Cp)   bf16 (one matrix per tap, used when Cp >= 256).
    Taps are sliced directly off the scratch Ref, cast to bf16, and fed to
    the MXU with f32 accumulation.  Returns (H*W, Cp) f32.
    """
    acc = None
    if w_ref.shape[0] == 3:                      # grouped: K = 3*Cp >= 384
        for dy in range(3):
            taps = jnp.concatenate(
                [pad_scr[dy:dy + H, dx:dx + W, :]
                 .reshape(H * W, Cp).astype(jnp.bfloat16)
                 for dx in range(3)], axis=-1)   # (H*W, 3*Cp) bf16
            d = jnp.dot(taps, w_ref[dy], preferred_element_type=jnp.float32)
            acc = d if acc is None else acc + d
    else:                                        # per-tap: K = Cp (>= 256)
        for k in range(9):
            dy, dx = divmod(k, 3)
            tap = (pad_scr[dy:dy + H, dx:dx + W, :]
                   .reshape(H * W, Cp).astype(jnp.bfloat16))
            d = jnp.dot(tap, w_ref[k], preferred_element_type=jnp.float32)
            acc = d if acc is None else acc + d
    return acc


def _write_stats(stats_ref, y):
    """Per-tile per-channel sum (row 0) and sum-of-squares (row 1), f32."""
    Cp = y.shape[-1]
    stats = jnp.concatenate([jnp.sum(y, axis=0, keepdims=True),
                             jnp.sum(y * y, axis=0, keepdims=True)], axis=0)
    stats_ref[...] = stats.reshape(1, 2, Cp)


# ---------------------------------------------------------------------------
# Kernels
# ---------------------------------------------------------------------------
def conv1_stats_kernel(x_ref, w_ref, y_ref, stats_ref, pad_scr):
    _, H, W, Cp = y_ref.shape
    _fill_padded(pad_scr, x_ref[0].astype(jnp.float32), H, W, Cp)
    y = _conv3x3(pad_scr, w_ref, H, W, Cp)                       # f32
    y_ref[...] = y.reshape(1, H, W, Cp).astype(y_ref.dtype)      # bf16 store
    _write_stats(stats_ref, y)


def bn_relu_conv2_stats_kernel(y1_ref, sc_ref, sh_ref, w_ref, y2_ref,
                               stats_ref, pad_scr):
    _, H, W, Cp = y2_ref.shape
    # BN1 folded into one f32 FMA per element, then ReLU (f32 elementwise).
    h = jnp.maximum(y1_ref[0].astype(jnp.float32) * sc_ref[...] + sh_ref[...],
                    0.0)
    _fill_padded(pad_scr, h, H, W, Cp)
    y = _conv3x3(pad_scr, w_ref, H, W, Cp)
    y2_ref[...] = y.reshape(1, H, W, Cp).astype(y2_ref.dtype)
    _write_stats(stats_ref, y)


def bn_residual_relu_kernel(y2_ref, x_ref, sc_ref, sh_ref, out_ref):
    _, H, W, C = out_ref.shape
    bn = y2_ref[0].astype(jnp.float32) * sc_ref[...] + sh_ref[...]  # (H,W,Cp)
    out = jnp.maximum(bn[..., :C] + x_ref[0].astype(jnp.float32), 0.0)
    out_ref[...] = out.reshape(1, H, W, C).astype(out_ref.dtype)


# ---------------------------------------------------------------------------
# Wrapper
# ---------------------------------------------------------------------------
def residual_block_forward(x_nchw, w1_oihw, g1, b1, w2_oihw, g2, b2):
    """ResidualBlock forward (train-mode BN). x: (N, C, H, W) -> (N, C, H, W)."""
    N, C, H, W = x_nchw.shape
    assert w1_oihw.shape == (C, C, 3, 3) and w2_oihw.shape == (C, C, 3, 3), \
        "identity residual requires in_channels == out_channels and stride 1"
    Cp = max(LANE, ((C + LANE - 1) // LANE) * LANE)
    per_tap = Cp >= 256   # MXU contraction depth: K=Cp if >=256, else K=3*Cp

    # Layout plumbing only: NCHW -> NHWC (channels stay unpadded in HBM).
    x = jnp.transpose(x_nchw, (0, 2, 3, 1))

    def prep_w(w_oihw):
        w = jnp.transpose(w_oihw, (2, 3, 1, 0))                   # OIHW -> HWIO
        w = jnp.pad(w, ((0, 0), (0, 0), (0, Cp - C), (0, Cp - C)))
        w = w.reshape(9, Cp, Cp) if per_tap else w.reshape(3, 3 * Cp, Cp)
        return w.astype(jnp.bfloat16)                             # native MXU dtype

    w1m, w2m = prep_w(w1_oihw), prep_w(w2_oihw)
    g1p, b1p = jnp.pad(g1, (0, Cp - C)), jnp.pad(b1, (0, Cp - C))
    g2p, b2p = jnp.pad(g2, (0, Cp - C)), jnp.pad(b2, (0, Cp - C))

    # 32 MiB scoped VMEM is ample for these per-sample tiles on every
    # generation (raise + enlarge spatial tiles for big H*W*Cp on v6e).
    cparams = pltpu.CompilerParams(
        dimension_semantics=("parallel",),
        vmem_limit_bytes=32 * 1024 * 1024)

    x_spec = pl.BlockSpec((1, H, W, C), lambda n: (n, 0, 0, 0))   # unpadded x
    act_spec = pl.BlockSpec((1, H, W, Cp), lambda n: (n, 0, 0, 0))
    stat_spec = pl.BlockSpec((1, 2, Cp), lambda n: (n, 0, 0))
    w_spec = pl.BlockSpec(w1m.shape, lambda n: (0, 0, 0))         # constant block
    vec_spec = pl.BlockSpec((1, Cp), lambda n: (0, 0))
    out_spec = pl.BlockSpec((1, H, W, C), lambda n: (n, 0, 0, 0))
    pad_scratch = pltpu.VMEM((H + 2, W + 2, Cp), jnp.float32)

    # Stage 1: conv1 + per-sample (sum, sumsq) partials for BN1.
    y1, st1 = pl.pallas_call(
        conv1_stats_kernel,
        grid=(N,),
        in_specs=[x_spec, w_spec],
        out_specs=(act_spec, stat_spec),
        out_shape=(jax.ShapeDtypeStruct((N, H, W, Cp), jnp.bfloat16),
                   jax.ShapeDtypeStruct((N, 2, Cp), jnp.float32)),
        scratch_shapes=[pad_scratch],
        compiler_params=cparams,
    )(x, w1m)

    count = N * H * W

    def bn_scale_shift(stats, g, b):
        # Tiny (N, 2, Cp) -> (Cp,) reduction + BN fold; per-channel scalars.
        # E[x^2]-E[x]^2 in f32: fine here since conv outputs are near zero-mean;
        # use a centered pass if activation magnitudes ever get large.
        s = jnp.sum(stats[:, 0, :], axis=0)
        ss = jnp.sum(stats[:, 1, :], axis=0)
        mean = s / count
        var = jnp.maximum(ss / count - mean * mean, 0.0)          # biased train-mode var
        scale = g * jax.lax.rsqrt(var + EPS)
        shift = b - mean * scale
        return (scale.reshape(1, Cp).astype(jnp.float32),
                shift.reshape(1, Cp).astype(jnp.float32))

    sc1, sh1 = bn_scale_shift(st1, g1p, b1p)

    # Stage 2: folded BN1 + ReLU + conv2 + per-sample partials for BN2.
    y2, st2 = pl.pallas_call(
        bn_relu_conv2_stats_kernel,
        grid=(N,),
        in_specs=[act_spec, vec_spec, vec_spec, w_spec],
        out_specs=(act_spec, stat_spec),
        out_shape=(jax.ShapeDtypeStruct((N, H, W, Cp), jnp.bfloat16),
                   jax.ShapeDtypeStruct((N, 2, Cp), jnp.float32)),
        scratch_shapes=[pad_scratch],
        compiler_params=cparams,
    )(y1, sc1, sh1, w2m)

    sc2, sh2 = bn_scale_shift(st2, g2p, b2p)

    # Stage 3: folded BN2 + residual add + ReLU, written unpadded (no wrapper
    # channel slice round trip).
    out_nhwc = pl.pallas_call(
        bn_residual_relu_kernel,
        grid=(N,),
        in_specs=[act_spec, x_spec, vec_spec, vec_spec],
        out_specs=out_spec,
        out_shape=jax.ShapeDtypeStruct((N, H, W, C), x_nchw.dtype),
        compiler_params=cparams,
    )(y2, x, sc2, sh2)

    return jnp.transpose(out_nhwc, (0, 3, 1, 2))                  # back to NCHW


# ---------------------------------------------------------------------------
# Pure-JAX reference (mirrors the PyTorch module in train-mode BN)
# ---------------------------------------------------------------------------
def ref_forward(x_nchw, w1_oihw, g1, b1, w2_oihw, g2, b2):
    x = jnp.transpose(x_nchw, (0, 2, 3, 1))

    def conv(h, w_oihw):
        return jax.lax.conv_general_dilated(
            h, jnp.transpose(w_oihw, (2, 3, 1, 0)),
            window_strides=(1, 1), padding=((1, 1), (1, 1)),
            dimension_numbers=('NHWC', 'HWIO', 'NHWC'),
            precision=jax.lax.Precision.HIGHEST)

    def bn(h, g, b):
        m = jnp.mean(h, axis=(0, 1, 2), keepdims=True)
        v = jnp.mean((h - m) ** 2, axis=(0, 1, 2), keepdims=True)
        return (h - m) * jax.lax.rsqrt(v + EPS) * g + b

    h = jnp.maximum(bn(conv(x, w1_oihw), g1, b1), 0.0)
    h = bn(conv(h, w2_oihw), g2, b2)
    out = jnp.maximum(h + x, 0.0)
    return jnp.transpose(out, (0, 3, 1, 2))


if __name__ == "__main__":
    # Small shapes: batch=2, channels=8, spatial=16x16 (in_channels ==
    # out_channels, stride=1, downsample=None -> identity residual).
    N, C, H, W = 2, 8, 16, 16
    key = jax.random.PRNGKey(0)
    kx, kw1, kw2, kg1, kb1, kg2, kb2 = jax.random.split(key, 7)

    x = jax.random.normal(kx, (N, C, H, W), jnp.float32)
    w1 = 0.1 * jax.random.normal(kw1, (C, C, 3, 3), jnp.float32)   # OIHW
    w2 = 0.1 * jax.random.normal(kw2, (C, C, 3, 3), jnp.float32)
    g1 = 1.0 + 0.1 * jax.random.normal(kg1, (C,), jnp.float32)
    b1 = 0.1 * jax.random.normal(kb1, (C,), jnp.float32)
    g2 = 1.0 + 0.1 * jax.random.normal(kg2, (C,), jnp.float32)
    b2 = 0.1 * jax.random.normal(kb2, (C,), jnp.float32)

    fwd = jax.jit(residual_block_forward)
    out = jax.block_until_ready(fwd(x, w1, g1, b1, w2, g2, b2))

    ref = ref_forward(x, w1, g1, b1, w2, g2, b2)
    assert out.shape == (N, C, H, W)
    # Tolerance loosened vs the all-f32 version: bf16 MXU operands and bf16
    # y1/y2 intermediates trade exact f32 bit-fidelity for native MXU speed.
    max_err = jnp.max(jnp.abs(out - ref))
    assert jnp.allclose(out, ref, rtol=5e-2, atol=5e-2), \
        f"max abs err {max_err}"
    print("KERNEL_OK")
</pallas_src>

<mosaic_0001>
module attributes {stable_mosaic.version = 11 : i64} {
  func.func @conv1_stats_kernel(%arg0: i32, %arg1: memref<1x16x16x8xf32, #tpu.memory_space<vmem>>, %arg2: memref<3x384x128xbf16, #tpu.memory_space<vmem>>, %arg3: memref<1x16x16x128xbf16, #tpu.memory_space<vmem>>, %arg4: memref<1x2x128xf32, #tpu.memory_space<vmem>>, %arg5: memref<18x18x128xf32, #tpu.memory_space<vmem>>) attributes {dimension_semantics = [#tpu.dimension_semantics<parallel>], iteration_bounds = array<i64: 2>, scalar_prefetch = 0 : i64, scratch_operands = 1 : i64, tpu.core_type = #tpu.core_type<tc>, window_params = [{transform_indices = @transform_0, window_bounds = array<i64: 1, 16, 16, 8>}, {pipeline_mode = #tpu.pipeline_mode<synchronous>, transform_indices = @transform_1, window_bounds = array<i64: 3, 384, 128>}, {transform_indices = @transform_2, window_bounds = array<i64: 1, 16, 16, 128>}, {transform_indices = @transform_3, window_bounds = array<i64: 1, 2, 128>}]} {
    %c0 = arith.constant 0 : index
    %c0_0 = arith.constant 0 : index
    %c0_1 = arith.constant 0 : index
    %c0_2 = arith.constant 0 : index
    %0 = vector.load %arg1[%c0, %c0_0, %c0_1, %c0_2] : memref<1x16x16x8xf32, #tpu.memory_space<vmem>>, vector<1x16x16x8xf32>
    %1 = vector.shape_cast %0 : vector<1x16x16x8xf32> to vector<16x16x8xf32>
    %cst = arith.constant 0.000000e+00 : f32
    %2 = vector.broadcast %cst : f32 to vector<16x16x120xf32>
    %3 = tpu.concatenate %1, %2 in 2 : vector<16x16x8xf32>, vector<16x16x120xf32> -> vector<16x16x128xf32>
    %cst_3 = arith.constant 0.000000e+00 : f32
    %4 = vector.broadcast %cst_3 : f32 to vector<1x18x128xf32>
    %c0_4 = arith.constant 0 : index
    %c0_5 = arith.constant 0 : index
    %c0_6 = arith.constant 0 : index
    %5 = vector.load %arg5[%c0_4, %c0_5, %c0_6] : memref<18x18x128xf32, #tpu.memory_space<vmem>>, vector<1x18x128xf32>
    tpu.vector_store %arg5[%c0_4, %c0_5, %c0_6], %4 {strides = array<i32>} : memref<18x18x128xf32, #tpu.memory_space<vmem>>, vector<1x18x128xf32>,
    %cst_7 = arith.constant 0.000000e+00 : f32
    %6 = vector.broadcast %cst_7 : f32 to vector<1x18x128xf32>
    %c17 = arith.constant 17 : index
    %c0_8 = arith.constant 0 : index
    %c0_9 = arith.constant 0 : index
    %7 = vector.load %arg5[%c17, %c0_8, %c0_9] : memref<18x18x128xf32, #tpu.memory_space<vmem>>, vector<1x18x128xf32>
    tpu.vector_store %arg5[%c17, %c0_8, %c0_9], %6 {strides = array<i32>} : memref<18x18x128xf32, #tpu.memory_space<vmem>>, vector<1x18x128xf32>,
    %cst_10 = arith.constant 0.000000e+00 : f32
    %8 = vector.broadcast %cst_10 : f32 to vector<16x1x128xf32>
    %c1 = arith.constant 1 : index
    %c0_11 = arith.constant 0 : index
    %c0_12 = arith.constant 0 : index
    %9 = vector.load %arg5[%c1, %c0_11, %c0_12] : memref<18x18x128xf32, #tpu.memory_space<vmem>>, vector<16x1x128xf32>
    tpu.vector_store %arg5[%c1, %c0_11, %c0_12], %8 {strides = array<i32>} : memref<18x18x128xf32, #tpu.memory_space<vmem>>, vector<16x1x128xf32>,
    %cst_13 = arith.constant 0.000000e+00 : f32
    %10 = vector.broadcast %cst_13 : f32 to vector<16x1x128xf32>
    %c1_14 = arith.constant 1 : index
    %c17_15 = arith.constant 17 : index
    %c0_16 = arith.constant 0 : index
    %11 = vector.load %arg5[%c1_14, %c17_15, %c0_16] : memref<18x18x128xf32, #tpu.memory_space<vmem>>, vector<16x1x128xf32>
    tpu.vector_store %arg5[%c1_14, %c17_15, %c0_16], %10 {strides = array<i32>} : memref<18x18x128xf32, #tpu.memory_space<vmem>>, vector<16x1x128xf32>,
    %c1_17 = arith.constant 1 : index
    %c1_18 = arith.constant 1 : index
    %c0_19 = arith.constant 0 : index
    %12 = vector.load %arg5[%c1_17, %c1_18, %c0_19] : memref<18x18x128xf32, #tpu.memory_space<vmem>>, vector<16x16x128xf32>
    tpu.vector_store %arg5[%c1_17, %c1_18, %c0_19], %3 {strides = array<i32>} : memref<18x18x128xf32, #tpu.memory_space<vmem>>, vector<16x16x128xf32>,
    %c0_20 = arith.constant 0 : index
    %c0_21 = arith.constant 0 : index
    %c0_22 = arith.constant 0 : index
    %13 = vector.load %arg5[%c0_20, %c0_21, %c0_22] : memref<18x18x128xf32, #tpu.memory_space<vmem>>, vector<16x16x128xf32>
    %14 = vector.shape_cast %13 : vector<16x16x128xf32> to vector<256x128xf32>
    %15 = arith.truncf %14 : vector<256x128xf32> to vector<256x128xbf16>
    %c0_23 = arith.constant 0 : index
    %c1_24 = arith.constant 1 : index
    %c0_25 = arith.constant 0 : index
    %16 = vector.load %arg5[%c0_23, %c1_24, %c0_25] : memref<18x18x128xf32, #tpu.memory_space<vmem>>, vector<16x16x128xf32>
    %17 = vector.shape_cast %16 : vector<16x16x128xf32> to vector<256x128xf32>
    %18 = arith.truncf %17 : vector<256x128xf32> to vector<256x128xbf16>
    %c0_26 = arith.constant 0 : index
    %c2 = arith.constant 2 : index
    %c0_27 = arith.constant 0 : index
    %19 = vector.load %arg5[%c0_26, %c2, %c0_27] : memref<18x18x128xf32, #tpu.memory_space<vmem>>, vector<16x16x128xf32>
    %20 = vector.shape_cast %19 : vector<16x16x128xf32> to vector<256x128xf32>
    %21 = arith.truncf %20 : vector<256x128xf32> to vector<256x128xbf16>
    %22 = tpu.concatenate %15, %18, %21 in 1 : vector<256x128xbf16>, vector<256x128xbf16>, vector<256x128xbf16> -> vector<256x384xbf16>
    %c0_28 = arith.constant 0 : index
    %c0_29 = arith.constant 0 : index
    %c0_30 = arith.constant 0 : index
    %23 = vector.load %arg2[%c0_28, %c0_29, %c0_30] : memref<3x384x128xbf16, #tpu.memory_space<vmem>>, vector<1x384x128xbf16>
    %24 = vector.shape_cast %23 : vector<1x384x128xbf16> to vector<384x128xbf16>
    %cst_31 = arith.constant dense<0.000000e+00> : vector<256x128xf32>
    %25 = tpu.matmul %22, %24, %cst_31 {dimension_numbers = #tpu.dot_dimension_numbers<[1], [0], [0], [1], [0, 0, 1, 1], [], []>} : vector<256x384xbf16>, vector<384x128xbf16>, vector<256x128xf32> -> vector<256x128xf32>
    %c1_32 = arith.constant 1 : index
    %c0_33 = arith.constant 0 : index
    %c0_34 = arith.constant 0 : index
    %26 = vector.load %arg5[%c1_32, %c0_33, %c0_34] : memref<18x18x128xf32, #tpu.memory_space<vmem>>, vector<16x16x128xf32>
    %27 = vector.shape_cast %26 : vector<16x16x128xf32> to vector<256x128xf32>
    %28 = arith.truncf %27 : vector<256x128xf32> to vector<256x128xbf16>
    %c1_35 = arith.constant 1 : index
    %c1_36 = arith.constant 1 : index
    %c0_37 = arith.constant 0 : index
    %29 = vector.load %arg5[%c1_35, %c1_36, %c0_37] : memref<18x18x128xf32, #tpu.memory_space<vmem>>, vector<16x16x128xf32>
    %30 = vector.shape_cast %29 : vector<16x16x128xf32> to vector<256x128xf32>
    %31 = arith.truncf %30 : vector<256x128xf32> to vector<256x128xbf16>
    %c1_38 = arith.constant 1 : index
    %c2_39 = arith.constant 2 : index
    %c0_40 = arith.constant 0 : index
    %32 = vector.load %arg5[%c1_38, %c2_39, %c0_40] : memref<18x18x128xf32, #tpu.memory_space<vmem>>, vector<16x16x128xf32>
    %33 = vector.shape_cast %32 : vector<16x16x128xf32> to vector<256x128xf32>
    %34 = arith.truncf %33 : vector<256x128xf32> to vector<256x128xbf16>
    %35 = tpu.concatenate %28, %31, %34 in 1 : vector<256x128xbf16>, vector<256x128xbf16>, vector<256x128xbf16> -> vector<256x384xbf16>
    %c1_41 = arith.constant 1 : index
    %c0_42 = arith.constant 0 : index
    %c0_43 = arith.constant 0 : index
    %36 = vector.load %arg2[%c1_41, %c0_42, %c0_43] : memref<3x384x128xbf16, #tpu.memory_space<vmem>>, vector<1x384x128xbf16>
    %37 = vector.shape_cast %36 : vector<1x384x128xbf16> to vector<384x128xbf16>
    %cst_44 = arith.constant dense<0.000000e+00> : vector<256x128xf32>
    %38 = tpu.matmul %35, %37, %cst_44 {dimension_numbers = #tpu.dot_dimension_numbers<[1], [0], [0], [1], [0, 0, 1, 1], [], []>} : vector<256x384xbf16>, vector<384x128xbf16>, vector<256x128xf32> -> vector<256x128xf32>
    %39 = arith.addf %25, %38 : vector<256x128xf32>
    %c2_45 = arith.constant 2 : index
    %c0_46 = arith.constant 0 : index
    %c0_47 = arith.constant 0 : index
    %40 = vector.load %arg5[%c2_45, %c0_46, %c0_47] : memref<18x18x128xf32, #tpu.memory_space<vmem>>, vector<16x16x128xf32>
    %41 = vector.shape_cast %40 : vector<16x16x128xf32> to vector<256x128xf32>
    %42 = arith.truncf %41 : vector<256x128xf32> to vector<256x128xbf16>
    %c2_48 = arith.constant 2 : index
    %c1_49 = arith.constant 1 : index
    %c0_50 = arith.constant 0 : index
    %43 = vector.load %arg5[%c2_48, %c1_49, %c0_50] : memref<18x18x128xf32, #tpu.memory_space<vmem>>, vector<16x16x128xf32>
    %44 = vector.shape_cast %43 : vector<16x16x128xf32> to vector<256x128xf32>
    %45 = arith.truncf %44 : vector<256x128xf32> to vector<256x128xbf16>
    %c2_51 = arith.constant 2 : index
    %c2_52 = arith.constant 2 : index
    %c0_53 = arith.constant 0 : index
    %46 = vector.load %arg5[%c2_51, %c2_52, %c0_53] : memref<18x18x128xf32, #tpu.memory_space<vmem>>, vector<16x16x128xf32>
    %47 = vector.shape_cast %46 : vector<16x16x128xf32> to vector<256x128xf32>
    %48 = arith.truncf %47 : vector<256x128xf32> to vector<256x128xbf16>
    %49 = tpu.concatenate %42, %45, %48 in 1 : vector<256x128xbf16>, vector<256x128xbf16>, vector<256x128xbf16> -> vector<256x384xbf16>
    %c2_54 = arith.constant 2 : index
    %c0_55 = arith.constant 0 : index
    %c0_56 = arith.constant 0 : index
    %50 = vector.load %arg2[%c2_54, %c0_55, %c0_56] : memref<3x384x128xbf16, #tpu.memory_space<vmem>>, vector<1x384x128xbf16>
    %51 = vector.shape_cast %50 : vector<1x384x128xbf16> to vector<384x128xbf16>
    %cst_57 = arith.constant dense<0.000000e+00> : vector<256x128xf32>
    %52 = tpu.matmul %49, %51, %cst_57 {dimension_numbers = #tpu.dot_dimension_numbers<[1], [0], [0], [1], [0, 0, 1, 1], [], []>} : vector<256x384xbf16>, vector<384x128xbf16>, vector<256x128xf32> -> vector<256x128xf32>
    %53 = arith.addf %39, %52 : vector<256x128xf32>
    %54 = vector.shape_cast %53 : vector<256x128xf32> to vector<1x16x16x128xf32>
    %55 = arith.truncf %54 : vector<1x16x16x128xf32> to vector<1x16x16x128xbf16>
    %c0_58 = arith.constant 0 : index
    %c0_59 = arith.constant 0 : index
    %c0_60 = arith.constant 0 : index
    %c0_61 = arith.constant 0 : index
    %56 = vector.load %arg3[%c0_58, %c0_59, %c0_60, %c0_61] : memref<1x16x16x128xbf16, #tpu.memory_space<vmem>>, vector<1x16x16x128xbf16>
    tpu.vector_store %arg3[%c0_58, %c0_59, %c0_60, %c0_61], %55 {strides = array<i32>} : memref<1x16x16x128xbf16, #tpu.memory_space<vmem>>, vector<1x16x16x128xbf16>,
    %cst_62 = arith.constant dense<0.000000e+00> : vector<128xf32>
    %57 = vector.multi_reduction <add>, %53, %cst_62 [0] : vector<256x128xf32> to vector<128xf32>
    %58 = vector.shape_cast %57 : vector<128xf32> to vector<1x128xf32>
    %59 = arith.mulf %53, %53 : vector<256x128xf32>
    %cst_63 = arith.constant dense<0.000000e+00> : vector<128xf32>
    %60 = vector.multi_reduction <add>, %59, %cst_63 [0] : vector<256x128xf32> to vector<128xf32>
    %61 = vector.shape_cast %60 : vector<128xf32> to vector<1x128xf32>
    %62 = tpu.concatenate %58, %61 in 0 : vector<1x128xf32>, vector<1x128xf32> -> vector<2x128xf32>
    %63 = vector.shape_cast %62 : vector<2x128xf32> to vector<1x2x128xf32>
    %c0_64 = arith.constant 0 : index
    %c0_65 = arith.constant 0 : index
    %c0_66 = arith.constant 0 : index
    %64 = vector.load %arg4[%c0_64, %c0_65, %c0_66] : memref<1x2x128xf32, #tpu.memory_space<vmem>>, vector<1x2x128xf32>
    tpu.vector_store %arg4[%c0_64, %c0_65, %c0_66], %63 {strides = array<i32>} : memref<1x2x128xf32, #tpu.memory_space<vmem>>, vector<1x2x128xf32>,
    return
  }
  func.func @transform_0(%arg0: i32) -> (i32, i32, i32, i32) {
    %c0_i32 = arith.constant 0 : i32
    %c0_i32_0 = arith.constant 0 : i32
    %c0_i32_1 = arith.constant 0 : i32
    %c0_i32_2 = arith.constant 0 : i32
    return %arg0, %c0_i32, %c0_i32_0, %c0_i32_1 : i32, i32, i32, i32
  }
  func.func @transform_1(%arg0: i32) -> (i32, i32, i32) {
    %c0_i32 = arith.constant 0 : i32
    %c0_i32_0 = arith.constant 0 : i32
    %c0_i32_1 = arith.constant 0 : i32
    %c0_i32_2 = arith.constant 0 : i32
    return %c0_i32, %c0_i32_0, %c0_i32_1 : i32, i32, i32
  }
  func.func @transform_2(%arg0: i32) -> (i32, i32, i32, i32) {
    %c0_i32 = arith.constant 0 : i32
    %c0_i32_0 = arith.constant 0 : i32
    %c0_i32_1 = arith.constant 0 : i32
    %c0_i32_2 = arith.constant 0 : i32
    return %arg0, %c0_i32, %c0_i32_0, %c0_i32_1 : i32, i32, i32, i32
  }
  func.func @transform_3(%arg0: i32) -> (i32, i32, i32) {
    %c0_i32 = arith.constant 0 : i32
    %c0_i32_0 = arith.constant 0 : i32
    %c0_i32_1 = arith.constant 0 : i32
    return %arg0, %c0_i32, %c0_i32_0 : i32, i32, i32
  }
}

module attributes {stable_mosaic.version = 11 : i64} {
  func.func @bn_residual_relu_kernel(%arg0: i32, %arg1: memref<1x16x16x128xbf16, #tpu.memory_space<vmem>>, %arg2: memref<1x16x16x8xf32, #tpu.memory_space<vmem>>, %arg3: memref<1x128xf32, #tpu.memory_space<vmem>>, %arg4: memref<1x128xf32, #tpu.memory_space<vmem>>, %arg5: memref<1x16x16x8xf32, #tpu.memory_space<vmem>>) attributes {dimension_semantics = [#tpu.dimension_semantics<parallel>], iteration_bounds = array<i64: 2>, scalar_prefetch = 0 : i64, scratch_operands = 0 : i64, tpu.core_type = #tpu.core_type<tc>, window_params = [{transform_indices = @transform_0, window_bounds = array<i64: 1, 16, 16, 128>}, {transform_indices = @transform_1, window_bounds = array<i64: 1, 16, 16, 8>}, {pipeline_mode = #tpu.pipeline_mode<synchronous>, transform_indices = @transform_2, window_bounds = array<i64: 1, 128>}, {pipeline_mode = #tpu.pipeline_mode<synchronous>, transform_indices = @transform_3, window_bounds = array<i64: 1, 128>}, {transform_indices = @transform_4, window_bounds = array<i64: 1, 16, 16, 8>}]} {
    %c0 = arith.constant 0 : index
    %c0_0 = arith.constant 0 : index
    %c0_1 = arith.constant 0 : index
    %c0_2 = arith.constant 0 : index
    %0 = vector.load %arg1[%c0, %c0_0, %c0_1, %c0_2] : memref<1x16x16x128xbf16, #tpu.memory_space<vmem>>, vector<1x16x16x128xbf16>
    %1 = vector.shape_cast %0 : vector<1x16x16x128xbf16> to vector<16x16x128xbf16>
    %2 = arith.extf %1 : vector<16x16x128xbf16> to vector<16x16x128xf32>
    %c0_3 = arith.constant 0 : index
    %c0_4 = arith.constant 0 : index
    %3 = vector.load %arg3[%c0_3, %c0_4] : memref<1x128xf32, #tpu.memory_space<vmem>>, vector<1x128xf32>
    %4 = vector.shape_cast %3 : vector<1x128xf32> to vector<1x1x128xf32>
    %5 = vector.broadcast %4 : vector<1x1x128xf32> to vector<16x16x128xf32>
    %6 = arith.mulf %2, %5 : vector<16x16x128xf32>
    %c0_5 = arith.constant 0 : index
    %c0_6 = arith.constant 0 : index
    %7 = vector.load %arg4[%c0_5, %c0_6] : memref<1x128xf32, #tpu.memory_space<vmem>>, vector<1x128xf32>
    %8 = vector.shape_cast %7 : vector<1x128xf32> to vector<1x1x128xf32>
    %9 = vector.broadcast %8 : vector<1x1x128xf32> to vector<16x16x128xf32>
    %10 = arith.addf %6, %9 : vector<16x16x128xf32>
    %11 = vector.extract_strided_slice %10 {offsets = [0, 0, 0], sizes = [16, 16, 8], strides = [1, 1, 1]} : vector<16x16x128xf32> to vector<16x16x8xf32>
    %c0_7 = arith.constant 0 : index
    %c0_8 = arith.constant 0 : index
    %c0_9 = arith.constant 0 : index
    %c0_10 = arith.constant 0 : index
    %12 = vector.load %arg2[%c0_7, %c0_8, %c0_9, %c0_10] : memref<1x16x16x8xf32, #tpu.memory_space<vmem>>, vector<1x16x16x8xf32>
    %13 = vector.shape_cast %12 : vector<1x16x16x8xf32> to vector<16x16x8xf32>
    %14 = arith.addf %11, %13 : vector<16x16x8xf32>
    %cst = arith.constant 0.000000e+00 : f32
    %15 = vector.broadcast %cst : f32 to vector<16x16x8xf32>
    %16 = arith.maximumf %14, %15 : vector<16x16x8xf32>
    %17 = vector.shape_cast %16 : vector<16x16x8xf32> to vector<1x16x16x8xf32>
    %c0_11 = arith.constant 0 : index
    %c0_12 = arith.constant 0 : index
    %c0_13 = arith.constant 0 : index
    %c0_14 = arith.constant 0 : index
    %18 = vector.load %arg5[%c0_11, %c0_12, %c0_13, %c0_14] : memref<1x16x16x8xf32, #tpu.memory_space<vmem>>, vector<1x16x16x8xf32>
    tpu.vector_store %arg5[%c0_11, %c0_12, %c0_13, %c0_14], %17 {strides = array<i32>} : memref<1x16x16x8xf32, #tpu.memory_space<vmem>>, vector<1x16x16x8xf32>,
    return
  }
  func.func @transform_0(%arg0: i32) -> (i32, i32, i32, i32) {
    %c0_i32 = arith.constant 0 : i32
    %c0_i32_0 = arith.constant 0 : i32
    %c0_i32_1 = arith.constant 0 : i32
    %c0_i32_2 = arith.constant 0 : i32
    return %arg0, %c0_i32, %c0_i32_0, %c0_i32_1 : i32, i32, i32, i32
  }
  func.func @transform_1(%arg0: i32) -> (i32, i32, i32, i32) {
    %c0_i32 = arith.constant 0 : i32
    %c0_i32_0 = arith.constant 0 : i32
    %c0_i32_1 = arith.constant 0 : i32
    %c0_i32_2 = arith.constant 0 : i32
    return %arg0, %c0_i32, %c0_i32_0, %c0_i32_1 : i32, i32, i32, i32
  }
  func.func @transform_2(%arg0: i32) -> (i32, i32) {
    %c0_i32 = arith.constant 0 : i32
    %c0_i32_0 = arith.constant 0 : i32
    %c0_i32_1 = arith.constant 0 : i32
    return %c0_i32, %c0_i32_0 : i32, i32
  }
  func.func @transform_3(%arg0: i32) -> (i32, i32) {
    %c0_i32 = arith.constant 0 : i32
    %c0_i32_0 = arith.constant 0 : i32
    %c0_i32_1 = arith.constant 0 : i32
    return %c0_i32, %c0_i32_0 : i32, i32
  }
  func.func @transform_4(%arg0: i32) -> (i32, i32, i32, i32) {
    %c0_i32 = arith.constant 0 : i32
    %c0_i32_0 = arith.constant 0 : i32
    %c0_i32_1 = arith.constant 0 : i32
    %c0_i32_2 = arith.constant 0 : i32
    return %arg0, %c0_i32, %c0_i32_0, %c0_i32_1 : i32, i32, i32, i32
  }
}

module attributes {stable_mosaic.version = 11 : i64} {
  func.func @bn_relu_conv2_stats_kernel(%arg0: i32, %arg1: memref<1x16x16x128xbf16, #tpu.memory_space<vmem>>, %arg2: memref<1x128xf32, #tpu.memory_space<vmem>>, %arg3: memref<1x128xf32, #tpu.memory_space<vmem>>, %arg4: memref<3x384x128xbf16, #tpu.memory_space<vmem>>, %arg5: memref<1x16x16x128xbf16, #tpu.memory_space<vmem>>, %arg6: memref<1x2x128xf32, #tpu.memory_space<vmem>>, %arg7: memref<18x18x128xf32, #tpu.memory_space<vmem>>) attributes {dimension_semantics = [#tpu.dimension_semantics<parallel>], iteration_bounds = array<i64: 2>, scalar_prefetch = 0 : i64, scratch_operands = 1 : i64, tpu.core_type = #tpu.core_type<tc>, window_params = [{transform_indices = @transform_0, window_bounds = array<i64: 1, 16, 16, 128>}, {pipeline_mode = #tpu.pipeline_mode<synchronous>, transform_indices = @transform_1, window_bounds = array<i64: 1, 128>}, {pipeline_mode = #tpu.pipeline_mode<synchronous>, transform_indices = @transform_2, window_bounds = array<i64: 1, 128>}, {pipeline_mode = #tpu.pipeline_mode<synchronous>, transform_indices = @transform_3, window_bounds = array<i64: 3, 384, 128>}, {transform_indices = @transform_4, window_bounds = array<i64: 1, 16, 16, 128>}, {transform_indices = @transform_5, window_bounds = array<i64: 1, 2, 128>}]} {
    %c0 = arith.constant 0 : index
    %c0_0 = arith.constant 0 : index
    %c0_1 = arith.constant 0 : index
    %c0_2 = arith.constant 0 : index
    %0 = vector.load %arg1[%c0, %c0_0, %c0_1, %c0_2] : memref<1x16x16x128xbf16, #tpu.memory_space<vmem>>, vector<1x16x16x128xbf16>
    %1 = vector.shape_cast %0 : vector<1x16x16x128xbf16> to vector<16x16x128xbf16>
    %2 = arith.extf %1 : vector<16x16x128xbf16> to vector<16x16x128xf32>
    %c0_3 = arith.constant 0 : index
    %c0_4 = arith.constant 0 : index
    %3 = vector.load %arg2[%c0_3, %c0_4] : memref<1x128xf32, #tpu.memory_space<vmem>>, vector<1x128xf32>
    %4 = vector.shape_cast %3 : vector<1x128xf32> to vector<1x1x128xf32>
    %5 = vector.broadcast %4 : vector<1x1x128xf32> to vector<16x16x128xf32>
    %6 = arith.mulf %2, %5 : vector<16x16x128xf32>
    %c0_5 = arith.constant 0 : index
    %c0_6 = arith.constant 0 : index
    %7 = vector.load %arg3[%c0_5, %c0_6] : memref<1x128xf32, #tpu.memory_space<vmem>>, vector<1x128xf32>
    %8 = vector.shape_cast %7 : vector<1x128xf32> to vector<1x1x128xf32>
    %9 = vector.broadcast %8 : vector<1x1x128xf32> to vector<16x16x128xf32>
    %10 = arith.addf %6, %9 : vector<16x16x128xf32>
    %cst = arith.constant 0.000000e+00 : f32
    %11 = vector.broadcast %cst : f32 to vector<16x16x128xf32>
    %12 = arith.maximumf %10, %11 : vector<16x16x128xf32>
    %cst_7 = arith.constant 0.000000e+00 : f32
    %13 = vector.broadcast %cst_7 : f32 to vector<1x18x128xf32>
    %c0_8 = arith.constant 0 : index
    %c0_9 = arith.constant 0 : index
    %c0_10 = arith.constant 0 : index
    %14 = vector.load %arg7[%c0_8, %c0_9, %c0_10] : memref<18x18x128xf32, #tpu.memory_space<vmem>>, vector<1x18x128xf32>
    tpu.vector_store %arg7[%c0_8, %c0_9, %c0_10], %13 {strides = array<i32>} : memref<18x18x128xf32, #tpu.memory_space<vmem>>, vector<1x18x128xf32>,
    %cst_11 = arith.constant 0.000000e+00 : f32
    %15 = vector.broadcast %cst_11 : f32 to vector<1x18x128xf32>
    %c17 = arith.constant 17 : index
    %c0_12 = arith.constant 0 : index
    %c0_13 = arith.constant 0 : index
    %16 = vector.load %arg7[%c17, %c0_12, %c0_13] : memref<18x18x128xf32, #tpu.memory_space<vmem>>, vector<1x18x128xf32>
    tpu.vector_store %arg7[%c17, %c0_12, %c0_13], %15 {strides = array<i32>} : memref<18x18x128xf32, #tpu.memory_space<vmem>>, vector<1x18x128xf32>,
    %cst_14 = arith.constant 0.000000e+00 : f32
    %17 = vector.broadcast %cst_14 : f32 to vector<16x1x128xf32>
    %c1 = arith.constant 1 : index
    %c0_15 = arith.constant 0 : index
    %c0_16 = arith.constant 0 : index
    %18 = vector.load %arg7[%c1, %c0_15, %c0_16] : memref<18x18x128xf32, #tpu.memory_space<vmem>>, vector<16x1x128xf32>
    tpu.vector_store %arg7[%c1, %c0_15, %c0_16], %17 {strides = array<i32>} : memref<18x18x128xf32, #tpu.memory_space<vmem>>, vector<16x1x128xf32>,
    %cst_17 = arith.constant 0.000000e+00 : f32
    %19 = vector.broadcast %cst_17 : f32 to vector<16x1x128xf32>
    %c1_18 = arith.constant 1 : index
    %c17_19 = arith.constant 17 : index
    %c0_20 = arith.constant 0 : index
    %20 = vector.load %arg7[%c1_18, %c17_19, %c0_20] : memref<18x18x128xf32, #tpu.memory_space<vmem>>, vector<16x1x128xf32>
    tpu.vector_store %arg7[%c1_18, %c17_19, %c0_20], %19 {strides = array<i32>} : memref<18x18x128xf32, #tpu.memory_space<vmem>>, vector<16x1x128xf32>,
    %c1_21 = arith.constant 1 : index
    %c1_22 = arith.constant 1 : index
    %c0_23 = arith.constant 0 : index
    %21 = vector.load %arg7[%c1_21, %c1_22, %c0_23] : memref<18x18x128xf32, #tpu.memory_space<vmem>>, vector<16x16x128xf32>
    tpu.vector_store %arg7[%c1_21, %c1_22, %c0_23], %12 {strides = array<i32>} : memref<18x18x128xf32, #tpu.memory_space<vmem>>, vector<16x16x128xf32>,
    %c0_24 = arith.constant 0 : index
    %c0_25 = arith.constant 0 : index
    %c0_26 = arith.constant 0 : index
    %22 = vector.load %arg7[%c0_24, %c0_25, %c0_26] : memref<18x18x128xf32, #tpu.memory_space<vmem>>, vector<16x16x128xf32>
    %23 = vector.shape_cast %22 : vector<16x16x128xf32> to vector<256x128xf32>
    %24 = arith.truncf %23 : vector<256x128xf32> to vector<256x128xbf16>
    %c0_27 = arith.constant 0 : index
    %c1_28 = arith.constant 1 : index
    %c0_29 = arith.constant 0 : index
    %25 = vector.load %arg7[%c0_27, %c1_28, %c0_29] : memref<18x18x128xf32, #tpu.memory_space<vmem>>, vector<16x16x128xf32>
    %26 = vector.shape_cast %25 : vector<16x16x128xf32> to vector<256x128xf32>
    %27 = arith.truncf %26 : vector<256x128xf32> to vector<256x128xbf16>
    %c0_30 = arith.constant 0 : index
    %c2 = arith.constant 2 : index
    %c0_31 = arith.constant 0 : index
    %28 = vector.load %arg7[%c0_30, %c2, %c0_31] : memref<18x18x128xf32, #tpu.memory_space<vmem>>, vector<16x16x128xf32>
    %29 = vector.shape_cast %28 : vector<16x16x128xf32> to vector<256x128xf32>
    %30 = arith.truncf %29 : vector<256x128xf32> to vector<256x128xbf16>
    %31 = tpu.concatenate %24, %27, %30 in 1 : vector<256x128xbf16>, vector<256x128xbf16>, vector<256x128xbf16> -> vector<256x384xbf16>
    %c0_32 = arith.constant 0 : index
    %c0_33 = arith.constant 0 : index
    %c0_34 = arith.constant 0 : index
    %32 = vector.load %arg4[%c0_32, %c0_33, %c0_34] : memref<3x384x128xbf16, #tpu.memory_space<vmem>>, vector<1x384x128xbf16>
    %33 = vector.shape_cast %32 : vector<1x384x128xbf16> to vector<384x128xbf16>
    %cst_35 = arith.constant dense<0.000000e+00> : vector<256x128xf32>
    %34 = tpu.matmul %31, %33, %cst_35 {dimension_numbers = #tpu.dot_dimension_numbers<[1], [0], [0], [1], [0, 0, 1, 1], [], []>} : vector<256x384xbf16>, vector<384x128xbf16>, vector<256x128xf32> -> vector<256x128xf32>
    %c1_36 = arith.constant 1 : index
    %c0_37 = arith.constant 0 : index
    %c0_38 = arith.constant 0 : index
    %35 = vector.load %arg7[%c1_36, %c0_37, %c0_38] : memref<18x18x128xf32, #tpu.memory_space<vmem>>, vector<16x16x128xf32>
    %36 = vector.shape_cast %35 : vector<16x16x128xf32> to vector<256x128xf32>
    %37 = arith.truncf %36 : vector<256x128xf32> to vector<256x128xbf16>
    %c1_39 = arith.constant 1 : index
    %c1_40 = arith.constant 1 : index
    %c0_41 = arith.constant 0 : index
    %38 = vector.load %arg7[%c1_39, %c1_40, %c0_41] : memref<18x18x128xf32, #tpu.memory_space<vmem>>, vector<16x16x128xf32>
    %39 = vector.shape_cast %38 : vector<16x16x128xf32> to vector<256x128xf32>
    %40 = arith.truncf %39 : vector<256x128xf32> to vector<256x128xbf16>
    %c1_42 = arith.constant 1 : index
    %c2_43 = arith.constant 2 : index
    %c0_44 = arith.constant 0 : index
    %41 = vector.load %arg7[%c1_42, %c2_43, %c0_44] : memref<18x18x128xf32, #tpu.memory_space<vmem>>, vector<16x16x128xf32>
    %42 = vector.shape_cast %41 : vector<16x16x128xf32> to vector<256x128xf32>
    %43 = arith.truncf %42 : vector<256x128xf32> to vector<256x128xbf16>
    %44 = tpu.concatenate %37, %40, %43 in 1 : vector<256x128xbf16>, vector<256x128xbf16>, vector<256x128xbf16> -> vector<256x384xbf16>
    %c1_45 = arith.constant 1 : index
    %c0_46 = arith.constant 0 : index
    %c0_47 = arith.constant 0 : index
    %45 = vector.load %arg4[%c1_45, %c0_46, %c0_47] : memref<3x384x128xbf16, #tpu.memory_space<vmem>>, vector<1x384x128xbf16>
    %46 = vector.shape_cast %45 : vector<1x384x128xbf16> to vector<384x128xbf16>
    %cst_48 = arith.constant dense<0.000000e+00> : vector<256x128xf32>
    %47 = tpu.matmul %44, %46, %cst_48 {dimension_numbers = #tpu.dot_dimension_numbers<[1], [0], [0], [1], [0, 0, 1, 1], [], []>} : vector<256x384xbf16>, vector<384x128xbf16>, vector<256x128xf32> -> vector<256x128xf32>
    %48 = arith.addf %34, %47 : vector<256x128xf32>
    %c2_49 = arith.constant 2 : index
    %c0_50 = arith.constant 0 : index
    %c0_51 = arith.constant 0 : index
    %49 = vector.load %arg7[%c2_49, %c0_50, %c0_51] : memref<18x18x128xf32, #tpu.memory_space<vmem>>, vector<16x16x128xf32>
    %50 = vector.shape_cast %49 : vector<16x16x128xf32> to vector<256x128xf32>
    %51 = arith.truncf %50 : vector<256x128xf32> to vector<256x128xbf16>
    %c2_52 = arith.constant 2 : index
    %c1_53 = arith.constant 1 : index
    %c0_54 = arith.constant 0 : index
    %52 = vector.load %arg7[%c2_52, %c1_53, %c0_54] : memref<18x18x128xf32, #tpu.memory_space<vmem>>, vector<16x16x128xf32>
    %53 = vector.shape_cast %52 : vector<16x16x128xf32> to vector<256x128xf32>
    %54 = arith.truncf %53 : vector<256x128xf32> to vector<256x128xbf16>
    %c2_55 = arith.constant 2 : index
    %c2_56 = arith.constant 2 : index
    %c0_57 = arith.constant 0 : index
    %55 = vector.load %arg7[%c2_55, %c2_56, %c0_57] : memref<18x18x128xf32, #tpu.memory_space<vmem>>, vector<16x16x128xf32>
    %56 = vector.shape_cast %55 : vector<16x16x128xf32> to vector<256x128xf32>
    %57 = arith.truncf %56 : vector<256x128xf32> to vector<256x128xbf16>
    %58 = tpu.concatenate %51, %54, %57 in 1 : vector<256x128xbf16>, vector<256x128xbf16>, vector<256x128xbf16> -> vector<256x384xbf16>
    %c2_58 = arith.constant 2 : index
    %c0_59 = arith.constant 0 : index
    %c0_60 = arith.constant 0 : index
    %59 = vector.load %arg4[%c2_58, %c0_59, %c0_60] : memref<3x384x128xbf16, #tpu.memory_space<vmem>>, vector<1x384x128xbf16>
    %60 = vector.shape_cast %59 : vector<1x384x128xbf16> to vector<384x128xbf16>
    %cst_61 = arith.constant dense<0.000000e+00> : vector<256x128xf32>
    %61 = tpu.matmul %58, %60, %cst_61 {dimension_numbers = #tpu.dot_dimension_numbers<[1], [0], [0], [1], [0, 0, 1, 1], [], []>} : vector<256x384xbf16>, vector<384x128xbf16>, vector<256x128xf32> -> vector<256x128xf32>
    %62 = arith.addf %48, %61 : vector<256x128xf32>
    %63 = vector.shape_cast %62 : vector<256x128xf32> to vector<1x16x16x128xf32>
    %64 = arith.truncf %63 : vector<1x16x16x128xf32> to vector<1x16x16x128xbf16>
    %c0_62 = arith.constant 0 : index
    %c0_63 = arith.constant 0 : index
    %c0_64 = arith.constant 0 : index
    %c0_65 = arith.constant 0 : index
    %65 = vector.load %arg5[%c0_62, %c0_63, %c0_64, %c0_65] : memref<1x16x16x128xbf16, #tpu.memory_space<vmem>>, vector<1x16x16x128xbf16>
    tpu.vector_store %arg5[%c0_62, %c0_63, %c0_64, %c0_65], %64 {strides = array<i32>} : memref<1x16x16x128xbf16, #tpu.memory_space<vmem>>, vector<1x16x16x128xbf16>,
    %cst_66 = arith.constant dense<0.000000e+00> : vector<128xf32>
    %66 = vector.multi_reduction <add>, %62, %cst_66 [0] : vector<256x128xf32> to vector<128xf32>
    %67 = vector.shape_cast %66 : vector<128xf32> to vector<1x128xf32>
    %68 = arith.mulf %62, %62 : vector<256x128xf32>
    %cst_67 = arith.constant dense<0.000000e+00> : vector<128xf32>
    %69 = vector.multi_reduction <add>, %68, %cst_67 [0] : vector<256x128xf32> to vector<128xf32>
    %70 = vector.shape_cast %69 : vector<128xf32> to vector<1x128xf32>
    %71 = tpu.concatenate %67, %70 in 0 : vector<1x128xf32>, vector<1x128xf32> -> vector<2x128xf32>
    %72 = vector.shape_cast %71 : vector<2x128xf32> to vector<1x2x128xf32>
    %c0_68 = arith.constant 0 : index
    %c0_69 = arith.constant 0 : index
    %c0_70 = arith.constant 0 : index
    %73 = vector.load %arg6[%c0_68, %c0_69, %c0_70] : memref<1x2x128xf32, #tpu.memory_space<vmem>>, vector<1x2x128xf32>
    tpu.vector_store %arg6[%c0_68, %c0_69, %c0_70], %72 {strides = array<i32>} : memref<1x2x128xf32, #tpu.memory_space<vmem>>, vector<1x2x128xf32>,
    return
  }
  func.func @transform_0(%arg0: i32) -> (i32, i32, i32, i32) {
    %c0_i32 = arith.constant 0 : i32
    %c0_i32_0 = arith.constant 0 : i32
    %c0_i32_1 = arith.constant 0 : i32
    %c0_i32_2 = arith.constant 0 : i32
    return %arg0, %c0_i32, %c0_i32_0, %c0_i32_1 : i32, i32, i32, i32
  }
  func.func @transform_1(%arg0: i32) -> (i32, i32) {
    %c0_i32 = arith.constant 0 : i32
    %c0_i32_0 = arith.constant 0 : i32
    %c0_i32_1 = arith.constant 0 : i32
    return %c0_i32, %c0_i32_0 : i32, i32
  }
  func.func @transform_2(%arg0: i32) -> (i32, i32) {
    %c0_i32 = arith.constant 0 : i32
    %c0_i32_0 = arith.constant 0 : i32
    %c0_i32_1 = arith.constant 0 : i32
    return %c0_i32, %c0_i32_0 : i32, i32
  }
  func.func @transform_3(%arg0: i32) -> (i32, i32, i32) {
    %c0_i32 = arith.constant 0 : i32
    %c0_i32_0 = arith.constant 0 : i32
    %c0_i32_1 = arith.constant 0 : i32
    %c0_i32_2 = arith.constant 0 : i32
    return %c0_i32, %c0_i32_0, %c0_i32_1 : i32, i32, i32
  }
  func.func @transform_4(%arg0: i32) -> (i32, i32, i32, i32) {
    %c0_i32 = arith.constant 0 : i32
    %c0_i32_0 = arith.constant 0 : i32
    %c0_i32_1 = arith.constant 0 : i32
    %c0_i32_2 = arith.constant 0 : i32
    return %arg0, %c0_i32, %c0_i32_0, %c0_i32_1 : i32, i32, i32, i32
  }
  func.func @transform_5(%arg0: i32) -> (i32, i32, i32) {
    %c0_i32 = arith.constant 0 : i32
    %c0_i32_0 = arith.constant 0 : i32
    %c0_i32_1 = arith.constant 0 : i32
    return %arg0, %c0_i32, %c0_i32_0 : i32, i32, i32
  }
}

</mosaic_0001>

<llo_original>
// kernel: residual_block_forward.5
$region0: #{residual_block_forward.5}
  #allocation0 [shape = 'u32[]', space=smem, size = 0x4, offset = 0x4, fixed_abs, tag = 'smem constant byte address 0x4 - core index']
  #allocation1 [shape = 'u32[144,128]{1,0:T(1,128)}', space=vmem, size = 0x12000, scoped, tag = 'internal scratch']
  %s0 = inlined_call_operand.vmem [shape: bf16[2,16,16,128], index: 0, kind: input, shape index: {}]
  %s1 = inlined_call_operand.vmem [shape: f32[2,16,16,8], index: 1, kind: input, shape index: {}]
  %s2 = inlined_call_operand.vmem [shape: f32[1,128], index: 2, kind: input, shape index: {}]
  %s3 = inlined_call_operand.vmem [shape: f32[1,128], index: 3, kind: input, shape index: {}]
  %s4 = inlined_call_operand.vmem [shape: f32[2,16,16,8], index: 4, kind: output, shape index: {}]
  %s5 = sld [smem:[#allocation0]]
  $region49: #{residual_block_forward.5} parent=0
    _
  %s7 = ssub.s32 1, %s5
  %s8 = scalar_select 0, %s7, %s5
  loop: start=0, step=1, limit=4
  $region2: #{residual_block_forward.5} parent=0 // loop_pre_header
    _
  $region3: #{residual_block_forward.5} parent=0 // loop_header
    %s10 = sphi 0, %s14
    %p11 = scmp.ge.s32.totalorder %s10, 4
    %s20 = sphi 0, %s22
    %s23 = sphi 0, %s20
    %s24 = sphi 0, %s23
    %s40 = sphi 0, %s24
    %s46 = sphi 0, %s48
    %s49 = sphi 0, %s46
    %s50 = sphi 0, %s49
    %s66 = sphi 0, %s50
    %s70 = sphi 0, %s70
    %s72 = sphi 0, %s70
    %s73 = sphi 0, %s72
    %s87 = sphi 0, %s73
    %s91 = sphi 0, %s91
    %s93 = sphi 0, %s91
    %s94 = sphi 0, %s93
    %s108 = sphi 0, %s94
    %s114 = sphi 0, %s116
    %s117 = sphi 0, %s114
    %s118 = sphi 0, %s117
    %s134 = sphi 0, %s118
  $region4: #{residual_block_forward.5} parent=0 // loop_header_branch
    %13 = sbr.rel (%p11) target = $region8
  $region5: #{residual_block_forward.5} parent=0 // loop_body
    %s15 = ssub.s32 %s10, 1
    %s16 = ssub.s32 %s10, 2
    %s17 = sadd.s32 %s10, 1
    %s18 = ssub.s32 %s10, %s17
    %p19 = scmp.eq.s32.totalorder %s18, 0
    %s21 = sadd.s32 %s20, 1
    %s22 = scalar_select %p19, %s20, %s21
    %p25 = pneg %p19
    %p26 = scmp.eq.s32.totalorder %s10, 1
    %p27 = por %p25, %p26
    %p28 = scmp.ne.s32.totalorder %s20, %s23
    %p29 = scmp.eq.s32.totalorder %s10, 0
    %p30 = por %p28, %p29
    %p31 = scmp.ne.s32.totalorder %s20, %s23
    %p32 = scmp.eq.s32.totalorder %s15, 1
    %p33 = por %p31, %p32
    %p34 = scmp.ne.s32.totalorder %s23, %s24
    %p35 = scmp.eq.s32.totalorder %s15, 0
    %p36 = por %p34, %p35
    %p37 = scmp.ne.s32.totalorder %s23, %s24
    %p38 = scmp.eq.s32.totalorder %s16, 1
    %p39 = por %p37, %p38
    %p41 = scmp.ne.s32.totalorder %s24, %s40
    %p42 = scmp.eq.s32.totalorder %s16, 0
    %p43 = por %p41, %p42
    %s44 = ssub.s32 %s10, %s17
    %p45 = scmp.eq.s32.totalorder %s44, 0
    %s47 = sadd.s32 %s46, 1
    %s48 = scalar_select %p45, %s46, %s47
    %p51 = pneg %p45
    %p52 = scmp.eq.s32.totalorder %s10, 1
    %p53 = por %p51, %p52
    %p54 = scmp.ne.s32.totalorder %s46, %s49
    %p55 = scmp.eq.s32.totalorder %s10, 0
    %p56 = por %p54, %p55
    %p57 = scmp.ne.s32.totalorder %s46, %s49
    %p58 = scmp.eq.s32.totalorder %s15, 1
    %p59 = por %p57, %p58
    %p60 = scmp.ne.s32.totalorder %s49, %s50
    %p61 = scmp.eq.s32.totalorder %s15, 0
    %p62 = por %p60, %p61
    %p63 = scmp.ne.s32.totalorder %s49, %s50
    %p64 = scmp.eq.s32.totalorder %s16, 1
    %p65 = por %p63, %p64
    %p67 = scmp.ne.s32.totalorder %s50, %s66
    %p68 = scmp.eq.s32.totalorder %s16, 0
    %p69 = por %p67, %p68
    %s71 = sadd.s32 %s70, 1
    %p74 = scmp.eq.s32.totalorder %s10, 1
    %p75 = scmp.ne.s32.totalorder %s70, %s72
    %p76 = scmp.eq.s32.totalorder %s10, 0
    %p77 = por %p75, %p76
    %p78 = scmp.ne.s32.totalorder %s70, %s72
    %p79 = scmp.eq.s32.totalorder %s15, 1
    %p80 = por %p78, %p79
    %p81 = scmp.ne.s32.totalorder %s72, %s73
    %p82 = scmp.eq.s32.totalorder %s15, 0
    %p83 = por %p81, %p82
    %p84 = scmp.ne.s32.totalorder %s72, %s73
    %p85 = scmp.eq.s32.totalorder %s16, 1
    %p86 = por %p84, %p85
    %p88 = scmp.ne.s32.totalorder %s73, %s87
    %p89 = scmp.eq.s32.totalorder %s16, 0
    %p90 = por %p88, %p89
    %s92 = sadd.s32 %s91, 1
    %p95 = scmp.eq.s32.totalorder %s10, 1
    %p96 = scmp.ne.s32.totalorder %s91, %s93
    %p97 = scmp.eq.s32.totalorder %s10, 0
    %p98 = por %p96, %p97
    %p99 = scmp.ne.s32.totalorder %s91, %s93
    %p100 = scmp.eq.s32.totalorder %s15, 1
    %p101 = por %p99, %p100
    %p102 = scmp.ne.s32.totalorder %s93, %s94
    %p103 = scmp.eq.s32.totalorder %s15, 0
    %p104 = por %p102, %p103
    %p105 = scmp.ne.s32.totalorder %s93, %s94
    %p106 = scmp.eq.s32.totalorder %s16, 1
    %p107 = por %p105, %p106
    %p109 = scmp.ne.s32.totalorder %s94, %s108
    %p110 = scmp.eq.s32.totalorder %s16, 0
    %p111 = por %p109, %p110
    %s112 = ssub.s32 %s10, %s17
    %p113 = scmp.eq.s32.totalorder %s112, 0
    %s115 = sadd.s32 %s114, 1
    %s116 = scalar_select %p113, %s114, %s115
    %p119 = pneg %p113
    %p120 = scmp.eq.s32.totalorder %s10, 1
    %p121 = por %p119, %p120
    %p122 = scmp.ne.s32.totalorder %s114, %s117
    %p123 = scmp.eq.s32.totalorder %s10, 0
    %p124 = por %p122, %p123
    %p125 = scmp.ne.s32.totalorder %s114, %s117
    %p126 = scmp.eq.s32.totalorder %s15, 1
    %p127 = por %p125, %p126
    %p128 = scmp.ne.s32.totalorder %s117, %s118
    %p129 = scmp.eq.s32.totalorder %s15, 0
    %p130 = por %p128, %p129
    %p131 = scmp.ne.s32.totalorder %s117, %s118
    %p132 = scmp.eq.s32.totalorder %s16, 1
    %p133 = por %p131, %p132
    %p135 = scmp.ne.s32.totalorder %s118, %s134
    %p136 = scmp.eq.s32.totalorder %s16, 0
    %p137 = por %p135, %p136
    %p138 = scmp.le.s32.totalorder 1, %s10
    %p139 = scmp.lt.s32.totalorder %s10, 3
    %p140 = pnand %p138, %p139
    %p141 = pneg %p140
    // Predicated region
    $region9: #{residual_block_forward.5} parent=5 // pred_check
      _
    $region10: #{residual_block_forward.5} parent=5 // pred_check_branch
      %143 = sbr.rel (%p140) target = $region12
    $region11: #{residual_block_forward.5} parent=5 // pred_region
      %s144 = ssub.s32 %s10, 1
      // Predicated region
      $region13: #{residual_block_forward.5} parent=11 // pred_check
        %p145 = pneg %p83
      $region14: #{residual_block_forward.5} parent=11 // pred_check_branch
        %147 = sbr.rel (%p145) target = $region16
      $region15: #{residual_block_forward.5} parent=11 // pred_region
        _
      $region16: #{residual_block_forward.5} parent=11 // pred_fallthru
        _
      // Predicated region
      $region17: #{residual_block_forward.5} parent=11 // pred_check
        %p148 = pneg %p104
      $region18: #{residual_block_forward.5} parent=11 // pred_check_branch
        %150 = sbr.rel (%p148) target = $region20
      $region19: #{residual_block_forward.5} parent=11 // pred_region
        _
      $region20: #{residual_block_forward.5} parent=11 // pred_fallthru
        _
    $region12: #{residual_block_forward.5} parent=5 // pred_fallthru
      _
    %p151 = scmp.lt.s32.totalorder %s10, 2
    // Predicated region
    $region21: #{residual_block_forward.5} parent=5 // pred_check
      %p152 = pneg %p151
    $region22: #{residual_block_forward.5} parent=5 // pred_check_branch
      %154 = sbr.rel (%p152) target = $region24
    $region23: #{residual_block_forward.5} parent=5 // pred_region
      // Predicated region
      $region25: #{residual_block_forward.5} parent=23 // pred_check
        %p155 = pneg %p30
      $region26: #{residual_block_forward.5} parent=23 // pred_check_branch
        %157 = sbr.rel (%p155) target = $region28
      $region27: #{residual_block_forward.5} parent=23 // pred_region
        %p158 = scmp.lt.s32.totalorder %s10, 1
        %s159 = scalar_select %p158, %s10, 1
        %s160 = smul.addr %s159, 32
        %s161 = smul.addr %s160, 4
        %s162 = scalar_lea.vmem %s0, %s161
      $region28: #{residual_block_forward.5} parent=23 // pred_fallthru
        _
      // Predicated region
      $region29: #{residual_block_forward.5} parent=23 // pred_check
        %p163 = pneg %p56
      $region30: #{residual_block_forward.5} parent=23 // pred_check_branch
        %165 = sbr.rel (%p163) target = $region32
      $region31: #{residual_block_forward.5} parent=23 // pred_region
        %p166 = scmp.lt.s32.totalorder %s10, 1
        %s167 = scalar_select %p166, %s10, 1
        %s168 = smul.addr %s167, 32
        %s169 = smul.addr %s168, 8
        %s170 = scalar_lea.vmem %s1, %s169
      $region32: #{residual_block_forward.5} parent=23 // pred_fallthru
        _
    $region24: #{residual_block_forward.5} parent=5 // pred_fallthru
      _
    %p171 = scmp.le.s32.totalorder 1, %s10
    %p172 = scmp.lt.s32.totalorder %s10, 3
    %p173 = pnand %p171, %p172
    %p174 = pneg %p173
    // Predicated region
    $region33: #{residual_block_forward.5} parent=5 // pred_check
      _
    $region34: #{residual_block_forward.5} parent=5 // pred_check_branch
      %176 = sbr.rel (%p173) target = $region36
    $region35: #{residual_block_forward.5} parent=5 // pred_region
      %s177 = ssub.s32 %s10, 1
      %p178 = scmp.lt.s32.totalorder %s15, 1
      %s179 = scalar_select %p178, %s15, 1
      %s180 = smul.addr %s179, 32
      %s181 = smul.addr %s180, 4
      %s182 = scalar_lea.vmem %s0, %s181
      %p183 = pneg %p36
      %p184 = pneg %p33
      %p185 = scmp.lt.s32.totalorder %s15, 1
      %s186 = scalar_select %p185, %s15, 1
      %s187 = smul.addr %s186, 32
      %s188 = smul.addr %s187, 8
      %s189 = scalar_lea.vmem %s1, %s188
      %p190 = pneg %p62
      %p191 = pneg %p59
      %p192 = pneg %p83
      %p193 = pneg %p80
      %p194 = pneg %p104
      %p195 = pneg %p101
      %p196 = pneg %p130
      %p197 = pneg %p127
      %p198 = scmp.lt.s32.totalorder %s15, 1
      %s199 = scalar_select %p198, %s15, 1
      %s200 = smul.addr %s199, 32
      %s201 = smul.addr %s200, 8
      %s202 = scalar_lea.vmem %s4, %s201
      %p203 = scmp.lt.s32.totalorder %s15, 1
      %s204 = scalar_select %p203, %s15, 1
      %s205 = smul.addr %s204, 32
      %s206 = smul.addr %s205, 4
      %s207 = scalar_lea.vmem %s0, %s206
      %p208 = scmp.lt.s32.totalorder %s15, 1
      %s209 = scalar_select %p208, %s15, 1
      %s210 = smul.addr %s209, 32
      %s211 = smul.addr %s210, 8
      %s212 = scalar_lea.vmem %s1, %s211
      %p213 = scmp.lt.s32.totalorder %s15, 1
      %s214 = scalar_select %p213, %s15, 1
      %s215 = smul.addr %s214, 32
      %s216 = smul.addr %s215, 8
      %s217 = scalar_lea.vmem %s4, %s216
      %v218 = vld [vmem:[%s207] sm:$0xf]
      %v219 = vld [vmem:[%s207 + $0x4] sm:$0xf]
      %v220 = vld [vmem:[%s207 + $0x8] sm:$0xf]
      %v221 = vld [vmem:[%s207 + $0xc] sm:$0xf]
      %v222 = vld [vmem:[%s207 + $0x10] sm:$0xf]
      %v223 = vld [vmem:[%s207 + $0x14] sm:$0xf]
      %v224 = vld [vmem:[%s207 + $0x18] sm:$0xf]
      %v225 = vld [vmem:[%s207 + $0x1c] sm:$0xf]
      %v226 = vld [vmem:[%s207 + $0x20] sm:$0xf]
      %v227 = vld [vmem:[%s207 + $0x24] sm:$0xf]
      %v228 = vld [vmem:[%s207 + $0x28] sm:$0xf]
      %v229 = vld [vmem:[%s207 + $0x2c] sm:$0xf]
      %v230 = vld [vmem:[%s207 + $0x30] sm:$0xf]
      %v231 = vld [vmem:[%s207 + $0x34] sm:$0xf]
      %v232 = vld [vmem:[%s207 + $0x38] sm:$0xf]
      %v233 = vld [vmem:[%s207 + $0x3c] sm:$0xf]
      %v234 = vld [vmem:[%s207 + $0x40] sm:$0xf]
      %v235 = vld [vmem:[%s207 + $0x44] sm:$0xf]
      %v236 = vld [vmem:[%s207 + $0x48] sm:$0xf]
      %v237 = vld [vmem:[%s207 + $0x4c] sm:$0xf]
      %v238 = vld [vmem:[%s207 + $0x50] sm:$0xf]
      %v239 = vld [vmem:[%s207 + $0x54] sm:$0xf]
      %v240 = vld [vmem:[%s207 + $0x58] sm:$0xf]
      %v241 = vld [vmem:[%s207 + $0x5c] sm:$0xf]
      %v242 = vld [vmem:[%s207 + $0x60] sm:$0xf]
      %v243 = vld [vmem:[%s207 + $0x64] sm:$0xf]
      %v244 = vld [vmem:[%s207 + $0x68] sm:$0xf]
      %v245 = vld [vmem:[%s207 + $0x6c] sm:$0xf]
      %v246 = vld [vmem:[%s207 + $0x70] sm:$0xf]
      %v247 = vld [vmem:[%s207 + $0x74] sm:$0xf]
      %v248 = vld [vmem:[%s207 + $0x78] sm:$0xf]
      %v249 = vld [vmem:[%s207 + $0x7c] sm:$0xf]
      %v250 = vunpack.c.l.bf16 %v218
      %v251 = vunpack.c.l.bf16 %v219
      %v252 = vunpack.c.l.bf16 %v220
      %v253 = vunpack.c.l.bf16 %v221
      %v254 = vunpack.c.l.bf16 %v222
      %v255 = vunpack.c.l.bf16 %v223
      %v256 = vunpack.c.l.bf16 %v224
      %v257 = vunpack.c.l.bf16 %v225
      %v258 = vunpack.c.l.bf16 %v226
      %v259 = vunpack.c.l.bf16 %v227
      %v260 = vunpack.c.l.bf16 %v228
      %v261 = vunpack.c.l.bf16 %v229
      %v262 = vunpack.c.l.bf16 %v230
      %v263 = vunpack.c.l.bf16 %v231
      %v264 = vunpack.c.l.bf16 %v232
      %v265 = vunpack.c.l.bf16 %v233
      %v266 = vunpack.c.l.bf16 %v234
      %v267 = vunpack.c.l.bf16 %v235
      %v268 = vunpack.c.l.bf16 %v236
      %v269 = vunpack.c.l.bf16 %v237
      %v270 = vunpack.c.l.bf16 %v238
      %v271 = vunpack.c.l.bf16 %v239
      %v272 = vunpack.c.l.bf16 %v240
      %v273 = vunpack.c.l.bf16 %v241
      %v274 = vunpack.c.l.bf16 %v242
      %v275 = vunpack.c.l.bf16 %v243
      %v276 = vunpack.c.l.bf16 %v244
      %v277 = vunpack.c.l.bf16 %v245
      %v278 = vunpack.c.l.bf16 %v246
      %v279 = vunpack.c.l.bf16 %v247
      %v280 = vunpack.c.l.bf16 %v248
      %v281 = vunpack.c.l.bf16 %v249
      %v282 = vld [vmem:[%s2] sm:$0x1]
      %v284 = vlaneseq
      %v285 = vshrl.u32 %v284, 7
      %v286 = vsub.s32 0, %v285
      %v287 = vrot.slane %v282, %v286
      %v289 = vmul.f32 %v250, %v287
      %v290 = vmul.f32 %v251, %v287
      %v291 = vmul.f32 %v252, %v287
      %v292 = vmul.f32 %v253, %v287
      %v293 = vmul.f32 %v254, %v287
      %v294 = vmul.f32 %v255, %v287
      %v295 = vmul.f32 %v256, %v287
      %v296 = vmul.f32 %v257, %v287
      %v297 = vmul.f32 %v258, %v287
      %v298 = vmul.f32 %v259, %v287
      %v299 = vmul.f32 %v260, %v287
      %v300 = vmul.f32 %v261, %v287
      %v301 = vmul.f32 %v262, %v287
      %v302 = vmul.f32 %v263, %v287
      %v303 = vmul.f32 %v264, %v287
      %v304 = vmul.f32 %v265, %v287
      %v305 = vmul.f32 %v266, %v287
      %v306 = vmul.f32 %v267, %v287
      %v307 = vmul.f32 %v268, %v287
      %v308 = vmul.f32 %v269, %v287
      %v309 = vmul.f32 %v270, %v287
      %v310 = vmul.f32 %v271, %v287
      %v311 = vmul.f32 %v272, %v287
      %v312 = vmul.f32 %v273, %v287
      %v313 = vmul.f32 %v274, %v287
      %v314 = vmul.f32 %v275, %v287
      %v315 = vmul.f32 %v276, %v287
      %v316 = vmul.f32 %v277, %v287
      %v317 = vmul.f32 %v278, %v287
      %v318 = vmul.f32 %v279, %v287
      %v319 = vmul.f32 %v280, %v287
      %v320 = vmul.f32 %v281, %v287
      %v321 = vld [vmem:[%s3] sm:$0x1]
      %v323 = vlaneseq
      %v324 = vshrl.u32 %v323, 7
      %v325 = vsub.s32 0, %v324
      %v326 = vrot.slane %v321, %v325
      %v328 = vadd.f32 %v289, %v326
      %v329 = vadd.f32 %v290, %v326
      %v330 = vadd.f32 %v291, %v326
      %v331 = vadd.f32 %v292, %v326
      %v332 = vadd.f32 %v293, %v326
      %v333 = vadd.f32 %v294, %v326
      %v334 = vadd.f32 %v295, %v326
      %v335 = vadd.f32 %v296, %v326
      %v336 = vadd.f32 %v297, %v326
      %v337 = vadd.f32 %v298, %v326
      %v338 = vadd.f32 %v299, %v326
      %v339 = vadd.f32 %v300, %v326
      %v340 = vadd.f32 %v301, %v326
      %v341 = vadd.f32 %v302, %v326
      %v342 = vadd.f32 %v303, %v326
      %v343 = vadd.f32 %v304, %v326
      %v344 = vadd.f32 %v305, %v326
      %v345 = vadd.f32 %v306, %v326
      %v346 = vadd.f32 %v307, %v326
      %v347 = vadd.f32 %v308, %v326
      %v348 = vadd.f32 %v309, %v326
      %v349 = vadd.f32 %v310, %v326
      %v350 = vadd.f32 %v311, %v326
      %v351 = vadd.f32 %v312, %v326
      %v352 = vadd.f32 %v313, %v326
      %v353 = vadd.f32 %v314, %v326
      %v354 = vadd.f32 %v315, %v326
      %v355 = vadd.f32 %v316, %v326
      %v356 = vadd.f32 %v317, %v326
      %v357 = vadd.f32 %v318, %v326
      %v358 = vadd.f32 %v319, %v326
      %v359 = vadd.f32 %v320, %v326
      %v360 = vld [vmem:[%s212] sm:$0xff]
      %v361 = vld [vmem:[%s212 + $0x8] sm:$0xff]
      %v362 = vld [vmem:[%s212 + $0x10] sm:$0xff]
      %v363 = vld [vmem:[%s212 + $0x18] sm:$0xff]
      %v364 = vld [vmem:[%s212 + $0x20] sm:$0xff]
      %v365 = vld [vmem:[%s212 + $0x28] sm:$0xff]
      %v366 = vld [vmem:[%s212 + $0x30] sm:$0xff]
      %v367 = vld [vmem:[%s212 + $0x38] sm:$0xff]
      %v368 = vld [vmem:[%s212 + $0x40] sm:$0xff]
      %v369 = vld [vmem:[%s212 + $0x48] sm:$0xff]
      %v370 = vld [vmem:[%s212 + $0x50] sm:$0xff]
      %v371 = vld [vmem:[%s212 + $0x58] sm:$0xff]
      %v372 = vld [vmem:[%s212 + $0x60] sm:$0xff]
      %v373 = vld [vmem:[%s212 + $0x68] sm:$0xff]
      %v374 = vld [vmem:[%s212 + $0x70] sm:$0xff]
      %v375 = vld [vmem:[%s212 + $0x78] sm:$0xff]
      %v376 = vld [vmem:[%s212 + $0x80] sm:$0xff]
      %v377 = vld [vmem:[%s212 + $0x88] sm:$0xff]
      %v378 = vld [vmem:[%s212 + $0x90] sm:$0xff]
      %v379 = vld [vmem:[%s212 + $0x98] sm:$0xff]
      %v380 = vld [vmem:[%s212 + $0xa0] sm:$0xff]
      %v381 = vld [vmem:[%s212 + $0xa8] sm:$0xff]
      %v382 = vld [vmem:[%s212 + $0xb0] sm:$0xff]
      %v383 = vld [vmem:[%s212 + $0xb8] sm:$0xff]
      %v384 = vld [vmem:[%s212 + $0xc0] sm:$0xff]
      %v385 = vld [vmem:[%s212 + $0xc8] sm:$0xff]
      %v386 = vld [vmem:[%s212 + $0xd0] sm:$0xff]
      %v387 = vld [vmem:[%s212 + $0xd8] sm:$0xff]
      %v388 = vld [vmem:[%s212 + $0xe0] sm:$0xff]
      %v389 = vld [vmem:[%s212 + $0xe8] sm:$0xff]
      %v390 = vld [vmem:[%s212 + $0xf0] sm:$0xff]
      %v391 = vld [vmem:[%s212 + $0xf8] sm:$0xff]
      %v392 = vadd.f32 %v328, %v360
      %v393 = vadd.f32 %v329, %v361
      %v394 = vadd.f32 %v330, %v362
      %v395 = vadd.f32 %v331, %v363
      %v396 = vadd.f32 %v332, %v364
      %v397 = vadd.f32 %v333, %v365
      %v398 = vadd.f32 %v334, %v366
      %v399 = vadd.f32 %v335, %v367
      %v400 = vadd.f32 %v336, %v368
      %v401 = vadd.f32 %v337, %v369
      %v402 = vadd.f32 %v338, %v370
      %v403 = vadd.f32 %v339, %v371
      %v404 = vadd.f32 %v340, %v372
      %v405 = vadd.f32 %v341, %v373
      %v406 = vadd.f32 %v342, %v374
      %v407 = vadd.f32 %v343, %v375
      %v408 = vadd.f32 %v344, %v376
      %v409 = vadd.f32 %v345, %v377
      %v410 = vadd.f32 %v346, %v378
      %v411 = vadd.f32 %v347, %v379
      %v412 = vadd.f32 %v348, %v380
      %v413 = vadd.f32 %v349, %v381
      %v414 = vadd.f32 %v350, %v382
      %v415 = vadd.f32 %v351, %v383
      %v416 = vadd.f32 %v352, %v384
      %v417 = vadd.f32 %v353, %v385
      %v418 = vadd.f32 %v354, %v386
      %v419 = vadd.f32 %v355, %v387
      %v420 = vadd.f32 %v356, %v388
      %v421 = vadd.f32 %v357, %v389
      %v422 = vadd.f32 %v358, %v390
      %v423 = vadd.f32 %v359, %v391
      %v424 = vmax.f32 %v392, 0.0
      %v425 = vmax.f32 %v393, 0.0
      %v426 = vmax.f32 %v394, 0.0
      %v427 = vmax.f32 %v395, 0.0
      %v428 = vmax.f32 %v396, 0.0
      %v429 = vmax.f32 %v397, 0.0
      %v430 = vmax.f32 %v398, 0.0
      %v431 = vmax.f32 %v399, 0.0
      %v432 = vmax.f32 %v400, 0.0
      %v433 = vmax.f32 %v401, 0.0
      %v434 = vmax.f32 %v402, 0.0
      %v435 = vmax.f32 %v403, 0.0
      %v436 = vmax.f32 %v404, 0.0
      %v437 = vmax.f32 %v405, 0.0
      %v438 = vmax.f32 %v406, 0.0
      %v439 = vmax.f32 %v407, 0.0
      %v440 = vmax.f32 %v408, 0.0
      %v441 = vmax.f32 %v409, 0.0
      %v442 = vmax.f32 %v410, 0.0
      %v443 = vmax.f32 %v411, 0.0
      %v444 = vmax.f32 %v412, 0.0
      %v445 = vmax.f32 %v413, 0.0
      %v446 = vmax.f32 %v414, 0.0
      %v447 = vmax.f32 %v415, 0.0
      %v448 = vmax.f32 %v416, 0.0
      %v449 = vmax.f32 %v417, 0.0
      %v450 = vmax.f32 %v418, 0.0
      %v451 = vmax.f32 %v419, 0.0
      %v452 = vmax.f32 %v420, 0.0
      %v453 = vmax.f32 %v421, 0.0
      %v454 = vmax.f32 %v422, 0.0
      %v455 = vmax.f32 %v423, 0.0
      %vm456 = vcmask 64512
      %457 = vst.msk [vmem:[%s217] sm:$0xff] %vm456, %v424
      %458 = vst.msk [vmem:[%s217 + $0x8] sm:$0xff] %vm456, %v425
      %459 = vst.msk [vmem:[%s217 + $0x10] sm:$0xff] %vm456, %v426
      %460 = vst.msk [vmem:[%s217 + $0x18] sm:$0xff] %vm456, %v427
      %461 = vst.msk [vmem:[%s217 + $0x20] sm:$0xff] %vm456, %v428
      %462 = vst.msk [vmem:[%s217 + $0x28] sm:$0xff] %vm456, %v429
      %463 = vst.msk [vmem:[%s217 + $0x30] sm:$0xff] %vm456, %v430
      %464 = vst.msk [vmem:[%s217 + $0x38] sm:$0xff] %vm456, %v431
      %465 = vst.msk [vmem:[%s217 + $0x40] sm:$0xff] %vm456, %v432
      %466 = vst.msk [vmem:[%s217 + $0x48] sm:$0xff] %vm456, %v433
      %467 = vst.msk [vmem:[%s217 + $0x50] sm:$0xff] %vm456, %v434
      %468 = vst.msk [vmem:[%s217 + $0x58] sm:$0xff] %vm456, %v435
      %469 = vst.msk [vmem:[%s217 + $0x60] sm:$0xff] %vm456, %v436
      %470 = vst.msk [vmem:[%s217 + $0x68] sm:$0xff] %vm456, %v437
      %471 = vst.msk [vmem:[%s217 + $0x70] sm:$0xff] %vm456, %v438
      %472 = vst.msk [vmem:[%s217 + $0x78] sm:$0xff] %vm456, %v439
      %473 = vst.msk [vmem:[%s217 + $0x80] sm:$0xff] %vm456, %v440
      %474 = vst.msk [vmem:[%s217 + $0x88] sm:$0xff] %vm456, %v441
      %475 = vst.msk [vmem:[%s217 + $0x90] sm:$0xff] %vm456, %v442
      %476 = vst.msk [vmem:[%s217 + $0x98] sm:$0xff] %vm456, %v443
      %477 = vst.msk [vmem:[%s217 + $0xa0] sm:$0xff] %vm456, %v444
      %478 = vst.msk [vmem:[%s217 + $0xa8] sm:$0xff] %vm456, %v445
      %479 = vst.msk [vmem:[%s217 + $0xb0] sm:$0xff] %vm456, %v446
      %480 = vst.msk [vmem:[%s217 + $0xb8] sm:$0xff] %vm456, %v447
      %481 = vst.msk [vmem:[%s217 + $0xc0] sm:$0xff] %vm456, %v448
      %482 = vst.msk [vmem:[%s217 + $0xc8] sm:$0xff] %vm456, %v449
      %483 = vst.msk [vmem:[%s217 + $0xd0] sm:$0xff] %vm456, %v450
      %484 = vst.msk [vmem:[%s217 + $0xd8] sm:$0xff] %vm456, %v451
      %485 = vst.msk [vmem:[%s217 + $0xe0] sm:$0xff] %vm456, %v452
      %486 = vst.msk [vmem:[%s217 + $0xe8] sm:$0xff] %vm456, %v453
      %487 = vst.msk [vmem:[%s217 + $0xf0] sm:$0xff] %vm456, %v454
      %488 = vst.msk [vmem:[%s217 + $0xf8] sm:$0xff] %vm456, %v455
      %p489 = scmp.lt.s32.totalorder %s15, 1
      %s490 = scalar_select %p489, %s15, 1
      %s491 = smul.addr %s490, 32
      %s492 = smul.addr %s491, 8
      %s493 = scalar_lea.vmem %s4, %s492
      // Predicated region
      $region37: #{residual_block_forward.5} parent=35 // pred_check
        %p494 = pneg %p127
      $region38: #{residual_block_forward.5} parent=35 // pred_check_branch
        %496 = sbr.rel (%p494) target = $region40
      $region39: #{residual_block_forward.5} parent=35 // pred_region
        _
      $region40: #{residual_block_forward.5} parent=35 // pred_fallthru
        _
    $region36: #{residual_block_forward.5} parent=5 // pred_fallthru
      _
    %p497 = scmp.le.s32.totalorder 2, %s10
    // Predicated region
    $region41: #{residual_block_forward.5} parent=5 // pred_check
      %p498 = pneg %p497
    $region42: #{residual_block_forward.5} parent=5 // pred_check_branch
      %500 = sbr.rel (%p498) target = $region44
    $region43: #{residual_block_forward.5} parent=5 // pred_region
      %s501 = ssub.s32 %s10, 2
      // Predicated region
      $region45: #{residual_block_forward.5} parent=43 // pred_check
        %p502 = pneg %p133
      $region46: #{residual_block_forward.5} parent=43 // pred_check_branch
        %504 = sbr.rel (%p502) target = $region48
      $region47: #{residual_block_forward.5} parent=43 // pred_region
        %p505 = scmp.lt.s32.totalorder %s16, 1
        %s506 = scalar_select %p505, %s16, 1
        %s507 = smul.addr %s506, 32
        %s508 = smul.addr %s507, 8
        %s509 = scalar_lea.vmem %s4, %s508
      $region48: #{residual_block_forward.5} parent=43 // pred_fallthru
        _
    $region44: #{residual_block_forward.5} parent=5 // pred_fallthru
      _
  $region6: #{residual_block_forward.5} parent=0 // loop_footer
    %s14 = sadd.s32 1, %s10
  $region7: #{residual_block_forward.5} parent=0 // loop_footer_branch
    %9 = sbr.rel target = $region3
  $region8: #{residual_block_forward.5} parent=0 // loop_exit
    _

// kernel: residual_block_forward.3
$region0: #{residual_block_forward.3}
  #allocation0 [shape = 'u32[]', space=smem, size = 0x4, offset = 0x4, fixed_abs, tag = 'smem constant byte address 0x4 - core index']
  #allocation1 [shape = 'u32[144,128]{1,0:T(1,128)}', space=vmem, size = 0x12000, scoped, tag = 'internal scratch']
  #allocation2 [shape = 'f32[18,18,128]{2,1,0:T(8,128)}', space=vmem, size = 0x36000, scoped, tag = 'scratch operand']
  %s0 = inlined_call_operand.vmem [shape: f32[2,16,16,8], index: 0, kind: input, shape index: {}]
  %s1 = inlined_call_operand.vmem [shape: bf16[3,384,128], index: 1, kind: input, shape index: {}]
  %s2 = inlined_call_operand.vmem [shape: bf16[2,16,16,128], index: 2, kind: output, shape index: {0}]
  %s3 = inlined_call_operand.vmem [shape: f32[2,2,128], index: 3, kind: output, shape index: {1}]
  %4 = xla_tuple %s2, %s3
  %s5 = sld [smem:[#allocation0]]
  $region49: #{residual_block_forward.3} parent=0
    _
  %s7 = ssub.s32 1, %s5
  %s8 = scalar_select 0, %s7, %s5
  loop: start=0, step=1, limit=4
  $region2: #{residual_block_forward.3} parent=0 // loop_pre_header
    _
  $region3: #{residual_block_forward.3} parent=0 // loop_header
    %s10 = sphi 0, %s14
    %p11 = scmp.ge.s32.totalorder %s10, 4
    %s20 = sphi 0, %s22
    %s23 = sphi 0, %s20
    %s24 = sphi 0, %s23
    %s40 = sphi 0, %s24
    %s44 = sphi 0, %s44
    %s46 = sphi 0, %s44
    %s47 = sphi 0, %s46
    %s61 = sphi 0, %s47
    %s67 = sphi 0, %s69
    %s70 = sphi 0, %s67
    %s71 = sphi 0, %s70
    %s87 = sphi 0, %s71
    %s93 = sphi 0, %s95
    %s96 = sphi 0, %s93
    %s97 = sphi 0, %s96
    %s113 = sphi 0, %s97
  $region4: #{residual_block_forward.3} parent=0 // loop_header_branch
    %13 = sbr.rel (%p11) target = $region8
  $region5: #{residual_block_forward.3} parent=0 // loop_body
    %s15 = ssub.s32 %s10, 1
    %s16 = ssub.s32 %s10, 2
    %s17 = sadd.s32 %s10, 1
    %s18 = ssub.s32 %s10, %s17
    %p19 = scmp.eq.s32.totalorder %s18, 0
    %s21 = sadd.s32 %s20, 1
    %s22 = scalar_select %p19, %s20, %s21
    %p25 = pneg %p19
    %p26 = scmp.eq.s32.totalorder %s10, 1
    %p27 = por %p25, %p26
    %p28 = scmp.ne.s32.totalorder %s20, %s23
    %p29 = scmp.eq.s32.totalorder %s10, 0
    %p30 = por %p28, %p29
    %p31 = scmp.ne.s32.totalorder %s20, %s23
    %p32 = scmp.eq.s32.totalorder %s15, 1
    %p33 = por %p31, %p32
    %p34 = scmp.ne.s32.totalorder %s23, %s24
    %p35 = scmp.eq.s32.totalorder %s15, 0
    %p36 = por %p34, %p35
    %p37 = scmp.ne.s32.totalorder %s23, %s24
    %p38 = scmp.eq.s32.totalorder %s16, 1
    %p39 = por %p37, %p38
    %p41 = scmp.ne.s32.totalorder %s24, %s40
    %p42 = scmp.eq.s32.totalorder %s16, 0
    %p43 = por %p41, %p42
    %s45 = sadd.s32 %s44, 1
    %p48 = scmp.eq.s32.totalorder %s10, 1
    %p49 = scmp.ne.s32.totalorder %s44, %s46
    %p50 = scmp.eq.s32.totalorder %s10, 0
    %p51 = por %p49, %p50
    %p52 = scmp.ne.s32.totalorder %s44, %s46
    %p53 = scmp.eq.s32.totalorder %s15, 1
    %p54 = por %p52, %p53
    %p55 = scmp.ne.s32.totalorder %s46, %s47
    %p56 = scmp.eq.s32.totalorder %s15, 0
    %p57 = por %p55, %p56
    %p58 = scmp.ne.s32.totalorder %s46, %s47
    %p59 = scmp.eq.s32.totalorder %s16, 1
    %p60 = por %p58, %p59
    %p62 = scmp.ne.s32.totalorder %s47, %s61
    %p63 = scmp.eq.s32.totalorder %s16, 0
    %p64 = por %p62, %p63
    %s65 = ssub.s32 %s10, %s17
    %p66 = scmp.eq.s32.totalorder %s65, 0
    %s68 = sadd.s32 %s67, 1
    %s69 = scalar_select %p66, %s67, %s68
    %p72 = pneg %p66
    %p73 = scmp.eq.s32.totalorder %s10, 1
    %p74 = por %p72, %p73
    %p75 = scmp.ne.s32.totalorder %s67, %s70
    %p76 = scmp.eq.s32.totalorder %s10, 0
    %p77 = por %p75, %p76
    %p78 = scmp.ne.s32.totalorder %s67, %s70
    %p79 = scmp.eq.s32.totalorder %s15, 1
    %p80 = por %p78, %p79
    %p81 = scmp.ne.s32.totalorder %s70, %s71
    %p82 = scmp.eq.s32.totalorder %s15, 0
    %p83 = por %p81, %p82
    %p84 = scmp.ne.s32.totalorder %s70, %s71
    %p85 = scmp.eq.s32.totalorder %s16, 1
    %p86 = por %p84, %p85
    %p88 = scmp.ne.s32.totalorder %s71, %s87
    %p89 = scmp.eq.s32.totalorder %s16, 0
    %p90 = por %p88, %p89
    %s91 = ssub.s32 %s10, %s17
    %p92 = scmp.eq.s32.totalorder %s91, 0
    %s94 = sadd.s32 %s93, 1
    %s95 = scalar_select %p92, %s93, %s94
    %p98 = pneg %p92
    %p99 = scmp.eq.s32.totalorder %s10, 1
    %p100 = por %p98, %p99
    %p101 = scmp.ne.s32.totalorder %s93, %s96
    %p102 = scmp.eq.s32.totalorder %s10, 0
    %p103 = por %p101, %p102
    %p104 = scmp.ne.s32.totalorder %s93, %s96
    %p105 = scmp.eq.s32.totalorder %s15, 1
    %p106 = por %p104, %p105
    %p107 = scmp.ne.s32.totalorder %s96, %s97
    %p108 = scmp.eq.s32.totalorder %s15, 0
    %p109 = por %p107, %p108
    %p110 = scmp.ne.s32.totalorder %s96, %s97
    %p111 = scmp.eq.s32.totalorder %s16, 1
    %p112 = por %p110, %p111
    %p114 = scmp.ne.s32.totalorder %s97, %s113
    %p115 = scmp.eq.s32.totalorder %s16, 0
    %p116 = por %p114, %p115
    %p117 = scmp.le.s32.totalorder 1, %s10
    %p118 = scmp.lt.s32.totalorder %s10, 3
    %p119 = pnand %p117, %p118
    %p120 = pneg %p119
    // Predicated region
    $region9: #{residual_block_forward.3} parent=5 // pred_check
      _
    $region10: #{residual_block_forward.3} parent=5 // pred_check_branch
      %122 = sbr.rel (%p119) target = $region12
    $region11: #{residual_block_forward.3} parent=5 // pred_region
      %s123 = ssub.s32 %s10, 1
      // Predicated region
      $region13: #{residual_block_forward.3} parent=11 // pred_check
        %p124 = pneg %p57
      $region14: #{residual_block_forward.3} parent=11 // pred_check_branch
        %126 = sbr.rel (%p124) target = $region16
      $region15: #{residual_block_forward.3} parent=11 // pred_region
        _
      $region16: #{residual_block_forward.3} parent=11 // pred_fallthru
        _
    $region12: #{residual_block_forward.3} parent=5 // pred_fallthru
      _
    %p127 = scmp.lt.s32.totalorder %s10, 2
    // Predicated region
    $region17: #{residual_block_forward.3} parent=5 // pred_check
      %p128 = pneg %p127
    $region18: #{residual_block_forward.3} parent=5 // pred_check_branch
      %130 = sbr.rel (%p128) target = $region20
    $region19: #{residual_block_forward.3} parent=5 // pred_region
      // Predicated region
      $region21: #{residual_block_forward.3} parent=19 // pred_check
        %p131 = pneg %p30
      $region22: #{residual_block_forward.3} parent=19 // pred_check_branch
        %133 = sbr.rel (%p131) target = $region24
      $region23: #{residual_block_forward.3} parent=19 // pred_region
        %p134 = scmp.lt.s32.totalorder %s10, 1
        %s135 = scalar_select %p134, %s10, 1
        %s136 = smul.addr %s135, 32
        %s137 = smul.addr %s136, 8
        %s138 = scalar_lea.vmem %s0, %s137
      $region24: #{residual_block_forward.3} parent=19 // pred_fallthru
        _
    $region20: #{residual_block_forward.3} parent=5 // pred_fallthru
      _
    %p139 = scmp.le.s32.totalorder 1, %s10
    %p140 = scmp.lt.s32.totalorder %s10, 3
    %p141 = pnand %p139, %p140
    %p142 = pneg %p141
    // Predicated region
    $region25: #{residual_block_forward.3} parent=5 // pred_check
      _
    $region26: #{residual_block_forward.3} parent=5 // pred_check_branch
      %144 = sbr.rel (%p141) target = $region28
    $region27: #{residual_block_forward.3} parent=5 // pred_region
      %s145 = ssub.s32 %s10, 1
      %p146 = scmp.lt.s32.totalorder %s15, 1
      %s147 = scalar_select %p146, %s15, 1
      %s148 = smul.addr %s147, 32
      %s149 = smul.addr %s148, 8
      %s150 = scalar_lea.vmem %s0, %s149
      %p151 = pneg %p36
      %p152 = pneg %p33
      %p153 = pneg %p57
      %p154 = pneg %p54
      %p155 = pneg %p83
      %p156 = pneg %p80
      %p157 = scmp.lt.s32.totalorder %s15, 1
      %s158 = scalar_select %p157, %s15, 1
      %s159 = smul.addr %s158, 32
      %s160 = smul.addr %s159, 4
      %s161 = scalar_lea.vmem %s2, %s160
      %p162 = pneg %p109
      %p163 = pneg %p106
      %p164 = scmp.lt.s32.totalorder %s15, 1
      %s165 = scalar_select %p164, %s15, 1
      %s166 = smul.addr %s165, 2
      %s167 = scalar_lea.vmem %s3, %s166
      %p168 = scmp.lt.s32.totalorder %s15, 1
      %s169 = scalar_select %p168, %s15, 1
      %s170 = smul.addr %s169, 32
      %s171 = smul.addr %s170, 8
      %s172 = scalar_lea.vmem %s0, %s171
      %p173 = scmp.lt.s32.totalorder %s15, 1
      %s174 = scalar_select %p173, %s15, 1
      %s175 = smul.addr %s174, 32
      %s176 = smul.addr %s175, 4
      %s177 = scalar_lea.vmem %s2, %s176
      %p178 = scmp.lt.s32.totalorder %s15, 1
      %s179 = scalar_select %p178, %s15, 1
      %s180 = smul.addr %s179, 2
      %s181 = scalar_lea.vmem %s3, %s180
      %v183 = vld [vmem:[%s172] sm:$0xff]
      %v184 = vld [vmem:[%s172 + $0x8] sm:$0xff]
      %v185 = vld [vmem:[%s172 + $0x10] sm:$0xff]
      %v186 = vld [vmem:[%s172 + $0x18] sm:$0xff]
      %v187 = vld [vmem:[%s172 + $0x20] sm:$0xff]
      %v188 = vld [vmem:[%s172 + $0x28] sm:$0xff]
      %v189 = vld [vmem:[%s172 + $0x30] sm:$0xff]
      %v190 = vld [vmem:[%s172 + $0x38] sm:$0xff]
      %v191 = vld [vmem:[%s172 + $0x40] sm:$0xff]
      %v192 = vld [vmem:[%s172 + $0x48] sm:$0xff]
      %v193 = vld [vmem:[%s172 + $0x50] sm:$0xff]
      %v194 = vld [vmem:[%s172 + $0x58] sm:$0xff]
      %v195 = vld [vmem:[%s172 + $0x60] sm:$0xff]
      %v196 = vld [vmem:[%s172 + $0x68] sm:$0xff]
      %v197 = vld [vmem:[%s172 + $0x70] sm:$0xff]
      %v198 = vld [vmem:[%s172 + $0x78] sm:$0xff]
      %v199 = vld [vmem:[%s172 + $0x80] sm:$0xff]
      %v200 = vld [vmem:[%s172 + $0x88] sm:$0xff]
      %v201 = vld [vmem:[%s172 + $0x90] sm:$0xff]
      %v202 = vld [vmem:[%s172 + $0x98] sm:$0xff]
      %v203 = vld [vmem:[%s172 + $0xa0] sm:$0xff]
      %v204 = vld [vmem:[%s172 + $0xa8] sm:$0xff]
      %v205 = vld [vmem:[%s172 + $0xb0] sm:$0xff]
      %v206 = vld [vmem:[%s172 + $0xb8] sm:$0xff]
      %v207 = vld [vmem:[%s172 + $0xc0] sm:$0xff]
      %v208 = vld [vmem:[%s172 + $0xc8] sm:$0xff]
      %v209 = vld [vmem:[%s172 + $0xd0] sm:$0xff]
      %v210 = vld [vmem:[%s172 + $0xd8] sm:$0xff]
      %v211 = vld [vmem:[%s172 + $0xe0] sm:$0xff]
      %v212 = vld [vmem:[%s172 + $0xe8] sm:$0xff]
      %v213 = vld [vmem:[%s172 + $0xf0] sm:$0xff]
      %v214 = vld [vmem:[%s172 + $0xf8] sm:$0xff]
      %vm215 = vcmask 64512
      %v216 = vsel %vm215, %v183, 0.0
      %v217 = vsel %vm215, %v184, 0.0
      %v218 = vsel %vm215, %v185, 0.0
      %v219 = vsel %vm215, %v186, 0.0
      %v220 = vsel %vm215, %v187, 0.0
      %v221 = vsel %vm215, %v188, 0.0
      %v222 = vsel %vm215, %v189, 0.0
      %v223 = vsel %vm215, %v190, 0.0
      %v224 = vsel %vm215, %v191, 0.0
      %v225 = vsel %vm215, %v192, 0.0
      %v226 = vsel %vm215, %v193, 0.0
      %v227 = vsel %vm215, %v194, 0.0
      %v228 = vsel %vm215, %v195, 0.0
      %v229 = vsel %vm215, %v196, 0.0
      %v230 = vsel %vm215, %v197, 0.0
      %v231 = vsel %vm215, %v198, 0.0
      %v232 = vsel %vm215, %v199, 0.0
      %v233 = vsel %vm215, %v200, 0.0
      %v234 = vsel %vm215, %v201, 0.0
      %v235 = vsel %vm215, %v202, 0.0
      %v236 = vsel %vm215, %v203, 0.0
      %v237 = vsel %vm215, %v204, 0.0
      %v238 = vsel %vm215, %v205, 0.0
      %v239 = vsel %vm215, %v206, 0.0
      %v240 = vsel %vm215, %v207, 0.0
      %v241 = vsel %vm215, %v208, 0.0
      %v242 = vsel %vm215, %v209, 0.0
      %v243 = vsel %vm215, %v210, 0.0
      %v244 = vsel %vm215, %v211, 0.0
      %v245 = vsel %vm215, %v212, 0.0
      %v246 = vsel %vm215, %v213, 0.0
      %v247 = vsel %vm215, %v214, 0.0
      %248 = vst [vmem:[#allocation2] sm:$0xff] 0.0
      %249 = vst [vmem:[#allocation2 + $0x8] sm:$0xff] 0.0
      %250 = vst [vmem:[#allocation2 + $0x10] sm:$0x3] 0.0
      %s251 = scalar_lea.vmem [#allocation2], 408
      %252 = vst [vmem:[%s251] sm:$0xff] 0.0
      %253 = vst [vmem:[%s251 + $0x8] sm:$0xff] 0.0
      %254 = vst [vmem:[%s251 + $0x10] sm:$0x3] 0.0
      %s255 = scalar_lea.vmem [#allocation2], 24
      %256 = vst [vmem:[%s255] sm:$0x1] 0.0
      %257 = vst [vmem:[%s255 + $0x18] sm:$0x1] 0.0
      %258 = vst [vmem:[%s255 + $0x30] sm:$0x1] 0.0
      %259 = vst [vmem:[%s255 + $0x48] sm:$0x1] 0.0
      %260 = vst [vmem:[%s255 + $0x60] sm:$0x1] 0.0
      %261 = vst [vmem:[%s255 + $0x78] sm:$0x1] 0.0
      %262 = vst [vmem:[%s255 + $0x90] sm:$0x1] 0.0
      %263 = vst [vmem:[%s255 + $0xa8] sm:$0x1] 0.0
      %264 = vst [vmem:[%s255 + $0xc0] sm:$0x1] 0.0
      %265 = vst [vmem:[%s255 + $0xd8] sm:$0x1] 0.0
      %266 = vst [vmem:[%s255 + $0xf0] sm:$0x1] 0.0
      %267 = vst [vmem:[%s255 + $0x108] sm:$0x1] 0.0
      %268 = vst [vmem:[%s255 + $0x120] sm:$0x1] 0.0
      %269 = vst [vmem:[%s255 + $0x138] sm:$0x1] 0.0
      %270 = vst [vmem:[%s255 + $0x150] sm:$0x1] 0.0
      %271 = vst [vmem:[%s255 + $0x168] sm:$0x1] 0.0
      %272 = vst [vmem:[%s255 + $0x11] sm:$0x1] 0.0
      %273 = vst [vmem:[%s255 + $0x29] sm:$0x1] 0.0
      %274 = vst [vmem:[%s255 + $0x41] sm:$0x1] 0.0
      %275 = vst [vmem:[%s255 + $0x59] sm:$0x1] 0.0
      %276 = vst [vmem:[%s255 + $0x71] sm:$0x1] 0.0
      %277 = vst [vmem:[%s255 + $0x89] sm:$0x1] 0.0
      %278 = vst [vmem:[%s255 + $0xa1] sm:$0x1] 0.0
      %279 = vst [vmem:[%s255 + $0xb9] sm:$0x1] 0.0
      %280 = vst [vmem:[%s255 + $0xd1] sm:$0x1] 0.0
      %281 = vst [vmem:[%s255 + $0xe9] sm:$0x1] 0.0
      %282 = vst [vmem:[%s255 + $0x101] sm:$0x1] 0.0
      %283 = vst [vmem:[%s255 + $0x119] sm:$0x1] 0.0
      %284 = vst [vmem:[%s255 + $0x131] sm:$0x1] 0.0
      %285 = vst [vmem:[%s255 + $0x149] sm:$0x1] 0.0
      %286 = vst [vmem:[%s255 + $0x161] sm:$0x1] 0.0
      %287 = vst [vmem:[%s255 + $0x179] sm:$0x1] 0.0
      %288 = vst [vmem:[%s255 + $0x1] sm:$0xff] %v216
      %289 = vst [vmem:[%s255 + $0x9] sm:$0xff] %v217
      %290 = vst [vmem:[%s255 + $0x19] sm:$0xff] %v218
      %291 = vst [vmem:[%s255 + $0x21] sm:$0xff] %v219
      %292 = vst [vmem:[%s255 + $0x31] sm:$0xff] %v220
      %293 = vst [vmem:[%s255 + $0x39] sm:$0xff] %v221
      %294 = vst [vmem:[%s255 + $0x49] sm:$0xff] %v222
      %295 = vst [vmem:[%s255 + $0x51] sm:$0xff] %v223
      %296 = vst [vmem:[%s255 + $0x61] sm:$0xff] %v224
      %297 = vst [vmem:[%s255 + $0x69] sm:$0xff] %v225
      %298 = vst [vmem:[%s255 + $0x79] sm:$0xff] %v226
      %299 = vst [vmem:[%s255 + $0x81] sm:$0xff] %v227
      %300 = vst [vmem:[%s255 + $0x91] sm:$0xff] %v228
      %301 = vst [vmem:[%s255 + $0x99] sm:$0xff] %v229
      %302 = vst [vmem:[%s255 + $0xa9] sm:$0xff] %v230
      %303 = vst [vmem:[%s255 + $0xb1] sm:$0xff] %v231
      %304 = vst [vmem:[%s255 + $0xc1] sm:$0xff] %v232
      %305 = vst [vmem:[%s255 + $0xc9] sm:$0xff] %v233
      %306 = vst [vmem:[%s255 + $0xd9] sm:$0xff] %v234
      %307 = vst [vmem:[%s255 + $0xe1] sm:$0xff] %v235
      %308 = vst [vmem:[%s255 + $0xf1] sm:$0xff] %v236
      %309 = vst [vmem:[%s255 + $0xf9] sm:$0xff] %v237
      %310 = vst [vmem:[%s255 + $0x109] sm:$0xff] %v238
      %311 = vst [vmem:[%s255 + $0x111] sm:$0xff] %v239
      %312 = vst [vmem:[%s255 + $0x121] sm:$0xff] %v240
      %313 = vst [vmem:[%s255 + $0x129] sm:$0xff] %v241
      %314 = vst [vmem:[%s255 + $0x139] sm:$0xff] %v242
      %315 = vst [vmem:[%s255 + $0x141] sm:$0xff] %v243
      %316 = vst [vmem:[%s255 + $0x151] sm:$0xff] %v244
      %317 = vst [vmem:[%s255 + $0x159] sm:$0xff] %v245
      %318 = vst [vmem:[%s255 + $0x169] sm:$0xff] %v246
      %319 = vst [vmem:[%s255 + $0x171] sm:$0xff] %v247
      %v320 = vld [vmem:[#allocation2] sm:$0xff]
      %v321 = vld [vmem:[#allocation2 + $0x8] sm:$0xff]
      %v322 = vld [vmem:[#allocation2 + $0x18] sm:$0xff]
      %v323 = vld [vmem:[#allocation2 + $0x20] sm:$0xff]
      %v324 = vld [vmem:[#allocation2 + $0x30] sm:$0xff]
      %v325 = vld [vmem:[#allocation2 + $0x38] sm:$0xff]
      %v326 = vld [vmem:[#allocation2 + $0x48] sm:$0xff]
      %v327 = vld [vmem:[#allocation2 + $0x50] sm:$0xff]
      %v328 = vld [vmem:[#allocation2 + $0x60] sm:$0xff]
      %v329 = vld [vmem:[#allocation2 + $0x68] sm:$0xff]
      %v330 = vld [vmem:[#allocation2 + $0x78] sm:$0xff]
      %v331 = vld [vmem:[#allocation2 + $0x80] sm:$0xff]
      %v332 = vld [vmem:[#allocation2 + $0x90] sm:$0xff]
      %v333 = vld [vmem:[#allocation2 + $0x98] sm:$0xff]
      %v334 = vld [vmem:[#allocation2 + $0xa8] sm:$0xff]
      %v335 = vld [vmem:[#allocation2 + $0xb0] sm:$0xff]
      %v336 = vld [vmem:[#allocation2 + $0xc0] sm:$0xff]
      %v337 = vld [vmem:[#allocation2 + $0xc8] sm:$0xff]
      %v338 = vld [vmem:[#allocation2 + $0xd8] sm:$0xff]
      %v339 = vld [vmem:[#allocation2 + $0xe0] sm:$0xff]
      %v340 = vld [vmem:[#allocation2 + $0xf0] sm:$0xff]
      %v341 = vld [vmem:[#allocation2 + $0xf8] sm:$0xff]
      %v342 = vld [vmem:[#allocation2 + $0x108] sm:$0xff]
      %v343 = vld [vmem:[#allocation2 + $0x110] sm:$0xff]
      %v344 = vld [vmem:[#allocation2 + $0x120] sm:$0xff]
      %v345 = vld [vmem:[#allocation2 + $0x128] sm:$0xff]
      %v346 = vld [vmem:[#allocation2 + $0x138] sm:$0xff]
      %v347 = vld [vmem:[#allocation2 + $0x140] sm:$0xff]
      %v348 = vld [vmem:[#allocation2 + $0x150] sm:$0xff]
      %v349 = vld [vmem:[#allocation2 + $0x158] sm:$0xff]
      %v350 = vld [vmem:[#allocation2 + $0x168] sm:$0xff]
      %v351 = vld [vmem:[#allocation2 + $0x170] sm:$0xff]
      %v352 = vpack.c.bf16 %v321, %v320
      %v353 = vpack.c.bf16 %v323, %v322
      %v354 = vpack.c.bf16 %v325, %v324
      %v355 = vpack.c.bf16 %v327, %v326
      %v356 = vpack.c.bf16 %v329, %v328
      %v357 = vpack.c.bf16 %v331, %v330
      %v358 = vpack.c.bf16 %v333, %v332
      %v359 = vpack.c.bf16 %v335, %v334
      %v360 = vpack.c.bf16 %v337, %v336
      %v361 = vpack.c.bf16 %v339, %v338
      %v362 = vpack.c.bf16 %v341, %v340
      %v363 = vpack.c.bf16 %v343, %v342
      %v364 = vpack.c.bf16 %v345, %v344
      %v365 = vpack.c.bf16 %v347, %v346
      %v366 = vpack.c.bf16 %v349, %v348
      %v367 = vpack.c.bf16 %v351, %v350
      %v368 = vld [vmem:[#allocation2 + $0x1] sm:$0xff]
      %v369 = vld [vmem:[#allocation2 + $0x9] sm:$0xff]
      %v370 = vld [vmem:[#allocation2 + $0x19] sm:$0xff]
      %v371 = vld [vmem:[#allocation2 + $0x21] sm:$0xff]
      %v372 = vld [vmem:[#allocation2 + $0x31] sm:$0xff]
      %v373 = vld [vmem:[#allocation2 + $0x39] sm:$0xff]
      %v374 = vld [vmem:[#allocation2 + $0x49] sm:$0xff]
      %v375 = vld [vmem:[#allocation2 + $0x51] sm:$0xff]
      %v376 = vld [vmem:[#allocation2 + $0x61] sm:$0xff]
      %v377 = vld [vmem:[#allocation2 + $0x69] sm:$0xff]
      %v378 = vld [vmem:[#allocation2 + $0x79] sm:$0xff]
      %v379 = vld [vmem:[#allocation2 + $0x81] sm:$0xff]
      %v380 = vld [vmem:[#allocation2 + $0x91] sm:$0xff]
      %v381 = vld [vmem:[#allocation2 + $0x99] sm:$0xff]
      %v382 = vld [vmem:[#allocation2 + $0xa9] sm:$0xff]
      %v383 = vld [vmem:[#allocation2 + $0xb1] sm:$0xff]
      %v384 = vld [vmem:[#allocation2 + $0xc1] sm:$0xff]
      %v385 = vld [vmem:[#allocation2 + $0xc9] sm:$0xff]
      %v386 = vld [vmem:[#allocation2 + $0xd9] sm:$0xff]
      %v387 = vld [vmem:[#allocation2 + $0xe1] sm:$0xff]
      %v388 = vld [vmem:[#allocation2 + $0xf1] sm:$0xff]
      %v389 = vld [vmem:[#allocation2 + $0xf9] sm:$0xff]
      %v390 = vld [vmem:[#allocation2 + $0x109] sm:$0xff]
      %v391 = vld [vmem:[#allocation2 + $0x111] sm:$0xff]
      %v392 = vld [vmem:[#allocation2 + $0x121] sm:$0xff]
      %v393 = vld [vmem:[#allocation2 + $0x129] sm:$0xff]
      %v394 = vld [vmem:[#allocation2 + $0x139] sm:$0xff]
      %v395 = vld [vmem:[#allocation2 + $0x141] sm:$0xff]
      %v396 = vld [vmem:[#allocation2 + $0x151] sm:$0xff]
      %v397 = vld [vmem:[#allocation2 + $0x159] sm:$0xff]
      %v398 = vld [vmem:[#allocation2 + $0x169] sm:$0xff]
      %v399 = vld [vmem:[#allocation2 + $0x171] sm:$0xff]
      %v400 = vpack.c.bf16 %v369, %v368
      %v401 = vpack.c.bf16 %v371, %v370
      %v402 = vpack.c.bf16 %v373, %v372
      %v403 = vpack.c.bf16 %v375, %v374
      %v404 = vpack.c.bf16 %v377, %v376
      %v405 = vpack.c.bf16 %v379, %v378
      %v406 = vpack.c.bf16 %v381, %v380
      %v407 = vpack.c.bf16 %v383, %v382
      %v408 = vpack.c.bf16 %v385, %v384
      %v409 = vpack.c.bf16 %v387, %v386
      %v410 = vpack.c.bf16 %v389, %v388
      %v411 = vpack.c.bf16 %v391, %v390
      %v412 = vpack.c.bf16 %v393, %v392
      %v413 = vpack.c.bf16 %v395, %v394
      %v414 = vpack.c.bf16 %v397, %v396
      %v415 = vpack.c.bf16 %v399, %v398
      %v416 = vld [vmem:[#allocation2 + $0x2] sm:$0xff]
      %v417 = vld [vmem:[#allocation2 + $0xa] sm:$0xff]
      %v418 = vld [vmem:[#allocation2 + $0x1a] sm:$0xff]
      %v419 = vld [vmem:[#allocation2 + $0x22] sm:$0xff]
      %v420 = vld [vmem:[#allocation2 + $0x32] sm:$0xff]
      %v421 = vld [vmem:[#allocation2 + $0x3a] sm:$0xff]
      %v422 = vld [vmem:[#allocation2 + $0x4a] sm:$0xff]
      %v423 = vld [vmem:[#allocation2 + $0x52] sm:$0xff]
      %v424 = vld [vmem:[#allocation2 + $0x62] sm:$0xff]
      %v425 = vld [vmem:[#allocation2 + $0x6a] sm:$0xff]
      %v426 = vld [vmem:[#allocation2 + $0x7a] sm:$0xff]
      %v427 = vld [vmem:[#allocation2 + $0x82] sm:$0xff]
      %v428 = vld [vmem:[#allocation2 + $0x92] sm:$0xff]
      %v429 = vld [vmem:[#allocation2 + $0x9a] sm:$0xff]
      %v430 = vld [vmem:[#allocation2 + $0xaa] sm:$0xff]
      %v431 = vld [vmem:[#allocation2 + $0xb2] sm:$0xff]
      %v432 = vld [vmem:[#allocation2 + $0xc2] sm:$0xff]
      %v433 = vld [vmem:[#allocation2 + $0xca] sm:$0xff]
      %v434 = vld [vmem:[#allocation2 + $0xda] sm:$0xff]
      %v435 = vld [vmem:[#allocation2 + $0xe2] sm:$0xff]
      %v436 = vld [vmem:[#allocation2 + $0xf2] sm:$0xff]
      %v437 = vld [vmem:[#allocation2 + $0xfa] sm:$0xff]
      %v438 = vld [vmem:[#allocation2 + $0x10a] sm:$0xff]
      %v439 = vld [vmem:[#allocation2 + $0x112] sm:$0xff]
      %v440 = vld [vmem:[#allocation2 + $0x122] sm:$0xff]
      %v441 = vld [vmem:[#allocation2 + $0x12a] sm:$0xff]
      %v442 = vld [vmem:[#allocation2 + $0x13a] sm:$0xff]
      %v443 = vld [vmem:[#allocation2 + $0x142] sm:$0xff]
      %v444 = vld [vmem:[#allocation2 + $0x152] sm:$0xff]
      %v445 = vld [vmem:[#allocation2 + $0x15a] sm:$0xff]
      %v446 = vld [vmem:[#allocation2 + $0x16a] sm:$0xff]
      %v447 = vld [vmem:[#allocation2 + $0x172] sm:$0xff]
      %v448 = vpack.c.bf16 %v417, %v416
      %v449 = vpack.c.bf16 %v419, %v418
      %v450 = vpack.c.bf16 %v421, %v420
      %v451 = vpack.c.bf16 %v423, %v422
      %v452 = vpack.c.bf16 %v425, %v424
      %v453 = vpack.c.bf16 %v427, %v426
      %v454 = vpack.c.bf16 %v429, %v428
      %v455 = vpack.c.bf16 %v431, %v430
      %v456 = vpack.c.bf16 %v433, %v432
      %v457 = vpack.c.bf16 %v435, %v434
      %v458 = vpack.c.bf16 %v437, %v436
      %v459 = vpack.c.bf16 %v439, %v438
      %v460 = vpack.c.bf16 %v441, %v440
      %v461 = vpack.c.bf16 %v443, %v442
      %v462 = vpack.c.bf16 %v445, %v444
      %v463 = vpack.c.bf16 %v447, %v446
      %v464 = vld [vmem:[%s1] sm:$0xf]
      %v465 = vld [vmem:[%s1 + $0x4] sm:$0xf]
      %v466 = vld [vmem:[%s1 + $0x8] sm:$0xf]
      %v467 = vld [vmem:[%s1 + $0xc] sm:$0xf]
      %v468 = vld [vmem:[%s1 + $0x10] sm:$0xf]
      %v469 = vld [vmem:[%s1 + $0x14] sm:$0xf]
      %v470 = vld [vmem:[%s1 + $0x18] sm:$0xf]
      %v471 = vld [vmem:[%s1 + $0x1c] sm:$0xf]
      %v472 = vld [vmem:[%s1 + $0x20] sm:$0xf]
      %v473 = vld [vmem:[%s1 + $0x24] sm:$0xf]
      %v474 = vld [vmem:[%s1 + $0x28] sm:$0xf]
      %v475 = vld [vmem:[%s1 + $0x2c] sm:$0xf]
      %v476 = vld [vmem:[%s1 + $0x30] sm:$0xf]
      %v477 = vld [vmem:[%s1 + $0x34] sm:$0xf]
      %v478 = vld [vmem:[%s1 + $0x38] sm:$0xf]
      %v479 = vld [vmem:[%s1 + $0x3c] sm:$0xf]
      %v480 = vld [vmem:[%s1 + $0x40] sm:$0xf]
      %v481 = vld [vmem:[%s1 + $0x44] sm:$0xf]
      %v482 = vld [vmem:[%s1 + $0x48] sm:$0xf]
      %v483 = vld [vmem:[%s1 + $0x4c] sm:$0xf]
      %v484 = vld [vmem:[%s1 + $0x50] sm:$0xf]
      %v485 = vld [vmem:[%s1 + $0x54] sm:$0xf]
      %v486 = vld [vmem:[%s1 + $0x58] sm:$0xf]
      %v487 = vld [vmem:[%s1 + $0x5c] sm:$0xf]
      %v488 = vld [vmem:[%s1 + $0x60] sm:$0xf]
      %v489 = vld [vmem:[%s1 + $0x64] sm:$0xf]
      %v490 = vld [vmem:[%s1 + $0x68] sm:$0xf]
      %v491 = vld [vmem:[%s1 + $0x6c] sm:$0xf]
      %v492 = vld [vmem:[%s1 + $0x70] sm:$0xf]
      %v493 = vld [vmem:[%s1 + $0x74] sm:$0xf]
      %v494 = vld [vmem:[%s1 + $0x78] sm:$0xf]
      %v495 = vld [vmem:[%s1 + $0x7c] sm:$0xf]
      %v496 = vld [vmem:[%s1 + $0x80] sm:$0xf]
      %v497 = vld [vmem:[%s1 + $0x84] sm:$0xf]
      %v498 = vld [vmem:[%s1 + $0x88] sm:$0xf]
      %v499 = vld [vmem:[%s1 + $0x8c] sm:$0xf]
      %v500 = vld [vmem:[%s1 + $0x90] sm:$0xf]
      %v501 = vld [vmem:[%s1 + $0x94] sm:$0xf]
      %v502 = vld [vmem:[%s1 + $0x98] sm:$0xf]
      %v503 = vld [vmem:[%s1 + $0x9c] sm:$0xf]
      %v504 = vld [vmem:[%s1 + $0xa0] sm:$0xf]
      %v505 = vld [vmem:[%s1 + $0xa4] sm:$0xf]
      %v506 = vld [vmem:[%s1 + $0xa8] sm:$0xf]
      %v507 = vld [vmem:[%s1 + $0xac] sm:$0xf]
      %v508 = vld [vmem:[%s1 + $0xb0] sm:$0xf]
      %v509 = vld [vmem:[%s1 + $0xb4] sm:$0xf]
      %v510 = vld [vmem:[%s1 + $0xb8] sm:$0xf]
      %v511 = vld [vmem:[%s1 + $0xbc] sm:$0xf]
      %v512 = vld [vmem:[%s255] sm:$0xff]
      %v513 = vld [vmem:[%s255 + $0x8] sm:$0xff]
      %v514 = vld [vmem:[%s255 + $0x18] sm:$0xff]
      %v515 = vld [vmem:[%s255 + $0x20] sm:$0xff]
      %v516 = vld [vmem:[%s255 + $0x30] sm:$0xff]
      %v517 = vld [vmem:[%s255 + $0x38] sm:$0xff]
      %v518 = vld [vmem:[%s255 + $0x48] sm:$0xff]
      %v519 = vld [vmem:[%s255 + $0x50] sm:$0xff]
      %v520 = vld [vmem:[%s255 + $0x60] sm:$0xff]
      %v521 = vld [vmem:[%s255 + $0x68] sm:$0xff]
      %v522 = vld [vmem:[%s255 + $0x78] sm:$0xff]
      %v523 = vld [vmem:[%s255 + $0x80] sm:$0xff]
      %v524 = vld [vmem:[%s255 + $0x90] sm:$0xff]
      %v525 = vld [vmem:[%s255 + $0x98] sm:$0xff]
      %v526 = vld [vmem:[%s255 + $0xa8] sm:$0xff]
      %v527 = vld [vmem:[%s255 + $0xb0] sm:$0xff]
      %v528 = vld [vmem:[%s255 + $0xc0] sm:$0xff]
      %v529 = vld [vmem:[%s255 + $0xc8] sm:$0xff]
      %v530 = vld [vmem:[%s255 + $0xd8] sm:$0xff]
      %v531 = vld [vmem:[%s255 + $0xe0] sm:$0xff]
      %v532 = vld [vmem:[%s255 + $0xf0] sm:$0xff]
      %v533 = vld [vmem:[%s255 + $0xf8] sm:$0xff]
      %v534 = vld [vmem:[%s255 + $0x108] sm:$0xff]
      %v535 = vld [vmem:[%s255 + $0x110] sm:$0xff]
      %v536 = vld [vmem:[%s255 + $0x120] sm:$0xff]
      %v537 = vld [vmem:[%s255 + $0x128] sm:$0xff]
      %v538 = vld [vmem:[%s255 + $0x138] sm:$0xff]
      %v539 = vld [vmem:[%s255 + $0x140] sm:$0xff]
      %v540 = vld [vmem:[%s255 + $0x150] sm:$0xff]
      %v541 = vld [vmem:[%s255 + $0x158] sm:$0xff]
      %v542 = vld [vmem:[%s255 + $0x168] sm:$0xff]
      %v543 = vld [vmem:[%s255 + $0x170] sm:$0xff]
      %v544 = vpack.c.bf16 %v513, %v512
      %v545 = vpack.c.bf16 %v515, %v514
      %v546 = vpack.c.bf16 %v517, %v516
      %v547 = vpack.c.bf16 %v519, %v518
      %v548 = vpack.c.bf16 %v521, %v520
      %v549 = vpack.c.bf16 %v523, %v522
      %v550 = vpack.c.bf16 %v525, %v524
      %v551 = vpack.c.bf16 %v527, %v526
      %v552 = vpack.c.bf16 %v529, %v528
      %v553 = vpack.c.bf16 %v531, %v530
      %v554 = vpack.c.bf16 %v533, %v532
      %v555 = vpack.c.bf16 %v535, %v534
      %v556 = vpack.c.bf16 %v537, %v536
      %v557 = vpack.c.bf16 %v539, %v538
      %v558 = vpack.c.bf16 %v541, %v540
      %v559 = vpack.c.bf16 %v543, %v542
      %v560 = vld [vmem:[%s255 + $0x1] sm:$0xff]
      %v561 = vld [vmem:[%s255 + $0x9] sm:$0xff]
      %v562 = vld [vmem:[%s255 + $0x19] sm:$0xff]
      %v563 = vld [vmem:[%s255 + $0x21] sm:$0xff]
      %v564 = vld [vmem:[%s255 + $0x31] sm:$0xff]
      %v565 = vld [vmem:[%s255 + $0x39] sm:$0xff]
      %v566 = vld [vmem:[%s255 + $0x49] sm:$0xff]
      %v567 = vld [vmem:[%s255 + $0x51] sm:$0xff]
      %v568 = vld [vmem:[%s255 + $0x61] sm:$0xff]
      %v569 = vld [vmem:[%s255 + $0x69] sm:$0xff]
      %v570 = vld [vmem:[%s255 + $0x79] sm:$0xff]
      %v571 = vld [vmem:[%s255 + $0x81] sm:$0xff]
      %v572 = vld [vmem:[%s255 + $0x91] sm:$0xff]
      %v573 = vld [vmem:[%s255 + $0x99] sm:$0xff]
      %v574 = vld [vmem:[%s255 + $0xa9] sm:$0xff]
      %v575 = vld [vmem:[%s255 + $0xb1] sm:$0xff]
      %v576 = vld [vmem:[%s255 + $0xc1] sm:$0xff]
      %v577 = vld [vmem:[%s255 + $0xc9] sm:$0xff]
      %v578 = vld [vmem:[%s255 + $0xd9] sm:$0xff]
      %v579 = vld [vmem:[%s255 + $0xe1] sm:$0xff]
      %v580 = vld [vmem:[%s255 + $0xf1] sm:$0xff]
      %v581 = vld [vmem:[%s255 + $0xf9] sm:$0xff]
      %v582 = vld [vmem:[%s255 + $0x109] sm:$0xff]
      %v583 = vld [vmem:[%s255 + $0x111] sm:$0xff]
      %v584 = vld [vmem:[%s255 + $0x121] sm:$0xff]
      %v585 = vld [vmem:[%s255 + $0x129] sm:$0xff]
      %v586 = vld [vmem:[%s255 + $0x139] sm:$0xff]
      %v587 = vld [vmem:[%s255 + $0x141] sm:$0xff]
      %v588 = vld [vmem:[%s255 + $0x151] sm:$0xff]
      %v589 = vld [vmem:[%s255 + $0x159] sm:$0xff]
      %v590 = vld [vmem:[%s255 + $0x169] sm:$0xff]
      %v591 = vld [vmem:[%s255 + $0x171] sm:$0xff]
      %v592 = vpack.c.bf16 %v561, %v560
      %v593 = vpack.c.bf16 %v563, %v562
      %v594 = vpack.c.bf16 %v565, %v564
      %v595 = vpack.c.bf16 %v567, %v566
      %v596 = vpack.c.bf16 %v569, %v568
      %v597 = vpack.c.bf16 %v571, %v570
      %v598 = vpack.c.bf16 %v573, %v572
      %v599 = vpack.c.bf16 %v575, %v574
      %v600 = vpack.c.bf16 %v577, %v576
      %v601 = vpack.c.bf16 %v579, %v578
      %v602 = vpack.c.bf16 %v581, %v580
      %v603 = vpack.c.bf16 %v583, %v582
      %v604 = vpack.c.bf16 %v585, %v584
      %v605 = vpack.c.bf16 %v587, %v586
      %v606 = vpack.c.bf16 %v589, %v588
      %v607 = vpack.c.bf16 %v591, %v590
      %v608 = vld [vmem:[%s255 + $0x2] sm:$0xff]
      %v609 = vld [vmem:[%s255 + $0xa] sm:$0xff]
      %v610 = vld [vmem:[%s255 + $0x1a] sm:$0xff]
      %v611 = vld [vmem:[%s255 + $0x22] sm:$0xff]
      %v612 = vld [vmem:[%s255 + $0x32] sm:$0xff]
      %v613 = vld [vmem:[%s255 + $0x3a] sm:$0xff]
      %v614 = vld [vmem:[%s255 + $0x4a] sm:$0xff]
      %v615 = vld [vmem:[%s255 + $0x52] sm:$0xff]
      %v616 = vld [vmem:[%s255 + $0x62] sm:$0xff]
      %v617 = vld [vmem:[%s255 + $0x6a] sm:$0xff]
      %v618 = vld [vmem:[%s255 + $0x7a] sm:$0xff]
      %v619 = vld [vmem:[%s255 + $0x82] sm:$0xff]
      %v620 = vld [vmem:[%s255 + $0x92] sm:$0xff]
      %v621 = vld [vmem:[%s255 + $0x9a] sm:$0xff]
      %v622 = vld [vmem:[%s255 + $0xaa] sm:$0xff]
      %v623 = vld [vmem:[%s255 + $0xb2] sm:$0xff]
      %v624 = vld [vmem:[%s255 + $0xc2] sm:$0xff]
      %v625 = vld [vmem:[%s255 + $0xca] sm:$0xff]
      %v626 = vld [vmem:[%s255 + $0xda] sm:$0xff]
      %v627 = vld [vmem:[%s255 + $0xe2] sm:$0xff]
      %v628 = vld [vmem:[%s255 + $0xf2] sm:$0xff]
      %v629 = vld [vmem:[%s255 + $0xfa] sm:$0xff]
      %v630 = vld [vmem:[%s255 + $0x10a] sm:$0xff]
      %v631 = vld [vmem:[%s255 + $0x112] sm:$0xff]
      %v632 = vld [vmem:[%s255 + $0x122] sm:$0xff]
      %v633 = vld [vmem:[%s255 + $0x12a] sm:$0xff]
      %v634 = vld [vmem:[%s255 + $0x13a] sm:$0xff]
      %v635 = vld [vmem:[%s255 + $0x142] sm:$0xff]
      %v636 = vld [vmem:[%s255 + $0x152] sm:$0xff]
      %v637 = vld [vmem:[%s255 + $0x15a] sm:$0xff]
      %v638 = vld [vmem:[%s255 + $0x16a] sm:$0xff]
      %v639 = vld [vmem:[%s255 + $0x172] sm:$0xff]
      %v640 = vpack.c.bf16 %v609, %v608
      %v641 = vpack.c.bf16 %v611, %v610
      %v642 = vpack.c.bf16 %v613, %v612
      %v643 = vpack.c.bf16 %v615, %v614
      %v644 = vpack.c.bf16 %v617, %v616
      %v645 = vpack.c.bf16 %v619, %v618
      %v646 = vpack.c.bf16 %v621, %v620
      %v647 = vpack.c.bf16 %v623, %v622
      %v648 = vpack.c.bf16 %v625, %v624
      %v649 = vpack.c.bf16 %v627, %v626
      %v650 = vpack.c.bf16 %v629, %v628
      %v651 = vpack.c.bf16 %v631, %v630
      %v652 = vpack.c.bf16 %v633, %v632
      %v653 = vpack.c.bf16 %v635, %v634
      %v654 = vpack.c.bf16 %v637, %v636
      %v655 = vpack.c.bf16 %v639, %v638
      %s656 = scalar_lea.vmem %s1, 192
      %v657 = vld [vmem:[%s656] sm:$0xf]
      %v658 = vld [vmem:[%s656 + $0x4] sm:$0xf]
      %v659 = vld [vmem:[%s656 + $0x8] sm:$0xf]
      %v660 = vld [vmem:[%s656 + $0xc] sm:$0xf]
      %v661 = vld [vmem:[%s656 + $0x10] sm:$0xf]
      %v662 = vld [vmem:[%s656 + $0x14] sm:$0xf]
      %v663 = vld [vmem:[%s656 + $0x18] sm:$0xf]
      %v664 = vld [vmem:[%s656 + $0x1c] sm:$0xf]
      %v665 = vld [vmem:[%s656 + $0x20] sm:$0xf]
      %v666 = vld [vmem:[%s656 + $0x24] sm:$0xf]
      %v667 = vld [vmem:[%s656 + $0x28] sm:$0xf]
      %v668 = vld [vmem:[%s656 + $0x2c] sm:$0xf]
      %v669 = vld [vmem:[%s656 + $0x30] sm:$0xf]
      %v670 = vld [vmem:[%s656 + $0x34] sm:$0xf]
      %v671 = vld [vmem:[%s656 + $0x38] sm:$0xf]
      %v672 = vld [vmem:[%s656 + $0x3c] sm:$0xf]
      %v673 = vld [vmem:[%s656 + $0x40] sm:$0xf]
      %v674 = vld [vmem:[%s656 + $0x44] sm:$0xf]
      %v675 = vld [vmem:[%s656 + $0x48] sm:$0xf]
      %v676 = vld [vmem:[%s656 + $0x4c] sm:$0xf]
      %v677 = vld [vmem:[%s656 + $0x50] sm:$0xf]
      %v678 = vld [vmem:[%s656 + $0x54] sm:$0xf]
      %v679 = vld [vmem:[%s656 + $0x58] sm:$0xf]
      %v680 = vld [vmem:[%s656 + $0x5c] sm:$0xf]
      %v681 = vld [vmem:[%s656 + $0x60] sm:$0xf]
      %v682 = vld [vmem:[%s656 + $0x64] sm:$0xf]
      %v683 = vld [vmem:[%s656 + $0x68] sm:$0xf]
      %v684 = vld [vmem:[%s656 + $0x6c] sm:$0xf]
      %v685 = vld [vmem:[%s656 + $0x70] sm:$0xf]
      %v686 = vld [vmem:[%s656 + $0x74] sm:$0xf]
      %v687 = vld [vmem:[%s656 + $0x78] sm:$0xf]
      %v688 = vld [vmem:[%s656 + $0x7c] sm:$0xf]
      %v689 = vld [vmem:[%s656 + $0x80] sm:$0xf]
      %v690 = vld [vmem:[%s656 + $0x84] sm:$0xf]
      %v691 = vld [vmem:[%s656 + $0x88] sm:$0xf]
      %v692 = vld [vmem:[%s656 + $0x8c] sm:$0xf]
      %v693 = vld [vmem:[%s656 + $0x90] sm:$0xf]
      %v694 = vld [vmem:[%s656 + $0x94] sm:$0xf]
      %v695 = vld [vmem:[%s656 + $0x98] sm:$0xf]
      %v696 = vld [vmem:[%s656 + $0x9c] sm:$0xf]
      %v697 = vld [vmem:[%s656 + $0xa0] sm:$0xf]
      %v698 = vld [vmem:[%s656 + $0xa4] sm:$0xf]
      %v699 = vld [vmem:[%s656 + $0xa8] sm:$0xf]
      %v700 = vld [vmem:[%s656 + $0xac] sm:$0xf]
      %v701 = vld [vmem:[%s656 + $0xb0] sm:$0xf]
      %v702 = vld [vmem:[%s656 + $0xb4] sm:$0xf]
      %v703 = vld [vmem:[%s656 + $0xb8] sm:$0xf]
      %v704 = vld [vmem:[%s656 + $0xbc] sm:$0xf]
      %v753 = vunpack.c.l.b16 %v657
      %v754 = vunpack.c.l.b16 %v658
      %v755 = vunpack.c.l.b16 %v659
      %v756 = vunpack.c.l.b16 %v660
      %v757 = vunpack.c.l.b16 %v661
      %v758 = vunpack.c.l.b16 %v662
      %v759 = vunpack.c.l.b16 %v663
      %v760 = vunpack.c.l.b16 %v664
      %v761 = vunpack.c.l.b16 %v665
      %v762 = vunpack.c.l.b16 %v666
      %v763 = vunpack.c.l.b16 %v667
      %v764 = vunpack.c.l.b16 %v668
      %v765 = vunpack.c.l.b16 %v669
      %v766 = vunpack.c.l.b16 %v670
      %v767 = vunpack.c.l.b16 %v671
      %v768 = vunpack.c.l.b16 %v672
      %v769 = vunpack.c.l.b16 %v673
      %v770 = vunpack.c.l.b16 %v674
      %v771 = vunpack.c.l.b16 %v675
      %v772 = vunpack.c.l.b16 %v676
      %v773 = vunpack.c.l.b16 %v677
      %v774 = vunpack.c.l.b16 %v678
      %v775 = vunpack.c.l.b16 %v679
      %v776 = vunpack.c.l.b16 %v680
      %v777 = vunpack.c.l.b16 %v681
      %v778 = vunpack.c.l.b16 %v682
      %v779 = vunpack.c.l.b16 %v683
      %v780 = vunpack.c.l.b16 %v684
      %v781 = vunpack.c.l.b16 %v685
      %v782 = vunpack.c.l.b16 %v686
      %v783 = vunpack.c.l.b16 %v687
      %v784 = vunpack.c.l.b16 %v688
      %v785 = vunpack.c.l.b16 %v689
      %v786 = vunpack.c.l.b16 %v690
      %v787 = vunpack.c.l.b16 %v691
      %v788 = vunpack.c.l.b16 %v692
      %v789 = vunpack.c.l.b16 %v693
      %v790 = vunpack.c.l.b16 %v694
      %v791 = vunpack.c.l.b16 %v695
      %v792 = vunpack.c.l.b16 %v696
      %v793 = vunpack.c.l.b16 %v697
      %v794 = vunpack.c.l.b16 %v698
      %v795 = vunpack.c.l.b16 %v699
      %v796 = vunpack.c.l.b16 %v700
      %v797 = vunpack.c.l.b16 %v701
      %v798 = vunpack.c.l.b16 %v702
      %v799 = vunpack.c.l.b16 %v703
      %v800 = vunpack.c.l.b16 %v704
      %v801 = vpack.c.b16 %v754, %v753
      %v802 = vpack.c.b16 %v756, %v755
      %v803 = vpack.c.b16 %v758, %v757
      %v804 = vpack.c.b16 %v760, %v759
      %v805 = vpack.c.b16 %v762, %v761
      %v806 = vpack.c.b16 %v764, %v763
      %v807 = vpack.c.b16 %v766, %v765
      %v808 = vpack.c.b16 %v768, %v767
      %v809 = vpack.c.b16 %v770, %v769
      %v810 = vpack.c.b16 %v772, %v771
      %v811 = vpack.c.b16 %v774, %v773
      %v812 = vpack.c.b16 %v776, %v775
      %v813 = vpack.c.b16 %v778, %v777
      %v814 = vpack.c.b16 %v780, %v779
      %v815 = vpack.c.b16 %v782, %v781
      %v816 = vpack.c.b16 %v784, %v783
      %v817 = vpack.c.b16 %v786, %v785
      %v818 = vpack.c.b16 %v788, %v787
      %v819 = vpack.c.b16 %v790, %v789
      %v820 = vpack.c.b16 %v792, %v791
      %v821 = vpack.c.b16 %v794, %v793
      %v822 = vpack.c.b16 %v796, %v795
      %v823 = vpack.c.b16 %v798, %v797
      %v824 = vpack.c.b16 %v800, %v799
      %849 = vmatprep.subr.bf16.mxu0 0
      %850 = vmatpush1.bf16.msra.mxu0 %v808
      %851 = vmatprep.subr.bf16.mxu0 0
      %852 = vmatpush1.bf16.msra.mxu0 %v807
      %853 = vmatprep.subr.bf16.mxu0 0
      %854 = vmatpush1.bf16.msra.mxu0 %v806
      %855 = vmatprep.subr.bf16.mxu0 0
      %856 = vmatpush1.bf16.msra.mxu0 %v805
      %857 = vmatprep.subr.bf16.mxu0 0
      %858 = vmatpush1.bf16.msra.mxu0 %v804
      %859 = vmatprep.subr.bf16.mxu0 0
      %860 = vmatpush1.bf16.msra.mxu0 %v803
      %861 = vmatprep.subr.bf16.mxu0 0
      %862 = vmatpush1.bf16.msra.mxu0 %v802
      %863 = vmatprep.subr.bf16.mxu0 0
      %864 = vmatpush1.bf16.msra.mxu0 %v801
      %865 = vmatprep.subr.bf16.mxu0 0
      %866 = vmatpush2.bf16.msra.mxu0 %v816
      %867 = vmatprep.subr.bf16.mxu0 0
      %868 = vmatpush2.bf16.msra.mxu0 %v815
      %869 = vmatprep.subr.bf16.mxu0 0
      %870 = vmatpush2.bf16.msra.mxu0 %v814
      %871 = vmatprep.subr.bf16.mxu0 0
      %872 = vmatpush2.bf16.msra.mxu0 %v813
      %873 = vmatprep.subr.bf16.mxu0 0
      %874 = vmatpush2.bf16.msra.mxu0 %v812
      %875 = vmatprep.subr.bf16.mxu0 0
      %876 = vmatpush2.bf16.msra.mxu0 %v811
      %877 = vmatprep.subr.bf16.mxu0 0
      %878 = vmatpush2.bf16.msra.mxu0 %v810
      %879 = vmatprep.subr.bf16.mxu0 0
      %880 = vmatpush2.bf16.msra.mxu0 %v809
      %881 = vmatprep.mubr.bf16.mxu0 %v592
      %882 = vmatmul.mubr.bf16.gmra.mxu0 %v544
      %v883 = vpop.f32.mrf.mxu0
      %v884 = vadd.f32 0.0, %v883
      %v885 = vpop.f32.mrf.mxu0
      %v886 = vpop.f32.mrf.mxu0
      %v887 = vadd.f32 0.0, %v886
      %v888 = vpop.f32.mrf.mxu0
      %889 = vmatprep.mubr.bf16.mxu0 %v593
      %890 = vmatmul.mubr.bf16.gmra.mxu0 %v545
      %v891 = vpop.f32.mrf.mxu0
      %v892 = vadd.f32 0.0, %v891
      %v893 = vpop.f32.mrf.mxu0
      %v894 = vpop.f32.mrf.mxu0
      %v895 = vadd.f32 0.0, %v894
      %v896 = vpop.f32.mrf.mxu0
      %897 = vmatprep.mubr.bf16.mxu0 %v594
      %898 = vmatmul.mubr.bf16.gmra.mxu0 %v546
      %v899 = vpop.f32.mrf.mxu0
      %v900 = vadd.f32 0.0, %v899
      %v901 = vpop.f32.mrf.mxu0
      %v902 = vpop.f32.mrf.mxu0
      %v903 = vadd.f32 0.0, %v902
      %v904 = vpop.f32.mrf.mxu0
      %905 = vmatprep.mubr.bf16.mxu0 %v595
      %906 = vmatmul.mubr.bf16.gmra.mxu0 %v547
      %v907 = vpop.f32.mrf.mxu0
      %v908 = vadd.f32 0.0, %v907
      %v909 = vpop.f32.mrf.mxu0
      %v910 = vpop.f32.mrf.mxu0
      %v911 = vadd.f32 0.0, %v910
      %v912 = vpop.f32.mrf.mxu0
      %913 = vmatprep.mubr.bf16.mxu0 %v596
      %914 = vmatmul.mubr.bf16.gmra.mxu0 %v548
      %v915 = vpop.f32.mrf.mxu0
      %v916 = vadd.f32 0.0, %v915
      %v917 = vpop.f32.mrf.mxu0
      %v918 = vpop.f32.mrf.mxu0
      %v919 = vadd.f32 0.0, %v918
      %v920 = vpop.f32.mrf.mxu0
      %921 = vmatprep.mubr.bf16.mxu0 %v597
      %922 = vmatmul.mubr.bf16.gmra.mxu0 %v549
      %v923 = vpop.f32.mrf.mxu0
      %v924 = vadd.f32 0.0, %v923
      %v925 = vpop.f32.mrf.mxu0
      %v926 = vpop.f32.mrf.mxu0
      %v927 = vadd.f32 0.0, %v926
      %v928 = vpop.f32.mrf.mxu0
      %929 = vmatprep.mubr.bf16.mxu0 %v598
      %930 = vmatmul.mubr.bf16.gmra.mxu0 %v550
      %v931 = vpop.f32.mrf.mxu0
      %v932 = vadd.f32 0.0, %v931
      %v933 = vpop.f32.mrf.mxu0
      %v934 = vpop.f32.mrf.mxu0
      %v935 = vadd.f32 0.0, %v934
      %v936 = vpop.f32.mrf.mxu0
      %937 = vmatprep.mubr.bf16.mxu0 %v599
      %938 = vmatmul.mubr.bf16.gmra.mxu0 %v551
      %v939 = vpop.f32.mrf.mxu0
      %v940 = vadd.f32 0.0, %v939
      %v941 = vpop.f32.mrf.mxu0
      %v942 = vpop.f32.mrf.mxu0
      %v943 = vadd.f32 0.0, %v942
      %v944 = vpop.f32.mrf.mxu0
      %945 = vmatprep.mubr.bf16.mxu0 %v600
      %946 = vmatmul.mubr.bf16.gmra.mxu0 %v552
      %v947 = vpop.f32.mrf.mxu0
      %v948 = vadd.f32 0.0, %v947
      %v949 = vpop.f32.mrf.mxu0
      %v950 = vpop.f32.mrf.mxu0
      %v951 = vadd.f32 0.0, %v950
      %v952 = vpop.f32.mrf.mxu0
      %953 = vmatprep.mubr.bf16.mxu0 %v601
      %954 = vmatmul.mubr.bf16.gmra.mxu0 %v553
      %v955 = vpop.f32.mrf.mxu0
      %v956 = vadd.f32 0.0, %v955
      %v957 = vpop.f32.mrf.mxu0
      %v958 = vpop.f32.mrf.mxu0
      %v959 = vadd.f32 0.0, %v958
      %v960 = vpop.f32.mrf.mxu0
      %961 = vmatprep.mubr.bf16.mxu0 %v602
      %962 = vmatmul.mubr.bf16.gmra.mxu0 %v554
      %v963 = vpop.f32.mrf.mxu0
      %v964 = vadd.f32 0.0, %v963
      %v965 = vpop.f32.mrf.mxu0
      %v966 = vpop.f32.mrf.mxu0
      %v967 = vadd.f32 0.0, %v966
      %v968 = vpop.f32.mrf.mxu0
      %969 = vmatprep.mubr.bf16.mxu0 %v603
      %970 = vmatmul.mubr.bf16.gmra.mxu0 %v555
      %v971 = vpop.f32.mrf.mxu0
      %v972 = vadd.f32 0.0, %v971
      %v973 = vpop.f32.mrf.mxu0
      %v974 = vpop.f32.mrf.mxu0
      %v975 = vadd.f32 0.0, %v974
      %v976 = vpop.f32.mrf.mxu0
      %977 = vmatprep.mubr.bf16.mxu0 %v604
      %978 = vmatmul.mubr.bf16.gmra.mxu0 %v556
      %v979 = vpop.f32.mrf.mxu0
      %v980 = vadd.f32 0.0, %v979
      %v981 = vpop.f32.mrf.mxu0
      %v982 = vpop.f32.mrf.mxu0
      %v983 = vadd.f32 0.0, %v982
      %v984 = vpop.f32.mrf.mxu0
      %985 = vmatprep.mubr.bf16.mxu0 %v605
      %986 = vmatmul.mubr.bf16.gmra.mxu0 %v557
      %v987 = vpop.f32.mrf.mxu0
      %v988 = vadd.f32 0.0, %v987
      %v989 = vpop.f32.mrf.mxu0
      %v990 = vpop.f32.mrf.mxu0
      %v991 = vadd.f32 0.0, %v990
      %v992 = vpop.f32.mrf.mxu0
      %993 = vmatprep.mubr.bf16.mxu0 %v606
      %994 = vmatmul.mubr.bf16.gmra.mxu0 %v558
      %v995 = vpop.f32.mrf.mxu0
      %v996 = vadd.f32 0.0, %v995
      %v997 = vpop.f32.mrf.mxu0
      %v998 = vpop.f32.mrf.mxu0
      %v999 = vadd.f32 0.0, %v998
      %v1000 = vpop.f32.mrf.mxu0
      %1001 = vmatprep.mubr.bf16.mxu0 %v607
      %1002 = vmatmul.mubr.bf16.gmra.mxu0 %v559
      %v1003 = vpop.f32.mrf.mxu0
      %v1004 = vadd.f32 0.0, %v1003
      %v1005 = vpop.f32.mrf.mxu0
      %v1006 = vpop.f32.mrf.mxu0
      %v1007 = vadd.f32 0.0, %v1006
      %v1008 = vpop.f32.mrf.mxu0
      %1009 = vdwg.mxu0
      %1010 = vmatprep.subr.bf16.mxu0 0
      %1011 = vmatpush1.bf16.msra.mxu0 %v824
      %1012 = vmatprep.subr.bf16.mxu0 0
      %1013 = vmatpush1.bf16.msra.mxu0 %v823
      %1014 = vmatprep.subr.bf16.mxu0 0
      %1015 = vmatpush1.bf16.msra.mxu0 %v822
      %1016 = vmatprep.subr.bf16.mxu0 0
      %1017 = vmatpush1.bf16.msra.mxu0 %v821
      %1018 = vmatprep.subr.bf16.mxu0 0
      %1019 = vmatpush1.bf16.msra.mxu0 %v820
      %1020 = vmatprep.subr.bf16.mxu0 0
      %1021 = vmatpush1.bf16.msra.mxu0 %v819
      %1022 = vmatprep.subr.bf16.mxu0 0
      %1023 = vmatpush1.bf16.msra.mxu0 %v818
      %1024 = vmatprep.subr.bf16.mxu0 0
      %1025 = vmatpush1.bf16.msra.mxu0 %v817
      %1026 = vmatprep.subr.bf16.mxu0 0
      %1027 = vmatpush2.bf16.msra.mxu0 0
      %1028 = vmatprep.subr.bf16.mxu0 0
      %1029 = vmatpush2.bf16.msra.mxu0 0
      %1030 = vmatprep.subr.bf16.mxu0 0
      %1031 = vmatpush2.bf16.msra.mxu0 0
      %1032 = vmatprep.subr.bf16.mxu0 0
      %1033 = vmatpush2.bf16.msra.mxu0 0
      %1034 = vmatprep.subr.bf16.mxu0 0
      %1035 = vmatpush2.bf16.msra.mxu0 0
      %1036 = vmatprep.subr.bf16.mxu0 0
      %1037 = vmatpush2.bf16.msra.mxu0 0
      %1038 = vmatprep.subr.bf16.mxu0 0
      %1039 = vmatpush2.bf16.msra.mxu0 0
      %1040 = vmatprep.subr.bf16.mxu0 0
      %1041 = vmatpush2.bf16.msra.mxu0 0
      %1042 = vmatprep.mubr.bf16.mxu0 0
      %1043 = vmatmul.mubr.bf16.gmra.mxu0 %v640
      %v1044 = vpop.f32.mrf.mxu0
      %v1045 = vadd.f32 %v884, %v1044
      %v1046 = vpop.f32.mrf.mxu0
      %v1047 = vpop.f32.mrf.mxu0
      %v1048 = vadd.f32 %v887, %v1047
      %v1049 = vpop.f32.mrf.mxu0
      %1050 = vmatprep.mubr.bf16.mxu0 0
      %1051 = vmatmul.mubr.bf16.gmra.mxu0 %v641
      %v1052 = vpop.f32.mrf.mxu0
      %v1053 = vadd.f32 %v892, %v1052
      %v1054 = vpop.f32.mrf.mxu0
      %v1055 = vpop.f32.mrf.mxu0
      %v1056 = vadd.f32 %v895, %v1055
      %v1057 = vpop.f32.mrf.mxu0
      %1058 = vmatprep.mubr.bf16.mxu0 0
      %1059 = vmatmul.mubr.bf16.gmra.mxu0 %v642
      %v1060 = vpop.f32.mrf.mxu0
      %v1061 = vadd.f32 %v900, %v1060
      %v1062 = vpop.f32.mrf.mxu0
      %v1063 = vpop.f32.mrf.mxu0
      %v1064 = vadd.f32 %v903, %v1063
      %v1065 = vpop.f32.mrf.mxu0
      %1066 = vmatprep.mubr.bf16.mxu0 0
      %1067 = vmatmul.mubr.bf16.gmra.mxu0 %v643
      %v1068 = vpop.f32.mrf.mxu0
      %v1069 = vadd.f32 %v908, %v1068
      %v1070 = vpop.f32.mrf.mxu0
      %v1071 = vpop.f32.mrf.mxu0
      %v1072 = vadd.f32 %v911, %v1071
      %v1073 = vpop.f32.mrf.mxu0
      %1074 = vmatprep.mubr.bf16.mxu0 0
      %1075 = vmatmul.mubr.bf16.gmra.mxu0 %v644
      %v1076 = vpop.f32.mrf.mxu0
      %v1077 = vadd.f32 %v916, %v1076
      %v1078 = vpop.f32.mrf.mxu0
      %v1079 = vpop.f32.mrf.mxu0
      %v1080 = vadd.f32 %v919, %v1079
      %v1081 = vpop.f32.mrf.mxu0
      %1082 = vmatprep.mubr.bf16.mxu0 0
      %1083 = vmatmul.mubr.bf16.gmra.mxu0 %v645
      %v1084 = vpop.f32.mrf.mxu0
      %v1085 = vadd.f32 %v924, %v1084
      %v1086 = vpop.f32.mrf.mxu0
      %v1087 = vpop.f32.mrf.mxu0
      %v1088 = vadd.f32 %v927, %v1087
      %v1089 = vpop.f32.mrf.mxu0
      %1090 = vmatprep.mubr.bf16.mxu0 0
      %1091 = vmatmul.mubr.bf16.gmra.mxu0 %v646
      %v1092 = vpop.f32.mrf.mxu0
      %v1093 = vadd.f32 %v932, %v1092
      %v1094 = vpop.f32.mrf.mxu0
      %v1095 = vpop.f32.mrf.mxu0
      %v1096 = vadd.f32 %v935, %v1095
      %v1097 = vpop.f32.mrf.mxu0
      %1098 = vmatprep.mubr.bf16.mxu0 0
      %1099 = vmatmul.mubr.bf16.gmra.mxu0 %v647
      %v1100 = vpop.f32.mrf.mxu0
      %v1101 = vadd.f32 %v940, %v1100
      %v1102 = vpop.f32.mrf.mxu0
      %v1103 = vpop.f32.mrf.mxu0
      %v1104 = vadd.f32 %v943, %v1103
      %v1105 = vpop.f32.mrf.mxu0
      %1106 = vmatprep.mubr.bf16.mxu0 0
      %1107 = vmatmul.mubr.bf16.gmra.mxu0 %v648
      %v1108 = vpop.f32.mrf.mxu0
      %v1109 = vadd.f32 %v948, %v1108
      %v1110 = vpop.f32.mrf.mxu0
      %v1111 = vpop.f32.mrf.mxu0
      %v1112 = vadd.f32 %v951, %v1111
      %v1113 = vpop.f32.mrf.mxu0
      %1114 = vmatprep.mubr.bf16.mxu0 0
      %1115 = vmatmul.mubr.bf16.gmra.mxu0 %v649
      %v1116 = vpop.f32.mrf.mxu0
      %v1117 = vadd.f32 %v956, %v1116
      %v1118 = vpop.f32.mrf.mxu0
      %v1119 = vpop.f32.mrf.mxu0
      %v1120 = vadd.f32 %v959, %v1119
      %v1121 = vpop.f32.mrf.mxu0
      %1122 = vmatprep.mubr.bf16.mxu0 0
      %1123 = vmatmul.mubr.bf16.gmra.mxu0 %v650
      %v1124 = vpop.f32.mrf.mxu0
      %v1125 = vadd.f32 %v964, %v1124
      %v1126 = vpop.f32.mrf.mxu0
      %v1127 = vpop.f32.mrf.mxu0
      %v1128 = vadd.f32 %v967, %v1127
      %v1129 = vpop.f32.mrf.mxu0
      %1130 = vmatprep.mubr.bf16.mxu0 0
      %1131 = vmatmul.mubr.bf16.gmra.mxu0 %v651
      %v1132 = vpop.f32.mrf.mxu0
      %v1133 = vadd.f32 %v972, %v1132
      %v1134 = vpop.f32.mrf.mxu0
      %v1135 = vpop.f32.mrf.mxu0
      %v1136 = vadd.f32 %v975, %v1135
      %v1137 = vpop.f32.mrf.mxu0
      %1138 = vmatprep.mubr.bf16.mxu0 0
      %1139 = vmatmul.mubr.bf16.gmra.mxu0 %v652
      %v1140 = vpop.f32.mrf.mxu0
      %v1141 = vadd.f32 %v980, %v1140
      %v1142 = vpop.f32.mrf.mxu0
      %v1143 = vpop.f32.mrf.mxu0
      %v1144 = vadd.f32 %v983, %v1143
      %v1145 = vpop.f32.mrf.mxu0
      %1146 = vmatprep.mubr.bf16.mxu0 0
      %1147 = vmatmul.mubr.bf16.gmra.mxu0 %v653
      %v1148 = vpop.f32.mrf.mxu0
      %v1149 = vadd.f32 %v988, %v1148
      %v1150 = vpop.f32.mrf.mxu0
      %v1151 = vpop.f32.mrf.mxu0
      %v1152 = vadd.f32 %v991, %v1151
      %v1153 = vpop.f32.mrf.mxu0
      %1154 = vmatprep.mubr.bf16.mxu0 0
      %1155 = vmatmul.mubr.bf16.gmra.mxu0 %v654
      %v1156 = vpop.f32.mrf.mxu0
      %v1157 = vadd.f32 %v996, %v1156
      %v1158 = vpop.f32.mrf.mxu0
      %v1159 = vpop.f32.mrf.mxu0
      %v1160 = vadd.f32 %v999, %v1159
      %v1161 = vpop.f32.mrf.mxu0
      %1162 = vmatprep.mubr.bf16.mxu0 0
      %1163 = vmatmul.mubr.bf16.gmra.mxu0 %v655
      %v1164 = vpop.f32.mrf.mxu0
      %v1165 = vadd.f32 %v1004, %v1164
      %v1166 = vpop.f32.mrf.mxu0
      %v1167 = vpop.f32.mrf.mxu0
      %v1168 = vadd.f32 %v1007, %v1167
      %v1169 = vpop.f32.mrf.mxu0
      %1170 = vdwg.mxu0
      %v1219 = vunpack.c.l.b16 %v464
      %v1220 = vunpack.c.l.b16 %v465
      %v1221 = vunpack.c.l.b16 %v466
      %v1222 = vunpack.c.l.b16 %v467
      %v1223 = vunpack.c.l.b16 %v468
      %v1224 = vunpack.c.l.b16 %v469
      %v1225 = vunpack.c.l.b16 %v470
      %v1226 = vunpack.c.l.b16 %v471
      %v1227 = vunpack.c.l.b16 %v472
      %v1228 = vunpack.c.l.b16 %v473
      %v1229 = vunpack.c.l.b16 %v474
      %v1230 = vunpack.c.l.b16 %v475
      %v1231 = vunpack.c.l.b16 %v476
      %v1232 = vunpack.c.l.b16 %v477
      %v1233 = vunpack.c.l.b16 %v478
      %v1234 = vunpack.c.l.b16 %v479
      %v1235 = vunpack.c.l.b16 %v480
      %v1236 = vunpack.c.l.b16 %v481
      %v1237 = vunpack.c.l.b16 %v482
      %v1238 = vunpack.c.l.b16 %v483
      %v1239 = vunpack.c.l.b16 %v484
      %v1240 = vunpack.c.l.b16 %v485
      %v1241 = vunpack.c.l.b16 %v486
      %v1242 = vunpack.c.l.b16 %v487
      %v1243 = vunpack.c.l.b16 %v488
      %v1244 = vunpack.c.l.b16 %v489
      %v1245 = vunpack.c.l.b16 %v490
      %v1246 = vunpack.c.l.b16 %v491
      %v1247 = vunpack.c.l.b16 %v492
      %v1248 = vunpack.c.l.b16 %v493
      %v1249 = vunpack.c.l.b16 %v494
      %v1250 = vunpack.c.l.b16 %v495
      %v1251 = vunpack.c.l.b16 %v496
      %v1252 = vunpack.c.l.b16 %v497
      %v1253 = vunpack.c.l.b16 %v498
      %v1254 = vunpack.c.l.b16 %v499
      %v1255 = vunpack.c.l.b16 %v500
      %v1256 = vunpack.c.l.b16 %v501
      %v1257 = vunpack.c.l.b16 %v502
      %v1258 = vunpack.c.l.b16 %v503
      %v1259 = vunpack.c.l.b16 %v504
      %v1260 = vunpack.c.l.b16 %v505
      %v1261 = vunpack.c.l.b16 %v506
      %v1262 = vunpack.c.l.b16 %v507
      %v1263 = vunpack.c.l.b16 %v508
      %v1264 = vunpack.c.l.b16 %v509
      %v1265 = vunpack.c.l.b16 %v510
      %v1266 = vunpack.c.l.b16 %v511
      %v1267 = vpack.c.b16 %v1220, %v1219
      %v1268 = vpack.c.b16 %v1222, %v1221
      %v1269 = vpack.c.b16 %v1224, %v1223
      %v1270 = vpack.c.b16 %v1226, %v1225
      %v1271 = vpack.c.b16 %v1228, %v1227
      %v1272 = vpack.c.b16 %v1230, %v1229
      %v1273 = vpack.c.b16 %v1232, %v1231
      %v1274 = vpack.c.b16 %v1234, %v1233
      %v1275 = vpack.c.b16 %v1236, %v1235
      %v1276 = vpack.c.b16 %v1238, %v1237
      %v1277 = vpack.c.b16 %v1240, %v1239
      %v1278 = vpack.c.b16 %v1242, %v1241
      %v1279 = vpack.c.b16 %v1244, %v1243
      %v1280 = vpack.c.b16 %v1246, %v1245
      %v1281 = vpack.c.b16 %v1248, %v1247
      %v1282 = vpack.c.b16 %v1250, %v1249
      %v1283 = vpack.c.b16 %v1252, %v1251
      %v1284 = vpack.c.b16 %v1254, %v1253
      %v1285 = vpack.c.b16 %v1256, %v1255
      %v1286 = vpack.c.b16 %v1258, %v1257
      %v1287 = vpack.c.b16 %v1260, %v1259
      %v1288 = vpack.c.b16 %v1262, %v1261
      %v1289 = vpack.c.b16 %v1264, %v1263
      %v1290 = vpack.c.b16 %v1266, %v1265
      %1315 = vmatprep.subr.bf16.mxu0 0
      %1316 = vmatpush1.bf16.msra.mxu0 %v1274
      %1317 = vmatprep.subr.bf16.mxu0 0
      %1318 = vmatpush1.bf16.msra.mxu0 %v1273
      %1319 = vmatprep.subr.bf16.mxu0 0
      %1320 = vmatpush1.bf16.msra.mxu0 %v1272
      %1321 = vmatprep.subr.bf16.mxu0 0
      %1322 = vmatpush1.bf16.msra.mxu0 %v1271
      %1323 = vmatprep.subr.bf16.mxu0 0
      %1324 = vmatpush1.bf16.msra.mxu0 %v1270
      %1325 = vmatprep.subr.bf16.mxu0 0
      %1326 = vmatpush1.bf16.msra.mxu0 %v1269
      %1327 = vmatprep.subr.bf16.mxu0 0
      %1328 = vmatpush1.bf16.msra.mxu0 %v1268
      %1329 = vmatprep.subr.bf16.mxu0 0
      %1330 = vmatpush1.bf16.msra.mxu0 %v1267
      %1331 = vmatprep.subr.bf16.mxu0 0
      %1332 = vmatpush2.bf16.msra.mxu0 %v1282
      %1333 = vmatprep.subr.bf16.mxu0 0
      %1334 = vmatpush2.bf16.msra.mxu0 %v1281
      %1335 = vmatprep.subr.bf16.mxu0 0
      %1336 = vmatpush2.bf16.msra.mxu0 %v1280
      %1337 = vmatprep.subr.bf16.mxu0 0
      %1338 = vmatpush2.bf16.msra.mxu0 %v1279
      %1339 = vmatprep.subr.bf16.mxu0 0
      %1340 = vmatpush2.bf16.msra.mxu0 %v1278
      %1341 = vmatprep.subr.bf16.mxu0 0
      %1342 = vmatpush2.bf16.msra.mxu0 %v1277
      %1343 = vmatprep.subr.bf16.mxu0 0
      %1344 = vmatpush2.bf16.msra.mxu0 %v1276
      %1345 = vmatprep.subr.bf16.mxu0 0
      %1346 = vmatpush2.bf16.msra.mxu0 %v1275
      %1347 = vmatprep.mubr.bf16.mxu0 %v400
      %1348 = vmatmul.mubr.bf16.gmra.mxu0 %v352
      %v1349 = vpop.f32.mrf.mxu0
      %v1350 = vadd.f32 %v1045, %v1349
      %v1351 = vpop.f32.mrf.mxu0
      %v1352 = vpop.f32.mrf.mxu0
      %v1353 = vadd.f32 %v1048, %v1352
      %v1354 = vpop.f32.mrf.mxu0
      %1355 = vmatprep.mubr.bf16.mxu0 %v401
      %1356 = vmatmul.mubr.bf16.gmra.mxu0 %v353
      %v1357 = vpop.f32.mrf.mxu0
      %v1358 = vadd.f32 %v1053, %v1357
      %v1359 = vpop.f32.mrf.mxu0
      %v1360 = vpop.f32.mrf.mxu0
      %v1361 = vadd.f32 %v1056, %v1360
      %v1362 = vpop.f32.mrf.mxu0
      %1363 = vmatprep.mubr.bf16.mxu0 %v402
      %1364 = vmatmul.mubr.bf16.gmra.mxu0 %v354
      %v1365 = vpop.f32.mrf.mxu0
      %v1366 = vadd.f32 %v1061, %v1365
      %v1367 = vpop.f32.mrf.mxu0
      %v1368 = vpop.f32.mrf.mxu0
      %v1369 = vadd.f32 %v1064, %v1368
      %v1370 = vpop.f32.mrf.mxu0
      %1371 = vmatprep.mubr.bf16.mxu0 %v403
      %1372 = vmatmul.mubr.bf16.gmra.mxu0 %v355
      %v1373 = vpop.f32.mrf.mxu0
      %v1374 = vadd.f32 %v1069, %v1373
      %v1375 = vpop.f32.mrf.mxu0
      %v1376 = vpop.f32.mrf.mxu0
      %v1377 = vadd.f32 %v1072, %v1376
      %v1378 = vpop.f32.mrf.mxu0
      %1379 = vmatprep.mubr.bf16.mxu0 %v404
      %1380 = vmatmul.mubr.bf16.gmra.mxu0 %v356
      %v1381 = vpop.f32.mrf.mxu0
      %v1382 = vadd.f32 %v1077, %v1381
      %v1383 = vpop.f32.mrf.mxu0
      %v1384 = vpop.f32.mrf.mxu0
      %v1385 = vadd.f32 %v1080, %v1384
      %v1386 = vpop.f32.mrf.mxu0
      %1387 = vmatprep.mubr.bf16.mxu0 %v405
      %1388 = vmatmul.mubr.bf16.gmra.mxu0 %v357
      %v1389 = vpop.f32.mrf.mxu0
      %v1390 = vadd.f32 %v1085, %v1389
      %v1391 = vpop.f32.mrf.mxu0
      %v1392 = vpop.f32.mrf.mxu0
      %v1393 = vadd.f32 %v1088, %v1392
      %v1394 = vpop.f32.mrf.mxu0
      %1395 = vmatprep.mubr.bf16.mxu0 %v406
      %1396 = vmatmul.mubr.bf16.gmra.mxu0 %v358
      %v1397 = vpop.f32.mrf.mxu0
      %v1398 = vadd.f32 %v1093, %v1397
      %v1399 = vpop.f32.mrf.mxu0
      %v1400 = vpop.f32.mrf.mxu0
      %v1401 = vadd.f32 %v1096, %v1400
      %v1402 = vpop.f32.mrf.mxu0
      %1403 = vmatprep.mubr.bf16.mxu0 %v407
      %1404 = vmatmul.mubr.bf16.gmra.mxu0 %v359
      %v1405 = vpop.f32.mrf.mxu0
      %v1406 = vadd.f32 %v1101, %v1405
      %v1407 = vpop.f32.mrf.mxu0
      %v1408 = vpop.f32.mrf.mxu0
      %v1409 = vadd.f32 %v1104, %v1408
      %v1410 = vpop.f32.mrf.mxu0
      %1411 = vmatprep.mubr.bf16.mxu0 %v408
      %1412 = vmatmul.mubr.bf16.gmra.mxu0 %v360
      %v1413 = vpop.f32.mrf.mxu0
      %v1414 = vadd.f32 %v1109, %v1413
      %v1415 = vpop.f32.mrf.mxu0
      %v1416 = vpop.f32.mrf.mxu0
      %v1417 = vadd.f32 %v1112, %v1416
      %v1418 = vpop.f32.mrf.mxu0
      %1419 = vmatprep.mubr.bf16.mxu0 %v409
      %1420 = vmatmul.mubr.bf16.gmra.mxu0 %v361
      %v1421 = vpop.f32.mrf.mxu0
      %v1422 = vadd.f32 %v1117, %v1421
      %v1423 = vpop.f32.mrf.mxu0
      %v1424 = vpop.f32.mrf.mxu0
      %v1425 = vadd.f32 %v1120, %v1424
      %v1426 = vpop.f32.mrf.mxu0
      %1427 = vmatprep.mubr.bf16.mxu0 %v410
      %1428 = vmatmul.mubr.bf16.gmra.mxu0 %v362
      %v1429 = vpop.f32.mrf.mxu0
      %v1430 = vadd.f32 %v1125, %v1429
      %v1431 = vpop.f32.mrf.mxu0
      %v1432 = vpop.f32.mrf.mxu0
      %v1433 = vadd.f32 %v1128, %v1432
      %v1434 = vpop.f32.mrf.mxu0
      %1435 = vmatprep.mubr.bf16.mxu0 %v411
      %1436 = vmatmul.mubr.bf16.gmra.mxu0 %v363
      %v1437 = vpop.f32.mrf.mxu0
      %v1438 = vadd.f32 %v1133, %v1437
      %v1439 = vpop.f32.mrf.mxu0
      %v1440 = vpop.f32.mrf.mxu0
      %v1441 = vadd.f32 %v1136, %v1440
      %v1442 = vpop.f32.mrf.mxu0
      %1443 = vmatprep.mubr.bf16.mxu0 %v412
      %1444 = vmatmul.mubr.bf16.gmra.mxu0 %v364
      %v1445 = vpop.f32.mrf.mxu0
      %v1446 = vadd.f32 %v1141, %v1445
      %v1447 = vpop.f32.mrf.mxu0
      %v1448 = vpop.f32.mrf.mxu0
      %v1449 = vadd.f32 %v1144, %v1448
      %v1450 = vpop.f32.mrf.mxu0
      %1451 = vmatprep.mubr.bf16.mxu0 %v413
      %1452 = vmatmul.mubr.bf16.gmra.mxu0 %v365
      %v1453 = vpop.f32.mrf.mxu0
      %v1454 = vadd.f32 %v1149, %v1453
      %v1455 = vpop.f32.mrf.mxu0
      %v1456 = vpop.f32.mrf.mxu0
      %v1457 = vadd.f32 %v1152, %v1456
      %v1458 = vpop.f32.mrf.mxu0
      %1459 = vmatprep.mubr.bf16.mxu0 %v414
      %1460 = vmatmul.mubr.bf16.gmra.mxu0 %v366
      %v1461 = vpop.f32.mrf.mxu0
      %v1462 = vadd.f32 %v1157, %v1461
      %v1463 = vpop.f32.mrf.mxu0
      %v1464 = vpop.f32.mrf.mxu0
      %v1465 = vadd.f32 %v1160, %v1464
      %v1466 = vpop.f32.mrf.mxu0
      %1467 = vmatprep.mubr.bf16.mxu0 %v415
      %1468 = vmatmul.mubr.bf16.gmra.mxu0 %v367
      %v1469 = vpop.f32.mrf.mxu0
      %v1470 = vadd.f32 %v1165, %v1469
      %v1471 = vpop.f32.mrf.mxu0
      %v1472 = vpop.f32.mrf.mxu0
      %v1473 = vadd.f32 %v1168, %v1472
      %v1474 = vpop.f32.mrf.mxu0
      %1475 = vdwg.mxu0
      %1476 = vmatprep.subr.bf16.mxu0 0
      %1477 = vmatpush1.bf16.msra.mxu0 %v1290
      %1478 = vmatprep.subr.bf16.mxu0 0
      %1479 = vmatpush1.bf16.msra.mxu0 %v1289
      %1480 = vmatprep.subr.bf16.mxu0 0
      %1481 = vmatpush1.bf16.msra.mxu0 %v1288
      %1482 = vmatprep.subr.bf16.mxu0 0
      %1483 = vmatpush1.bf16.msra.mxu0 %v1287
      %1484 = vmatprep.subr.bf16.mxu0 0
      %1485 = vmatpush1.bf16.msra.mxu0 %v1286
      %1486 = vmatprep.subr.bf16.mxu0 0
      %1487 = vmatpush1.bf16.msra.mxu0 %v1285
      %1488 = vmatprep.subr.bf16.mxu0 0
      %1489 = vmatpush1.bf16.msra.mxu0 %v1284
      %1490 = vmatprep.subr.bf16.mxu0 0
      %1491 = vmatpush1.bf16.msra.mxu0 %v1283
      %1492 = vmatprep.subr.bf16.mxu0 0
      %1493 = vmatpush2.bf16.msra.mxu0 0
      %1494 = vmatprep.subr.bf16.mxu0 0
      %1495 = vmatpush2.bf16.msra.mxu0 0
      %1496 = vmatprep.subr.bf16.mxu0 0
      %1497 = vmatpush2.bf16.msra.mxu0 0
      %1498 = vmatprep.subr.bf16.mxu0 0
      %1499 = vmatpush2.bf16.msra.mxu0 0
      %1500 = vmatprep.subr.bf16.mxu0 0
      %1501 = vmatpush2.bf16.msra.mxu0 0
      %1502 = vmatprep.subr.bf16.mxu0 0
      %1503 = vmatpush2.bf16.msra.mxu0 0
      %1504 = vmatprep.subr.bf16.mxu0 0
      %1505 = vmatpush2.bf16.msra.mxu0 0
      %1506 = vmatprep.subr.bf16.mxu0 0
      %1507 = vmatpush2.bf16.msra.mxu0 0
      %1508 = vmatprep.mubr.bf16.mxu0 0
      %1509 = vmatmul.mubr.bf16.gmra.mxu0 %v448
      %v1510 = vpop.f32.mrf.mxu0
      %v1511 = vadd.f32 %v1350, %v1510
      %v1512 = vpop.f32.mrf.mxu0
      %v1513 = vpop.f32.mrf.mxu0
      %v1514 = vadd.f32 %v1353, %v1513
      %v1515 = vpop.f32.mrf.mxu0
      %1516 = vmatprep.mubr.bf16.mxu0 0
      %1517 = vmatmul.mubr.bf16.gmra.mxu0 %v449
      %v1518 = vpop.f32.mrf.mxu0
      %v1519 = vadd.f32 %v1358, %v1518
      %v1520 = vpop.f32.mrf.mxu0
      %v1521 = vpop.f32.mrf.mxu0
      %v1522 = vadd.f32 %v1361, %v1521
      %v1523 = vpop.f32.mrf.mxu0
      %1524 = vmatprep.mubr.bf16.mxu0 0
      %1525 = vmatmul.mubr.bf16.gmra.mxu0 %v450
      %v1526 = vpop.f32.mrf.mxu0
      %v1527 = vadd.f32 %v1366, %v1526
      %v1528 = vpop.f32.mrf.mxu0
      %v1529 = vpop.f32.mrf.mxu0
      %v1530 = vadd.f32 %v1369, %v1529
      %v1531 = vpop.f32.mrf.mxu0
      %1532 = vmatprep.mubr.bf16.mxu0 0
      %1533 = vmatmul.mubr.bf16.gmra.mxu0 %v451
      %v1534 = vpop.f32.mrf.mxu0
      %v1535 = vadd.f32 %v1374, %v1534
      %v1536 = vpop.f32.mrf.mxu0
      %v1537 = vpop.f32.mrf.mxu0
      %v1538 = vadd.f32 %v1377, %v1537
      %v1539 = vpop.f32.mrf.mxu0
      %1540 = vmatprep.mubr.bf16.mxu0 0
      %1541 = vmatmul.mubr.bf16.gmra.mxu0 %v452
      %v1542 = vpop.f32.mrf.mxu0
      %v1543 = vadd.f32 %v1382, %v1542
      %v1544 = vpop.f32.mrf.mxu0
      %v1545 = vpop.f32.mrf.mxu0
      %v1546 = vadd.f32 %v1385, %v1545
      %v1547 = vpop.f32.mrf.mxu0
      %1548 = vmatprep.mubr.bf16.mxu0 0
      %1549 = vmatmul.mubr.bf16.gmra.mxu0 %v453
      %v1550 = vpop.f32.mrf.mxu0
      %v1551 = vadd.f32 %v1390, %v1550
      %v1552 = vpop.f32.mrf.mxu0
      %v1553 = vpop.f32.mrf.mxu0
      %v1554 = vadd.f32 %v1393, %v1553
      %v1555 = vpop.f32.mrf.mxu0
      %1556 = vmatprep.mubr.bf16.mxu0 0
      %1557 = vmatmul.mubr.bf16.gmra.mxu0 %v454
      %v1558 = vpop.f32.mrf.mxu0
      %v1559 = vadd.f32 %v1398, %v1558
      %v1560 = vpop.f32.mrf.mxu0
      %v1561 = vpop.f32.mrf.mxu0
      %v1562 = vadd.f32 %v1401, %v1561
      %v1563 = vpop.f32.mrf.mxu0
      %1564 = vmatprep.mubr.bf16.mxu0 0
      %1565 = vmatmul.mubr.bf16.gmra.mxu0 %v455
      %v1566 = vpop.f32.mrf.mxu0
      %v1567 = vadd.f32 %v1406, %v1566
      %v1568 = vpop.f32.mrf.mxu0
      %v1569 = vpop.f32.mrf.mxu0
      %v1570 = vadd.f32 %v1409, %v1569
      %v1571 = vpop.f32.mrf.mxu0
      %1572 = vmatprep.mubr.bf16.mxu0 0
      %1573 = vmatmul.mubr.bf16.gmra.mxu0 %v456
      %v1574 = vpop.f32.mrf.mxu0
      %v1575 = vadd.f32 %v1414, %v1574
      %v1576 = vpop.f32.mrf.mxu0
      %v1577 = vpop.f32.mrf.mxu0
      %v1578 = vadd.f32 %v1417, %v1577
      %v1579 = vpop.f32.mrf.mxu0
      %1580 = vmatprep.mubr.bf16.mxu0 0
      %1581 = vmatmul.mubr.bf16.gmra.mxu0 %v457
      %v1582 = vpop.f32.mrf.mxu0
      %v1583 = vadd.f32 %v1422, %v1582
      %v1584 = vpop.f32.mrf.mxu0
      %v1585 = vpop.f32.mrf.mxu0
      %v1586 = vadd.f32 %v1425, %v1585
      %v1587 = vpop.f32.mrf.mxu0
      %1588 = vmatprep.mubr.bf16.mxu0 0
      %1589 = vmatmul.mubr.bf16.gmra.mxu0 %v458
      %v1590 = vpop.f32.mrf.mxu0
      %v1591 = vadd.f32 %v1430, %v1590
      %v1592 = vpop.f32.mrf.mxu0
      %v1593 = vpop.f32.mrf.mxu0
      %v1594 = vadd.f32 %v1433, %v1593
      %v1595 = vpop.f32.mrf.mxu0
      %1596 = vmatprep.mubr.bf16.mxu0 0
      %1597 = vmatmul.mubr.bf16.gmra.mxu0 %v459
      %v1598 = vpop.f32.mrf.mxu0
      %v1599 = vadd.f32 %v1438, %v1598
      %v1600 = vpop.f32.mrf.mxu0
      %v1601 = vpop.f32.mrf.mxu0
      %v1602 = vadd.f32 %v1441, %v1601
      %v1603 = vpop.f32.mrf.mxu0
      %1604 = vmatprep.mubr.bf16.mxu0 0
      %1605 = vmatmul.mubr.bf16.gmra.mxu0 %v460
      %v1606 = vpop.f32.mrf.mxu0
      %v1607 = vadd.f32 %v1446, %v1606
      %v1608 = vpop.f32.mrf.mxu0
      %v1609 = vpop.f32.mrf.mxu0
      %v1610 = vadd.f32 %v1449, %v1609
      %v1611 = vpop.f32.mrf.mxu0
      %1612 = vmatprep.mubr.bf16.mxu0 0
      %1613 = vmatmul.mubr.bf16.gmra.mxu0 %v461
      %v1614 = vpop.f32.mrf.mxu0
      %v1615 = vadd.f32 %v1454, %v1614
      %v1616 = vpop.f32.mrf.mxu0
      %v1617 = vpop.f32.mrf.mxu0
      %v1618 = vadd.f32 %v1457, %v1617
      %v1619 = vpop.f32.mrf.mxu0
      %1620 = vmatprep.mubr.bf16.mxu0 0
      %1621 = vmatmul.mubr.bf16.gmra.mxu0 %v462
      %v1622 = vpop.f32.mrf.mxu0
      %v1623 = vadd.f32 %v1462, %v1622
      %v1624 = vpop.f32.mrf.mxu0
      %v1625 = vpop.f32.mrf.mxu0
      %v1626 = vadd.f32 %v1465, %v1625
      %v1627 = vpop.f32.mrf.mxu0
      %1628 = vmatprep.mubr.bf16.mxu0 0
      %1629 = vmatmul.mubr.bf16.gmra.mxu0 %v463
      %v1630 = vpop.f32.mrf.mxu0
      %v1631 = vadd.f32 %v1470, %v1630
      %v1632 = vpop.f32.mrf.mxu0
      %v1633 = vpop.f32.mrf.mxu0
      %v1634 = vadd.f32 %v1473, %v1633
      %v1635 = vpop.f32.mrf.mxu0
      %1636 = vdwg.mxu0
      %s1637 = scalar_lea.vmem [#allocation2], 48
      %v1638 = vld [vmem:[%s1637] sm:$0xff]
      %v1639 = vld [vmem:[%s1637 + $0x8] sm:$0xff]
      %v1640 = vld [vmem:[%s1637 + $0x18] sm:$0xff]
      %v1641 = vld [vmem:[%s1637 + $0x20] sm:$0xff]
      %v1642 = vld [vmem:[%s1637 + $0x30] sm:$0xff]
      %v1643 = vld [vmem:[%s1637 + $0x38] sm:$0xff]
      %v1644 = vld [vmem:[%s1637 + $0x48] sm:$0xff]
      %v1645 = vld [vmem:[%s1637 + $0x50] sm:$0xff]
      %v1646 = vld [vmem:[%s1637 + $0x60] sm:$0xff]
      %v1647 = vld [vmem:[%s1637 + $0x68] sm:$0xff]
      %v1648 = vld [vmem:[%s1637 + $0x78] sm:$0xff]
      %v1649 = vld [vmem:[%s1637 + $0x80] sm:$0xff]
      %v1650 = vld [vmem:[%s1637 + $0x90] sm:$0xff]
      %v1651 = vld [vmem:[%s1637 + $0x98] sm:$0xff]
      %v1652 = vld [vmem:[%s1637 + $0xa8] sm:$0xff]
      %v1653 = vld [vmem:[%s1637 + $0xb0] sm:$0xff]
      %v1654 = vld [vmem:[%s1637 + $0xc0] sm:$0xff]
      %v1655 = vld [vmem:[%s1637 + $0xc8] sm:$0xff]
      %v1656 = vld [vmem:[%s1637 + $0xd8] sm:$0xff]
      %v1657 = vld [vmem:[%s1637 + $0xe0] sm:$0xff]
      %v1658 = vld [vmem:[%s1637 + $0xf0] sm:$0xff]
      %v1659 = vld [vmem:[%s1637 + $0xf8] sm:$0xff]
      %v1660 = vld [vmem:[%s1637 + $0x108] sm:$0xff]
      %v1661 = vld [vmem:[%s1637 + $0x110] sm:$0xff]
      %v1662 = vld [vmem:[%s1637 + $0x120] sm:$0xff]
      %v1663 = vld [vmem:[%s1637 + $0x128] sm:$0xff]
      %v1664 = vld [vmem:[%s1637 + $0x138] sm:$0xff]
      %v1665 = vld [vmem:[%s1637 + $0x140] sm:$0xff]
      %v1666 = vld [vmem:[%s1637 + $0x150] sm:$0xff]
      %v1667 = vld [vmem:[%s1637 + $0x158] sm:$0xff]
      %v1668 = vld [vmem:[%s1637 + $0x168] sm:$0xff]
      %v1669 = vld [vmem:[%s1637 + $0x170] sm:$0xff]
      %v1670 = vpack.c.bf16 %v1639, %v1638
      %v1671 = vpack.c.bf16 %v1641, %v1640
      %v1672 = vpack.c.bf16 %v1643, %v1642
      %v1673 = vpack.c.bf16 %v1645, %v1644
      %v1674 = vpack.c.bf16 %v1647, %v1646
      %v1675 = vpack.c.bf16 %v1649, %v1648
      %v1676 = vpack.c.bf16 %v1651, %v1650
      %v1677 = vpack.c.bf16 %v1653, %v1652
      %v1678 = vpack.c.bf16 %v1655, %v1654
      %v1679 = vpack.c.bf16 %v1657, %v1656
      %v1680 = vpack.c.bf16 %v1659, %v1658
      %v1681 = vpack.c.bf16 %v1661, %v1660
      %v1682 = vpack.c.bf16 %v1663, %v1662
      %v1683 = vpack.c.bf16 %v1665, %v1664
      %v1684 = vpack.c.bf16 %v1667, %v1666
      %v1685 = vpack.c.bf16 %v1669, %v1668
      %v1686 = vld [vmem:[%s1637 + $0x1] sm:$0xff]
      %v1687 = vld [vmem:[%s1637 + $0x9] sm:$0xff]
      %v1688 = vld [vmem:[%s1637 + $0x19] sm:$0xff]
      %v1689 = vld [vmem:[%s1637 + $0x21] sm:$0xff]
      %v1690 = vld [vmem:[%s1637 + $0x31] sm:$0xff]
      %v1691 = vld [vmem:[%s1637 + $0x39] sm:$0xff]
      %v1692 = vld [vmem:[%s1637 + $0x49] sm:$0xff]
      %v1693 = vld [vmem:[%s1637 + $0x51] sm:$0xff]
      %v1694 = vld [vmem:[%s1637 + $0x61] sm:$0xff]
      %v1695 = vld [vmem:[%s1637 + $0x69] sm:$0xff]
      %v1696 = vld [vmem:[%s1637 + $0x79] sm:$0xff]
      %v1697 = vld [vmem:[%s1637 + $0x81] sm:$0xff]
      %v1698 = vld [vmem:[%s1637 + $0x91] sm:$0xff]
      %v1699 = vld [vmem:[%s1637 + $0x99] sm:$0xff]
      %v1700 = vld [vmem:[%s1637 + $0xa9] sm:$0xff]
      %v1701 = vld [vmem:[%s1637 + $0xb1] sm:$0xff]
      %v1702 = vld [vmem:[%s1637 + $0xc1] sm:$0xff]
      %v1703 = vld [vmem:[%s1637 + $0xc9] sm:$0xff]
      %v1704 = vld [vmem:[%s1637 + $0xd9] sm:$0xff]
      %v1705 = vld [vmem:[%s1637 + $0xe1] sm:$0xff]
      %v1706 = vld [vmem:[%s1637 + $0xf1] sm:$0xff]
      %v1707 = vld [vmem:[%s1637 + $0xf9] sm:$0xff]
      %v1708 = vld [vmem:[%s1637 + $0x109] sm:$0xff]
      %v1709 = vld [vmem:[%s1637 + $0x111] sm:$0xff]
      %v1710 = vld [vmem:[%s1637 + $0x121] sm:$0xff]
      %v1711 = vld [vmem:[%s1637 + $0x129] sm:$0xff]
      %v1712 = vld [vmem:[%s1637 + $0x139] sm:$0xff]
      %v1713 = vld [vmem:[%s1637 + $0x141] sm:$0xff]
      %v1714 = vld [vmem:[%s1637 + $0x151] sm:$0xff]
      %v1715 = vld [vmem:[%s1637 + $0x159] sm:$0xff]
      %v1716 = vld [vmem:[%s1637 + $0x169] sm:$0xff]
      %v1717 = vld [vmem:[%s1637 + $0x171] sm:$0xff]
      %v1718 = vpack.c.bf16 %v1687, %v1686
      %v1719 = vpack.c.bf16 %v1689, %v1688
      %v1720 = vpack.c.bf16 %v1691, %v1690
      %v1721 = vpack.c.bf16 %v1693, %v1692
      %v1722 = vpack.c.bf16 %v1695, %v1694
      %v1723 = vpack.c.bf16 %v1697, %v1696
      %v1724 = vpack.c.bf16 %v1699, %v1698
      %v1725 = vpack.c.bf16 %v1701, %v1700
      %v1726 = vpack.c.bf16 %v1703, %v1702
      %v1727 = vpack.c.bf16 %v1705, %v1704
      %v1728 = vpack.c.bf16 %v1707, %v1706
      %v1729 = vpack.c.bf16 %v1709, %v1708
      %v1730 = vpack.c.bf16 %v1711, %v1710
      %v1731 = vpack.c.bf16 %v1713, %v1712
      %v1732 = vpack.c.bf16 %v1715, %v1714
      %v1733 = vpack.c.bf16 %v1717, %v1716
      %v1734 = vld [vmem:[%s1637 + $0x2] sm:$0xff]
      %v1735 = vld [vmem:[%s1637 + $0xa] sm:$0xff]
      %v1736 = vld [vmem:[%s1637 + $0x1a] sm:$0xff]
      %v1737 = vld [vmem:[%s1637 + $0x22] sm:$0xff]
      %v1738 = vld [vmem:[%s1637 + $0x32] sm:$0xff]
      %v1739 = vld [vmem:[%s1637 + $0x3a] sm:$0xff]
      %v1740 = vld [vmem:[%s1637 + $0x4a] sm:$0xff]
      %v1741 = vld [vmem:[%s1637 + $0x52] sm:$0xff]
      %v1742 = vld [vmem:[%s1637 + $0x62] sm:$0xff]
      %v1743 = vld [vmem:[%s1637 + $0x6a] sm:$0xff]
      %v1744 = vld [vmem:[%s1637 + $0x7a] sm:$0xff]
      %v1745 = vld [vmem:[%s1637 + $0x82] sm:$0xff]
      %v1746 = vld [vmem:[%s1637 + $0x92] sm:$0xff]
      %v1747 = vld [vmem:[%s1637 + $0x9a] sm:$0xff]
      %v1748 = vld [vmem:[%s1637 + $0xaa] sm:$0xff]
      %v1749 = vld [vmem:[%s1637 + $0xb2] sm:$0xff]
      %v1750 = vld [vmem:[%s1637 + $0xc2] sm:$0xff]
      %v1751 = vld [vmem:[%s1637 + $0xca] sm:$0xff]
      %v1752 = vld [vmem:[%s1637 + $0xda] sm:$0xff]
      %v1753 = vld [vmem:[%s1637 + $0xe2] sm:$0xff]
      %v1754 = vld [vmem:[%s1637 + $0xf2] sm:$0xff]
      %v1755 = vld [vmem:[%s1637 + $0xfa] sm:$0xff]
      %v1756 = vld [vmem:[%s1637 + $0x10a] sm:$0xff]
      %v1757 = vld [vmem:[%s1637 + $0x112] sm:$0xff]
      %v1758 = vld [vmem:[%s1637 + $0x122] sm:$0xff]
      %v1759 = vld [vmem:[%s1637 + $0x12a] sm:$0xff]
      %v1760 = vld [vmem:[%s1637 + $0x13a] sm:$0xff]
      %v1761 = vld [vmem:[%s1637 + $0x142] sm:$0xff]
      %v1762 = vld [vmem:[%s1637 + $0x152] sm:$0xff]
      %v1763 = vld [vmem:[%s1637 + $0x15a] sm:$0xff]
      %v1764 = vld [vmem:[%s1637 + $0x16a] sm:$0xff]
      %v1765 = vld [vmem:[%s1637 + $0x172] sm:$0xff]
      %v1766 = vpack.c.bf16 %v1735, %v1734
      %v1767 = vpack.c.bf16 %v1737, %v1736
      %v1768 = vpack.c.bf16 %v1739, %v1738
      %v1769 = vpack.c.bf16 %v1741, %v1740
      %v1770 = vpack.c.bf16 %v1743, %v1742
      %v1771 = vpack.c.bf16 %v1745, %v1744
      %v1772 = vpack.c.bf16 %v1747, %v1746
      %v1773 = vpack.c.bf16 %v1749, %v1748
      %v1774 = vpack.c.bf16 %v1751, %v1750
      %v1775 = vpack.c.bf16 %v1753, %v1752
      %v1776 = vpack.c.bf16 %v1755, %v1754
      %v1777 = vpack.c.bf16 %v1757, %v1756
      %v1778 = vpack.c.bf16 %v1759, %v1758
      %v1779 = vpack.c.bf16 %v1761, %v1760
      %v1780 = vpack.c.bf16 %v1763, %v1762
      %v1781 = vpack.c.bf16 %v1765, %v1764
      %s1782 = scalar_lea.vmem %s1, 384
      %v1783 = vld [vmem:[%s1782] sm:$0xf]
      %v1784 = vld [vmem:[%s1782 + $0x4] sm:$0xf]
      %v1785 = vld [vmem:[%s1782 + $0x8] sm:$0xf]
      %v1786 = vld [vmem:[%s1782 + $0xc] sm:$0xf]
      %v1787 = vld [vmem:[%s1782 + $0x10] sm:$0xf]
      %v1788 = vld [vmem:[%s1782 + $0x14] sm:$0xf]
      %v1789 = vld [vmem:[%s1782 + $0x18] sm:$0xf]
      %v1790 = vld [vmem:[%s1782 + $0x1c] sm:$0xf]
      %v1791 = vld [vmem:[%s1782 + $0x20] sm:$0xf]
      %v1792 = vld [vmem:[%s1782 + $0x24] sm:$0xf]
      %v1793 = vld [vmem:[%s1782 + $0x28] sm:$0xf]
      %v1794 = vld [vmem:[%s1782 + $0x2c] sm:$0xf]
      %v1795 = vld [vmem:[%s1782 + $0x30] sm:$0xf]
      %v1796 = vld [vmem:[%s1782 + $0x34] sm:$0xf]
      %v1797 = vld [vmem:[%s1782 + $0x38] sm:$0xf]
      %v1798 = vld [vmem:[%s1782 + $0x3c] sm:$0xf]
      %v1799 = vld [vmem:[%s1782 + $0x40] sm:$0xf]
      %v1800 = vld [vmem:[%s1782 + $0x44] sm:$0xf]
      %v1801 = vld [vmem:[%s1782 + $0x48] sm:$0xf]
      %v1802 = vld [vmem:[%s1782 + $0x4c] sm:$0xf]
      %v1803 = vld [vmem:[%s1782 + $0x50] sm:$0xf]
      %v1804 = vld [vmem:[%s1782 + $0x54] sm:$0xf]
      %v1805 = vld [vmem:[%s1782 + $0x58] sm:$0xf]
      %v1806 = vld [vmem:[%s1782 + $0x5c] sm:$0xf]
      %v1807 = vld [vmem:[%s1782 + $0x60] sm:$0xf]
      %v1808 = vld [vmem:[%s1782 + $0x64] sm:$0xf]
      %v1809 = vld [vmem:[%s1782 + $0x68] sm:$0xf]
      %v1810 = vld [vmem:[%s1782 + $0x6c] sm:$0xf]
      %v1811 = vld [vmem:[%s1782 + $0x70] sm:$0xf]
      %v1812 = vld [vmem:[%s1782 + $0x74] sm:$0xf]
      %v1813 = vld [vmem:[%s1782 + $0x78] sm:$0xf]
      %v1814 = vld [vmem:[%s1782 + $0x7c] sm:$0xf]
      %v1815 = vld [vmem:[%s1782 + $0x80] sm:$0xf]
      %v1816 = vld [vmem:[%s1782 + $0x84] sm:$0xf]
      %v1817 = vld [vmem:[%s1782 + $0x88] sm:$0xf]
      %v1818 = vld [vmem:[%s1782 + $0x8c] sm:$0xf]
      %v1819 = vld [vmem:[%s1782 + $0x90] sm:$0xf]
      %v1820 = vld [vmem:[%s1782 + $0x94] sm:$0xf]
      %v1821 = vld [vmem:[%s1782 + $0x98] sm:$0xf]
      %v1822 = vld [vmem:[%s1782 + $0x9c] sm:$0xf]
      %v1823 = vld [vmem:[%s1782 + $0xa0] sm:$0xf]
      %v1824 = vld [vmem:[%s1782 + $0xa4] sm:$0xf]
      %v1825 = vld [vmem:[%s1782 + $0xa8] sm:$0xf]
      %v1826 = vld [vmem:[%s1782 + $0xac] sm:$0xf]
      %v1827 = vld [vmem:[%s1782 + $0xb0] sm:$0xf]
      %v1828 = vld [vmem:[%s1782 + $0xb4] sm:$0xf]
      %v1829 = vld [vmem:[%s1782 + $0xb8] sm:$0xf]
      %v1830 = vld [vmem:[%s1782 + $0xbc] sm:$0xf]
      %v1879 = vunpack.c.l.b16 %v1783
      %v1880 = vunpack.c.l.b16 %v1784
      %v1881 = vunpack.c.l.b16 %v1785
      %v1882 = vunpack.c.l.b16 %v1786
      %v1883 = vunpack.c.l.b16 %v1787
      %v1884 = vunpack.c.l.b16 %v1788
      %v1885 = vunpack.c.l.b16 %v1789
      %v1886 = vunpack.c.l.b16 %v1790
      %v1887 = vunpack.c.l.b16 %v1791
      %v1888 = vunpack.c.l.b16 %v1792
      %v1889 = vunpack.c.l.b16 %v1793
      %v1890 = vunpack.c.l.b16 %v1794
      %v1891 = vunpack.c.l.b16 %v1795
      %v1892 = vunpack.c.l.b16 %v1796
      %v1893 = vunpack.c.l.b16 %v1797
      %v1894 = vunpack.c.l.b16 %v1798
      %v1895 = vunpack.c.l.b16 %v1799
      %v1896 = vunpack.c.l.b16 %v1800
      %v1897 = vunpack.c.l.b16 %v1801
      %v1898 = vunpack.c.l.b16 %v1802
      %v1899 = vunpack.c.l.b16 %v1803
      %v1900 = vunpack.c.l.b16 %v1804
      %v1901 = vunpack.c.l.b16 %v1805
      %v1902 = vunpack.c.l.b16 %v1806
      %v1903 = vunpack.c.l.b16 %v1807
      %v1904 = vunpack.c.l.b16 %v1808
      %v1905 = vunpack.c.l.b16 %v1809
      %v1906 = vunpack.c.l.b16 %v1810
      %v1907 = vunpack.c.l.b16 %v1811
      %v1908 = vunpack.c.l.b16 %v1812
      %v1909 = vunpack.c.l.b16 %v1813
      %v1910 = vunpack.c.l.b16 %v1814
      %v1911 = vunpack.c.l.b16 %v1815
      %v1912 = vunpack.c.l.b16 %v1816
      %v1913 = vunpack.c.l.b16 %v1817
      %v1914 = vunpack.c.l.b16 %v1818
      %v1915 = vunpack.c.l.b16 %v1819
      %v1916 = vunpack.c.l.b16 %v1820
      %v1917 = vunpack.c.l.b16 %v1821
      %v1918 = vunpack.c.l.b16 %v1822
      %v1919 = vunpack.c.l.b16 %v1823
      %v1920 = vunpack.c.l.b16 %v1824
      %v1921 = vunpack.c.l.b16 %v1825
      %v1922 = vunpack.c.l.b16 %v1826
      %v1923 = vunpack.c.l.b16 %v1827
      %v1924 = vunpack.c.l.b16 %v1828
      %v1925 = vunpack.c.l.b16 %v1829
      %v1926 = vunpack.c.l.b16 %v1830
      %v1927 = vpack.c.b16 %v1880, %v1879
      %v1928 = vpack.c.b16 %v1882, %v1881
      %v1929 = vpack.c.b16 %v1884, %v1883
      %v1930 = vpack.c.b16 %v1886, %v1885
      %v1931 = vpack.c.b16 %v1888, %v1887
      %v1932 = vpack.c.b16 %v1890, %v1889
      %v1933 = vpack.c.b16 %v1892, %v1891
      %v1934 = vpack.c.b16 %v1894, %v1893
      %v1935 = vpack.c.b16 %v1896, %v1895
      %v1936 = vpack.c.b16 %v1898, %v1897
      %v1937 = vpack.c.b16 %v1900, %v1899
      %v1938 = vpack.c.b16 %v1902, %v1901
      %v1939 = vpack.c.b16 %v1904, %v1903
      %v1940 = vpack.c.b16 %v1906, %v1905
      %v1941 = vpack.c.b16 %v1908, %v1907
      %v1942 = vpack.c.b16 %v1910, %v1909
      %v1943 = vpack.c.b16 %v1912, %v1911
      %v1944 = vpack.c.b16 %v1914, %v1913
      %v1945 = vpack.c.b16 %v1916, %v1915
      %v1946 = vpack.c.b16 %v1918, %v1917
      %v1947 = vpack.c.b16 %v1920, %v1919
      %v1948 = vpack.c.b16 %v1922, %v1921
      %v1949 = vpack.c.b16 %v1924, %v1923
      %v1950 = vpack.c.b16 %v1926, %v1925
      %1975 = vmatprep.subr.bf16.mxu0 0
      %1976 = vmatpush1.bf16.msra.mxu0 %v1934
      %1977 = vmatprep.subr.bf16.mxu0 0
      %1978 = vmatpush1.bf16.msra.mxu0 %v1933
      %1979 = vmatprep.subr.bf16.mxu0 0
      %1980 = vmatpush1.bf16.msra.mxu0 %v1932
      %1981 = vmatprep.subr.bf16.mxu0 0
      %1982 = vmatpush1.bf16.msra.mxu0 %v1931
      %1983 = vmatprep.subr.bf16.mxu0 0
      %1984 = vmatpush1.bf16.msra.mxu0 %v1930
      %1985 = vmatprep.subr.bf16.mxu0 0
      %1986 = vmatpush1.bf16.msra.mxu0 %v1929
      %1987 = vmatprep.subr.bf16.mxu0 0
      %1988 = vmatpush1.bf16.msra.mxu0 %v1928
      %1989 = vmatprep.subr.bf16.mxu0 0
      %1990 = vmatpush1.bf16.msra.mxu0 %v1927
      %1991 = vmatprep.subr.bf16.mxu0 0
      %1992 = vmatpush2.bf16.msra.mxu0 %v1942
      %1993 = vmatprep.subr.bf16.mxu0 0
      %1994 = vmatpush2.bf16.msra.mxu0 %v1941
      %1995 = vmatprep.subr.bf16.mxu0 0
      %1996 = vmatpush2.bf16.msra.mxu0 %v1940
      %1997 = vmatprep.subr.bf16.mxu0 0
      %1998 = vmatpush2.bf16.msra.mxu0 %v1939
      %1999 = vmatprep.subr.bf16.mxu0 0
      %2000 = vmatpush2.bf16.msra.mxu0 %v1938
      %2001 = vmatprep.subr.bf16.mxu0 0
      %2002 = vmatpush2.bf16.msra.mxu0 %v1937
      %2003 = vmatprep.subr.bf16.mxu0 0
      %2004 = vmatpush2.bf16.msra.mxu0 %v1936
      %2005 = vmatprep.subr.bf16.mxu0 0
      %2006 = vmatpush2.bf16.msra.mxu0 %v1935
      %2007 = vmatprep.mubr.bf16.mxu0 %v1718
      %2008 = vmatmul.mubr.bf16.gmra.mxu0 %v1670
      %v2009 = vpop.f32.mrf.mxu0
      %v2010 = vadd.f32 0.0, %v2009
      %v2011 = vpop.f32.mrf.mxu0
      %v2012 = vpop.f32.mrf.mxu0
      %v2013 = vadd.f32 0.0, %v2012
      %v2014 = vpop.f32.mrf.mxu0
      %2015 = vmatprep.mubr.bf16.mxu0 %v1719
      %2016 = vmatmul.mubr.bf16.gmra.mxu0 %v1671
      %v2017 = vpop.f32.mrf.mxu0
      %v2018 = vadd.f32 0.0, %v2017
      %v2019 = vpop.f32.mrf.mxu0
      %v2020 = vpop.f32.mrf.mxu0
      %v2021 = vadd.f32 0.0, %v2020
      %v2022 = vpop.f32.mrf.mxu0
      %2023 = vmatprep.mubr.bf16.mxu0 %v1720
      %2024 = vmatmul.mubr.bf16.gmra.mxu0 %v1672
      %v2025 = vpop.f32.mrf.mxu0
      %v2026 = vadd.f32 0.0, %v2025
      %v2027 = vpop.f32.mrf.mxu0
      %v2028 = vpop.f32.mrf.mxu0
      %v2029 = vadd.f32 0.0, %v2028
      %v2030 = vpop.f32.mrf.mxu0
      %2031 = vmatprep.mubr.bf16.mxu0 %v1721
      %2032 = vmatmul.mubr.bf16.gmra.mxu0 %v1673
      %v2033 = vpop.f32.mrf.mxu0
      %v2034 = vadd.f32 0.0, %v2033
      %v2035 = vpop.f32.mrf.mxu0
      %v2036 = vpop.f32.mrf.mxu0
      %v2037 = vadd.f32 0.0, %v2036
      %v2038 = vpop.f32.mrf.mxu0
      %2039 = vmatprep.mubr.bf16.mxu0 %v1722
      %2040 = vmatmul.mubr.bf16.gmra.mxu0 %v1674
      %v2041 = vpop.f32.mrf.mxu0
      %v2042 = vadd.f32 0.0, %v2041
      %v2043 = vpop.f32.mrf.mxu0
      %v2044 = vpop.f32.mrf.mxu0
      %v2045 = vadd.f32 0.0, %v2044
      %v2046 = vpop.f32.mrf.mxu0
      %2047 = vmatprep.mubr.bf16.mxu0 %v1723
      %2048 = vmatmul.mubr.bf16.gmra.mxu0 %v1675
      %v2049 = vpop.f32.mrf.mxu0
      %v2050 = vadd.f32 0.0, %v2049
      %v2051 = vpop.f32.mrf.mxu0
      %v2052 = vpop.f32.mrf.mxu0
      %v2053 = vadd.f32 0.0, %v2052
      %v2054 = vpop.f32.mrf.mxu0
      %2055 = vmatprep.mubr.bf16.mxu0 %v1724
      %2056 = vmatmul.mubr.bf16.gmra.mxu0 %v1676
      %v2057 = vpop.f32.mrf.mxu0
      %v2058 = vadd.f32 0.0, %v2057
      %v2059 = vpop.f32.mrf.mxu0
      %v2060 = vpop.f32.mrf.mxu0
      %v2061 = vadd.f32 0.0, %v2060
      %v2062 = vpop.f32.mrf.mxu0
      %2063 = vmatprep.mubr.bf16.mxu0 %v1725
      %2064 = vmatmul.mubr.bf16.gmra.mxu0 %v1677
      %v2065 = vpop.f32.mrf.mxu0
      %v2066 = vadd.f32 0.0, %v2065
      %v2067 = vpop.f32.mrf.mxu0
      %v2068 = vpop.f32.mrf.mxu0
      %v2069 = vadd.f32 0.0, %v2068
      %v2070 = vpop.f32.mrf.mxu0
      %2071 = vmatprep.mubr.bf16.mxu0 %v1726
      %2072 = vmatmul.mubr.bf16.gmra.mxu0 %v1678
      %v2073 = vpop.f32.mrf.mxu0
      %v2074 = vadd.f32 0.0, %v2073
      %v2075 = vpop.f32.mrf.mxu0
      %v2076 = vpop.f32.mrf.mxu0
      %v2077 = vadd.f32 0.0, %v2076
      %v2078 = vpop.f32.mrf.mxu0
      %2079 = vmatprep.mubr.bf16.mxu0 %v1727
      %2080 = vmatmul.mubr.bf16.gmra.mxu0 %v1679
      %v2081 = vpop.f32.mrf.mxu0
      %v2082 = vadd.f32 0.0, %v2081
      %v2083 = vpop.f32.mrf.mxu0
      %v2084 = vpop.f32.mrf.mxu0
      %v2085 = vadd.f32 0.0, %v2084
      %v2086 = vpop.f32.mrf.mxu0
      %2087 = vmatprep.mubr.bf16.mxu0 %v1728
      %2088 = vmatmul.mubr.bf16.gmra.mxu0 %v1680
      %v2089 = vpop.f32.mrf.mxu0
      %v2090 = vadd.f32 0.0, %v2089
      %v2091 = vpop.f32.mrf.mxu0
      %v2092 = vpop.f32.mrf.mxu0
      %v2093 = vadd.f32 0.0, %v2092
      %v2094 = vpop.f32.mrf.mxu0
      %2095 = vmatprep.mubr.bf16.mxu0 %v1729
      %2096 = vmatmul.mubr.bf16.gmra.mxu0 %v1681
      %v2097 = vpop.f32.mrf.mxu0
      %v2098 = vadd.f32 0.0, %v2097
      %v2099 = vpop.f32.mrf.mxu0
      %v2100 = vpop.f32.mrf.mxu0
      %v2101 = vadd.f32 0.0, %v2100
      %v2102 = vpop.f32.mrf.mxu0
      %2103 = vmatprep.mubr.bf16.mxu0 %v1730
      %2104 = vmatmul.mubr.bf16.gmra.mxu0 %v1682
      %v2105 = vpop.f32.mrf.mxu0
      %v2106 = vadd.f32 0.0, %v2105
      %v2107 = vpop.f32.mrf.mxu0
      %v2108 = vpop.f32.mrf.mxu0
      %v2109 = vadd.f32 0.0, %v2108
      %v2110 = vpop.f32.mrf.mxu0
      %2111 = vmatprep.mubr.bf16.mxu0 %v1731
      %2112 = vmatmul.mubr.bf16.gmra.mxu0 %v1683
      %v2113 = vpop.f32.mrf.mxu0
      %v2114 = vadd.f32 0.0, %v2113
      %v2115 = vpop.f32.mrf.mxu0
      %v2116 = vpop.f32.mrf.mxu0
      %v2117 = vadd.f32 0.0, %v2116
      %v2118 = vpop.f32.mrf.mxu0
      %2119 = vmatprep.mubr.bf16.mxu0 %v1732
      %2120 = vmatmul.mubr.bf16.gmra.mxu0 %v1684
      %v2121 = vpop.f32.mrf.mxu0
      %v2122 = vadd.f32 0.0, %v2121
      %v2123 = vpop.f32.mrf.mxu0
      %v2124 = vpop.f32.mrf.mxu0
      %v2125 = vadd.f32 0.0, %v2124
      %v2126 = vpop.f32.mrf.mxu0
      %2127 = vmatprep.mubr.bf16.mxu0 %v1733
      %2128 = vmatmul.mubr.bf16.gmra.mxu0 %v1685
      %v2129 = vpop.f32.mrf.mxu0
      %v2130 = vadd.f32 0.0, %v2129
      %v2131 = vpop.f32.mrf.mxu0
      %v2132 = vpop.f32.mrf.mxu0
      %v2133 = vadd.f32 0.0, %v2132
      %v2134 = vpop.f32.mrf.mxu0
      %2135 = vdwg.mxu0
      %2136 = vmatprep.subr.bf16.mxu0 0
      %2137 = vmatpush1.bf16.msra.mxu0 %v1950
      %2138 = vmatprep.subr.bf16.mxu0 0
      %2139 = vmatpush1.bf16.msra.mxu0 %v1949
      %2140 = vmatprep.subr.bf16.mxu0 0
      %2141 = vmatpush1.bf16.msra.mxu0 %v1948
      %2142 = vmatprep.subr.bf16.mxu0 0
      %2143 = vmatpush1.bf16.msra.mxu0 %v1947
      %2144 = vmatprep.subr.bf16.mxu0 0
      %2145 = vmatpush1.bf16.msra.mxu0 %v1946
      %2146 = vmatprep.subr.bf16.mxu0 0
      %2147 = vmatpush1.bf16.msra.mxu0 %v1945
      %2148 = vmatprep.subr.bf16.mxu0 0
      %2149 = vmatpush1.bf16.msra.mxu0 %v1944
      %2150 = vmatprep.subr.bf16.mxu0 0
      %2151 = vmatpush1.bf16.msra.mxu0 %v1943
      %2152 = vmatprep.subr.bf16.mxu0 0
      %2153 = vmatpush2.bf16.msra.mxu0 0
      %2154 = vmatprep.subr.bf16.mxu0 0
      %2155 = vmatpush2.bf16.msra.mxu0 0
      %2156 = vmatprep.subr.bf16.mxu0 0
      %2157 = vmatpush2.bf16.msra.mxu0 0
      %2158 = vmatprep.subr.bf16.mxu0 0
      %2159 = vmatpush2.bf16.msra.mxu0 0
      %2160 = vmatprep.subr.bf16.mxu0 0
      %2161 = vmatpush2.bf16.msra.mxu0 0
      %2162 = vmatprep.subr.bf16.mxu0 0
      %2163 = vmatpush2.bf16.msra.mxu0 0
      %2164 = vmatprep.subr.bf16.mxu0 0
      %2165 = vmatpush2.bf16.msra.mxu0 0
      %2166 = vmatprep.subr.bf16.mxu0 0
      %2167 = vmatpush2.bf16.msra.mxu0 0
      %2168 = vmatprep.mubr.bf16.mxu0 0
      %2169 = vmatmul.mubr.bf16.gmra.mxu0 %v1766
      %v2170 = vpop.f32.mrf.mxu0
      %v2171 = vadd.f32 %v2010, %v2170
      %v2172 = vpop.f32.mrf.mxu0
      %v2173 = vpop.f32.mrf.mxu0
      %v2174 = vadd.f32 %v2013, %v2173
      %v2175 = vpop.f32.mrf.mxu0
      %2176 = vmatprep.mubr.bf16.mxu0 0
      %2177 = vmatmul.mubr.bf16.gmra.mxu0 %v1767
      %v2178 = vpop.f32.mrf.mxu0
      %v2179 = vadd.f32 %v2018, %v2178
      %v2180 = vpop.f32.mrf.mxu0
      %v2181 = vpop.f32.mrf.mxu0
      %v2182 = vadd.f32 %v2021, %v2181
      %v2183 = vpop.f32.mrf.mxu0
      %2184 = vmatprep.mubr.bf16.mxu0 0
      %2185 = vmatmul.mubr.bf16.gmra.mxu0 %v1768
      %v2186 = vpop.f32.mrf.mxu0
      %v2187 = vadd.f32 %v2026, %v2186
      %v2188 = vpop.f32.mrf.mxu0
      %v2189 = vpop.f32.mrf.mxu0
      %v2190 = vadd.f32 %v2029, %v2189
      %v2191 = vpop.f32.mrf.mxu0
      %2192 = vmatprep.mubr.bf16.mxu0 0
      %2193 = vmatmul.mubr.bf16.gmra.mxu0 %v1769
      %v2194 = vpop.f32.mrf.mxu0
      %v2195 = vadd.f32 %v2034, %v2194
      %v2196 = vpop.f32.mrf.mxu0
      %v2197 = vpop.f32.mrf.mxu0
      %v2198 = vadd.f32 %v2037, %v2197
      %v2199 = vpop.f32.mrf.mxu0
      %2200 = vmatprep.mubr.bf16.mxu0 0
      %2201 = vmatmul.mubr.bf16.gmra.mxu0 %v1770
      %v2202 = vpop.f32.mrf.mxu0
      %v2203 = vadd.f32 %v2042, %v2202
      %v2204 = vpop.f32.mrf.mxu0
      %v2205 = vpop.f32.mrf.mxu0
      %v2206 = vadd.f32 %v2045, %v2205
      %v2207 = vpop.f32.mrf.mxu0
      %2208 = vmatprep.mubr.bf16.mxu0 0
      %2209 = vmatmul.mubr.bf16.gmra.mxu0 %v1771
      %v2210 = vpop.f32.mrf.mxu0
      %v2211 = vadd.f32 %v2050, %v2210
      %v2212 = vpop.f32.mrf.mxu0
      %v2213 = vpop.f32.mrf.mxu0
      %v2214 = vadd.f32 %v2053, %v2213
      %v2215 = vpop.f32.mrf.mxu0
      %2216 = vmatprep.mubr.bf16.mxu0 0
      %2217 = vmatmul.mubr.bf16.gmra.mxu0 %v1772
      %v2218 = vpop.f32.mrf.mxu0
      %v2219 = vadd.f32 %v2058, %v2218
      %v2220 = vpop.f32.mrf.mxu0
      %v2221 = vpop.f32.mrf.mxu0
      %v2222 = vadd.f32 %v2061, %v2221
      %v2223 = vpop.f32.mrf.mxu0
      %2224 = vmatprep.mubr.bf16.mxu0 0
      %2225 = vmatmul.mubr.bf16.gmra.mxu0 %v1773
      %v2226 = vpop.f32.mrf.mxu0
      %v2227 = vadd.f32 %v2066, %v2226
      %v2228 = vpop.f32.mrf.mxu0
      %v2229 = vpop.f32.mrf.mxu0
      %v2230 = vadd.f32 %v2069, %v2229
      %v2231 = vpop.f32.mrf.mxu0
      %2232 = vmatprep.mubr.bf16.mxu0 0
      %2233 = vmatmul.mubr.bf16.gmra.mxu0 %v1774
      %v2234 = vpop.f32.mrf.mxu0
      %v2235 = vadd.f32 %v2074, %v2234
      %v2236 = vpop.f32.mrf.mxu0
      %v2237 = vpop.f32.mrf.mxu0
      %v2238 = vadd.f32 %v2077, %v2237
      %v2239 = vpop.f32.mrf.mxu0
      %2240 = vmatprep.mubr.bf16.mxu0 0
      %2241 = vmatmul.mubr.bf16.gmra.mxu0 %v1775
      %v2242 = vpop.f32.mrf.mxu0
      %v2243 = vadd.f32 %v2082, %v2242
      %v2244 = vpop.f32.mrf.mxu0
      %v2245 = vpop.f32.mrf.mxu0
      %v2246 = vadd.f32 %v2085, %v2245
      %v2247 = vpop.f32.mrf.mxu0
      %2248 = vmatprep.mubr.bf16.mxu0 0
      %2249 = vmatmul.mubr.bf16.gmra.mxu0 %v1776
      %v2250 = vpop.f32.mrf.mxu0
      %v2251 = vadd.f32 %v2090, %v2250
      %v2252 = vpop.f32.mrf.mxu0
      %v2253 = vpop.f32.mrf.mxu0
      %v2254 = vadd.f32 %v2093, %v2253
      %v2255 = vpop.f32.mrf.mxu0
      %2256 = vmatprep.mubr.bf16.mxu0 0
      %2257 = vmatmul.mubr.bf16.gmra.mxu0 %v1777
      %v2258 = vpop.f32.mrf.mxu0
      %v2259 = vadd.f32 %v2098, %v2258
      %v2260 = vpop.f32.mrf.mxu0
      %v2261 = vpop.f32.mrf.mxu0
      %v2262 = vadd.f32 %v2101, %v2261
      %v2263 = vpop.f32.mrf.mxu0
      %2264 = vmatprep.mubr.bf16.mxu0 0
      %2265 = vmatmul.mubr.bf16.gmra.mxu0 %v1778
      %v2266 = vpop.f32.mrf.mxu0
      %v2267 = vadd.f32 %v2106, %v2266
      %v2268 = vpop.f32.mrf.mxu0
      %v2269 = vpop.f32.mrf.mxu0
      %v2270 = vadd.f32 %v2109, %v2269
      %v2271 = vpop.f32.mrf.mxu0
      %2272 = vmatprep.mubr.bf16.mxu0 0
      %2273 = vmatmul.mubr.bf16.gmra.mxu0 %v1779
      %v2274 = vpop.f32.mrf.mxu0
      %v2275 = vadd.f32 %v2114, %v2274
      %v2276 = vpop.f32.mrf.mxu0
      %v2277 = vpop.f32.mrf.mxu0
      %v2278 = vadd.f32 %v2117, %v2277
      %v2279 = vpop.f32.mrf.mxu0
      %2280 = vmatprep.mubr.bf16.mxu0 0
      %2281 = vmatmul.mubr.bf16.gmra.mxu0 %v1780
      %v2282 = vpop.f32.mrf.mxu0
      %v2283 = vadd.f32 %v2122, %v2282
      %v2284 = vpop.f32.mrf.mxu0
      %v2285 = vpop.f32.mrf.mxu0
      %v2286 = vadd.f32 %v2125, %v2285
      %v2287 = vpop.f32.mrf.mxu0
      %2288 = vmatprep.mubr.bf16.mxu0 0
      %2289 = vmatmul.mubr.bf16.gmra.mxu0 %v1781
      %v2290 = vpop.f32.mrf.mxu0
      %v2291 = vadd.f32 %v2130, %v2290
      %v2292 = vpop.f32.mrf.mxu0
      %v2293 = vpop.f32.mrf.mxu0
      %v2294 = vadd.f32 %v2133, %v2293
      %v2295 = vpop.f32.mrf.mxu0
      %2296 = vdwg.mxu0
      %v2297 = vadd.f32 %v1511, %v2171
      %v2298 = vadd.f32 %v1514, %v2174
      %v2299 = vadd.f32 %v1519, %v2179
      %v2300 = vadd.f32 %v1522, %v2182
      %v2301 = vadd.f32 %v1527, %v2187
      %v2302 = vadd.f32 %v1530, %v2190
      %v2303 = vadd.f32 %v1535, %v2195
      %v2304 = vadd.f32 %v1538, %v2198
      %v2305 = vadd.f32 %v1543, %v2203
      %v2306 = vadd.f32 %v1546, %v2206
      %v2307 = vadd.f32 %v1551, %v2211
      %v2308 = vadd.f32 %v1554, %v2214
      %v2309 = vadd.f32 %v1559, %v2219
      %v2310 = vadd.f32 %v1562, %v2222
      %v2311 = vadd.f32 %v1567, %v2227
      %v2312 = vadd.f32 %v1570, %v2230
      %v2313 = vadd.f32 %v1575, %v2235
      %v2314 = vadd.f32 %v1578, %v2238
      %v2315 = vadd.f32 %v1583, %v2243
      %v2316 = vadd.f32 %v1586, %v2246
      %v2317 = vadd.f32 %v1591, %v2251
      %v2318 = vadd.f32 %v1594, %v2254
      %v2319 = vadd.f32 %v1599, %v2259
      %v2320 = vadd.f32 %v1602, %v2262
      %v2321 = vadd.f32 %v1607, %v2267
      %v2322 = vadd.f32 %v1610, %v2270
      %v2323 = vadd.f32 %v1615, %v2275
      %v2324 = vadd.f32 %v1618, %v2278
      %v2325 = vadd.f32 %v1623, %v2283
      %v2326 = vadd.f32 %v1626, %v2286
      %v2327 = vadd.f32 %v1631, %v2291
      %v2328 = vadd.f32 %v1634, %v2294
      %v2329 = vpack.c.bf16 %v2298, %v2297
      %v2330 = vpack.c.bf16 %v2300, %v2299
      %v2331 = vpack.c.bf16 %v2302, %v2301
      %v2332 = vpack.c.bf16 %v2304, %v2303
      %v2333 = vpack.c.bf16 %v2306, %v2305
      %v2334 = vpack.c.bf16 %v2308, %v2307
      %v2335 = vpack.c.bf16 %v2310, %v2309
      %v2336 = vpack.c.bf16 %v2312, %v2311
      %v2337 = vpack.c.bf16 %v2314, %v2313
      %v2338 = vpack.c.bf16 %v2316, %v2315
      %v2339 = vpack.c.bf16 %v2318, %v2317
      %v2340 = vpack.c.bf16 %v2320, %v2319
      %v2341 = vpack.c.bf16 %v2322, %v2321
      %v2342 = vpack.c.bf16 %v2324, %v2323
      %v2343 = vpack.c.bf16 %v2326, %v2325
      %v2344 = vpack.c.bf16 %v2328, %v2327
      %v2361 = vunpack.c.l.b16 %v2329
      %v2362 = vunpack.c.h.b16 %v2329
      %v2363 = vunpack.c.l.b16 %v2330
      %v2364 = vunpack.c.h.b16 %v2330
      %v2365 = vunpack.c.l.b16 %v2331
      %v2366 = vunpack.c.h.b16 %v2331
      %v2367 = vunpack.c.l.b16 %v2332
      %v2368 = vunpack.c.h.b16 %v2332
      %v2369 = vunpack.c.l.b16 %v2333
      %v2370 = vunpack.c.h.b16 %v2333
      %v2371 = vunpack.c.l.b16 %v2334
      %v2372 = vunpack.c.h.b16 %v2334
      %v2373 = vunpack.c.l.b16 %v2335
      %v2374 = vunpack.c.h.b16 %v2335
      %v2375 = vunpack.c.l.b16 %v2336
      %v2376 = vunpack.c.h.b16 %v2336
      %v2377 = vunpack.c.l.b16 %v2337
      %v2378 = vunpack.c.h.b16 %v2337
      %v2379 = vunpack.c.l.b16 %v2338
      %v2380 = vunpack.c.h.b16 %v2338
      %v2381 = vunpack.c.l.b16 %v2339
      %v2382 = vunpack.c.h.b16 %v2339
      %v2383 = vunpack.c.l.b16 %v2340
      %v2384 = vunpack.c.h.b16 %v2340
      %v2385 = vunpack.c.l.b16 %v2341
      %v2386 = vunpack.c.h.b16 %v2341
      %v2387 = vunpack.c.l.b16 %v2342
      %v2388 = vunpack.c.h.b16 %v2342
      %v2389 = vunpack.c.l.b16 %v2343
      %v2390 = vunpack.c.h.b16 %v2343
      %v2391 = vunpack.c.l.b16 %v2344
      %v2392 = vunpack.c.h.b16 %v2344
      %v2393 = vpack.c.b16 %v2361, %v2361
      %v2394 = vpack.c.b16 %v2362, %v2362
      %v2395 = vpack.c.b16 %v2363, %v2363
      %v2396 = vpack.c.b16 %v2364, %v2364
      %v2397 = vpack.c.b16 %v2365, %v2365
      %v2398 = vpack.c.b16 %v2366, %v2366
      %v2399 = vpack.c.b16 %v2367, %v2367
      %v2400 = vpack.c.b16 %v2368, %v2368
      %v2401 = vpack.c.b16 %v2369, %v2369
      %v2402 = vpack.c.b16 %v2370, %v2370
      %v2403 = vpack.c.b16 %v2371, %v2371
      %v2404 = vpack.c.b16 %v2372, %v2372
      %v2405 = vpack.c.b16 %v2373, %v2373
      %v2406 = vpack.c.b16 %v2374, %v2374
      %v2407 = vpack.c.b16 %v2375, %v2375
      %v2408 = vpack.c.b16 %v2376, %v2376
      %v2409 = vpack.c.b16 %v2377, %v2377
      %v2410 = vpack.c.b16 %v2378, %v2378
      %v2411 = vpack.c.b16 %v2379, %v2379
      %v2412 = vpack.c.b16 %v2380, %v2380
      %v2413 = vpack.c.b16 %v2381, %v2381
      %v2414 = vpack.c.b16 %v2382, %v2382
      %v2415 = vpack.c.b16 %v2383, %v2383
      %v2416 = vpack.c.b16 %v2384, %v2384
      %v2417 = vpack.c.b16 %v2385, %v2385
      %v2418 = vpack.c.b16 %v2386, %v2386
      %v2419 = vpack.c.b16 %v2387, %v2387
      %v2420 = vpack.c.b16 %v2388, %v2388
      %v2421 = vpack.c.b16 %v2389, %v2389
      %v2422 = vpack.c.b16 %v2390, %v2390
      %v2423 = vpack.c.b16 %v2391, %v2391
      %v2424 = vpack.c.b16 %v2392, %v2392
      %2457 = vst [vmem:[%s177] sm:$0xf] %v2393
      %2458 = vst [vmem:[%s177 + $0x4] sm:$0xf] %v2394
      %2459 = vst [vmem:[%s177 + $0x8] sm:$0xf] %v2395
      %2460 = vst [vmem:[%s177 + $0xc] sm:$0xf] %v2396
      %2461 = vst [vmem:[%s177 + $0x10] sm:$0xf] %v2397
      %2462 = vst [vmem:[%s177 + $0x14] sm:$0xf] %v2398
      %2463 = vst [vmem:[%s177 + $0x18] sm:$0xf] %v2399
      %2464 = vst [vmem:[%s177 + $0x1c] sm:$0xf] %v2400
      %2465 = vst [vmem:[%s177 + $0x20] sm:$0xf] %v2401
      %2466 = vst [vmem:[%s177 + $0x24] sm:$0xf] %v2402
      %2467 = vst [vmem:[%s177 + $0x28] sm:$0xf] %v2403
      %2468 = vst [vmem:[%s177 + $0x2c] sm:$0xf] %v2404
      %2469 = vst [vmem:[%s177 + $0x30] sm:$0xf] %v2405
      %2470 = vst [vmem:[%s177 + $0x34] sm:$0xf] %v2406
      %2471 = vst [vmem:[%s177 + $0x38] sm:$0xf] %v2407
      %2472 = vst [vmem:[%s177 + $0x3c] sm:$0xf] %v2408
      %2473 = vst [vmem:[%s177 + $0x40] sm:$0xf] %v2409
      %2474 = vst [vmem:[%s177 + $0x44] sm:$0xf] %v2410
      %2475 = vst [vmem:[%s177 + $0x48] sm:$0xf] %v2411
      %2476 = vst [vmem:[%s177 + $0x4c] sm:$0xf] %v2412
      %2477 = vst [vmem:[%s177 + $0x50] sm:$0xf] %v2413
      %2478 = vst [vmem:[%s177 + $0x54] sm:$0xf] %v2414
      %2479 = vst [vmem:[%s177 + $0x58] sm:$0xf] %v2415
      %2480 = vst [vmem:[%s177 + $0x5c] sm:$0xf] %v2416
      %2481 = vst [vmem:[%s177 + $0x60] sm:$0xf] %v2417
      %2482 = vst [vmem:[%s177 + $0x64] sm:$0xf] %v2418
      %2483 = vst [vmem:[%s177 + $0x68] sm:$0xf] %v2419
      %2484 = vst [vmem:[%s177 + $0x6c] sm:$0xf] %v2420
      %2485 = vst [vmem:[%s177 + $0x70] sm:$0xf] %v2421
      %2486 = vst [vmem:[%s177 + $0x74] sm:$0xf] %v2422
      %2487 = vst [vmem:[%s177 + $0x78] sm:$0xf] %v2423
      %2488 = vst [vmem:[%s177 + $0x7c] sm:$0xf] %v2424
      %v2489 = vadd.f32 %v2297, %v2298
      %v2490 = vadd.f32 %v2489, %v2299
      %v2491 = vadd.f32 %v2490, %v2300
      %v2492 = vadd.f32 %v2491, %v2301
      %v2493 = vadd.f32 %v2492, %v2302
      %v2494 = vadd.f32 %v2493, %v2303
      %v2495 = vadd.f32 %v2494, %v2304
      %v2496 = vadd.f32 %v2495, %v2305
      %v2497 = vadd.f32 %v2496, %v2306
      %v2498 = vadd.f32 %v2497, %v2307
      %v2499 = vadd.f32 %v2498, %v2308
      %v2500 = vadd.f32 %v2499, %v2309
      %v2501 = vadd.f32 %v2500, %v2310
      %v2502 = vadd.f32 %v2501, %v2311
      %v2503 = vadd.f32 %v2502, %v2312
      %v2504 = vadd.f32 %v2503, %v2313
      %v2505 = vadd.f32 %v2504, %v2314
      %v2506 = vadd.f32 %v2505, %v2315
      %v2507 = vadd.f32 %v2506, %v2316
      %v2508 = vadd.f32 %v2507, %v2317
      %v2509 = vadd.f32 %v2508, %v2318
      %v2510 = vadd.f32 %v2509, %v2319
      %v2511 = vadd.f32 %v2510, %v2320
      %v2512 = vadd.f32 %v2511, %v2321
      %v2513 = vadd.f32 %v2512, %v2322
      %v2514 = vadd.f32 %v2513, %v2323
      %v2515 = vadd.f32 %v2514, %v2324
      %v2516 = vadd.f32 %v2515, %v2325
      %v2517 = vadd.f32 %v2516, %v2326
      %v2518 = vadd.f32 %v2517, %v2327
      %v2519 = vadd.f32 %v2518, %v2328
      %v2520 = vrot.slane %v2519, 4
      %v2521 = vadd.f32 %v2519, %v2520
      %v2522 = vrot.slane %v2521, 2
      %v2523 = vadd.f32 %v2521, %v2522
      %v2524 = vrot.slane %v2523, 1
      %v2525 = vadd.f32 %v2523, %v2524
      %v2526 = vmul.f32 %v2297, %v2297
      %v2527 = vmul.f32 %v2298, %v2298
      %v2528 = vmul.f32 %v2299, %v2299
      %v2529 = vmul.f32 %v2300, %v2300
      %v2530 = vmul.f32 %v2301, %v2301
      %v2531 = vmul.f32 %v2302, %v2302
      %v2532 = vmul.f32 %v2303, %v2303
      %v2533 = vmul.f32 %v2304, %v2304
      %v2534 = vmul.f32 %v2305, %v2305
      %v2535 = vmul.f32 %v2306, %v2306
      %v2536 = vmul.f32 %v2307, %v2307
      %v2537 = vmul.f32 %v2308, %v2308
      %v2538 = vmul.f32 %v2309, %v2309
      %v2539 = vmul.f32 %v2310, %v2310
      %v2540 = vmul.f32 %v2311, %v2311
      %v2541 = vmul.f32 %v2312, %v2312
      %v2542 = vmul.f32 %v2313, %v2313
      %v2543 = vmul.f32 %v2314, %v2314
      %v2544 = vmul.f32 %v2315, %v2315
      %v2545 = vmul.f32 %v2316, %v2316
      %v2546 = vmul.f32 %v2317, %v2317
      %v2547 = vmul.f32 %v2318, %v2318
      %v2548 = vmul.f32 %v2319, %v2319
      %v2549 = vmul.f32 %v2320, %v2320
      %v2550 = vmul.f32 %v2321, %v2321
      %v2551 = vmul.f32 %v2322, %v2322
      %v2552 = vmul.f32 %v2323, %v2323
      %v2553 = vmul.f32 %v2324, %v2324
      %v2554 = vmul.f32 %v2325, %v2325
      %v2555 = vmul.f32 %v2326, %v2326
      %v2556 = vmul.f32 %v2327, %v2327
      %v2557 = vmul.f32 %v2328, %v2328
      %v2558 = vadd.f32 %v2526, %v2527
      %v2559 = vadd.f32 %v2558, %v2528
      %v2560 = vadd.f32 %v2559, %v2529
      %v2561 = vadd.f32 %v2560, %v2530
      %v2562 = vadd.f32 %v2561, %v2531
      %v2563 = vadd.f32 %v2562, %v2532
      %v2564 = vadd.f32 %v2563, %v2533
      %v2565 = vadd.f32 %v2564, %v2534
      %v2566 = vadd.f32 %v2565, %v2535
      %v2567 = vadd.f32 %v2566, %v2536
      %v2568 = vadd.f32 %v2567, %v2537
      %v2569 = vadd.f32 %v2568, %v2538
      %v2570 = vadd.f32 %v2569, %v2539
      %v2571 = vadd.f32 %v2570, %v2540
      %v2572 = vadd.f32 %v2571, %v2541
      %v2573 = vadd.f32 %v2572, %v2542
      %v2574 = vadd.f32 %v2573, %v2543
      %v2575 = vadd.f32 %v2574, %v2544
      %v2576 = vadd.f32 %v2575, %v2545
      %v2577 = vadd.f32 %v2576, %v2546
      %v2578 = vadd.f32 %v2577, %v2547
      %v2579 = vadd.f32 %v2578, %v2548
      %v2580 = vadd.f32 %v2579, %v2549
      %v2581 = vadd.f32 %v2580, %v2550
      %v2582 = vadd.f32 %v2581, %v2551
      %v2583 = vadd.f32 %v2582, %v2552
      %v2584 = vadd.f32 %v2583, %v2553
      %v2585 = vadd.f32 %v2584, %v2554
      %v2586 = vadd.f32 %v2585, %v2555
      %v2587 = vadd.f32 %v2586, %v2556
      %v2588 = vadd.f32 %v2587, %v2557
      %v2589 = vrot.slane %v2588, 4
      %v2590 = vadd.f32 %v2588, %v2589
      %v2591 = vrot.slane %v2590, 2
      %v2592 = vadd.f32 %v2590, %v2591
      %v2593 = vrot.slane %v2592, 1
      %v2594 = vadd.f32 %v2592, %v2593
      %vm2595 = vcmask 1040384
      %v2596 = vsel %vm2595, %v2525, %v2594
      %2597 = vst [vmem:[%s181] sm:$0x3] %v2596
      %p2598 = scmp.lt.s32.totalorder %s15, 1
      %s2599 = scalar_select %p2598, %s15, 1
      %s2600 = smul.addr %s2599, 32
      %s2601 = smul.addr %s2600, 4
      %s2602 = scalar_lea.vmem %s2, %s2601
      %p2603 = scmp.lt.s32.totalorder %s15, 1
      %s2604 = scalar_select %p2603, %s15, 1
      %s2605 = smul.addr %s2604, 2
      %s2606 = scalar_lea.vmem %s3, %s2605
      // Predicated region
      $region29: #{residual_block_forward.3} parent=27 // pred_check
        %p2607 = pneg %p80
      $region30: #{residual_block_forward.3} parent=27 // pred_check_branch
        %2609 = sbr.rel (%p2607) target = $region32
      $region31: #{residual_block_forward.3} parent=27 // pred_region
        _
      $region32: #{residual_block_forward.3} parent=27 // pred_fallthru
        _
      // Predicated region
      $region33: #{residual_block_forward.3} parent=27 // pred_check
        %p2610 = pneg %p106
      $region34: #{residual_block_forward.3} parent=27 // pred_check_branch
        %2612 = sbr.rel (%p2610) target = $region36
      $region35: #{residual_block_forward.3} parent=27 // pred_region
        _
      $region36: #{residual_block_forward.3} parent=27 // pred_fallthru
        _
    $region28: #{residual_block_forward.3} parent=5 // pred_fallthru
      _
    %p2613 = scmp.le.s32.totalorder 2, %s10
    // Predicated region
    $region37: #{residual_block_forward.3} parent=5 // pred_check
      %p2614 = pneg %p2613
    $region38: #{residual_block_forward.3} parent=5 // pred_check_branch
      %2616 = sbr.rel (%p2614) target = $region40
    $region39: #{residual_block_forward.3} parent=5 // pred_region
      %s2617 = ssub.s32 %s10, 2
      // Predicated region
      $region41: #{residual_block_forward.3} parent=39 // pred_check
        %p2618 = pneg %p86
      $region42: #{residual_block_forward.3} parent=39 // pred_check_branch
        %2620 = sbr.rel (%p2618) target = $region44
      $region43: #{residual_block_forward.3} parent=39 // pred_region
        %p2621 = scmp.lt.s32.totalorder %s16, 1
        %s2622 = scalar_select %p2621, %s16, 1
        %s2623 = smul.addr %s2622, 32
        %s2624 = smul.addr %s2623, 4
        %s2625 = scalar_lea.vmem %s2, %s2624
      $region44: #{residual_block_forward.3} parent=39 // pred_fallthru
        _
      // Predicated region
      $region45: #{residual_block_forward.3} parent=39 // pred_check
        %p2626 = pneg %p112
      $region46: #{residual_block_forward.3} parent=39 // pred_check_branch
        %2628 = sbr.rel (%p2626) target = $region48
      $region47: #{residual_block_forward.3} parent=39 // pred_region
        %p2629 = scmp.lt.s32.totalorder %s16, 1
        %s2630 = scalar_select %p2629, %s16, 1
        %s2631 = smul.addr %s2630, 2
        %s2632 = scalar_lea.vmem %s3, %s2631
      $region48: #{residual_block_forward.3} parent=39 // pred_fallthru
        _
    $region40: #{residual_block_forward.3} parent=5 // pred_fallthru
      _
  $region6: #{residual_block_forward.3} parent=0 // loop_footer
    %s14 = sadd.s32 1, %s10
  $region7: #{residual_block_forward.3} parent=0 // loop_footer_branch
    %9 = sbr.rel target = $region3
  $region8: #{residual_block_forward.3} parent=0 // loop_exit
    _

// kernel: residual_block_forward.4
$region0: #{residual_block_forward.4}
  #allocation0 [shape = 'u32[]', space=smem, size = 0x4, offset = 0x4, fixed_abs, tag = 'smem constant byte address 0x4 - core index']
  #allocation1 [shape = 'u32[144,128]{1,0:T(1,128)}', space=vmem, size = 0x12000, scoped, tag = 'internal scratch']
  #allocation2 [shape = 'f32[18,18,128]{2,1,0:T(8,128)}', space=vmem, size = 0x36000, scoped, tag = 'scratch operand']
  %s0 = inlined_call_operand.vmem [shape: bf16[2,16,16,128], index: 0, kind: input, shape index: {}]
  %s1 = inlined_call_operand.vmem [shape: f32[1,128], index: 1, kind: input, shape index: {}]
  %s2 = inlined_call_operand.vmem [shape: f32[1,128], index: 2, kind: input, shape index: {}]
  %s3 = inlined_call_operand.vmem [shape: bf16[3,384,128], index: 3, kind: input, shape index: {}]
  %s4 = inlined_call_operand.vmem [shape: bf16[2,16,16,128], index: 4, kind: output, shape index: {0}]
  %s5 = inlined_call_operand.vmem [shape: f32[2,2,128], index: 5, kind: output, shape index: {1}]
  %6 = xla_tuple %s4, %s5
  %s7 = sld [smem:[#allocation0]]
  $region57: #{residual_block_forward.4} parent=0
    _
  %s9 = ssub.s32 1, %s7
  %s10 = scalar_select 0, %s9, %s7
  loop: start=0, step=1, limit=4
  $region2: #{residual_block_forward.4} parent=0 // loop_pre_header
    _
  $region3: #{residual_block_forward.4} parent=0 // loop_header
    %s12 = sphi 0, %s16
    %p13 = scmp.ge.s32.totalorder %s12, 4
    %s22 = sphi 0, %s24
    %s25 = sphi 0, %s22
    %s26 = sphi 0, %s25
    %s42 = sphi 0, %s26
    %s46 = sphi 0, %s46
    %s48 = sphi 0, %s46
    %s49 = sphi 0, %s48
    %s63 = sphi 0, %s49
    %s67 = sphi 0, %s67
    %s69 = sphi 0, %s67
    %s70 = sphi 0, %s69
    %s84 = sphi 0, %s70
    %s88 = sphi 0, %s88
    %s90 = sphi 0, %s88
    %s91 = sphi 0, %s90
    %s105 = sphi 0, %s91
    %s111 = sphi 0, %s113
    %s114 = sphi 0, %s111
    %s115 = sphi 0, %s114
    %s131 = sphi 0, %s115
    %s137 = sphi 0, %s139
    %s140 = sphi 0, %s137
    %s141 = sphi 0, %s140
    %s157 = sphi 0, %s141
  $region4: #{residual_block_forward.4} parent=0 // loop_header_branch
    %15 = sbr.rel (%p13) target = $region8
  $region5: #{residual_block_forward.4} parent=0 // loop_body
    %s17 = ssub.s32 %s12, 1
    %s18 = ssub.s32 %s12, 2
    %s19 = sadd.s32 %s12, 1
    %s20 = ssub.s32 %s12, %s19
    %p21 = scmp.eq.s32.totalorder %s20, 0
    %s23 = sadd.s32 %s22, 1
    %s24 = scalar_select %p21, %s22, %s23
    %p27 = pneg %p21
    %p28 = scmp.eq.s32.totalorder %s12, 1
    %p29 = por %p27, %p28
    %p30 = scmp.ne.s32.totalorder %s22, %s25
    %p31 = scmp.eq.s32.totalorder %s12, 0
    %p32 = por %p30, %p31
    %p33 = scmp.ne.s32.totalorder %s22, %s25
    %p34 = scmp.eq.s32.totalorder %s17, 1
    %p35 = por %p33, %p34
    %p36 = scmp.ne.s32.totalorder %s25, %s26
    %p37 = scmp.eq.s32.totalorder %s17, 0
    %p38 = por %p36, %p37
    %p39 = scmp.ne.s32.totalorder %s25, %s26
    %p40 = scmp.eq.s32.totalorder %s18, 1
    %p41 = por %p39, %p40
    %p43 = scmp.ne.s32.totalorder %s26, %s42
    %p44 = scmp.eq.s32.totalorder %s18, 0
    %p45 = por %p43, %p44
    %s47 = sadd.s32 %s46, 1
    %p50 = scmp.eq.s32.totalorder %s12, 1
    %p51 = scmp.ne.s32.totalorder %s46, %s48
    %p52 = scmp.eq.s32.totalorder %s12, 0
    %p53 = por %p51, %p52
    %p54 = scmp.ne.s32.totalorder %s46, %s48
    %p55 = scmp.eq.s32.totalorder %s17, 1
    %p56 = por %p54, %p55
    %p57 = scmp.ne.s32.totalorder %s48, %s49
    %p58 = scmp.eq.s32.totalorder %s17, 0
    %p59 = por %p57, %p58
    %p60 = scmp.ne.s32.totalorder %s48, %s49
    %p61 = scmp.eq.s32.totalorder %s18, 1
    %p62 = por %p60, %p61
    %p64 = scmp.ne.s32.totalorder %s49, %s63
    %p65 = scmp.eq.s32.totalorder %s18, 0
    %p66 = por %p64, %p65
    %s68 = sadd.s32 %s67, 1
    %p71 = scmp.eq.s32.totalorder %s12, 1
    %p72 = scmp.ne.s32.totalorder %s67, %s69
    %p73 = scmp.eq.s32.totalorder %s12, 0
    %p74 = por %p72, %p73
    %p75 = scmp.ne.s32.totalorder %s67, %s69
    %p76 = scmp.eq.s32.totalorder %s17, 1
    %p77 = por %p75, %p76
    %p78 = scmp.ne.s32.totalorder %s69, %s70
    %p79 = scmp.eq.s32.totalorder %s17, 0
    %p80 = por %p78, %p79
    %p81 = scmp.ne.s32.totalorder %s69, %s70
    %p82 = scmp.eq.s32.totalorder %s18, 1
    %p83 = por %p81, %p82
    %p85 = scmp.ne.s32.totalorder %s70, %s84
    %p86 = scmp.eq.s32.totalorder %s18, 0
    %p87 = por %p85, %p86
    %s89 = sadd.s32 %s88, 1
    %p92 = scmp.eq.s32.totalorder %s12, 1
    %p93 = scmp.ne.s32.totalorder %s88, %s90
    %p94 = scmp.eq.s32.totalorder %s12, 0
    %p95 = por %p93, %p94
    %p96 = scmp.ne.s32.totalorder %s88, %s90
    %p97 = scmp.eq.s32.totalorder %s17, 1
    %p98 = por %p96, %p97
    %p99 = scmp.ne.s32.totalorder %s90, %s91
    %p100 = scmp.eq.s32.totalorder %s17, 0
    %p101 = por %p99, %p100
    %p102 = scmp.ne.s32.totalorder %s90, %s91
    %p103 = scmp.eq.s32.totalorder %s18, 1
    %p104 = por %p102, %p103
    %p106 = scmp.ne.s32.totalorder %s91, %s105
    %p107 = scmp.eq.s32.totalorder %s18, 0
    %p108 = por %p106, %p107
    %s109 = ssub.s32 %s12, %s19
    %p110 = scmp.eq.s32.totalorder %s109, 0
    %s112 = sadd.s32 %s111, 1
    %s113 = scalar_select %p110, %s111, %s112
    %p116 = pneg %p110
    %p117 = scmp.eq.s32.totalorder %s12, 1
    %p118 = por %p116, %p117
    %p119 = scmp.ne.s32.totalorder %s111, %s114
    %p120 = scmp.eq.s32.totalorder %s12, 0
    %p121 = por %p119, %p120
    %p122 = scmp.ne.s32.totalorder %s111, %s114
    %p123 = scmp.eq.s32.totalorder %s17, 1
    %p124 = por %p122, %p123
    %p125 = scmp.ne.s32.totalorder %s114, %s115
    %p126 = scmp.eq.s32.totalorder %s17, 0
    %p127 = por %p125, %p126
    %p128 = scmp.ne.s32.totalorder %s114, %s115
    %p129 = scmp.eq.s32.totalorder %s18, 1
    %p130 = por %p128, %p129
    %p132 = scmp.ne.s32.totalorder %s115, %s131
    %p133 = scmp.eq.s32.totalorder %s18, 0
    %p134 = por %p132, %p133
    %s135 = ssub.s32 %s12, %s19
    %p136 = scmp.eq.s32.totalorder %s135, 0
    %s138 = sadd.s32 %s137, 1
    %s139 = scalar_select %p136, %s137, %s138
    %p142 = pneg %p136
    %p143 = scmp.eq.s32.totalorder %s12, 1
    %p144 = por %p142, %p143
    %p145 = scmp.ne.s32.totalorder %s137, %s140
    %p146 = scmp.eq.s32.totalorder %s12, 0
    %p147 = por %p145, %p146
    %p148 = scmp.ne.s32.totalorder %s137, %s140
    %p149 = scmp.eq.s32.totalorder %s17, 1
    %p150 = por %p148, %p149
    %p151 = scmp.ne.s32.totalorder %s140, %s141
    %p152 = scmp.eq.s32.totalorder %s17, 0
    %p153 = por %p151, %p152
    %p154 = scmp.ne.s32.totalorder %s140, %s141
    %p155 = scmp.eq.s32.totalorder %s18, 1
    %p156 = por %p154, %p155
    %p158 = scmp.ne.s32.totalorder %s141, %s157
    %p159 = scmp.eq.s32.totalorder %s18, 0
    %p160 = por %p158, %p159
    %p161 = scmp.le.s32.totalorder 1, %s12
    %p162 = scmp.lt.s32.totalorder %s12, 3
    %p163 = pnand %p161, %p162
    %p164 = pneg %p163
    // Predicated region
    $region9: #{residual_block_forward.4} parent=5 // pred_check
      _
    $region10: #{residual_block_forward.4} parent=5 // pred_check_branch
      %166 = sbr.rel (%p163) target = $region12
    $region11: #{residual_block_forward.4} parent=5 // pred_region
      %s167 = ssub.s32 %s12, 1
      // Predicated region
      $region13: #{residual_block_forward.4} parent=11 // pred_check
        %p168 = pneg %p59
      $region14: #{residual_block_forward.4} parent=11 // pred_check_branch
        %170 = sbr.rel (%p168) target = $region16
      $region15: #{residual_block_forward.4} parent=11 // pred_region
        _
      $region16: #{residual_block_forward.4} parent=11 // pred_fallthru
        _
      // Predicated region
      $region17: #{residual_block_forward.4} parent=11 // pred_check
        %p171 = pneg %p80
      $region18: #{residual_block_forward.4} parent=11 // pred_check_branch
        %173 = sbr.rel (%p171) target = $region20
      $region19: #{residual_block_forward.4} parent=11 // pred_region
        _
      $region20: #{residual_block_forward.4} parent=11 // pred_fallthru
        _
      // Predicated region
      $region21: #{residual_block_forward.4} parent=11 // pred_check
        %p174 = pneg %p101
      $region22: #{residual_block_forward.4} parent=11 // pred_check_branch
        %176 = sbr.rel (%p174) target = $region24
      $region23: #{residual_block_forward.4} parent=11 // pred_region
        _
      $region24: #{residual_block_forward.4} parent=11 // pred_fallthru
        _
    $region12: #{residual_block_forward.4} parent=5 // pred_fallthru
      _
    %p177 = scmp.lt.s32.totalorder %s12, 2
    // Predicated region
    $region25: #{residual_block_forward.4} parent=5 // pred_check
      %p178 = pneg %p177
    $region26: #{residual_block_forward.4} parent=5 // pred_check_branch
      %180 = sbr.rel (%p178) target = $region28
    $region27: #{residual_block_forward.4} parent=5 // pred_region
      // Predicated region
      $region29: #{residual_block_forward.4} parent=27 // pred_check
        %p181 = pneg %p32
      $region30: #{residual_block_forward.4} parent=27 // pred_check_branch
        %183 = sbr.rel (%p181) target = $region32
      $region31: #{residual_block_forward.4} parent=27 // pred_region
        %p184 = scmp.lt.s32.totalorder %s12, 1
        %s185 = scalar_select %p184, %s12, 1
        %s186 = smul.addr %s185, 32
        %s187 = smul.addr %s186, 4
        %s188 = scalar_lea.vmem %s0, %s187
      $region32: #{residual_block_forward.4} parent=27 // pred_fallthru
        _
    $region28: #{residual_block_forward.4} parent=5 // pred_fallthru
      _
    %p189 = scmp.le.s32.totalorder 1, %s12
    %p190 = scmp.lt.s32.totalorder %s12, 3
    %p191 = pnand %p189, %p190
    %p192 = pneg %p191
    // Predicated region
    $region33: #{residual_block_forward.4} parent=5 // pred_check
      _
    $region34: #{residual_block_forward.4} parent=5 // pred_check_branch
      %194 = sbr.rel (%p191) target = $region36
    $region35: #{residual_block_forward.4} parent=5 // pred_region
      %s195 = ssub.s32 %s12, 1
      %p196 = scmp.lt.s32.totalorder %s17, 1
      %s197 = scalar_select %p196, %s17, 1
      %s198 = smul.addr %s197, 32
      %s199 = smul.addr %s198, 4
      %s200 = scalar_lea.vmem %s0, %s199
      %p201 = pneg %p38
      %p202 = pneg %p35
      %p203 = pneg %p59
      %p204 = pneg %p56
      %p205 = pneg %p80
      %p206 = pneg %p77
      %p207 = pneg %p101
      %p208 = pneg %p98
      %p209 = pneg %p127
      %p210 = pneg %p124
      %p211 = scmp.lt.s32.totalorder %s17, 1
      %s212 = scalar_select %p211, %s17, 1
      %s213 = smul.addr %s212, 32
      %s214 = smul.addr %s213, 4
      %s215 = scalar_lea.vmem %s4, %s214
      %p216 = pneg %p153
      %p217 = pneg %p150
      %p218 = scmp.lt.s32.totalorder %s17, 1
      %s219 = scalar_select %p218, %s17, 1
      %s220 = smul.addr %s219, 2
      %s221 = scalar_lea.vmem %s5, %s220
      %p222 = scmp.lt.s32.totalorder %s17, 1
      %s223 = scalar_select %p222, %s17, 1
      %s224 = smul.addr %s223, 32
      %s225 = smul.addr %s224, 4
      %s226 = scalar_lea.vmem %s0, %s225
      %p227 = scmp.lt.s32.totalorder %s17, 1
      %s228 = scalar_select %p227, %s17, 1
      %s229 = smul.addr %s228, 32
      %s230 = smul.addr %s229, 4
      %s231 = scalar_lea.vmem %s4, %s230
      %p232 = scmp.lt.s32.totalorder %s17, 1
      %s233 = scalar_select %p232, %s17, 1
      %s234 = smul.addr %s233, 2
      %s235 = scalar_lea.vmem %s5, %s234
      %v237 = vld [vmem:[%s226] sm:$0xf]
      %v238 = vld [vmem:[%s226 + $0x4] sm:$0xf]
      %v239 = vld [vmem:[%s226 + $0x8] sm:$0xf]
      %v240 = vld [vmem:[%s226 + $0xc] sm:$0xf]
      %v241 = vld [vmem:[%s226 + $0x10] sm:$0xf]
      %v242 = vld [vmem:[%s226 + $0x14] sm:$0xf]
      %v243 = vld [vmem:[%s226 + $0x18] sm:$0xf]
      %v244 = vld [vmem:[%s226 + $0x1c] sm:$0xf]
      %v245 = vld [vmem:[%s226 + $0x20] sm:$0xf]
      %v246 = vld [vmem:[%s226 + $0x24] sm:$0xf]
      %v247 = vld [vmem:[%s226 + $0x28] sm:$0xf]
      %v248 = vld [vmem:[%s226 + $0x2c] sm:$0xf]
      %v249 = vld [vmem:[%s226 + $0x30] sm:$0xf]
      %v250 = vld [vmem:[%s226 + $0x34] sm:$0xf]
      %v251 = vld [vmem:[%s226 + $0x38] sm:$0xf]
      %v252 = vld [vmem:[%s226 + $0x3c] sm:$0xf]
      %v253 = vld [vmem:[%s226 + $0x40] sm:$0xf]
      %v254 = vld [vmem:[%s226 + $0x44] sm:$0xf]
      %v255 = vld [vmem:[%s226 + $0x48] sm:$0xf]
      %v256 = vld [vmem:[%s226 + $0x4c] sm:$0xf]
      %v257 = vld [vmem:[%s226 + $0x50] sm:$0xf]
      %v258 = vld [vmem:[%s226 + $0x54] sm:$0xf]
      %v259 = vld [vmem:[%s226 + $0x58] sm:$0xf]
      %v260 = vld [vmem:[%s226 + $0x5c] sm:$0xf]
      %v261 = vld [vmem:[%s226 + $0x60] sm:$0xf]
      %v262 = vld [vmem:[%s226 + $0x64] sm:$0xf]
      %v263 = vld [vmem:[%s226 + $0x68] sm:$0xf]
      %v264 = vld [vmem:[%s226 + $0x6c] sm:$0xf]
      %v265 = vld [vmem:[%s226 + $0x70] sm:$0xf]
      %v266 = vld [vmem:[%s226 + $0x74] sm:$0xf]
      %v267 = vld [vmem:[%s226 + $0x78] sm:$0xf]
      %v268 = vld [vmem:[%s226 + $0x7c] sm:$0xf]
      %v269 = vunpack.c.l.bf16 %v237
      %v270 = vunpack.c.l.bf16 %v238
      %v271 = vunpack.c.l.bf16 %v239
      %v272 = vunpack.c.l.bf16 %v240
      %v273 = vunpack.c.l.bf16 %v241
      %v274 = vunpack.c.l.bf16 %v242
      %v275 = vunpack.c.l.bf16 %v243
      %v276 = vunpack.c.l.bf16 %v244
      %v277 = vunpack.c.l.bf16 %v245
      %v278 = vunpack.c.l.bf16 %v246
      %v279 = vunpack.c.l.bf16 %v247
      %v280 = vunpack.c.l.bf16 %v248
      %v281 = vunpack.c.l.bf16 %v249
      %v282 = vunpack.c.l.bf16 %v250
      %v283 = vunpack.c.l.bf16 %v251
      %v284 = vunpack.c.l.bf16 %v252
      %v285 = vunpack.c.l.bf16 %v253
      %v286 = vunpack.c.l.bf16 %v254
      %v287 = vunpack.c.l.bf16 %v255
      %v288 = vunpack.c.l.bf16 %v256
      %v289 = vunpack.c.l.bf16 %v257
      %v290 = vunpack.c.l.bf16 %v258
      %v291 = vunpack.c.l.bf16 %v259
      %v292 = vunpack.c.l.bf16 %v260
      %v293 = vunpack.c.l.bf16 %v261
      %v294 = vunpack.c.l.bf16 %v262
      %v295 = vunpack.c.l.bf16 %v263
      %v296 = vunpack.c.l.bf16 %v264
      %v297 = vunpack.c.l.bf16 %v265
      %v298 = vunpack.c.l.bf16 %v266
      %v299 = vunpack.c.l.bf16 %v267
      %v300 = vunpack.c.l.bf16 %v268
      %v301 = vld [vmem:[%s1] sm:$0x1]
      %v303 = vlaneseq
      %v304 = vshrl.u32 %v303, 7
      %v305 = vsub.s32 0, %v304
      %v306 = vrot.slane %v301, %v305
      %v308 = vmul.f32 %v269, %v306
      %v309 = vmul.f32 %v270, %v306
      %v310 = vmul.f32 %v271, %v306
      %v311 = vmul.f32 %v272, %v306
      %v312 = vmul.f32 %v273, %v306
      %v313 = vmul.f32 %v274, %v306
      %v314 = vmul.f32 %v275, %v306
      %v315 = vmul.f32 %v276, %v306
      %v316 = vmul.f32 %v277, %v306
      %v317 = vmul.f32 %v278, %v306
      %v318 = vmul.f32 %v279, %v306
      %v319 = vmul.f32 %v280, %v306
      %v320 = vmul.f32 %v281, %v306
      %v321 = vmul.f32 %v282, %v306
      %v322 = vmul.f32 %v283, %v306
      %v323 = vmul.f32 %v284, %v306
      %v324 = vmul.f32 %v285, %v306
      %v325 = vmul.f32 %v286, %v306
      %v326 = vmul.f32 %v287, %v306
      %v327 = vmul.f32 %v288, %v306
      %v328 = vmul.f32 %v289, %v306
      %v329 = vmul.f32 %v290, %v306
      %v330 = vmul.f32 %v291, %v306
      %v331 = vmul.f32 %v292, %v306
      %v332 = vmul.f32 %v293, %v306
      %v333 = vmul.f32 %v294, %v306
      %v334 = vmul.f32 %v295, %v306
      %v335 = vmul.f32 %v296, %v306
      %v336 = vmul.f32 %v297, %v306
      %v337 = vmul.f32 %v298, %v306
      %v338 = vmul.f32 %v299, %v306
      %v339 = vmul.f32 %v300, %v306
      %v340 = vld [vmem:[%s2] sm:$0x1]
      %v342 = vlaneseq
      %v343 = vshrl.u32 %v342, 7
      %v344 = vsub.s32 0, %v343
      %v345 = vrot.slane %v340, %v344
      %v347 = vadd.f32 %v308, %v345
      %v348 = vadd.f32 %v309, %v345
      %v349 = vadd.f32 %v310, %v345
      %v350 = vadd.f32 %v311, %v345
      %v351 = vadd.f32 %v312, %v345
      %v352 = vadd.f32 %v313, %v345
      %v353 = vadd.f32 %v314, %v345
      %v354 = vadd.f32 %v315, %v345
      %v355 = vadd.f32 %v316, %v345
      %v356 = vadd.f32 %v317, %v345
      %v357 = vadd.f32 %v318, %v345
      %v358 = vadd.f32 %v319, %v345
      %v359 = vadd.f32 %v320, %v345
      %v360 = vadd.f32 %v321, %v345
      %v361 = vadd.f32 %v322, %v345
      %v362 = vadd.f32 %v323, %v345
      %v363 = vadd.f32 %v324, %v345
      %v364 = vadd.f32 %v325, %v345
      %v365 = vadd.f32 %v326, %v345
      %v366 = vadd.f32 %v327, %v345
      %v367 = vadd.f32 %v328, %v345
      %v368 = vadd.f32 %v329, %v345
      %v369 = vadd.f32 %v330, %v345
      %v370 = vadd.f32 %v331, %v345
      %v371 = vadd.f32 %v332, %v345
      %v372 = vadd.f32 %v333, %v345
      %v373 = vadd.f32 %v334, %v345
      %v374 = vadd.f32 %v335, %v345
      %v375 = vadd.f32 %v336, %v345
      %v376 = vadd.f32 %v337, %v345
      %v377 = vadd.f32 %v338, %v345
      %v378 = vadd.f32 %v339, %v345
      %v379 = vmax.f32 %v347, 0.0
      %v380 = vmax.f32 %v348, 0.0
      %v381 = vmax.f32 %v349, 0.0
      %v382 = vmax.f32 %v350, 0.0
      %v383 = vmax.f32 %v351, 0.0
      %v384 = vmax.f32 %v352, 0.0
      %v385 = vmax.f32 %v353, 0.0
      %v386 = vmax.f32 %v354, 0.0
      %v387 = vmax.f32 %v355, 0.0
      %v388 = vmax.f32 %v356, 0.0
      %v389 = vmax.f32 %v357, 0.0
      %v390 = vmax.f32 %v358, 0.0
      %v391 = vmax.f32 %v359, 0.0
      %v392 = vmax.f32 %v360, 0.0
      %v393 = vmax.f32 %v361, 0.0
      %v394 = vmax.f32 %v362, 0.0
      %v395 = vmax.f32 %v363, 0.0
      %v396 = vmax.f32 %v364, 0.0
      %v397 = vmax.f32 %v365, 0.0
      %v398 = vmax.f32 %v366, 0.0
      %v399 = vmax.f32 %v367, 0.0
      %v400 = vmax.f32 %v368, 0.0
      %v401 = vmax.f32 %v369, 0.0
      %v402 = vmax.f32 %v370, 0.0
      %v403 = vmax.f32 %v371, 0.0
      %v404 = vmax.f32 %v372, 0.0
      %v405 = vmax.f32 %v373, 0.0
      %v406 = vmax.f32 %v374, 0.0
      %v407 = vmax.f32 %v375, 0.0
      %v408 = vmax.f32 %v376, 0.0
      %v409 = vmax.f32 %v377, 0.0
      %v410 = vmax.f32 %v378, 0.0
      %411 = vst [vmem:[#allocation2] sm:$0xff] 0.0
      %412 = vst [vmem:[#allocation2 + $0x8] sm:$0xff] 0.0
      %413 = vst [vmem:[#allocation2 + $0x10] sm:$0x3] 0.0
      %s414 = scalar_lea.vmem [#allocation2], 408
      %415 = vst [vmem:[%s414] sm:$0xff] 0.0
      %416 = vst [vmem:[%s414 + $0x8] sm:$0xff] 0.0
      %417 = vst [vmem:[%s414 + $0x10] sm:$0x3] 0.0
      %s418 = scalar_lea.vmem [#allocation2], 24
      %419 = vst [vmem:[%s418] sm:$0x1] 0.0
      %420 = vst [vmem:[%s418 + $0x18] sm:$0x1] 0.0
      %421 = vst [vmem:[%s418 + $0x30] sm:$0x1] 0.0
      %422 = vst [vmem:[%s418 + $0x48] sm:$0x1] 0.0
      %423 = vst [vmem:[%s418 + $0x60] sm:$0x1] 0.0
      %424 = vst [vmem:[%s418 + $0x78] sm:$0x1] 0.0
      %425 = vst [vmem:[%s418 + $0x90] sm:$0x1] 0.0
      %426 = vst [vmem:[%s418 + $0xa8] sm:$0x1] 0.0
      %427 = vst [vmem:[%s418 + $0xc0] sm:$0x1] 0.0
      %428 = vst [vmem:[%s418 + $0xd8] sm:$0x1] 0.0
      %429 = vst [vmem:[%s418 + $0xf0] sm:$0x1] 0.0
      %430 = vst [vmem:[%s418 + $0x108] sm:$0x1] 0.0
      %431 = vst [vmem:[%s418 + $0x120] sm:$0x1] 0.0
      %432 = vst [vmem:[%s418 + $0x138] sm:$0x1] 0.0
      %433 = vst [vmem:[%s418 + $0x150] sm:$0x1] 0.0
      %434 = vst [vmem:[%s418 + $0x168] sm:$0x1] 0.0
      %435 = vst [vmem:[%s418 + $0x11] sm:$0x1] 0.0
      %436 = vst [vmem:[%s418 + $0x29] sm:$0x1] 0.0
      %437 = vst [vmem:[%s418 + $0x41] sm:$0x1] 0.0
      %438 = vst [vmem:[%s418 + $0x59] sm:$0x1] 0.0
      %439 = vst [vmem:[%s418 + $0x71] sm:$0x1] 0.0
      %440 = vst [vmem:[%s418 + $0x89] sm:$0x1] 0.0
      %441 = vst [vmem:[%s418 + $0xa1] sm:$0x1] 0.0
      %442 = vst [vmem:[%s418 + $0xb9] sm:$0x1] 0.0
      %443 = vst [vmem:[%s418 + $0xd1] sm:$0x1] 0.0
      %444 = vst [vmem:[%s418 + $0xe9] sm:$0x1] 0.0
      %445 = vst [vmem:[%s418 + $0x101] sm:$0x1] 0.0
      %446 = vst [vmem:[%s418 + $0x119] sm:$0x1] 0.0
      %447 = vst [vmem:[%s418 + $0x131] sm:$0x1] 0.0
      %448 = vst [vmem:[%s418 + $0x149] sm:$0x1] 0.0
      %449 = vst [vmem:[%s418 + $0x161] sm:$0x1] 0.0
      %450 = vst [vmem:[%s418 + $0x179] sm:$0x1] 0.0
      %451 = vst [vmem:[%s418 + $0x1] sm:$0xff] %v379
      %452 = vst [vmem:[%s418 + $0x9] sm:$0xff] %v380
      %453 = vst [vmem:[%s418 + $0x19] sm:$0xff] %v381
      %454 = vst [vmem:[%s418 + $0x21] sm:$0xff] %v382
      %455 = vst [vmem:[%s418 + $0x31] sm:$0xff] %v383
      %456 = vst [vmem:[%s418 + $0x39] sm:$0xff] %v384
      %457 = vst [vmem:[%s418 + $0x49] sm:$0xff] %v385
      %458 = vst [vmem:[%s418 + $0x51] sm:$0xff] %v386
      %459 = vst [vmem:[%s418 + $0x61] sm:$0xff] %v387
      %460 = vst [vmem:[%s418 + $0x69] sm:$0xff] %v388
      %461 = vst [vmem:[%s418 + $0x79] sm:$0xff] %v389
      %462 = vst [vmem:[%s418 + $0x81] sm:$0xff] %v390
      %463 = vst [vmem:[%s418 + $0x91] sm:$0xff] %v391
      %464 = vst [vmem:[%s418 + $0x99] sm:$0xff] %v392
      %465 = vst [vmem:[%s418 + $0xa9] sm:$0xff] %v393
      %466 = vst [vmem:[%s418 + $0xb1] sm:$0xff] %v394
      %467 = vst [vmem:[%s418 + $0xc1] sm:$0xff] %v395
      %468 = vst [vmem:[%s418 + $0xc9] sm:$0xff] %v396
      %469 = vst [vmem:[%s418 + $0xd9] sm:$0xff] %v397
      %470 = vst [vmem:[%s418 + $0xe1] sm:$0xff] %v398
      %471 = vst [vmem:[%s418 + $0xf1] sm:$0xff] %v399
      %472 = vst [vmem:[%s418 + $0xf9] sm:$0xff] %v400
      %473 = vst [vmem:[%s418 + $0x109] sm:$0xff] %v401
      %474 = vst [vmem:[%s418 + $0x111] sm:$0xff] %v402
      %475 = vst [vmem:[%s418 + $0x121] sm:$0xff] %v403
      %476 = vst [vmem:[%s418 + $0x129] sm:$0xff] %v404
      %477 = vst [vmem:[%s418 + $0x139] sm:$0xff] %v405
      %478 = vst [vmem:[%s418 + $0x141] sm:$0xff] %v406
      %479 = vst [vmem:[%s418 + $0x151] sm:$0xff] %v407
      %480 = vst [vmem:[%s418 + $0x159] sm:$0xff] %v408
      %481 = vst [vmem:[%s418 + $0x169] sm:$0xff] %v409
      %482 = vst [vmem:[%s418 + $0x171] sm:$0xff] %v410
      %v483 = vld [vmem:[#allocation2] sm:$0xff]
      %v484 = vld [vmem:[#allocation2 + $0x8] sm:$0xff]
      %v485 = vld [vmem:[#allocation2 + $0x18] sm:$0xff]
      %v486 = vld [vmem:[#allocation2 + $0x20] sm:$0xff]
      %v487 = vld [vmem:[#allocation2 + $0x30] sm:$0xff]
      %v488 = vld [vmem:[#allocation2 + $0x38] sm:$0xff]
      %v489 = vld [vmem:[#allocation2 + $0x48] sm:$0xff]
      %v490 = vld [vmem:[#allocation2 + $0x50] sm:$0xff]
      %v491 = vld [vmem:[#allocation2 + $0x60] sm:$0xff]
      %v492 = vld [vmem:[#allocation2 + $0x68] sm:$0xff]
      %v493 = vld [vmem:[#allocation2 + $0x78] sm:$0xff]
      %v494 = vld [vmem:[#allocation2 + $0x80] sm:$0xff]
      %v495 = vld [vmem:[#allocation2 + $0x90] sm:$0xff]
      %v496 = vld [vmem:[#allocation2 + $0x98] sm:$0xff]
      %v497 = vld [vmem:[#allocation2 + $0xa8] sm:$0xff]
      %v498 = vld [vmem:[#allocation2 + $0xb0] sm:$0xff]
      %v499 = vld [vmem:[#allocation2 + $0xc0] sm:$0xff]
      %v500 = vld [vmem:[#allocation2 + $0xc8] sm:$0xff]
      %v501 = vld [vmem:[#allocation2 + $0xd8] sm:$0xff]
      %v502 = vld [vmem:[#allocation2 + $0xe0] sm:$0xff]
      %v503 = vld [vmem:[#allocation2 + $0xf0] sm:$0xff]
      %v504 = vld [vmem:[#allocation2 + $0xf8] sm:$0xff]
      %v505 = vld [vmem:[#allocation2 + $0x108] sm:$0xff]
      %v506 = vld [vmem:[#allocation2 + $0x110] sm:$0xff]
      %v507 = vld [vmem:[#allocation2 + $0x120] sm:$0xff]
      %v508 = vld [vmem:[#allocation2 + $0x128] sm:$0xff]
      %v509 = vld [vmem:[#allocation2 + $0x138] sm:$0xff]
      %v510 = vld [vmem:[#allocation2 + $0x140] sm:$0xff]
      %v511 = vld [vmem:[#allocation2 + $0x150] sm:$0xff]
      %v512 = vld [vmem:[#allocation2 + $0x158] sm:$0xff]
      %v513 = vld [vmem:[#allocation2 + $0x168] sm:$0xff]
      %v514 = vld [vmem:[#allocation2 + $0x170] sm:$0xff]
      %v515 = vpack.c.bf16 %v484, %v483
      %v516 = vpack.c.bf16 %v486, %v485
      %v517 = vpack.c.bf16 %v488, %v487
      %v518 = vpack.c.bf16 %v490, %v489
      %v519 = vpack.c.bf16 %v492, %v491
      %v520 = vpack.c.bf16 %v494, %v493
      %v521 = vpack.c.bf16 %v496, %v495
      %v522 = vpack.c.bf16 %v498, %v497
      %v523 = vpack.c.bf16 %v500, %v499
      %v524 = vpack.c.bf16 %v502, %v501
      %v525 = vpack.c.bf16 %v504, %v503
      %v526 = vpack.c.bf16 %v506, %v505
      %v527 = vpack.c.bf16 %v508, %v507
      %v528 = vpack.c.bf16 %v510, %v509
      %v529 = vpack.c.bf16 %v512, %v511
      %v530 = vpack.c.bf16 %v514, %v513
      %v531 = vld [vmem:[#allocation2 + $0x1] sm:$0xff]
      %v532 = vld [vmem:[#allocation2 + $0x9] sm:$0xff]
      %v533 = vld [vmem:[#allocation2 + $0x19] sm:$0xff]
      %v534 = vld [vmem:[#allocation2 + $0x21] sm:$0xff]
      %v535 = vld [vmem:[#allocation2 + $0x31] sm:$0xff]
      %v536 = vld [vmem:[#allocation2 + $0x39] sm:$0xff]
      %v537 = vld [vmem:[#allocation2 + $0x49] sm:$0xff]
      %v538 = vld [vmem:[#allocation2 + $0x51] sm:$0xff]
      %v539 = vld [vmem:[#allocation2 + $0x61] sm:$0xff]
      %v540 = vld [vmem:[#allocation2 + $0x69] sm:$0xff]
      %v541 = vld [vmem:[#allocation2 + $0x79] sm:$0xff]
      %v542 = vld [vmem:[#allocation2 + $0x81] sm:$0xff]
      %v543 = vld [vmem:[#allocation2 + $0x91] sm:$0xff]
      %v544 = vld [vmem:[#allocation2 + $0x99] sm:$0xff]
      %v545 = vld [vmem:[#allocation2 + $0xa9] sm:$0xff]
      %v546 = vld [vmem:[#allocation2 + $0xb1] sm:$0xff]
      %v547 = vld [vmem:[#allocation2 + $0xc1] sm:$0xff]
      %v548 = vld [vmem:[#allocation2 + $0xc9] sm:$0xff]
      %v549 = vld [vmem:[#allocation2 + $0xd9] sm:$0xff]
      %v550 = vld [vmem:[#allocation2 + $0xe1] sm:$0xff]
      %v551 = vld [vmem:[#allocation2 + $0xf1] sm:$0xff]
      %v552 = vld [vmem:[#allocation2 + $0xf9] sm:$0xff]
      %v553 = vld [vmem:[#allocation2 + $0x109] sm:$0xff]
      %v554 = vld [vmem:[#allocation2 + $0x111] sm:$0xff]
      %v555 = vld [vmem:[#allocation2 + $0x121] sm:$0xff]
      %v556 = vld [vmem:[#allocation2 + $0x129] sm:$0xff]
      %v557 = vld [vmem:[#allocation2 + $0x139] sm:$0xff]
      %v558 = vld [vmem:[#allocation2 + $0x141] sm:$0xff]
      %v559 = vld [vmem:[#allocation2 + $0x151] sm:$0xff]
      %v560 = vld [vmem:[#allocation2 + $0x159] sm:$0xff]
      %v561 = vld [vmem:[#allocation2 + $0x169] sm:$0xff]
      %v562 = vld [vmem:[#allocation2 + $0x171] sm:$0xff]
      %v563 = vpack.c.bf16 %v532, %v531
      %v564 = vpack.c.bf16 %v534, %v533
      %v565 = vpack.c.bf16 %v536, %v535
      %v566 = vpack.c.bf16 %v538, %v537
      %v567 = vpack.c.bf16 %v540, %v539
      %v568 = vpack.c.bf16 %v542, %v541
      %v569 = vpack.c.bf16 %v544, %v543
      %v570 = vpack.c.bf16 %v546, %v545
      %v571 = vpack.c.bf16 %v548, %v547
      %v572 = vpack.c.bf16 %v550, %v549
      %v573 = vpack.c.bf16 %v552, %v551
      %v574 = vpack.c.bf16 %v554, %v553
      %v575 = vpack.c.bf16 %v556, %v555
      %v576 = vpack.c.bf16 %v558, %v557
      %v577 = vpack.c.bf16 %v560, %v559
      %v578 = vpack.c.bf16 %v562, %v561
      %v579 = vld [vmem:[#allocation2 + $0x2] sm:$0xff]
      %v580 = vld [vmem:[#allocation2 + $0xa] sm:$0xff]
      %v581 = vld [vmem:[#allocation2 + $0x1a] sm:$0xff]
      %v582 = vld [vmem:[#allocation2 + $0x22] sm:$0xff]
      %v583 = vld [vmem:[#allocation2 + $0x32] sm:$0xff]
      %v584 = vld [vmem:[#allocation2 + $0x3a] sm:$0xff]
      %v585 = vld [vmem:[#allocation2 + $0x4a] sm:$0xff]
      %v586 = vld [vmem:[#allocation2 + $0x52] sm:$0xff]
      %v587 = vld [vmem:[#allocation2 + $0x62] sm:$0xff]
      %v588 = vld [vmem:[#allocation2 + $0x6a] sm:$0xff]
      %v589 = vld [vmem:[#allocation2 + $0x7a] sm:$0xff]
      %v590 = vld [vmem:[#allocation2 + $0x82] sm:$0xff]
      %v591 = vld [vmem:[#allocation2 + $0x92] sm:$0xff]
      %v592 = vld [vmem:[#allocation2 + $0x9a] sm:$0xff]
      %v593 = vld [vmem:[#allocation2 + $0xaa] sm:$0xff]
      %v594 = vld [vmem:[#allocation2 + $0xb2] sm:$0xff]
      %v595 = vld [vmem:[#allocation2 + $0xc2] sm:$0xff]
      %v596 = vld [vmem:[#allocation2 + $0xca] sm:$0xff]
      %v597 = vld [vmem:[#allocation2 + $0xda] sm:$0xff]
      %v598 = vld [vmem:[#allocation2 + $0xe2] sm:$0xff]
      %v599 = vld [vmem:[#allocation2 + $0xf2] sm:$0xff]
      %v600 = vld [vmem:[#allocation2 + $0xfa] sm:$0xff]
      %v601 = vld [vmem:[#allocation2 + $0x10a] sm:$0xff]
      %v602 = vld [vmem:[#allocation2 + $0x112] sm:$0xff]
      %v603 = vld [vmem:[#allocation2 + $0x122] sm:$0xff]
      %v604 = vld [vmem:[#allocation2 + $0x12a] sm:$0xff]
      %v605 = vld [vmem:[#allocation2 + $0x13a] sm:$0xff]
      %v606 = vld [vmem:[#allocation2 + $0x142] sm:$0xff]
      %v607 = vld [vmem:[#allocation2 + $0x152] sm:$0xff]
      %v608 = vld [vmem:[#allocation2 + $0x15a] sm:$0xff]
      %v609 = vld [vmem:[#allocation2 + $0x16a] sm:$0xff]
      %v610 = vld [vmem:[#allocation2 + $0x172] sm:$0xff]
      %v611 = vpack.c.bf16 %v580, %v579
      %v612 = vpack.c.bf16 %v582, %v581
      %v613 = vpack.c.bf16 %v584, %v583
      %v614 = vpack.c.bf16 %v586, %v585
      %v615 = vpack.c.bf16 %v588, %v587
      %v616 = vpack.c.bf16 %v590, %v589
      %v617 = vpack.c.bf16 %v592, %v591
      %v618 = vpack.c.bf16 %v594, %v593
      %v619 = vpack.c.bf16 %v596, %v595
      %v620 = vpack.c.bf16 %v598, %v597
      %v621 = vpack.c.bf16 %v600, %v599
      %v622 = vpack.c.bf16 %v602, %v601
      %v623 = vpack.c.bf16 %v604, %v603
      %v624 = vpack.c.bf16 %v606, %v605
      %v625 = vpack.c.bf16 %v608, %v607
      %v626 = vpack.c.bf16 %v610, %v609
      %v627 = vld [vmem:[%s3] sm:$0xf]
      %v628 = vld [vmem:[%s3 + $0x4] sm:$0xf]
      %v629 = vld [vmem:[%s3 + $0x8] sm:$0xf]
      %v630 = vld [vmem:[%s3 + $0xc] sm:$0xf]
      %v631 = vld [vmem:[%s3 + $0x10] sm:$0xf]
      %v632 = vld [vmem:[%s3 + $0x14] sm:$0xf]
      %v633 = vld [vmem:[%s3 + $0x18] sm:$0xf]
      %v634 = vld [vmem:[%s3 + $0x1c] sm:$0xf]
      %v635 = vld [vmem:[%s3 + $0x20] sm:$0xf]
      %v636 = vld [vmem:[%s3 + $0x24] sm:$0xf]
      %v637 = vld [vmem:[%s3 + $0x28] sm:$0xf]
      %v638 = vld [vmem:[%s3 + $0x2c] sm:$0xf]
      %v639 = vld [vmem:[%s3 + $0x30] sm:$0xf]
      %v640 = vld [vmem:[%s3 + $0x34] sm:$0xf]
      %v641 = vld [vmem:[%s3 + $0x38] sm:$0xf]
      %v642 = vld [vmem:[%s3 + $0x3c] sm:$0xf]
      %v643 = vld [vmem:[%s3 + $0x40] sm:$0xf]
      %v644 = vld [vmem:[%s3 + $0x44] sm:$0xf]
      %v645 = vld [vmem:[%s3 + $0x48] sm:$0xf]
      %v646 = vld [vmem:[%s3 + $0x4c] sm:$0xf]
      %v647 = vld [vmem:[%s3 + $0x50] sm:$0xf]
      %v648 = vld [vmem:[%s3 + $0x54] sm:$0xf]
      %v649 = vld [vmem:[%s3 + $0x58] sm:$0xf]
      %v650 = vld [vmem:[%s3 + $0x5c] sm:$0xf]
      %v651 = vld [vmem:[%s3 + $0x60] sm:$0xf]
      %v652 = vld [vmem:[%s3 + $0x64] sm:$0xf]
      %v653 = vld [vmem:[%s3 + $0x68] sm:$0xf]
      %v654 = vld [vmem:[%s3 + $0x6c] sm:$0xf]
      %v655 = vld [vmem:[%s3 + $0x70] sm:$0xf]
      %v656 = vld [vmem:[%s3 + $0x74] sm:$0xf]
      %v657 = vld [vmem:[%s3 + $0x78] sm:$0xf]
      %v658 = vld [vmem:[%s3 + $0x7c] sm:$0xf]
      %v659 = vld [vmem:[%s3 + $0x80] sm:$0xf]
      %v660 = vld [vmem:[%s3 + $0x84] sm:$0xf]
      %v661 = vld [vmem:[%s3 + $0x88] sm:$0xf]
      %v662 = vld [vmem:[%s3 + $0x8c] sm:$0xf]
      %v663 = vld [vmem:[%s3 + $0x90] sm:$0xf]
      %v664 = vld [vmem:[%s3 + $0x94] sm:$0xf]
      %v665 = vld [vmem:[%s3 + $0x98] sm:$0xf]
      %v666 = vld [vmem:[%s3 + $0x9c] sm:$0xf]
      %v667 = vld [vmem:[%s3 + $0xa0] sm:$0xf]
      %v668 = vld [vmem:[%s3 + $0xa4] sm:$0xf]
      %v669 = vld [vmem:[%s3 + $0xa8] sm:$0xf]
      %v670 = vld [vmem:[%s3 + $0xac] sm:$0xf]
      %v671 = vld [vmem:[%s3 + $0xb0] sm:$0xf]
      %v672 = vld [vmem:[%s3 + $0xb4] sm:$0xf]
      %v673 = vld [vmem:[%s3 + $0xb8] sm:$0xf]
      %v674 = vld [vmem:[%s3 + $0xbc] sm:$0xf]
      %v675 = vld [vmem:[%s418] sm:$0xff]
      %v676 = vld [vmem:[%s418 + $0x8] sm:$0xff]
      %v677 = vld [vmem:[%s418 + $0x18] sm:$0xff]
      %v678 = vld [vmem:[%s418 + $0x20] sm:$0xff]
      %v679 = vld [vmem:[%s418 + $0x30] sm:$0xff]
      %v680 = vld [vmem:[%s418 + $0x38] sm:$0xff]
      %v681 = vld [vmem:[%s418 + $0x48] sm:$0xff]
      %v682 = vld [vmem:[%s418 + $0x50] sm:$0xff]
      %v683 = vld [vmem:[%s418 + $0x60] sm:$0xff]
      %v684 = vld [vmem:[%s418 + $0x68] sm:$0xff]
      %v685 = vld [vmem:[%s418 + $0x78] sm:$0xff]
      %v686 = vld [vmem:[%s418 + $0x80] sm:$0xff]
      %v687 = vld [vmem:[%s418 + $0x90] sm:$0xff]
      %v688 = vld [vmem:[%s418 + $0x98] sm:$0xff]
      %v689 = vld [vmem:[%s418 + $0xa8] sm:$0xff]
      %v690 = vld [vmem:[%s418 + $0xb0] sm:$0xff]
      %v691 = vld [vmem:[%s418 + $0xc0] sm:$0xff]
      %v692 = vld [vmem:[%s418 + $0xc8] sm:$0xff]
      %v693 = vld [vmem:[%s418 + $0xd8] sm:$0xff]
      %v694 = vld [vmem:[%s418 + $0xe0] sm:$0xff]
      %v695 = vld [vmem:[%s418 + $0xf0] sm:$0xff]
      %v696 = vld [vmem:[%s418 + $0xf8] sm:$0xff]
      %v697 = vld [vmem:[%s418 + $0x108] sm:$0xff]
      %v698 = vld [vmem:[%s418 + $0x110] sm:$0xff]
      %v699 = vld [vmem:[%s418 + $0x120] sm:$0xff]
      %v700 = vld [vmem:[%s418 + $0x128] sm:$0xff]
      %v701 = vld [vmem:[%s418 + $0x138] sm:$0xff]
      %v702 = vld [vmem:[%s418 + $0x140] sm:$0xff]
      %v703 = vld [vmem:[%s418 + $0x150] sm:$0xff]
      %v704 = vld [vmem:[%s418 + $0x158] sm:$0xff]
      %v705 = vld [vmem:[%s418 + $0x168] sm:$0xff]
      %v706 = vld [vmem:[%s418 + $0x170] sm:$0xff]
      %v707 = vpack.c.bf16 %v676, %v675
      %v708 = vpack.c.bf16 %v678, %v677
      %v709 = vpack.c.bf16 %v680, %v679
      %v710 = vpack.c.bf16 %v682, %v681
      %v711 = vpack.c.bf16 %v684, %v683
      %v712 = vpack.c.bf16 %v686, %v685
      %v713 = vpack.c.bf16 %v688, %v687
      %v714 = vpack.c.bf16 %v690, %v689
      %v715 = vpack.c.bf16 %v692, %v691
      %v716 = vpack.c.bf16 %v694, %v693
      %v717 = vpack.c.bf16 %v696, %v695
      %v718 = vpack.c.bf16 %v698, %v697
      %v719 = vpack.c.bf16 %v700, %v699
      %v720 = vpack.c.bf16 %v702, %v701
      %v721 = vpack.c.bf16 %v704, %v703
      %v722 = vpack.c.bf16 %v706, %v705
      %v723 = vld [vmem:[%s418 + $0x1] sm:$0xff]
      %v724 = vld [vmem:[%s418 + $0x9] sm:$0xff]
      %v725 = vld [vmem:[%s418 + $0x19] sm:$0xff]
      %v726 = vld [vmem:[%s418 + $0x21] sm:$0xff]
      %v727 = vld [vmem:[%s418 + $0x31] sm:$0xff]
      %v728 = vld [vmem:[%s418 + $0x39] sm:$0xff]
      %v729 = vld [vmem:[%s418 + $0x49] sm:$0xff]
      %v730 = vld [vmem:[%s418 + $0x51] sm:$0xff]
      %v731 = vld [vmem:[%s418 + $0x61] sm:$0xff]
      %v732 = vld [vmem:[%s418 + $0x69] sm:$0xff]
      %v733 = vld [vmem:[%s418 + $0x79] sm:$0xff]
      %v734 = vld [vmem:[%s418 + $0x81] sm:$0xff]
      %v735 = vld [vmem:[%s418 + $0x91] sm:$0xff]
      %v736 = vld [vmem:[%s418 + $0x99] sm:$0xff]
      %v737 = vld [vmem:[%s418 + $0xa9] sm:$0xff]
      %v738 = vld [vmem:[%s418 + $0xb1] sm:$0xff]
      %v739 = vld [vmem:[%s418 + $0xc1] sm:$0xff]
      %v740 = vld [vmem:[%s418 + $0xc9] sm:$0xff]
      %v741 = vld [vmem:[%s418 + $0xd9] sm:$0xff]
      %v742 = vld [vmem:[%s418 + $0xe1] sm:$0xff]
      %v743 = vld [vmem:[%s418 + $0xf1] sm:$0xff]
      %v744 = vld [vmem:[%s418 + $0xf9] sm:$0xff]
      %v745 = vld [vmem:[%s418 + $0x109] sm:$0xff]
      %v746 = vld [vmem:[%s418 + $0x111] sm:$0xff]
      %v747 = vld [vmem:[%s418 + $0x121] sm:$0xff]
      %v748 = vld [vmem:[%s418 + $0x129] sm:$0xff]
      %v749 = vld [vmem:[%s418 + $0x139] sm:$0xff]
      %v750 = vld [vmem:[%s418 + $0x141] sm:$0xff]
      %v751 = vld [vmem:[%s418 + $0x151] sm:$0xff]
      %v752 = vld [vmem:[%s418 + $0x159] sm:$0xff]
      %v753 = vld [vmem:[%s418 + $0x169] sm:$0xff]
      %v754 = vld [vmem:[%s418 + $0x171] sm:$0xff]
      %v755 = vpack.c.bf16 %v724, %v723
      %v756 = vpack.c.bf16 %v726, %v725
      %v757 = vpack.c.bf16 %v728, %v727
      %v758 = vpack.c.bf16 %v730, %v729
      %v759 = vpack.c.bf16 %v732, %v731
      %v760 = vpack.c.bf16 %v734, %v733
      %v761 = vpack.c.bf16 %v736, %v735
      %v762 = vpack.c.bf16 %v738, %v737
      %v763 = vpack.c.bf16 %v740, %v739
      %v764 = vpack.c.bf16 %v742, %v741
      %v765 = vpack.c.bf16 %v744, %v743
      %v766 = vpack.c.bf16 %v746, %v745
      %v767 = vpack.c.bf16 %v748, %v747
      %v768 = vpack.c.bf16 %v750, %v749
      %v769 = vpack.c.bf16 %v752, %v751
      %v770 = vpack.c.bf16 %v754, %v753
      %v771 = vld [vmem:[%s418 + $0x2] sm:$0xff]
      %v772 = vld [vmem:[%s418 + $0xa] sm:$0xff]
      %v773 = vld [vmem:[%s418 + $0x1a] sm:$0xff]
      %v774 = vld [vmem:[%s418 + $0x22] sm:$0xff]
      %v775 = vld [vmem:[%s418 + $0x32] sm:$0xff]
      %v776 = vld [vmem:[%s418 + $0x3a] sm:$0xff]
      %v777 = vld [vmem:[%s418 + $0x4a] sm:$0xff]
      %v778 = vld [vmem:[%s418 + $0x52] sm:$0xff]
      %v779 = vld [vmem:[%s418 + $0x62] sm:$0xff]
      %v780 = vld [vmem:[%s418 + $0x6a] sm:$0xff]
      %v781 = vld [vmem:[%s418 + $0x7a] sm:$0xff]
      %v782 = vld [vmem:[%s418 + $0x82] sm:$0xff]
      %v783 = vld [vmem:[%s418 + $0x92] sm:$0xff]
      %v784 = vld [vmem:[%s418 + $0x9a] sm:$0xff]
      %v785 = vld [vmem:[%s418 + $0xaa] sm:$0xff]
      %v786 = vld [vmem:[%s418 + $0xb2] sm:$0xff]
      %v787 = vld [vmem:[%s418 + $0xc2] sm:$0xff]
      %v788 = vld [vmem:[%s418 + $0xca] sm:$0xff]
      %v789 = vld [vmem:[%s418 + $0xda] sm:$0xff]
      %v790 = vld [vmem:[%s418 + $0xe2] sm:$0xff]
      %v791 = vld [vmem:[%s418 + $0xf2] sm:$0xff]
      %v792 = vld [vmem:[%s418 + $0xfa] sm:$0xff]
      %v793 = vld [vmem:[%s418 + $0x10a] sm:$0xff]
      %v794 = vld [vmem:[%s418 + $0x112] sm:$0xff]
      %v795 = vld [vmem:[%s418 + $0x122] sm:$0xff]
      %v796 = vld [vmem:[%s418 + $0x12a] sm:$0xff]
      %v797 = vld [vmem:[%s418 + $0x13a] sm:$0xff]
      %v798 = vld [vmem:[%s418 + $0x142] sm:$0xff]
      %v799 = vld [vmem:[%s418 + $0x152] sm:$0xff]
      %v800 = vld [vmem:[%s418 + $0x15a] sm:$0xff]
      %v801 = vld [vmem:[%s418 + $0x16a] sm:$0xff]
      %v802 = vld [vmem:[%s418 + $0x172] sm:$0xff]
      %v803 = vpack.c.bf16 %v772, %v771
      %v804 = vpack.c.bf16 %v774, %v773
      %v805 = vpack.c.bf16 %v776, %v775
      %v806 = vpack.c.bf16 %v778, %v777
      %v807 = vpack.c.bf16 %v780, %v779
      %v808 = vpack.c.bf16 %v782, %v781
      %v809 = vpack.c.bf16 %v784, %v783
      %v810 = vpack.c.bf16 %v786, %v785
      %v811 = vpack.c.bf16 %v788, %v787
      %v812 = vpack.c.bf16 %v790, %v789
      %v813 = vpack.c.bf16 %v792, %v791
      %v814 = vpack.c.bf16 %v794, %v793
      %v815 = vpack.c.bf16 %v796, %v795
      %v816 = vpack.c.bf16 %v798, %v797
      %v817 = vpack.c.bf16 %v800, %v799
      %v818 = vpack.c.bf16 %v802, %v801
      %s819 = scalar_lea.vmem %s3, 192
      %v820 = vld [vmem:[%s819] sm:$0xf]
      %v821 = vld [vmem:[%s819 + $0x4] sm:$0xf]
      %v822 = vld [vmem:[%s819 + $0x8] sm:$0xf]
      %v823 = vld [vmem:[%s819 + $0xc] sm:$0xf]
      %v824 = vld [vmem:[%s819 + $0x10] sm:$0xf]
      %v825 = vld [vmem:[%s819 + $0x14] sm:$0xf]
      %v826 = vld [vmem:[%s819 + $0x18] sm:$0xf]
      %v827 = vld [vmem:[%s819 + $0x1c] sm:$0xf]
      %v828 = vld [vmem:[%s819 + $0x20] sm:$0xf]
      %v829 = vld [vmem:[%s819 + $0x24] sm:$0xf]
      %v830 = vld [vmem:[%s819 + $0x28] sm:$0xf]
      %v831 = vld [vmem:[%s819 + $0x2c] sm:$0xf]
      %v832 = vld [vmem:[%s819 + $0x30] sm:$0xf]
      %v833 = vld [vmem:[%s819 + $0x34] sm:$0xf]
      %v834 = vld [vmem:[%s819 + $0x38] sm:$0xf]
      %v835 = vld [vmem:[%s819 + $0x3c] sm:$0xf]
      %v836 = vld [vmem:[%s819 + $0x40] sm:$0xf]
      %v837 = vld [vmem:[%s819 + $0x44] sm:$0xf]
      %v838 = vld [vmem:[%s819 + $0x48] sm:$0xf]
      %v839 = vld [vmem:[%s819 + $0x4c] sm:$0xf]
      %v840 = vld [vmem:[%s819 + $0x50] sm:$0xf]
      %v841 = vld [vmem:[%s819 + $0x54] sm:$0xf]
      %v842 = vld [vmem:[%s819 + $0x58] sm:$0xf]
      %v843 = vld [vmem:[%s819 + $0x5c] sm:$0xf]
      %v844 = vld [vmem:[%s819 + $0x60] sm:$0xf]
      %v845 = vld [vmem:[%s819 + $0x64] sm:$0xf]
      %v846 = vld [vmem:[%s819 + $0x68] sm:$0xf]
      %v847 = vld [vmem:[%s819 + $0x6c] sm:$0xf]
      %v848 = vld [vmem:[%s819 + $0x70] sm:$0xf]
      %v849 = vld [vmem:[%s819 + $0x74] sm:$0xf]
      %v850 = vld [vmem:[%s819 + $0x78] sm:$0xf]
      %v851 = vld [vmem:[%s819 + $0x7c] sm:$0xf]
      %v852 = vld [vmem:[%s819 + $0x80] sm:$0xf]
      %v853 = vld [vmem:[%s819 + $0x84] sm:$0xf]
      %v854 = vld [vmem:[%s819 + $0x88] sm:$0xf]
      %v855 = vld [vmem:[%s819 + $0x8c] sm:$0xf]
      %v856 = vld [vmem:[%s819 + $0x90] sm:$0xf]
      %v857 = vld [vmem:[%s819 + $0x94] sm:$0xf]
      %v858 = vld [vmem:[%s819 + $0x98] sm:$0xf]
      %v859 = vld [vmem:[%s819 + $0x9c] sm:$0xf]
      %v860 = vld [vmem:[%s819 + $0xa0] sm:$0xf]
      %v861 = vld [vmem:[%s819 + $0xa4] sm:$0xf]
      %v862 = vld [vmem:[%s819 + $0xa8] sm:$0xf]
      %v863 = vld [vmem:[%s819 + $0xac] sm:$0xf]
      %v864 = vld [vmem:[%s819 + $0xb0] sm:$0xf]
      %v865 = vld [vmem:[%s819 + $0xb4] sm:$0xf]
      %v866 = vld [vmem:[%s819 + $0xb8] sm:$0xf]
      %v867 = vld [vmem:[%s819 + $0xbc] sm:$0xf]
      %v916 = vunpack.c.l.b16 %v820
      %v917 = vunpack.c.l.b16 %v821
      %v918 = vunpack.c.l.b16 %v822
      %v919 = vunpack.c.l.b16 %v823
      %v920 = vunpack.c.l.b16 %v824
      %v921 = vunpack.c.l.b16 %v825
      %v922 = vunpack.c.l.b16 %v826
      %v923 = vunpack.c.l.b16 %v827
      %v924 = vunpack.c.l.b16 %v828
      %v925 = vunpack.c.l.b16 %v829
      %v926 = vunpack.c.l.b16 %v830
      %v927 = vunpack.c.l.b16 %v831
      %v928 = vunpack.c.l.b16 %v832
      %v929 = vunpack.c.l.b16 %v833
      %v930 = vunpack.c.l.b16 %v834
      %v931 = vunpack.c.l.b16 %v835
      %v932 = vunpack.c.l.b16 %v836
      %v933 = vunpack.c.l.b16 %v837
      %v934 = vunpack.c.l.b16 %v838
      %v935 = vunpack.c.l.b16 %v839
      %v936 = vunpack.c.l.b16 %v840
      %v937 = vunpack.c.l.b16 %v841
      %v938 = vunpack.c.l.b16 %v842
      %v939 = vunpack.c.l.b16 %v843
      %v940 = vunpack.c.l.b16 %v844
      %v941 = vunpack.c.l.b16 %v845
      %v942 = vunpack.c.l.b16 %v846
      %v943 = vunpack.c.l.b16 %v847
      %v944 = vunpack.c.l.b16 %v848
      %v945 = vunpack.c.l.b16 %v849
      %v946 = vunpack.c.l.b16 %v850
      %v947 = vunpack.c.l.b16 %v851
      %v948 = vunpack.c.l.b16 %v852
      %v949 = vunpack.c.l.b16 %v853
      %v950 = vunpack.c.l.b16 %v854
      %v951 = vunpack.c.l.b16 %v855
      %v952 = vunpack.c.l.b16 %v856
      %v953 = vunpack.c.l.b16 %v857
      %v954 = vunpack.c.l.b16 %v858
      %v955 = vunpack.c.l.b16 %v859
      %v956 = vunpack.c.l.b16 %v860
      %v957 = vunpack.c.l.b16 %v861
      %v958 = vunpack.c.l.b16 %v862
      %v959 = vunpack.c.l.b16 %v863
      %v960 = vunpack.c.l.b16 %v864
      %v961 = vunpack.c.l.b16 %v865
      %v962 = vunpack.c.l.b16 %v866
      %v963 = vunpack.c.l.b16 %v867
      %v964 = vpack.c.b16 %v917, %v916
      %v965 = vpack.c.b16 %v919, %v918
      %v966 = vpack.c.b16 %v921, %v920
      %v967 = vpack.c.b16 %v923, %v922
      %v968 = vpack.c.b16 %v925, %v924
      %v969 = vpack.c.b16 %v927, %v926
      %v970 = vpack.c.b16 %v929, %v928
      %v971 = vpack.c.b16 %v931, %v930
      %v972 = vpack.c.b16 %v933, %v932
      %v973 = vpack.c.b16 %v935, %v934
      %v974 = vpack.c.b16 %v937, %v936
      %v975 = vpack.c.b16 %v939, %v938
      %v976 = vpack.c.b16 %v941, %v940
      %v977 = vpack.c.b16 %v943, %v942
      %v978 = vpack.c.b16 %v945, %v944
      %v979 = vpack.c.b16 %v947, %v946
      %v980 = vpack.c.b16 %v949, %v948
      %v981 = vpack.c.b16 %v951, %v950
      %v982 = vpack.c.b16 %v953, %v952
      %v983 = vpack.c.b16 %v955, %v954
      %v984 = vpack.c.b16 %v957, %v956
      %v985 = vpack.c.b16 %v959, %v958
      %v986 = vpack.c.b16 %v961, %v960
      %v987 = vpack.c.b16 %v963, %v962
      %1012 = vmatprep.subr.bf16.mxu0 0
      %1013 = vmatpush1.bf16.msra.mxu0 %v971
      %1014 = vmatprep.subr.bf16.mxu0 0
      %1015 = vmatpush1.bf16.msra.mxu0 %v970
      %1016 = vmatprep.subr.bf16.mxu0 0
      %1017 = vmatpush1.bf16.msra.mxu0 %v969
      %1018 = vmatprep.subr.bf16.mxu0 0
      %1019 = vmatpush1.bf16.msra.mxu0 %v968
      %1020 = vmatprep.subr.bf16.mxu0 0
      %1021 = vmatpush1.bf16.msra.mxu0 %v967
      %1022 = vmatprep.subr.bf16.mxu0 0
      %1023 = vmatpush1.bf16.msra.mxu0 %v966
      %1024 = vmatprep.subr.bf16.mxu0 0
      %1025 = vmatpush1.bf16.msra.mxu0 %v965
      %1026 = vmatprep.subr.bf16.mxu0 0
      %1027 = vmatpush1.bf16.msra.mxu0 %v964
      %1028 = vmatprep.subr.bf16.mxu0 0
      %1029 = vmatpush2.bf16.msra.mxu0 %v979
      %1030 = vmatprep.subr.bf16.mxu0 0
      %1031 = vmatpush2.bf16.msra.mxu0 %v978
      %1032 = vmatprep.subr.bf16.mxu0 0
      %1033 = vmatpush2.bf16.msra.mxu0 %v977
      %1034 = vmatprep.subr.bf16.mxu0 0
      %1035 = vmatpush2.bf16.msra.mxu0 %v976
      %1036 = vmatprep.subr.bf16.mxu0 0
      %1037 = vmatpush2.bf16.msra.mxu0 %v975
      %1038 = vmatprep.subr.bf16.mxu0 0
      %1039 = vmatpush2.bf16.msra.mxu0 %v974
      %1040 = vmatprep.subr.bf16.mxu0 0
      %1041 = vmatpush2.bf16.msra.mxu0 %v973
      %1042 = vmatprep.subr.bf16.mxu0 0
      %1043 = vmatpush2.bf16.msra.mxu0 %v972
      %1044 = vmatprep.mubr.bf16.mxu0 %v755
      %1045 = vmatmul.mubr.bf16.gmra.mxu0 %v707
      %v1046 = vpop.f32.mrf.mxu0
      %v1047 = vadd.f32 0.0, %v1046
      %v1048 = vpop.f32.mrf.mxu0
      %v1049 = vpop.f32.mrf.mxu0
      %v1050 = vadd.f32 0.0, %v1049
      %v1051 = vpop.f32.mrf.mxu0
      %1052 = vmatprep.mubr.bf16.mxu0 %v756
      %1053 = vmatmul.mubr.bf16.gmra.mxu0 %v708
      %v1054 = vpop.f32.mrf.mxu0
      %v1055 = vadd.f32 0.0, %v1054
      %v1056 = vpop.f32.mrf.mxu0
      %v1057 = vpop.f32.mrf.mxu0
      %v1058 = vadd.f32 0.0, %v1057
      %v1059 = vpop.f32.mrf.mxu0
      %1060 = vmatprep.mubr.bf16.mxu0 %v757
      %1061 = vmatmul.mubr.bf16.gmra.mxu0 %v709
      %v1062 = vpop.f32.mrf.mxu0
      %v1063 = vadd.f32 0.0, %v1062
      %v1064 = vpop.f32.mrf.mxu0
      %v1065 = vpop.f32.mrf.mxu0
      %v1066 = vadd.f32 0.0, %v1065
      %v1067 = vpop.f32.mrf.mxu0
      %1068 = vmatprep.mubr.bf16.mxu0 %v758
      %1069 = vmatmul.mubr.bf16.gmra.mxu0 %v710
      %v1070 = vpop.f32.mrf.mxu0
      %v1071 = vadd.f32 0.0, %v1070
      %v1072 = vpop.f32.mrf.mxu0
      %v1073 = vpop.f32.mrf.mxu0
      %v1074 = vadd.f32 0.0, %v1073
      %v1075 = vpop.f32.mrf.mxu0
      %1076 = vmatprep.mubr.bf16.mxu0 %v759
      %1077 = vmatmul.mubr.bf16.gmra.mxu0 %v711
      %v1078 = vpop.f32.mrf.mxu0
      %v1079 = vadd.f32 0.0, %v1078
      %v1080 = vpop.f32.mrf.mxu0
      %v1081 = vpop.f32.mrf.mxu0
      %v1082 = vadd.f32 0.0, %v1081
      %v1083 = vpop.f32.mrf.mxu0
      %1084 = vmatprep.mubr.bf16.mxu0 %v760
      %1085 = vmatmul.mubr.bf16.gmra.mxu0 %v712
      %v1086 = vpop.f32.mrf.mxu0
      %v1087 = vadd.f32 0.0, %v1086
      %v1088 = vpop.f32.mrf.mxu0
      %v1089 = vpop.f32.mrf.mxu0
      %v1090 = vadd.f32 0.0, %v1089
      %v1091 = vpop.f32.mrf.mxu0
      %1092 = vmatprep.mubr.bf16.mxu0 %v761
      %1093 = vmatmul.mubr.bf16.gmra.mxu0 %v713
      %v1094 = vpop.f32.mrf.mxu0
      %v1095 = vadd.f32 0.0, %v1094
      %v1096 = vpop.f32.mrf.mxu0
      %v1097 = vpop.f32.mrf.mxu0
      %v1098 = vadd.f32 0.0, %v1097
      %v1099 = vpop.f32.mrf.mxu0
      %1100 = vmatprep.mubr.bf16.mxu0 %v762
      %1101 = vmatmul.mubr.bf16.gmra.mxu0 %v714
      %v1102 = vpop.f32.mrf.mxu0
      %v1103 = vadd.f32 0.0, %v1102
      %v1104 = vpop.f32.mrf.mxu0
      %v1105 = vpop.f32.mrf.mxu0
      %v1106 = vadd.f32 0.0, %v1105
      %v1107 = vpop.f32.mrf.mxu0
      %1108 = vmatprep.mubr.bf16.mxu0 %v763
      %1109 = vmatmul.mubr.bf16.gmra.mxu0 %v715
      %v1110 = vpop.f32.mrf.mxu0
      %v1111 = vadd.f32 0.0, %v1110
      %v1112 = vpop.f32.mrf.mxu0
      %v1113 = vpop.f32.mrf.mxu0
      %v1114 = vadd.f32 0.0, %v1113
      %v1115 = vpop.f32.mrf.mxu0
      %1116 = vmatprep.mubr.bf16.mxu0 %v764
      %1117 = vmatmul.mubr.bf16.gmra.mxu0 %v716
      %v1118 = vpop.f32.mrf.mxu0
      %v1119 = vadd.f32 0.0, %v1118
      %v1120 = vpop.f32.mrf.mxu0
      %v1121 = vpop.f32.mrf.mxu0
      %v1122 = vadd.f32 0.0, %v1121
      %v1123 = vpop.f32.mrf.mxu0
      %1124 = vmatprep.mubr.bf16.mxu0 %v765
      %1125 = vmatmul.mubr.bf16.gmra.mxu0 %v717
      %v1126 = vpop.f32.mrf.mxu0
      %v1127 = vadd.f32 0.0, %v1126
      %v1128 = vpop.f32.mrf.mxu0
      %v1129 = vpop.f32.mrf.mxu0
      %v1130 = vadd.f32 0.0, %v1129
      %v1131 = vpop.f32.mrf.mxu0
      %1132 = vmatprep.mubr.bf16.mxu0 %v766
      %1133 = vmatmul.mubr.bf16.gmra.mxu0 %v718
      %v1134 = vpop.f32.mrf.mxu0
      %v1135 = vadd.f32 0.0, %v1134
      %v1136 = vpop.f32.mrf.mxu0
      %v1137 = vpop.f32.mrf.mxu0
      %v1138 = vadd.f32 0.0, %v1137
      %v1139 = vpop.f32.mrf.mxu0
      %1140 = vmatprep.mubr.bf16.mxu0 %v767
      %1141 = vmatmul.mubr.bf16.gmra.mxu0 %v719
      %v1142 = vpop.f32.mrf.mxu0
      %v1143 = vadd.f32 0.0, %v1142
      %v1144 = vpop.f32.mrf.mxu0
      %v1145 = vpop.f32.mrf.mxu0
      %v1146 = vadd.f32 0.0, %v1145
      %v1147 = vpop.f32.mrf.mxu0
      %1148 = vmatprep.mubr.bf16.mxu0 %v768
      %1149 = vmatmul.mubr.bf16.gmra.mxu0 %v720
      %v1150 = vpop.f32.mrf.mxu0
      %v1151 = vadd.f32 0.0, %v1150
      %v1152 = vpop.f32.mrf.mxu0
      %v1153 = vpop.f32.mrf.mxu0
      %v1154 = vadd.f32 0.0, %v1153
      %v1155 = vpop.f32.mrf.mxu0
      %1156 = vmatprep.mubr.bf16.mxu0 %v769
      %1157 = vmatmul.mubr.bf16.gmra.mxu0 %v721
      %v1158 = vpop.f32.mrf.mxu0
      %v1159 = vadd.f32 0.0, %v1158
      %v1160 = vpop.f32.mrf.mxu0
      %v1161 = vpop.f32.mrf.mxu0
      %v1162 = vadd.f32 0.0, %v1161
      %v1163 = vpop.f32.mrf.mxu0
      %1164 = vmatprep.mubr.bf16.mxu0 %v770
      %1165 = vmatmul.mubr.bf16.gmra.mxu0 %v722
      %v1166 = vpop.f32.mrf.mxu0
      %v1167 = vadd.f32 0.0, %v1166
      %v1168 = vpop.f32.mrf.mxu0
      %v1169 = vpop.f32.mrf.mxu0
      %v1170 = vadd.f32 0.0, %v1169
      %v1171 = vpop.f32.mrf.mxu0
      %1172 = vdwg.mxu0
      %1173 = vmatprep.subr.bf16.mxu0 0
      %1174 = vmatpush1.bf16.msra.mxu0 %v987
      %1175 = vmatprep.subr.bf16.mxu0 0
      %1176 = vmatpush1.bf16.msra.mxu0 %v986
      %1177 = vmatprep.subr.bf16.mxu0 0
      %1178 = vmatpush1.bf16.msra.mxu0 %v985
      %1179 = vmatprep.subr.bf16.mxu0 0
      %1180 = vmatpush1.bf16.msra.mxu0 %v984
      %1181 = vmatprep.subr.bf16.mxu0 0
      %1182 = vmatpush1.bf16.msra.mxu0 %v983
      %1183 = vmatprep.subr.bf16.mxu0 0
      %1184 = vmatpush1.bf16.msra.mxu0 %v982
      %1185 = vmatprep.subr.bf16.mxu0 0
      %1186 = vmatpush1.bf16.msra.mxu0 %v981
      %1187 = vmatprep.subr.bf16.mxu0 0
      %1188 = vmatpush1.bf16.msra.mxu0 %v980
      %1189 = vmatprep.subr.bf16.mxu0 0
      %1190 = vmatpush2.bf16.msra.mxu0 0
      %1191 = vmatprep.subr.bf16.mxu0 0
      %1192 = vmatpush2.bf16.msra.mxu0 0
      %1193 = vmatprep.subr.bf16.mxu0 0
      %1194 = vmatpush2.bf16.msra.mxu0 0
      %1195 = vmatprep.subr.bf16.mxu0 0
      %1196 = vmatpush2.bf16.msra.mxu0 0
      %1197 = vmatprep.subr.bf16.mxu0 0
      %1198 = vmatpush2.bf16.msra.mxu0 0
      %1199 = vmatprep.subr.bf16.mxu0 0
      %1200 = vmatpush2.bf16.msra.mxu0 0
      %1201 = vmatprep.subr.bf16.mxu0 0
      %1202 = vmatpush2.bf16.msra.mxu0 0
      %1203 = vmatprep.subr.bf16.mxu0 0
      %1204 = vmatpush2.bf16.msra.mxu0 0
      %1205 = vmatprep.mubr.bf16.mxu0 0
      %1206 = vmatmul.mubr.bf16.gmra.mxu0 %v803
      %v1207 = vpop.f32.mrf.mxu0
      %v1208 = vadd.f32 %v1047, %v1207
      %v1209 = vpop.f32.mrf.mxu0
      %v1210 = vpop.f32.mrf.mxu0
      %v1211 = vadd.f32 %v1050, %v1210
      %v1212 = vpop.f32.mrf.mxu0
      %1213 = vmatprep.mubr.bf16.mxu0 0
      %1214 = vmatmul.mubr.bf16.gmra.mxu0 %v804
      %v1215 = vpop.f32.mrf.mxu0
      %v1216 = vadd.f32 %v1055, %v1215
      %v1217 = vpop.f32.mrf.mxu0
      %v1218 = vpop.f32.mrf.mxu0
      %v1219 = vadd.f32 %v1058, %v1218
      %v1220 = vpop.f32.mrf.mxu0
      %1221 = vmatprep.mubr.bf16.mxu0 0
      %1222 = vmatmul.mubr.bf16.gmra.mxu0 %v805
      %v1223 = vpop.f32.mrf.mxu0
      %v1224 = vadd.f32 %v1063, %v1223
      %v1225 = vpop.f32.mrf.mxu0
      %v1226 = vpop.f32.mrf.mxu0
      %v1227 = vadd.f32 %v1066, %v1226
      %v1228 = vpop.f32.mrf.mxu0
      %1229 = vmatprep.mubr.bf16.mxu0 0
      %1230 = vmatmul.mubr.bf16.gmra.mxu0 %v806
      %v1231 = vpop.f32.mrf.mxu0
      %v1232 = vadd.f32 %v1071, %v1231
      %v1233 = vpop.f32.mrf.mxu0
      %v1234 = vpop.f32.mrf.mxu0
      %v1235 = vadd.f32 %v1074, %v1234
      %v1236 = vpop.f32.mrf.mxu0
      %1237 = vmatprep.mubr.bf16.mxu0 0
      %1238 = vmatmul.mubr.bf16.gmra.mxu0 %v807
      %v1239 = vpop.f32.mrf.mxu0
      %v1240 = vadd.f32 %v1079, %v1239
      %v1241 = vpop.f32.mrf.mxu0
      %v1242 = vpop.f32.mrf.mxu0
      %v1243 = vadd.f32 %v1082, %v1242
      %v1244 = vpop.f32.mrf.mxu0
      %1245 = vmatprep.mubr.bf16.mxu0 0
      %1246 = vmatmul.mubr.bf16.gmra.mxu0 %v808
      %v1247 = vpop.f32.mrf.mxu0
      %v1248 = vadd.f32 %v1087, %v1247
      %v1249 = vpop.f32.mrf.mxu0
      %v1250 = vpop.f32.mrf.mxu0
      %v1251 = vadd.f32 %v1090, %v1250
      %v1252 = vpop.f32.mrf.mxu0
      %1253 = vmatprep.mubr.bf16.mxu0 0
      %1254 = vmatmul.mubr.bf16.gmra.mxu0 %v809
      %v1255 = vpop.f32.mrf.mxu0
      %v1256 = vadd.f32 %v1095, %v1255
      %v1257 = vpop.f32.mrf.mxu0
      %v1258 = vpop.f32.mrf.mxu0
      %v1259 = vadd.f32 %v1098, %v1258
      %v1260 = vpop.f32.mrf.mxu0
      %1261 = vmatprep.mubr.bf16.mxu0 0
      %1262 = vmatmul.mubr.bf16.gmra.mxu0 %v810
      %v1263 = vpop.f32.mrf.mxu0
      %v1264 = vadd.f32 %v1103, %v1263
      %v1265 = vpop.f32.mrf.mxu0
      %v1266 = vpop.f32.mrf.mxu0
      %v1267 = vadd.f32 %v1106, %v1266
      %v1268 = vpop.f32.mrf.mxu0
      %1269 = vmatprep.mubr.bf16.mxu0 0
      %1270 = vmatmul.mubr.bf16.gmra.mxu0 %v811
      %v1271 = vpop.f32.mrf.mxu0
      %v1272 = vadd.f32 %v1111, %v1271
      %v1273 = vpop.f32.mrf.mxu0
      %v1274 = vpop.f32.mrf.mxu0
      %v1275 = vadd.f32 %v1114, %v1274
      %v1276 = vpop.f32.mrf.mxu0
      %1277 = vmatprep.mubr.bf16.mxu0 0
      %1278 = vmatmul.mubr.bf16.gmra.mxu0 %v812
      %v1279 = vpop.f32.mrf.mxu0
      %v1280 = vadd.f32 %v1119, %v1279
      %v1281 = vpop.f32.mrf.mxu0
      %v1282 = vpop.f32.mrf.mxu0
      %v1283 = vadd.f32 %v1122, %v1282
      %v1284 = vpop.f32.mrf.mxu0
      %1285 = vmatprep.mubr.bf16.mxu0 0
      %1286 = vmatmul.mubr.bf16.gmra.mxu0 %v813
      %v1287 = vpop.f32.mrf.mxu0
      %v1288 = vadd.f32 %v1127, %v1287
      %v1289 = vpop.f32.mrf.mxu0
      %v1290 = vpop.f32.mrf.mxu0
      %v1291 = vadd.f32 %v1130, %v1290
      %v1292 = vpop.f32.mrf.mxu0
      %1293 = vmatprep.mubr.bf16.mxu0 0
      %1294 = vmatmul.mubr.bf16.gmra.mxu0 %v814
      %v1295 = vpop.f32.mrf.mxu0
      %v1296 = vadd.f32 %v1135, %v1295
      %v1297 = vpop.f32.mrf.mxu0
      %v1298 = vpop.f32.mrf.mxu0
      %v1299 = vadd.f32 %v1138, %v1298
      %v1300 = vpop.f32.mrf.mxu0
      %1301 = vmatprep.mubr.bf16.mxu0 0
      %1302 = vmatmul.mubr.bf16.gmra.mxu0 %v815
      %v1303 = vpop.f32.mrf.mxu0
      %v1304 = vadd.f32 %v1143, %v1303
      %v1305 = vpop.f32.mrf.mxu0
      %v1306 = vpop.f32.mrf.mxu0
      %v1307 = vadd.f32 %v1146, %v1306
      %v1308 = vpop.f32.mrf.mxu0
      %1309 = vmatprep.mubr.bf16.mxu0 0
      %1310 = vmatmul.mubr.bf16.gmra.mxu0 %v816
      %v1311 = vpop.f32.mrf.mxu0
      %v1312 = vadd.f32 %v1151, %v1311
      %v1313 = vpop.f32.mrf.mxu0
      %v1314 = vpop.f32.mrf.mxu0
      %v1315 = vadd.f32 %v1154, %v1314
      %v1316 = vpop.f32.mrf.mxu0
      %1317 = vmatprep.mubr.bf16.mxu0 0
      %1318 = vmatmul.mubr.bf16.gmra.mxu0 %v817
      %v1319 = vpop.f32.mrf.mxu0
      %v1320 = vadd.f32 %v1159, %v1319
      %v1321 = vpop.f32.mrf.mxu0
      %v1322 = vpop.f32.mrf.mxu0
      %v1323 = vadd.f32 %v1162, %v1322
      %v1324 = vpop.f32.mrf.mxu0
      %1325 = vmatprep.mubr.bf16.mxu0 0
      %1326 = vmatmul.mubr.bf16.gmra.mxu0 %v818
      %v1327 = vpop.f32.mrf.mxu0
      %v1328 = vadd.f32 %v1167, %v1327
      %v1329 = vpop.f32.mrf.mxu0
      %v1330 = vpop.f32.mrf.mxu0
      %v1331 = vadd.f32 %v1170, %v1330
      %v1332 = vpop.f32.mrf.mxu0
      %1333 = vdwg.mxu0
      %v1382 = vunpack.c.l.b16 %v627
      %v1383 = vunpack.c.l.b16 %v628
      %v1384 = vunpack.c.l.b16 %v629
      %v1385 = vunpack.c.l.b16 %v630
      %v1386 = vunpack.c.l.b16 %v631
      %v1387 = vunpack.c.l.b16 %v632
      %v1388 = vunpack.c.l.b16 %v633
      %v1389 = vunpack.c.l.b16 %v634
      %v1390 = vunpack.c.l.b16 %v635
      %v1391 = vunpack.c.l.b16 %v636
      %v1392 = vunpack.c.l.b16 %v637
      %v1393 = vunpack.c.l.b16 %v638
      %v1394 = vunpack.c.l.b16 %v639
      %v1395 = vunpack.c.l.b16 %v640
      %v1396 = vunpack.c.l.b16 %v641
      %v1397 = vunpack.c.l.b16 %v642
      %v1398 = vunpack.c.l.b16 %v643
      %v1399 = vunpack.c.l.b16 %v644
      %v1400 = vunpack.c.l.b16 %v645
      %v1401 = vunpack.c.l.b16 %v646
      %v1402 = vunpack.c.l.b16 %v647
      %v1403 = vunpack.c.l.b16 %v648
      %v1404 = vunpack.c.l.b16 %v649
      %v1405 = vunpack.c.l.b16 %v650
      %v1406 = vunpack.c.l.b16 %v651
      %v1407 = vunpack.c.l.b16 %v652
      %v1408 = vunpack.c.l.b16 %v653
      %v1409 = vunpack.c.l.b16 %v654
      %v1410 = vunpack.c.l.b16 %v655
      %v1411 = vunpack.c.l.b16 %v656
      %v1412 = vunpack.c.l.b16 %v657
      %v1413 = vunpack.c.l.b16 %v658
      %v1414 = vunpack.c.l.b16 %v659
      %v1415 = vunpack.c.l.b16 %v660
      %v1416 = vunpack.c.l.b16 %v661
      %v1417 = vunpack.c.l.b16 %v662
      %v1418 = vunpack.c.l.b16 %v663
      %v1419 = vunpack.c.l.b16 %v664
      %v1420 = vunpack.c.l.b16 %v665
      %v1421 = vunpack.c.l.b16 %v666
      %v1422 = vunpack.c.l.b16 %v667
      %v1423 = vunpack.c.l.b16 %v668
      %v1424 = vunpack.c.l.b16 %v669
      %v1425 = vunpack.c.l.b16 %v670
      %v1426 = vunpack.c.l.b16 %v671
      %v1427 = vunpack.c.l.b16 %v672
      %v1428 = vunpack.c.l.b16 %v673
      %v1429 = vunpack.c.l.b16 %v674
      %v1430 = vpack.c.b16 %v1383, %v1382
      %v1431 = vpack.c.b16 %v1385, %v1384
      %v1432 = vpack.c.b16 %v1387, %v1386
      %v1433 = vpack.c.b16 %v1389, %v1388
      %v1434 = vpack.c.b16 %v1391, %v1390
      %v1435 = vpack.c.b16 %v1393, %v1392
      %v1436 = vpack.c.b16 %v1395, %v1394
      %v1437 = vpack.c.b16 %v1397, %v1396
      %v1438 = vpack.c.b16 %v1399, %v1398
      %v1439 = vpack.c.b16 %v1401, %v1400
      %v1440 = vpack.c.b16 %v1403, %v1402
      %v1441 = vpack.c.b16 %v1405, %v1404
      %v1442 = vpack.c.b16 %v1407, %v1406
      %v1443 = vpack.c.b16 %v1409, %v1408
      %v1444 = vpack.c.b16 %v1411, %v1410
      %v1445 = vpack.c.b16 %v1413, %v1412
      %v1446 = vpack.c.b16 %v1415, %v1414
      %v1447 = vpack.c.b16 %v1417, %v1416
      %v1448 = vpack.c.b16 %v1419, %v1418
      %v1449 = vpack.c.b16 %v1421, %v1420
      %v1450 = vpack.c.b16 %v1423, %v1422
      %v1451 = vpack.c.b16 %v1425, %v1424
      %v1452 = vpack.c.b16 %v1427, %v1426
      %v1453 = vpack.c.b16 %v1429, %v1428
      %1478 = vmatprep.subr.bf16.mxu0 0
      %1479 = vmatpush1.bf16.msra.mxu0 %v1437
      %1480 = vmatprep.subr.bf16.mxu0 0
      %1481 = vmatpush1.bf16.msra.mxu0 %v1436
      %1482 = vmatprep.subr.bf16.mxu0 0
      %1483 = vmatpush1.bf16.msra.mxu0 %v1435
      %1484 = vmatprep.subr.bf16.mxu0 0
      %1485 = vmatpush1.bf16.msra.mxu0 %v1434
      %1486 = vmatprep.subr.bf16.mxu0 0
      %1487 = vmatpush1.bf16.msra.mxu0 %v1433
      %1488 = vmatprep.subr.bf16.mxu0 0
      %1489 = vmatpush1.bf16.msra.mxu0 %v1432
      %1490 = vmatprep.subr.bf16.mxu0 0
      %1491 = vmatpush1.bf16.msra.mxu0 %v1431
      %1492 = vmatprep.subr.bf16.mxu0 0
      %1493 = vmatpush1.bf16.msra.mxu0 %v1430
      %1494 = vmatprep.subr.bf16.mxu0 0
      %1495 = vmatpush2.bf16.msra.mxu0 %v1445
      %1496 = vmatprep.subr.bf16.mxu0 0
      %1497 = vmatpush2.bf16.msra.mxu0 %v1444
      %1498 = vmatprep.subr.bf16.mxu0 0
      %1499 = vmatpush2.bf16.msra.mxu0 %v1443
      %1500 = vmatprep.subr.bf16.mxu0 0
      %1501 = vmatpush2.bf16.msra.mxu0 %v1442
      %1502 = vmatprep.subr.bf16.mxu0 0
      %1503 = vmatpush2.bf16.msra.mxu0 %v1441
      %1504 = vmatprep.subr.bf16.mxu0 0
      %1505 = vmatpush2.bf16.msra.mxu0 %v1440
      %1506 = vmatprep.subr.bf16.mxu0 0
      %1507 = vmatpush2.bf16.msra.mxu0 %v1439
      %1508 = vmatprep.subr.bf16.mxu0 0
      %1509 = vmatpush2.bf16.msra.mxu0 %v1438
      %1510 = vmatprep.mubr.bf16.mxu0 %v563
      %1511 = vmatmul.mubr.bf16.gmra.mxu0 %v515
      %v1512 = vpop.f32.mrf.mxu0
      %v1513 = vadd.f32 %v1208, %v1512
      %v1514 = vpop.f32.mrf.mxu0
      %v1515 = vpop.f32.mrf.mxu0
      %v1516 = vadd.f32 %v1211, %v1515
      %v1517 = vpop.f32.mrf.mxu0
      %1518 = vmatprep.mubr.bf16.mxu0 %v564
      %1519 = vmatmul.mubr.bf16.gmra.mxu0 %v516
      %v1520 = vpop.f32.mrf.mxu0
      %v1521 = vadd.f32 %v1216, %v1520
      %v1522 = vpop.f32.mrf.mxu0
      %v1523 = vpop.f32.mrf.mxu0
      %v1524 = vadd.f32 %v1219, %v1523
      %v1525 = vpop.f32.mrf.mxu0
      %1526 = vmatprep.mubr.bf16.mxu0 %v565
      %1527 = vmatmul.mubr.bf16.gmra.mxu0 %v517
      %v1528 = vpop.f32.mrf.mxu0
      %v1529 = vadd.f32 %v1224, %v1528
      %v1530 = vpop.f32.mrf.mxu0
      %v1531 = vpop.f32.mrf.mxu0
      %v1532 = vadd.f32 %v1227, %v1531
      %v1533 = vpop.f32.mrf.mxu0
      %1534 = vmatprep.mubr.bf16.mxu0 %v566
      %1535 = vmatmul.mubr.bf16.gmra.mxu0 %v518
      %v1536 = vpop.f32.mrf.mxu0
      %v1537 = vadd.f32 %v1232, %v1536
      %v1538 = vpop.f32.mrf.mxu0
      %v1539 = vpop.f32.mrf.mxu0
      %v1540 = vadd.f32 %v1235, %v1539
      %v1541 = vpop.f32.mrf.mxu0
      %1542 = vmatprep.mubr.bf16.mxu0 %v567
      %1543 = vmatmul.mubr.bf16.gmra.mxu0 %v519
      %v1544 = vpop.f32.mrf.mxu0
      %v1545 = vadd.f32 %v1240, %v1544
      %v1546 = vpop.f32.mrf.mxu0
      %v1547 = vpop.f32.mrf.mxu0
      %v1548 = vadd.f32 %v1243, %v1547
      %v1549 = vpop.f32.mrf.mxu0
      %1550 = vmatprep.mubr.bf16.mxu0 %v568
      %1551 = vmatmul.mubr.bf16.gmra.mxu0 %v520
      %v1552 = vpop.f32.mrf.mxu0
      %v1553 = vadd.f32 %v1248, %v1552
      %v1554 = vpop.f32.mrf.mxu0
      %v1555 = vpop.f32.mrf.mxu0
      %v1556 = vadd.f32 %v1251, %v1555
      %v1557 = vpop.f32.mrf.mxu0
      %1558 = vmatprep.mubr.bf16.mxu0 %v569
      %1559 = vmatmul.mubr.bf16.gmra.mxu0 %v521
      %v1560 = vpop.f32.mrf.mxu0
      %v1561 = vadd.f32 %v1256, %v1560
      %v1562 = vpop.f32.mrf.mxu0
      %v1563 = vpop.f32.mrf.mxu0
      %v1564 = vadd.f32 %v1259, %v1563
      %v1565 = vpop.f32.mrf.mxu0
      %1566 = vmatprep.mubr.bf16.mxu0 %v570
      %1567 = vmatmul.mubr.bf16.gmra.mxu0 %v522
      %v1568 = vpop.f32.mrf.mxu0
      %v1569 = vadd.f32 %v1264, %v1568
      %v1570 = vpop.f32.mrf.mxu0
      %v1571 = vpop.f32.mrf.mxu0
      %v1572 = vadd.f32 %v1267, %v1571
      %v1573 = vpop.f32.mrf.mxu0
      %1574 = vmatprep.mubr.bf16.mxu0 %v571
      %1575 = vmatmul.mubr.bf16.gmra.mxu0 %v523
      %v1576 = vpop.f32.mrf.mxu0
      %v1577 = vadd.f32 %v1272, %v1576
      %v1578 = vpop.f32.mrf.mxu0
      %v1579 = vpop.f32.mrf.mxu0
      %v1580 = vadd.f32 %v1275, %v1579
      %v1581 = vpop.f32.mrf.mxu0
      %1582 = vmatprep.mubr.bf16.mxu0 %v572
      %1583 = vmatmul.mubr.bf16.gmra.mxu0 %v524
      %v1584 = vpop.f32.mrf.mxu0
      %v1585 = vadd.f32 %v1280, %v1584
      %v1586 = vpop.f32.mrf.mxu0
      %v1587 = vpop.f32.mrf.mxu0
      %v1588 = vadd.f32 %v1283, %v1587
      %v1589 = vpop.f32.mrf.mxu0
      %1590 = vmatprep.mubr.bf16.mxu0 %v573
      %1591 = vmatmul.mubr.bf16.gmra.mxu0 %v525
      %v1592 = vpop.f32.mrf.mxu0
      %v1593 = vadd.f32 %v1288, %v1592
      %v1594 = vpop.f32.mrf.mxu0
      %v1595 = vpop.f32.mrf.mxu0
      %v1596 = vadd.f32 %v1291, %v1595
      %v1597 = vpop.f32.mrf.mxu0
      %1598 = vmatprep.mubr.bf16.mxu0 %v574
      %1599 = vmatmul.mubr.bf16.gmra.mxu0 %v526
      %v1600 = vpop.f32.mrf.mxu0
      %v1601 = vadd.f32 %v1296, %v1600
      %v1602 = vpop.f32.mrf.mxu0
      %v1603 = vpop.f32.mrf.mxu0
      %v1604 = vadd.f32 %v1299, %v1603
      %v1605 = vpop.f32.mrf.mxu0
      %1606 = vmatprep.mubr.bf16.mxu0 %v575
      %1607 = vmatmul.mubr.bf16.gmra.mxu0 %v527
      %v1608 = vpop.f32.mrf.mxu0
      %v1609 = vadd.f32 %v1304, %v1608
      %v1610 = vpop.f32.mrf.mxu0
      %v1611 = vpop.f32.mrf.mxu0
      %v1612 = vadd.f32 %v1307, %v1611
      %v1613 = vpop.f32.mrf.mxu0
      %1614 = vmatprep.mubr.bf16.mxu0 %v576
      %1615 = vmatmul.mubr.bf16.gmra.mxu0 %v528
      %v1616 = vpop.f32.mrf.mxu0
      %v1617 = vadd.f32 %v1312, %v1616
      %v1618 = vpop.f32.mrf.mxu0
      %v1619 = vpop.f32.mrf.mxu0
      %v1620 = vadd.f32 %v1315, %v1619
      %v1621 = vpop.f32.mrf.mxu0
      %1622 = vmatprep.mubr.bf16.mxu0 %v577
      %1623 = vmatmul.mubr.bf16.gmra.mxu0 %v529
      %v1624 = vpop.f32.mrf.mxu0
      %v1625 = vadd.f32 %v1320, %v1624
      %v1626 = vpop.f32.mrf.mxu0
      %v1627 = vpop.f32.mrf.mxu0
      %v1628 = vadd.f32 %v1323, %v1627
      %v1629 = vpop.f32.mrf.mxu0
      %1630 = vmatprep.mubr.bf16.mxu0 %v578
      %1631 = vmatmul.mubr.bf16.gmra.mxu0 %v530
      %v1632 = vpop.f32.mrf.mxu0
      %v1633 = vadd.f32 %v1328, %v1632
      %v1634 = vpop.f32.mrf.mxu0
      %v1635 = vpop.f32.mrf.mxu0
      %v1636 = vadd.f32 %v1331, %v1635
      %v1637 = vpop.f32.mrf.mxu0
      %1638 = vdwg.mxu0
      %1639 = vmatprep.subr.bf16.mxu0 0
      %1640 = vmatpush1.bf16.msra.mxu0 %v1453
      %1641 = vmatprep.subr.bf16.mxu0 0
      %1642 = vmatpush1.bf16.msra.mxu0 %v1452
      %1643 = vmatprep.subr.bf16.mxu0 0
      %1644 = vmatpush1.bf16.msra.mxu0 %v1451
      %1645 = vmatprep.subr.bf16.mxu0 0
      %1646 = vmatpush1.bf16.msra.mxu0 %v1450
      %1647 = vmatprep.subr.bf16.mxu0 0
      %1648 = vmatpush1.bf16.msra.mxu0 %v1449
      %1649 = vmatprep.subr.bf16.mxu0 0
      %1650 = vmatpush1.bf16.msra.mxu0 %v1448
      %1651 = vmatprep.subr.bf16.mxu0 0
      %1652 = vmatpush1.bf16.msra.mxu0 %v1447
      %1653 = vmatprep.subr.bf16.mxu0 0
      %1654 = vmatpush1.bf16.msra.mxu0 %v1446
      %1655 = vmatprep.subr.bf16.mxu0 0
      %1656 = vmatpush2.bf16.msra.mxu0 0
      %1657 = vmatprep.subr.bf16.mxu0 0
      %1658 = vmatpush2.bf16.msra.mxu0 0
      %1659 = vmatprep.subr.bf16.mxu0 0
      %1660 = vmatpush2.bf16.msra.mxu0 0
      %1661 = vmatprep.subr.bf16.mxu0 0
      %1662 = vmatpush2.bf16.msra.mxu0 0
      %1663 = vmatprep.subr.bf16.mxu0 0
      %1664 = vmatpush2.bf16.msra.mxu0 0
      %1665 = vmatprep.subr.bf16.mxu0 0
      %1666 = vmatpush2.bf16.msra.mxu0 0
      %1667 = vmatprep.subr.bf16.mxu0 0
      %1668 = vmatpush2.bf16.msra.mxu0 0
      %1669 = vmatprep.subr.bf16.mxu0 0
      %1670 = vmatpush2.bf16.msra.mxu0 0
      %1671 = vmatprep.mubr.bf16.mxu0 0
      %1672 = vmatmul.mubr.bf16.gmra.mxu0 %v611
      %v1673 = vpop.f32.mrf.mxu0
      %v1674 = vadd.f32 %v1513, %v1673
      %v1675 = vpop.f32.mrf.mxu0
      %v1676 = vpop.f32.mrf.mxu0
      %v1677 = vadd.f32 %v1516, %v1676
      %v1678 = vpop.f32.mrf.mxu0
      %1679 = vmatprep.mubr.bf16.mxu0 0
      %1680 = vmatmul.mubr.bf16.gmra.mxu0 %v612
      %v1681 = vpop.f32.mrf.mxu0
      %v1682 = vadd.f32 %v1521, %v1681
      %v1683 = vpop.f32.mrf.mxu0
      %v1684 = vpop.f32.mrf.mxu0
      %v1685 = vadd.f32 %v1524, %v1684
      %v1686 = vpop.f32.mrf.mxu0
      %1687 = vmatprep.mubr.bf16.mxu0 0
      %1688 = vmatmul.mubr.bf16.gmra.mxu0 %v613
      %v1689 = vpop.f32.mrf.mxu0
      %v1690 = vadd.f32 %v1529, %v1689
      %v1691 = vpop.f32.mrf.mxu0
      %v1692 = vpop.f32.mrf.mxu0
      %v1693 = vadd.f32 %v1532, %v1692
      %v1694 = vpop.f32.mrf.mxu0
      %1695 = vmatprep.mubr.bf16.mxu0 0
      %1696 = vmatmul.mubr.bf16.gmra.mxu0 %v614
      %v1697 = vpop.f32.mrf.mxu0
      %v1698 = vadd.f32 %v1537, %v1697
      %v1699 = vpop.f32.mrf.mxu0
      %v1700 = vpop.f32.mrf.mxu0
      %v1701 = vadd.f32 %v1540, %v1700
      %v1702 = vpop.f32.mrf.mxu0
      %1703 = vmatprep.mubr.bf16.mxu0 0
      %1704 = vmatmul.mubr.bf16.gmra.mxu0 %v615
      %v1705 = vpop.f32.mrf.mxu0
      %v1706 = vadd.f32 %v1545, %v1705
      %v1707 = vpop.f32.mrf.mxu0
      %v1708 = vpop.f32.mrf.mxu0
      %v1709 = vadd.f32 %v1548, %v1708
      %v1710 = vpop.f32.mrf.mxu0
      %1711 = vmatprep.mubr.bf16.mxu0 0
      %1712 = vmatmul.mubr.bf16.gmra.mxu0 %v616
      %v1713 = vpop.f32.mrf.mxu0
      %v1714 = vadd.f32 %v1553, %v1713
      %v1715 = vpop.f32.mrf.mxu0
      %v1716 = vpop.f32.mrf.mxu0
      %v1717 = vadd.f32 %v1556, %v1716
      %v1718 = vpop.f32.mrf.mxu0
      %1719 = vmatprep.mubr.bf16.mxu0 0
      %1720 = vmatmul.mubr.bf16.gmra.mxu0 %v617
      %v1721 = vpop.f32.mrf.mxu0
      %v1722 = vadd.f32 %v1561, %v1721
      %v1723 = vpop.f32.mrf.mxu0
      %v1724 = vpop.f32.mrf.mxu0
      %v1725 = vadd.f32 %v1564, %v1724
      %v1726 = vpop.f32.mrf.mxu0
      %1727 = vmatprep.mubr.bf16.mxu0 0
      %1728 = vmatmul.mubr.bf16.gmra.mxu0 %v618
      %v1729 = vpop.f32.mrf.mxu0
      %v1730 = vadd.f32 %v1569, %v1729
      %v1731 = vpop.f32.mrf.mxu0
      %v1732 = vpop.f32.mrf.mxu0
      %v1733 = vadd.f32 %v1572, %v1732
      %v1734 = vpop.f32.mrf.mxu0
      %1735 = vmatprep.mubr.bf16.mxu0 0
      %1736 = vmatmul.mubr.bf16.gmra.mxu0 %v619
      %v1737 = vpop.f32.mrf.mxu0
      %v1738 = vadd.f32 %v1577, %v1737
      %v1739 = vpop.f32.mrf.mxu0
      %v1740 = vpop.f32.mrf.mxu0
      %v1741 = vadd.f32 %v1580, %v1740
      %v1742 = vpop.f32.mrf.mxu0
      %1743 = vmatprep.mubr.bf16.mxu0 0
      %1744 = vmatmul.mubr.bf16.gmra.mxu0 %v620
      %v1745 = vpop.f32.mrf.mxu0
      %v1746 = vadd.f32 %v1585, %v1745
      %v1747 = vpop.f32.mrf.mxu0
      %v1748 = vpop.f32.mrf.mxu0
      %v1749 = vadd.f32 %v1588, %v1748
      %v1750 = vpop.f32.mrf.mxu0
      %1751 = vmatprep.mubr.bf16.mxu0 0
      %1752 = vmatmul.mubr.bf16.gmra.mxu0 %v621
      %v1753 = vpop.f32.mrf.mxu0
      %v1754 = vadd.f32 %v1593, %v1753
      %v1755 = vpop.f32.mrf.mxu0
      %v1756 = vpop.f32.mrf.mxu0
      %v1757 = vadd.f32 %v1596, %v1756
      %v1758 = vpop.f32.mrf.mxu0
      %1759 = vmatprep.mubr.bf16.mxu0 0
      %1760 = vmatmul.mubr.bf16.gmra.mxu0 %v622
      %v1761 = vpop.f32.mrf.mxu0
      %v1762 = vadd.f32 %v1601, %v1761
      %v1763 = vpop.f32.mrf.mxu0
      %v1764 = vpop.f32.mrf.mxu0
      %v1765 = vadd.f32 %v1604, %v1764
      %v1766 = vpop.f32.mrf.mxu0
      %1767 = vmatprep.mubr.bf16.mxu0 0
      %1768 = vmatmul.mubr.bf16.gmra.mxu0 %v623
      %v1769 = vpop.f32.mrf.mxu0
      %v1770 = vadd.f32 %v1609, %v1769
      %v1771 = vpop.f32.mrf.mxu0
      %v1772 = vpop.f32.mrf.mxu0
      %v1773 = vadd.f32 %v1612, %v1772
      %v1774 = vpop.f32.mrf.mxu0
      %1775 = vmatprep.mubr.bf16.mxu0 0
      %1776 = vmatmul.mubr.bf16.gmra.mxu0 %v624
      %v1777 = vpop.f32.mrf.mxu0
      %v1778 = vadd.f32 %v1617, %v1777
      %v1779 = vpop.f32.mrf.mxu0
      %v1780 = vpop.f32.mrf.mxu0
      %v1781 = vadd.f32 %v1620, %v1780
      %v1782 = vpop.f32.mrf.mxu0
      %1783 = vmatprep.mubr.bf16.mxu0 0
      %1784 = vmatmul.mubr.bf16.gmra.mxu0 %v625
      %v1785 = vpop.f32.mrf.mxu0
      %v1786 = vadd.f32 %v1625, %v1785
      %v1787 = vpop.f32.mrf.mxu0
      %v1788 = vpop.f32.mrf.mxu0
      %v1789 = vadd.f32 %v1628, %v1788
      %v1790 = vpop.f32.mrf.mxu0
      %1791 = vmatprep.mubr.bf16.mxu0 0
      %1792 = vmatmul.mubr.bf16.gmra.mxu0 %v626
      %v1793 = vpop.f32.mrf.mxu0
      %v1794 = vadd.f32 %v1633, %v1793
      %v1795 = vpop.f32.mrf.mxu0
      %v1796 = vpop.f32.mrf.mxu0
      %v1797 = vadd.f32 %v1636, %v1796
      %v1798 = vpop.f32.mrf.mxu0
      %1799 = vdwg.mxu0
      %s1800 = scalar_lea.vmem [#allocation2], 48
      %v1801 = vld [vmem:[%s1800] sm:$0xff]
      %v1802 = vld [vmem:[%s1800 + $0x8] sm:$0xff]
      %v1803 = vld [vmem:[%s1800 + $0x18] sm:$0xff]
      %v1804 = vld [vmem:[%s1800 + $0x20] sm:$0xff]
      %v1805 = vld [vmem:[%s1800 + $0x30] sm:$0xff]
      %v1806 = vld [vmem:[%s1800 + $0x38] sm:$0xff]
      %v1807 = vld [vmem:[%s1800 + $0x48] sm:$0xff]
      %v1808 = vld [vmem:[%s1800 + $0x50] sm:$0xff]
      %v1809 = vld [vmem:[%s1800 + $0x60] sm:$0xff]
      %v1810 = vld [vmem:[%s1800 + $0x68] sm:$0xff]
      %v1811 = vld [vmem:[%s1800 + $0x78] sm:$0xff]
      %v1812 = vld [vmem:[%s1800 + $0x80] sm:$0xff]
      %v1813 = vld [vmem:[%s1800 + $0x90] sm:$0xff]
      %v1814 = vld [vmem:[%s1800 + $0x98] sm:$0xff]
      %v1815 = vld [vmem:[%s1800 + $0xa8] sm:$0xff]
      %v1816 = vld [vmem:[%s1800 + $0xb0] sm:$0xff]
      %v1817 = vld [vmem:[%s1800 + $0xc0] sm:$0xff]
      %v1818 = vld [vmem:[%s1800 + $0xc8] sm:$0xff]
      %v1819 = vld [vmem:[%s1800 + $0xd8] sm:$0xff]
      %v1820 = vld [vmem:[%s1800 + $0xe0] sm:$0xff]
      %v1821 = vld [vmem:[%s1800 + $0xf0] sm:$0xff]
      %v1822 = vld [vmem:[%s1800 + $0xf8] sm:$0xff]
      %v1823 = vld [vmem:[%s1800 + $0x108] sm:$0xff]
      %v1824 = vld [vmem:[%s1800 + $0x110] sm:$0xff]
      %v1825 = vld [vmem:[%s1800 + $0x120] sm:$0xff]
      %v1826 = vld [vmem:[%s1800 + $0x128] sm:$0xff]
      %v1827 = vld [vmem:[%s1800 + $0x138] sm:$0xff]
      %v1828 = vld [vmem:[%s1800 + $0x140] sm:$0xff]
      %v1829 = vld [vmem:[%s1800 + $0x150] sm:$0xff]
      %v1830 = vld [vmem:[%s1800 + $0x158] sm:$0xff]
      %v1831 = vld [vmem:[%s1800 + $0x168] sm:$0xff]
      %v1832 = vld [vmem:[%s1800 + $0x170] sm:$0xff]
      %v1833 = vpack.c.bf16 %v1802, %v1801
      %v1834 = vpack.c.bf16 %v1804, %v1803
      %v1835 = vpack.c.bf16 %v1806, %v1805
      %v1836 = vpack.c.bf16 %v1808, %v1807
      %v1837 = vpack.c.bf16 %v1810, %v1809
      %v1838 = vpack.c.bf16 %v1812, %v1811
      %v1839 = vpack.c.bf16 %v1814, %v1813
      %v1840 = vpack.c.bf16 %v1816, %v1815
      %v1841 = vpack.c.bf16 %v1818, %v1817
      %v1842 = vpack.c.bf16 %v1820, %v1819
      %v1843 = vpack.c.bf16 %v1822, %v1821
      %v1844 = vpack.c.bf16 %v1824, %v1823
      %v1845 = vpack.c.bf16 %v1826, %v1825
      %v1846 = vpack.c.bf16 %v1828, %v1827
      %v1847 = vpack.c.bf16 %v1830, %v1829
      %v1848 = vpack.c.bf16 %v1832, %v1831
      %v1849 = vld [vmem:[%s1800 + $0x1] sm:$0xff]
      %v1850 = vld [vmem:[%s1800 + $0x9] sm:$0xff]
      %v1851 = vld [vmem:[%s1800 + $0x19] sm:$0xff]
      %v1852 = vld [vmem:[%s1800 + $0x21] sm:$0xff]
      %v1853 = vld [vmem:[%s1800 + $0x31] sm:$0xff]
      %v1854 = vld [vmem:[%s1800 + $0x39] sm:$0xff]
      %v1855 = vld [vmem:[%s1800 + $0x49] sm:$0xff]
      %v1856 = vld [vmem:[%s1800 + $0x51] sm:$0xff]
      %v1857 = vld [vmem:[%s1800 + $0x61] sm:$0xff]
      %v1858 = vld [vmem:[%s1800 + $0x69] sm:$0xff]
      %v1859 = vld [vmem:[%s1800 + $0x79] sm:$0xff]
      %v1860 = vld [vmem:[%s1800 + $0x81] sm:$0xff]
      %v1861 = vld [vmem:[%s1800 + $0x91] sm:$0xff]
      %v1862 = vld [vmem:[%s1800 + $0x99] sm:$0xff]
      %v1863 = vld [vmem:[%s1800 + $0xa9] sm:$0xff]
      %v1864 = vld [vmem:[%s1800 + $0xb1] sm:$0xff]
      %v1865 = vld [vmem:[%s1800 + $0xc1] sm:$0xff]
      %v1866 = vld [vmem:[%s1800 + $0xc9] sm:$0xff]
      %v1867 = vld [vmem:[%s1800 + $0xd9] sm:$0xff]
      %v1868 = vld [vmem:[%s1800 + $0xe1] sm:$0xff]
      %v1869 = vld [vmem:[%s1800 + $0xf1] sm:$0xff]
      %v1870 = vld [vmem:[%s1800 + $0xf9] sm:$0xff]
      %v1871 = vld [vmem:[%s1800 + $0x109] sm:$0xff]
      %v1872 = vld [vmem:[%s1800 + $0x111] sm:$0xff]
      %v1873 = vld [vmem:[%s1800 + $0x121] sm:$0xff]
      %v1874 = vld [vmem:[%s1800 + $0x129] sm:$0xff]
      %v1875 = vld [vmem:[%s1800 + $0x139] sm:$0xff]
      %v1876 = vld [vmem:[%s1800 + $0x141] sm:$0xff]
      %v1877 = vld [vmem:[%s1800 + $0x151] sm:$0xff]
      %v1878 = vld [vmem:[%s1800 + $0x159] sm:$0xff]
      %v1879 = vld [vmem:[%s1800 + $0x169] sm:$0xff]
      %v1880 = vld [vmem:[%s1800 + $0x171] sm:$0xff]
      %v1881 = vpack.c.bf16 %v1850, %v1849
      %v1882 = vpack.c.bf16 %v1852, %v1851
      %v1883 = vpack.c.bf16 %v1854, %v1853
      %v1884 = vpack.c.bf16 %v1856, %v1855
      %v1885 = vpack.c.bf16 %v1858, %v1857
      %v1886 = vpack.c.bf16 %v1860, %v1859
      %v1887 = vpack.c.bf16 %v1862, %v1861
      %v1888 = vpack.c.bf16 %v1864, %v1863
      %v1889 = vpack.c.bf16 %v1866, %v1865
      %v1890 = vpack.c.bf16 %v1868, %v1867
      %v1891 = vpack.c.bf16 %v1870, %v1869
      %v1892 = vpack.c.bf16 %v1872, %v1871
      %v1893 = vpack.c.bf16 %v1874, %v1873
      %v1894 = vpack.c.bf16 %v1876, %v1875
      %v1895 = vpack.c.bf16 %v1878, %v1877
      %v1896 = vpack.c.bf16 %v1880, %v1879
      %v1897 = vld [vmem:[%s1800 + $0x2] sm:$0xff]
      %v1898 = vld [vmem:[%s1800 + $0xa] sm:$0xff]
      %v1899 = vld [vmem:[%s1800 + $0x1a] sm:$0xff]
      %v1900 = vld [vmem:[%s1800 + $0x22] sm:$0xff]
      %v1901 = vld [vmem:[%s1800 + $0x32] sm:$0xff]
      %v1902 = vld [vmem:[%s1800 + $0x3a] sm:$0xff]
      %v1903 = vld [vmem:[%s1800 + $0x4a] sm:$0xff]
      %v1904 = vld [vmem:[%s1800 + $0x52] sm:$0xff]
      %v1905 = vld [vmem:[%s1800 + $0x62] sm:$0xff]
      %v1906 = vld [vmem:[%s1800 + $0x6a] sm:$0xff]
      %v1907 = vld [vmem:[%s1800 + $0x7a] sm:$0xff]
      %v1908 = vld [vmem:[%s1800 + $0x82] sm:$0xff]
      %v1909 = vld [vmem:[%s1800 + $0x92] sm:$0xff]
      %v1910 = vld [vmem:[%s1800 + $0x9a] sm:$0xff]
      %v1911 = vld [vmem:[%s1800 + $0xaa] sm:$0xff]
      %v1912 = vld [vmem:[%s1800 + $0xb2] sm:$0xff]
      %v1913 = vld [vmem:[%s1800 + $0xc2] sm:$0xff]
      %v1914 = vld [vmem:[%s1800 + $0xca] sm:$0xff]
      %v1915 = vld [vmem:[%s1800 + $0xda] sm:$0xff]
      %v1916 = vld [vmem:[%s1800 + $0xe2] sm:$0xff]
      %v1917 = vld [vmem:[%s1800 + $0xf2] sm:$0xff]
      %v1918 = vld [vmem:[%s1800 + $0xfa] sm:$0xff]
      %v1919 = vld [vmem:[%s1800 + $0x10a] sm:$0xff]
      %v1920 = vld [vmem:[%s1800 + $0x112] sm:$0xff]
      %v1921 = vld [vmem:[%s1800 + $0x122] sm:$0xff]
      %v1922 = vld [vmem:[%s1800 + $0x12a] sm:$0xff]
      %v1923 = vld [vmem:[%s1800 + $0x13a] sm:$0xff]
      %v1924 = vld [vmem:[%s1800 + $0x142] sm:$0xff]
      %v1925 = vld [vmem:[%s1800 + $0x152] sm:$0xff]
      %v1926 = vld [vmem:[%s1800 + $0x15a] sm:$0xff]
      %v1927 = vld [vmem:[%s1800 + $0x16a] sm:$0xff]
      %v1928 = vld [vmem:[%s1800 + $0x172] sm:$0xff]
      %v1929 = vpack.c.bf16 %v1898, %v1897
      %v1930 = vpack.c.bf16 %v1900, %v1899
      %v1931 = vpack.c.bf16 %v1902, %v1901
      %v1932 = vpack.c.bf16 %v1904, %v1903
      %v1933 = vpack.c.bf16 %v1906, %v1905
      %v1934 = vpack.c.bf16 %v1908, %v1907
      %v1935 = vpack.c.bf16 %v1910, %v1909
      %v1936 = vpack.c.bf16 %v1912, %v1911
      %v1937 = vpack.c.bf16 %v1914, %v1913
      %v1938 = vpack.c.bf16 %v1916, %v1915
      %v1939 = vpack.c.bf16 %v1918, %v1917
      %v1940 = vpack.c.bf16 %v1920, %v1919
      %v1941 = vpack.c.bf16 %v1922, %v1921
      %v1942 = vpack.c.bf16 %v1924, %v1923
      %v1943 = vpack.c.bf16 %v1926, %v1925
      %v1944 = vpack.c.bf16 %v1928, %v1927
      %s1945 = scalar_lea.vmem %s3, 384
      %v1946 = vld [vmem:[%s1945] sm:$0xf]
      %v1947 = vld [vmem:[%s1945 + $0x4] sm:$0xf]
      %v1948 = vld [vmem:[%s1945 + $0x8] sm:$0xf]
      %v1949 = vld [vmem:[%s1945 + $0xc] sm:$0xf]
      %v1950 = vld [vmem:[%s1945 + $0x10] sm:$0xf]
      %v1951 = vld [vmem:[%s1945 + $0x14] sm:$0xf]
      %v1952 = vld [vmem:[%s1945 + $0x18] sm:$0xf]
      %v1953 = vld [vmem:[%s1945 + $0x1c] sm:$0xf]
      %v1954 = vld [vmem:[%s1945 + $0x20] sm:$0xf]
      %v1955 = vld [vmem:[%s1945 + $0x24] sm:$0xf]
      %v1956 = vld [vmem:[%s1945 + $0x28] sm:$0xf]
      %v1957 = vld [vmem:[%s1945 + $0x2c] sm:$0xf]
      %v1958 = vld [vmem:[%s1945 + $0x30] sm:$0xf]
      %v1959 = vld [vmem:[%s1945 + $0x34] sm:$0xf]
      %v1960 = vld [vmem:[%s1945 + $0x38] sm:$0xf]
      %v1961 = vld [vmem:[%s1945 + $0x3c] sm:$0xf]
      %v1962 = vld [vmem:[%s1945 + $0x40] sm:$0xf]
      %v1963 = vld [vmem:[%s1945 + $0x44] sm:$0xf]
      %v1964 = vld [vmem:[%s1945 + $0x48] sm:$0xf]
      %v1965 = vld [vmem:[%s1945 + $0x4c] sm:$0xf]
      %v1966 = vld [vmem:[%s1945 + $0x50] sm:$0xf]
      %v1967 = vld [vmem:[%s1945 + $0x54] sm:$0xf]
      %v1968 = vld [vmem:[%s1945 + $0x58] sm:$0xf]
      %v1969 = vld [vmem:[%s1945 + $0x5c] sm:$0xf]
      %v1970 = vld [vmem:[%s1945 + $0x60] sm:$0xf]
      %v1971 = vld [vmem:[%s1945 + $0x64] sm:$0xf]
      %v1972 = vld [vmem:[%s1945 + $0x68] sm:$0xf]
      %v1973 = vld [vmem:[%s1945 + $0x6c] sm:$0xf]
      %v1974 = vld [vmem:[%s1945 + $0x70] sm:$0xf]
      %v1975 = vld [vmem:[%s1945 + $0x74] sm:$0xf]
      %v1976 = vld [vmem:[%s1945 + $0x78] sm:$0xf]
      %v1977 = vld [vmem:[%s1945 + $0x7c] sm:$0xf]
      %v1978 = vld [vmem:[%s1945 + $0x80] sm:$0xf]
      %v1979 = vld [vmem:[%s1945 + $0x84] sm:$0xf]
      %v1980 = vld [vmem:[%s1945 + $0x88] sm:$0xf]
      %v1981 = vld [vmem:[%s1945 + $0x8c] sm:$0xf]
      %v1982 = vld [vmem:[%s1945 + $0x90] sm:$0xf]
      %v1983 = vld [vmem:[%s1945 + $0x94] sm:$0xf]
      %v1984 = vld [vmem:[%s1945 + $0x98] sm:$0xf]
      %v1985 = vld [vmem:[%s1945 + $0x9c] sm:$0xf]
      %v1986 = vld [vmem:[%s1945 + $0xa0] sm:$0xf]
      %v1987 = vld [vmem:[%s1945 + $0xa4] sm:$0xf]
      %v1988 = vld [vmem:[%s1945 + $0xa8] sm:$0xf]
      %v1989 = vld [vmem:[%s1945 + $0xac] sm:$0xf]
      %v1990 = vld [vmem:[%s1945 + $0xb0] sm:$0xf]
      %v1991 = vld [vmem:[%s1945 + $0xb4] sm:$0xf]
      %v1992 = vld [vmem:[%s1945 + $0xb8] sm:$0xf]
      %v1993 = vld [vmem:[%s1945 + $0xbc] sm:$0xf]
      %v2042 = vunpack.c.l.b16 %v1946
      %v2043 = vunpack.c.l.b16 %v1947
      %v2044 = vunpack.c.l.b16 %v1948
      %v2045 = vunpack.c.l.b16 %v1949
      %v2046 = vunpack.c.l.b16 %v1950
      %v2047 = vunpack.c.l.b16 %v1951
      %v2048 = vunpack.c.l.b16 %v1952
      %v2049 = vunpack.c.l.b16 %v1953
      %v2050 = vunpack.c.l.b16 %v1954
      %v2051 = vunpack.c.l.b16 %v1955
      %v2052 = vunpack.c.l.b16 %v1956
      %v2053 = vunpack.c.l.b16 %v1957
      %v2054 = vunpack.c.l.b16 %v1958
      %v2055 = vunpack.c.l.b16 %v1959
      %v2056 = vunpack.c.l.b16 %v1960
      %v2057 = vunpack.c.l.b16 %v1961
      %v2058 = vunpack.c.l.b16 %v1962
      %v2059 = vunpack.c.l.b16 %v1963
      %v2060 = vunpack.c.l.b16 %v1964
      %v2061 = vunpack.c.l.b16 %v1965
      %v2062 = vunpack.c.l.b16 %v1966
      %v2063 = vunpack.c.l.b16 %v1967
      %v2064 = vunpack.c.l.b16 %v1968
      %v2065 = vunpack.c.l.b16 %v1969
      %v2066 = vunpack.c.l.b16 %v1970
      %v2067 = vunpack.c.l.b16 %v1971
      %v2068 = vunpack.c.l.b16 %v1972
      %v2069 = vunpack.c.l.b16 %v1973
      %v2070 = vunpack.c.l.b16 %v1974
      %v2071 = vunpack.c.l.b16 %v1975
      %v2072 = vunpack.c.l.b16 %v1976
      %v2073 = vunpack.c.l.b16 %v1977
      %v2074 = vunpack.c.l.b16 %v1978
      %v2075 = vunpack.c.l.b16 %v1979
      %v2076 = vunpack.c.l.b16 %v1980
      %v2077 = vunpack.c.l.b16 %v1981
      %v2078 = vunpack.c.l.b16 %v1982
      %v2079 = vunpack.c.l.b16 %v1983
      %v2080 = vunpack.c.l.b16 %v1984
      %v2081 = vunpack.c.l.b16 %v1985
      %v2082 = vunpack.c.l.b16 %v1986
      %v2083 = vunpack.c.l.b16 %v1987
      %v2084 = vunpack.c.l.b16 %v1988
      %v2085 = vunpack.c.l.b16 %v1989
      %v2086 = vunpack.c.l.b16 %v1990
      %v2087 = vunpack.c.l.b16 %v1991
      %v2088 = vunpack.c.l.b16 %v1992
      %v2089 = vunpack.c.l.b16 %v1993
      %v2090 = vpack.c.b16 %v2043, %v2042
      %v2091 = vpack.c.b16 %v2045, %v2044
      %v2092 = vpack.c.b16 %v2047, %v2046
      %v2093 = vpack.c.b16 %v2049, %v2048
      %v2094 = vpack.c.b16 %v2051, %v2050
      %v2095 = vpack.c.b16 %v2053, %v2052
      %v2096 = vpack.c.b16 %v2055, %v2054
      %v2097 = vpack.c.b16 %v2057, %v2056
      %v2098 = vpack.c.b16 %v2059, %v2058
      %v2099 = vpack.c.b16 %v2061, %v2060
      %v2100 = vpack.c.b16 %v2063, %v2062
      %v2101 = vpack.c.b16 %v2065, %v2064
      %v2102 = vpack.c.b16 %v2067, %v2066
      %v2103 = vpack.c.b16 %v2069, %v2068
      %v2104 = vpack.c.b16 %v2071, %v2070
      %v2105 = vpack.c.b16 %v2073, %v2072
      %v2106 = vpack.c.b16 %v2075, %v2074
      %v2107 = vpack.c.b16 %v2077, %v2076
      %v2108 = vpack.c.b16 %v2079, %v2078
      %v2109 = vpack.c.b16 %v2081, %v2080
      %v2110 = vpack.c.b16 %v2083, %v2082
      %v2111 = vpack.c.b16 %v2085, %v2084
      %v2112 = vpack.c.b16 %v2087, %v2086
      %v2113 = vpack.c.b16 %v2089, %v2088
      %2138 = vmatprep.subr.bf16.mxu0 0
      %2139 = vmatpush1.bf16.msra.mxu0 %v2097
      %2140 = vmatprep.subr.bf16.mxu0 0
      %2141 = vmatpush1.bf16.msra.mxu0 %v2096
      %2142 = vmatprep.subr.bf16.mxu0 0
      %2143 = vmatpush1.bf16.msra.mxu0 %v2095
      %2144 = vmatprep.subr.bf16.mxu0 0
      %2145 = vmatpush1.bf16.msra.mxu0 %v2094
      %2146 = vmatprep.subr.bf16.mxu0 0
      %2147 = vmatpush1.bf16.msra.mxu0 %v2093
      %2148 = vmatprep.subr.bf16.mxu0 0
      %2149 = vmatpush1.bf16.msra.mxu0 %v2092
      %2150 = vmatprep.subr.bf16.mxu0 0
      %2151 = vmatpush1.bf16.msra.mxu0 %v2091
      %2152 = vmatprep.subr.bf16.mxu0 0
      %2153 = vmatpush1.bf16.msra.mxu0 %v2090
      %2154 = vmatprep.subr.bf16.mxu0 0
      %2155 = vmatpush2.bf16.msra.mxu0 %v2105
      %2156 = vmatprep.subr.bf16.mxu0 0
      %2157 = vmatpush2.bf16.msra.mxu0 %v2104
      %2158 = vmatprep.subr.bf16.mxu0 0
      %2159 = vmatpush2.bf16.msra.mxu0 %v2103
      %2160 = vmatprep.subr.bf16.mxu0 0
      %2161 = vmatpush2.bf16.msra.mxu0 %v2102
      %2162 = vmatprep.subr.bf16.mxu0 0
      %2163 = vmatpush2.bf16.msra.mxu0 %v2101
      %2164 = vmatprep.subr.bf16.mxu0 0
      %2165 = vmatpush2.bf16.msra.mxu0 %v2100
      %2166 = vmatprep.subr.bf16.mxu0 0
      %2167 = vmatpush2.bf16.msra.mxu0 %v2099
      %2168 = vmatprep.subr.bf16.mxu0 0
      %2169 = vmatpush2.bf16.msra.mxu0 %v2098
      %2170 = vmatprep.mubr.bf16.mxu0 %v1881
      %2171 = vmatmul.mubr.bf16.gmra.mxu0 %v1833
      %v2172 = vpop.f32.mrf.mxu0
      %v2173 = vadd.f32 0.0, %v2172
      %v2174 = vpop.f32.mrf.mxu0
      %v2175 = vpop.f32.mrf.mxu0
      %v2176 = vadd.f32 0.0, %v2175
      %v2177 = vpop.f32.mrf.mxu0
      %2178 = vmatprep.mubr.bf16.mxu0 %v1882
      %2179 = vmatmul.mubr.bf16.gmra.mxu0 %v1834
      %v2180 = vpop.f32.mrf.mxu0
      %v2181 = vadd.f32 0.0, %v2180
      %v2182 = vpop.f32.mrf.mxu0
      %v2183 = vpop.f32.mrf.mxu0
      %v2184 = vadd.f32 0.0, %v2183
      %v2185 = vpop.f32.mrf.mxu0
      %2186 = vmatprep.mubr.bf16.mxu0 %v1883
      %2187 = vmatmul.mubr.bf16.gmra.mxu0 %v1835
      %v2188 = vpop.f32.mrf.mxu0
      %v2189 = vadd.f32 0.0, %v2188
      %v2190 = vpop.f32.mrf.mxu0
      %v2191 = vpop.f32.mrf.mxu0
      %v2192 = vadd.f32 0.0, %v2191
      %v2193 = vpop.f32.mrf.mxu0
      %2194 = vmatprep.mubr.bf16.mxu0 %v1884
      %2195 = vmatmul.mubr.bf16.gmra.mxu0 %v1836
      %v2196 = vpop.f32.mrf.mxu0
      %v2197 = vadd.f32 0.0, %v2196
      %v2198 = vpop.f32.mrf.mxu0
      %v2199 = vpop.f32.mrf.mxu0
      %v2200 = vadd.f32 0.0, %v2199
      %v2201 = vpop.f32.mrf.mxu0
      %2202 = vmatprep.mubr.bf16.mxu0 %v1885
      %2203 = vmatmul.mubr.bf16.gmra.mxu0 %v1837
      %v2204 = vpop.f32.mrf.mxu0
      %v2205 = vadd.f32 0.0, %v2204
      %v2206 = vpop.f32.mrf.mxu0
      %v2207 = vpop.f32.mrf.mxu0
      %v2208 = vadd.f32 0.0, %v2207
      %v2209 = vpop.f32.mrf.mxu0
      %2210 = vmatprep.mubr.bf16.mxu0 %v1886
      %2211 = vmatmul.mubr.bf16.gmra.mxu0 %v1838
      %v2212 = vpop.f32.mrf.mxu0
      %v2213 = vadd.f32 0.0, %v2212
      %v2214 = vpop.f32.mrf.mxu0
      %v2215 = vpop.f32.mrf.mxu0
      %v2216 = vadd.f32 0.0, %v2215
      %v2217 = vpop.f32.mrf.mxu0
      %2218 = vmatprep.mubr.bf16.mxu0 %v1887
      %2219 = vmatmul.mubr.bf16.gmra.mxu0 %v1839
      %v2220 = vpop.f32.mrf.mxu0
      %v2221 = vadd.f32 0.0, %v2220
      %v2222 = vpop.f32.mrf.mxu0
      %v2223 = vpop.f32.mrf.mxu0
      %v2224 = vadd.f32 0.0, %v2223
      %v2225 = vpop.f32.mrf.mxu0
      %2226 = vmatprep.mubr.bf16.mxu0 %v1888
      %2227 = vmatmul.mubr.bf16.gmra.mxu0 %v1840
      %v2228 = vpop.f32.mrf.mxu0
      %v2229 = vadd.f32 0.0, %v2228
      %v2230 = vpop.f32.mrf.mxu0
      %v2231 = vpop.f32.mrf.mxu0
      %v2232 = vadd.f32 0.0, %v2231
      %v2233 = vpop.f32.mrf.mxu0
      %2234 = vmatprep.mubr.bf16.mxu0 %v1889
      %2235 = vmatmul.mubr.bf16.gmra.mxu0 %v1841
      %v2236 = vpop.f32.mrf.mxu0
      %v2237 = vadd.f32 0.0, %v2236
      %v2238 = vpop.f32.mrf.mxu0
      %v2239 = vpop.f32.mrf.mxu0
      %v2240 = vadd.f32 0.0, %v2239
      %v2241 = vpop.f32.mrf.mxu0
      %2242 = vmatprep.mubr.bf16.mxu0 %v1890
      %2243 = vmatmul.mubr.bf16.gmra.mxu0 %v1842
      %v2244 = vpop.f32.mrf.mxu0
      %v2245 = vadd.f32 0.0, %v2244
      %v2246 = vpop.f32.mrf.mxu0
      %v2247 = vpop.f32.mrf.mxu0
      %v2248 = vadd.f32 0.0, %v2247
      %v2249 = vpop.f32.mrf.mxu0
      %2250 = vmatprep.mubr.bf16.mxu0 %v1891
      %2251 = vmatmul.mubr.bf16.gmra.mxu0 %v1843
      %v2252 = vpop.f32.mrf.mxu0
      %v2253 = vadd.f32 0.0, %v2252
      %v2254 = vpop.f32.mrf.mxu0
      %v2255 = vpop.f32.mrf.mxu0
      %v2256 = vadd.f32 0.0, %v2255
      %v2257 = vpop.f32.mrf.mxu0
      %2258 = vmatprep.mubr.bf16.mxu0 %v1892
      %2259 = vmatmul.mubr.bf16.gmra.mxu0 %v1844
      %v2260 = vpop.f32.mrf.mxu0
      %v2261 = vadd.f32 0.0, %v2260
      %v2262 = vpop.f32.mrf.mxu0
      %v2263 = vpop.f32.mrf.mxu0
      %v2264 = vadd.f32 0.0, %v2263
      %v2265 = vpop.f32.mrf.mxu0
      %2266 = vmatprep.mubr.bf16.mxu0 %v1893
      %2267 = vmatmul.mubr.bf16.gmra.mxu0 %v1845
      %v2268 = vpop.f32.mrf.mxu0
      %v2269 = vadd.f32 0.0, %v2268
      %v2270 = vpop.f32.mrf.mxu0
      %v2271 = vpop.f32.mrf.mxu0
      %v2272 = vadd.f32 0.0, %v2271
      %v2273 = vpop.f32.mrf.mxu0
      %2274 = vmatprep.mubr.bf16.mxu0 %v1894
      %2275 = vmatmul.mubr.bf16.gmra.mxu0 %v1846
      %v2276 = vpop.f32.mrf.mxu0
      %v2277 = vadd.f32 0.0, %v2276
      %v2278 = vpop.f32.mrf.mxu0
      %v2279 = vpop.f32.mrf.mxu0
      %v2280 = vadd.f32 0.0, %v2279
      %v2281 = vpop.f32.mrf.mxu0
      %2282 = vmatprep.mubr.bf16.mxu0 %v1895
      %2283 = vmatmul.mubr.bf16.gmra.mxu0 %v1847
      %v2284 = vpop.f32.mrf.mxu0
      %v2285 = vadd.f32 0.0, %v2284
      %v2286 = vpop.f32.mrf.mxu0
      %v2287 = vpop.f32.mrf.mxu0
      %v2288 = vadd.f32 0.0, %v2287
      %v2289 = vpop.f32.mrf.mxu0
      %2290 = vmatprep.mubr.bf16.mxu0 %v1896
      %2291 = vmatmul.mubr.bf16.gmra.mxu0 %v1848
      %v2292 = vpop.f32.mrf.mxu0
      %v2293 = vadd.f32 0.0, %v2292
      %v2294 = vpop.f32.mrf.mxu0
      %v2295 = vpop.f32.mrf.mxu0
      %v2296 = vadd.f32 0.0, %v2295
      %v2297 = vpop.f32.mrf.mxu0
      %2298 = vdwg.mxu0
      %2299 = vmatprep.subr.bf16.mxu0 0
      %2300 = vmatpush1.bf16.msra.mxu0 %v2113
      %2301 = vmatprep.subr.bf16.mxu0 0
      %2302 = vmatpush1.bf16.msra.mxu0 %v2112
      %2303 = vmatprep.subr.bf16.mxu0 0
      %2304 = vmatpush1.bf16.msra.mxu0 %v2111
      %2305 = vmatprep.subr.bf16.mxu0 0
      %2306 = vmatpush1.bf16.msra.mxu0 %v2110
      %2307 = vmatprep.subr.bf16.mxu0 0
      %2308 = vmatpush1.bf16.msra.mxu0 %v2109
      %2309 = vmatprep.subr.bf16.mxu0 0
      %2310 = vmatpush1.bf16.msra.mxu0 %v2108
      %2311 = vmatprep.subr.bf16.mxu0 0
      %2312 = vmatpush1.bf16.msra.mxu0 %v2107
      %2313 = vmatprep.subr.bf16.mxu0 0
      %2314 = vmatpush1.bf16.msra.mxu0 %v2106
      %2315 = vmatprep.subr.bf16.mxu0 0
      %2316 = vmatpush2.bf16.msra.mxu0 0
      %2317 = vmatprep.subr.bf16.mxu0 0
      %2318 = vmatpush2.bf16.msra.mxu0 0
      %2319 = vmatprep.subr.bf16.mxu0 0
      %2320 = vmatpush2.bf16.msra.mxu0 0
      %2321 = vmatprep.subr.bf16.mxu0 0
      %2322 = vmatpush2.bf16.msra.mxu0 0
      %2323 = vmatprep.subr.bf16.mxu0 0
      %2324 = vmatpush2.bf16.msra.mxu0 0
      %2325 = vmatprep.subr.bf16.mxu0 0
      %2326 = vmatpush2.bf16.msra.mxu0 0
      %2327 = vmatprep.subr.bf16.mxu0 0
      %2328 = vmatpush2.bf16.msra.mxu0 0
      %2329 = vmatprep.subr.bf16.mxu0 0
      %2330 = vmatpush2.bf16.msra.mxu0 0
      %2331 = vmatprep.mubr.bf16.mxu0 0
      %2332 = vmatmul.mubr.bf16.gmra.mxu0 %v1929
      %v2333 = vpop.f32.mrf.mxu0
      %v2334 = vadd.f32 %v2173, %v2333
      %v2335 = vpop.f32.mrf.mxu0
      %v2336 = vpop.f32.mrf.mxu0
      %v2337 = vadd.f32 %v2176, %v2336
      %v2338 = vpop.f32.mrf.mxu0
      %2339 = vmatprep.mubr.bf16.mxu0 0
      %2340 = vmatmul.mubr.bf16.gmra.mxu0 %v1930
      %v2341 = vpop.f32.mrf.mxu0
      %v2342 = vadd.f32 %v2181, %v2341
      %v2343 = vpop.f32.mrf.mxu0
      %v2344 = vpop.f32.mrf.mxu0
      %v2345 = vadd.f32 %v2184, %v2344
      %v2346 = vpop.f32.mrf.mxu0
      %2347 = vmatprep.mubr.bf16.mxu0 0
      %2348 = vmatmul.mubr.bf16.gmra.mxu0 %v1931
      %v2349 = vpop.f32.mrf.mxu0
      %v2350 = vadd.f32 %v2189, %v2349
      %v2351 = vpop.f32.mrf.mxu0
      %v2352 = vpop.f32.mrf.mxu0
      %v2353 = vadd.f32 %v2192, %v2352
      %v2354 = vpop.f32.mrf.mxu0
      %2355 = vmatprep.mubr.bf16.mxu0 0
      %2356 = vmatmul.mubr.bf16.gmra.mxu0 %v1932
      %v2357 = vpop.f32.mrf.mxu0
      %v2358 = vadd.f32 %v2197, %v2357
      %v2359 = vpop.f32.mrf.mxu0
      %v2360 = vpop.f32.mrf.mxu0
      %v2361 = vadd.f32 %v2200, %v2360
      %v2362 = vpop.f32.mrf.mxu0
      %2363 = vmatprep.mubr.bf16.mxu0 0
      %2364 = vmatmul.mubr.bf16.gmra.mxu0 %v1933
      %v2365 = vpop.f32.mrf.mxu0
      %v2366 = vadd.f32 %v2205, %v2365
      %v2367 = vpop.f32.mrf.mxu0
      %v2368 = vpop.f32.mrf.mxu0
      %v2369 = vadd.f32 %v2208, %v2368
      %v2370 = vpop.f32.mrf.mxu0
      %2371 = vmatprep.mubr.bf16.mxu0 0
      %2372 = vmatmul.mubr.bf16.gmra.mxu0 %v1934
      %v2373 = vpop.f32.mrf.mxu0
      %v2374 = vadd.f32 %v2213, %v2373
      %v2375 = vpop.f32.mrf.mxu0
      %v2376 = vpop.f32.mrf.mxu0
      %v2377 = vadd.f32 %v2216, %v2376
      %v2378 = vpop.f32.mrf.mxu0
      %2379 = vmatprep.mubr.bf16.mxu0 0
      %2380 = vmatmul.mubr.bf16.gmra.mxu0 %v1935
      %v2381 = vpop.f32.mrf.mxu0
      %v2382 = vadd.f32 %v2221, %v2381
      %v2383 = vpop.f32.mrf.mxu0
      %v2384 = vpop.f32.mrf.mxu0
      %v2385 = vadd.f32 %v2224, %v2384
      %v2386 = vpop.f32.mrf.mxu0
      %2387 = vmatprep.mubr.bf16.mxu0 0
      %2388 = vmatmul.mubr.bf16.gmra.mxu0 %v1936
      %v2389 = vpop.f32.mrf.mxu0
      %v2390 = vadd.f32 %v2229, %v2389
      %v2391 = vpop.f32.mrf.mxu0
      %v2392 = vpop.f32.mrf.mxu0
      %v2393 = vadd.f32 %v2232, %v2392
      %v2394 = vpop.f32.mrf.mxu0
      %2395 = vmatprep.mubr.bf16.mxu0 0
      %2396 = vmatmul.mubr.bf16.gmra.mxu0 %v1937
      %v2397 = vpop.f32.mrf.mxu0
      %v2398 = vadd.f32 %v2237, %v2397
      %v2399 = vpop.f32.mrf.mxu0
      %v2400 = vpop.f32.mrf.mxu0
      %v2401 = vadd.f32 %v2240, %v2400
      %v2402 = vpop.f32.mrf.mxu0
      %2403 = vmatprep.mubr.bf16.mxu0 0
      %2404 = vmatmul.mubr.bf16.gmra.mxu0 %v1938
      %v2405 = vpop.f32.mrf.mxu0
      %v2406 = vadd.f32 %v2245, %v2405
      %v2407 = vpop.f32.mrf.mxu0
      %v2408 = vpop.f32.mrf.mxu0
      %v2409 = vadd.f32 %v2248, %v2408
      %v2410 = vpop.f32.mrf.mxu0
      %2411 = vmatprep.mubr.bf16.mxu0 0
      %2412 = vmatmul.mubr.bf16.gmra.mxu0 %v1939
      %v2413 = vpop.f32.mrf.mxu0
      %v2414 = vadd.f32 %v2253, %v2413
      %v2415 = vpop.f32.mrf.mxu0
      %v2416 = vpop.f32.mrf.mxu0
      %v2417 = vadd.f32 %v2256, %v2416
      %v2418 = vpop.f32.mrf.mxu0
      %2419 = vmatprep.mubr.bf16.mxu0 0
      %2420 = vmatmul.mubr.bf16.gmra.mxu0 %v1940
      %v2421 = vpop.f32.mrf.mxu0
      %v2422 = vadd.f32 %v2261, %v2421
      %v2423 = vpop.f32.mrf.mxu0
      %v2424 = vpop.f32.mrf.mxu0
      %v2425 = vadd.f32 %v2264, %v2424
      %v2426 = vpop.f32.mrf.mxu0
      %2427 = vmatprep.mubr.bf16.mxu0 0
      %2428 = vmatmul.mubr.bf16.gmra.mxu0 %v1941
      %v2429 = vpop.f32.mrf.mxu0
      %v2430 = vadd.f32 %v2269, %v2429
      %v2431 = vpop.f32.mrf.mxu0
      %v2432 = vpop.f32.mrf.mxu0
      %v2433 = vadd.f32 %v2272, %v2432
      %v2434 = vpop.f32.mrf.mxu0
      %2435 = vmatprep.mubr.bf16.mxu0 0
      %2436 = vmatmul.mubr.bf16.gmra.mxu0 %v1942
      %v2437 = vpop.f32.mrf.mxu0
      %v2438 = vadd.f32 %v2277, %v2437
      %v2439 = vpop.f32.mrf.mxu0
      %v2440 = vpop.f32.mrf.mxu0
      %v2441 = vadd.f32 %v2280, %v2440
      %v2442 = vpop.f32.mrf.mxu0
      %2443 = vmatprep.mubr.bf16.mxu0 0
      %2444 = vmatmul.mubr.bf16.gmra.mxu0 %v1943
      %v2445 = vpop.f32.mrf.mxu0
      %v2446 = vadd.f32 %v2285, %v2445
      %v2447 = vpop.f32.mrf.mxu0
      %v2448 = vpop.f32.mrf.mxu0
      %v2449 = vadd.f32 %v2288, %v2448
      %v2450 = vpop.f32.mrf.mxu0
      %2451 = vmatprep.mubr.bf16.mxu0 0
      %2452 = vmatmul.mubr.bf16.gmra.mxu0 %v1944
      %v2453 = vpop.f32.mrf.mxu0
      %v2454 = vadd.f32 %v2293, %v2453
      %v2455 = vpop.f32.mrf.mxu0
      %v2456 = vpop.f32.mrf.mxu0
      %v2457 = vadd.f32 %v2296, %v2456
      %v2458 = vpop.f32.mrf.mxu0
      %2459 = vdwg.mxu0
      %v2460 = vadd.f32 %v1674, %v2334
      %v2461 = vadd.f32 %v1677, %v2337
      %v2462 = vadd.f32 %v1682, %v2342
      %v2463 = vadd.f32 %v1685, %v2345
      %v2464 = vadd.f32 %v1690, %v2350
      %v2465 = vadd.f32 %v1693, %v2353
      %v2466 = vadd.f32 %v1698, %v2358
      %v2467 = vadd.f32 %v1701, %v2361
      %v2468 = vadd.f32 %v1706, %v2366
      %v2469 = vadd.f32 %v1709, %v2369
      %v2470 = vadd.f32 %v1714, %v2374
      %v2471 = vadd.f32 %v1717, %v2377
      %v2472 = vadd.f32 %v1722, %v2382
      %v2473 = vadd.f32 %v1725, %v2385
      %v2474 = vadd.f32 %v1730, %v2390
      %v2475 = vadd.f32 %v1733, %v2393
      %v2476 = vadd.f32 %v1738, %v2398
      %v2477 = vadd.f32 %v1741, %v2401
      %v2478 = vadd.f32 %v1746, %v2406
      %v2479 = vadd.f32 %v1749, %v2409
      %v2480 = vadd.f32 %v1754, %v2414
      %v2481 = vadd.f32 %v1757, %v2417
      %v2482 = vadd.f32 %v1762, %v2422
      %v2483 = vadd.f32 %v1765, %v2425
      %v2484 = vadd.f32 %v1770, %v2430
      %v2485 = vadd.f32 %v1773, %v2433
      %v2486 = vadd.f32 %v1778, %v2438
      %v2487 = vadd.f32 %v1781, %v2441
      %v2488 = vadd.f32 %v1786, %v2446
      %v2489 = vadd.f32 %v1789, %v2449
      %v2490 = vadd.f32 %v1794, %v2454
      %v2491 = vadd.f32 %v1797, %v2457
      %v2492 = vpack.c.bf16 %v2461, %v2460
      %v2493 = vpack.c.bf16 %v2463, %v2462
      %v2494 = vpack.c.bf16 %v2465, %v2464
      %v2495 = vpack.c.bf16 %v2467, %v2466
      %v2496 = vpack.c.bf16 %v2469, %v2468
      %v2497 = vpack.c.bf16 %v2471, %v2470
      %v2498 = vpack.c.bf16 %v2473, %v2472
      %v2499 = vpack.c.bf16 %v2475, %v2474
      %v2500 = vpack.c.bf16 %v2477, %v2476
      %v2501 = vpack.c.bf16 %v2479, %v2478
      %v2502 = vpack.c.bf16 %v2481, %v2480
      %v2503 = vpack.c.bf16 %v2483, %v2482
      %v2504 = vpack.c.bf16 %v2485, %v2484
      %v2505 = vpack.c.bf16 %v2487, %v2486
      %v2506 = vpack.c.bf16 %v2489, %v2488
      %v2507 = vpack.c.bf16 %v2491, %v2490
      %v2524 = vunpack.c.l.b16 %v2492
      %v2525 = vunpack.c.h.b16 %v2492
      %v2526 = vunpack.c.l.b16 %v2493
      %v2527 = vunpack.c.h.b16 %v2493
      %v2528 = vunpack.c.l.b16 %v2494
      %v2529 = vunpack.c.h.b16 %v2494
      %v2530 = vunpack.c.l.b16 %v2495
      %v2531 = vunpack.c.h.b16 %v2495
      %v2532 = vunpack.c.l.b16 %v2496
      %v2533 = vunpack.c.h.b16 %v2496
      %v2534 = vunpack.c.l.b16 %v2497
      %v2535 = vunpack.c.h.b16 %v2497
      %v2536 = vunpack.c.l.b16 %v2498
      %v2537 = vunpack.c.h.b16 %v2498
      %v2538 = vunpack.c.l.b16 %v2499
      %v2539 = vunpack.c.h.b16 %v2499
      %v2540 = vunpack.c.l.b16 %v2500
      %v2541 = vunpack.c.h.b16 %v2500
      %v2542 = vunpack.c.l.b16 %v2501
      %v2543 = vunpack.c.h.b16 %v2501
      %v2544 = vunpack.c.l.b16 %v2502
      %v2545 = vunpack.c.h.b16 %v2502
      %v2546 = vunpack.c.l.b16 %v2503
      %v2547 = vunpack.c.h.b16 %v2503
      %v2548 = vunpack.c.l.b16 %v2504
      %v2549 = vunpack.c.h.b16 %v2504
      %v2550 = vunpack.c.l.b16 %v2505
      %v2551 = vunpack.c.h.b16 %v2505
      %v2552 = vunpack.c.l.b16 %v2506
      %v2553 = vunpack.c.h.b16 %v2506
      %v2554 = vunpack.c.l.b16 %v2507
      %v2555 = vunpack.c.h.b16 %v2507
      %v2556 = vpack.c.b16 %v2524, %v2524
      %v2557 = vpack.c.b16 %v2525, %v2525
      %v2558 = vpack.c.b16 %v2526, %v2526
      %v2559 = vpack.c.b16 %v2527, %v2527
      %v2560 = vpack.c.b16 %v2528, %v2528
      %v2561 = vpack.c.b16 %v2529, %v2529
      %v2562 = vpack.c.b16 %v2530, %v2530
      %v2563 = vpack.c.b16 %v2531, %v2531
      %v2564 = vpack.c.b16 %v2532, %v2532
      %v2565 = vpack.c.b16 %v2533, %v2533
      %v2566 = vpack.c.b16 %v2534, %v2534
      %v2567 = vpack.c.b16 %v2535, %v2535
      %v2568 = vpack.c.b16 %v2536, %v2536
      %v2569 = vpack.c.b16 %v2537, %v2537
      %v2570 = vpack.c.b16 %v2538, %v2538
      %v2571 = vpack.c.b16 %v2539, %v2539
      %v2572 = vpack.c.b16 %v2540, %v2540
      %v2573 = vpack.c.b16 %v2541, %v2541
      %v2574 = vpack.c.b16 %v2542, %v2542
      %v2575 = vpack.c.b16 %v2543, %v2543
      %v2576 = vpack.c.b16 %v2544, %v2544
      %v2577 = vpack.c.b16 %v2545, %v2545
      %v2578 = vpack.c.b16 %v2546, %v2546
      %v2579 = vpack.c.b16 %v2547, %v2547
      %v2580 = vpack.c.b16 %v2548, %v2548
      %v2581 = vpack.c.b16 %v2549, %v2549
      %v2582 = vpack.c.b16 %v2550, %v2550
      %v2583 = vpack.c.b16 %v2551, %v2551
      %v2584 = vpack.c.b16 %v2552, %v2552
      %v2585 = vpack.c.b16 %v2553, %v2553
      %v2586 = vpack.c.b16 %v2554, %v2554
      %v2587 = vpack.c.b16 %v2555, %v2555
      %2620 = vst [vmem:[%s231] sm:$0xf] %v2556
      %2621 = vst [vmem:[%s231 + $0x4] sm:$0xf] %v2557
      %2622 = vst [vmem:[%s231 + $0x8] sm:$0xf] %v2558
      %2623 = vst [vmem:[%s231 + $0xc] sm:$0xf] %v2559
      %2624 = vst [vmem:[%s231 + $0x10] sm:$0xf] %v2560
      %2625 = vst [vmem:[%s231 + $0x14] sm:$0xf] %v2561
      %2626 = vst [vmem:[%s231 + $0x18] sm:$0xf] %v2562
      %2627 = vst [vmem:[%s231 + $0x1c] sm:$0xf] %v2563
      %2628 = vst [vmem:[%s231 + $0x20] sm:$0xf] %v2564
      %2629 = vst [vmem:[%s231 + $0x24] sm:$0xf] %v2565
      %2630 = vst [vmem:[%s231 + $0x28] sm:$0xf] %v2566
      %2631 = vst [vmem:[%s231 + $0x2c] sm:$0xf] %v2567
      %2632 = vst [vmem:[%s231 + $0x30] sm:$0xf] %v2568
      %2633 = vst [vmem:[%s231 + $0x34] sm:$0xf] %v2569
      %2634 = vst [vmem:[%s231 + $0x38] sm:$0xf] %v2570
      %2635 = vst [vmem:[%s231 + $0x3c] sm:$0xf] %v2571
      %2636 = vst [vmem:[%s231 + $0x40] sm:$0xf] %v2572
      %2637 = vst [vmem:[%s231 + $0x44] sm:$0xf] %v2573
      %2638 = vst [vmem:[%s231 + $0x48] sm:$0xf] %v2574
      %2639 = vst [vmem:[%s231 + $0x4c] sm:$0xf] %v2575
      %2640 = vst [vmem:[%s231 + $0x50] sm:$0xf] %v2576
      %2641 = vst [vmem:[%s231 + $0x54] sm:$0xf] %v2577
      %2642 = vst [vmem:[%s231 + $0x58] sm:$0xf] %v2578
      %2643 = vst [vmem:[%s231 + $0x5c] sm:$0xf] %v2579
      %2644 = vst [vmem:[%s231 + $0x60] sm:$0xf] %v2580
      %2645 = vst [vmem:[%s231 + $0x64] sm:$0xf] %v2581
      %2646 = vst [vmem:[%s231 + $0x68] sm:$0xf] %v2582
      %2647 = vst [vmem:[%s231 + $0x6c] sm:$0xf] %v2583
      %2648 = vst [vmem:[%s231 + $0x70] sm:$0xf] %v2584
      %2649 = vst [vmem:[%s231 + $0x74] sm:$0xf] %v2585
      %2650 = vst [vmem:[%s231 + $0x78] sm:$0xf] %v2586
      %2651 = vst [vmem:[%s231 + $0x7c] sm:$0xf] %v2587
      %v2652 = vadd.f32 %v2460, %v2461
      %v2653 = vadd.f32 %v2652, %v2462
      %v2654 = vadd.f32 %v2653, %v2463
      %v2655 = vadd.f32 %v2654, %v2464
      %v2656 = vadd.f32 %v2655, %v2465
      %v2657 = vadd.f32 %v2656, %v2466
      %v2658 = vadd.f32 %v2657, %v2467
      %v2659 = vadd.f32 %v2658, %v2468
      %v2660 = vadd.f32 %v2659, %v2469
      %v2661 = vadd.f32 %v2660, %v2470
      %v2662 = vadd.f32 %v2661, %v2471
      %v2663 = vadd.f32 %v2662, %v2472
      %v2664 = vadd.f32 %v2663, %v2473
      %v2665 = vadd.f32 %v2664, %v2474
      %v2666 = vadd.f32 %v2665, %v2475
      %v2667 = vadd.f32 %v2666, %v2476
      %v2668 = vadd.f32 %v2667, %v2477
      %v2669 = vadd.f32 %v2668, %v2478
      %v2670 = vadd.f32 %v2669, %v2479
      %v2671 = vadd.f32 %v2670, %v2480
      %v2672 = vadd.f32 %v2671, %v2481
      %v2673 = vadd.f32 %v2672, %v2482
      %v2674 = vadd.f32 %v2673, %v2483
      %v2675 = vadd.f32 %v2674, %v2484
      %v2676 = vadd.f32 %v2675, %v2485
      %v2677 = vadd.f32 %v2676, %v2486
      %v2678 = vadd.f32 %v2677, %v2487
      %v2679 = vadd.f32 %v2678, %v2488
      %v2680 = vadd.f32 %v2679, %v2489
      %v2681 = vadd.f32 %v2680, %v2490
      %v2682 = vadd.f32 %v2681, %v2491
      %v2683 = vrot.slane %v2682, 4
      %v2684 = vadd.f32 %v2682, %v2683
      %v2685 = vrot.slane %v2684, 2
      %v2686 = vadd.f32 %v2684, %v2685
      %v2687 = vrot.slane %v2686, 1
      %v2688 = vadd.f32 %v2686, %v2687
      %v2689 = vmul.f32 %v2460, %v2460
      %v2690 = vmul.f32 %v2461, %v2461
      %v2691 = vmul.f32 %v2462, %v2462
      %v2692 = vmul.f32 %v2463, %v2463
      %v2693 = vmul.f32 %v2464, %v2464
      %v2694 = vmul.f32 %v2465, %v2465
      %v2695 = vmul.f32 %v2466, %v2466
      %v2696 = vmul.f32 %v2467, %v2467
      %v2697 = vmul.f32 %v2468, %v2468
      %v2698 = vmul.f32 %v2469, %v2469
      %v2699 = vmul.f32 %v2470, %v2470
      %v2700 = vmul.f32 %v2471, %v2471
      %v2701 = vmul.f32 %v2472, %v2472
      %v2702 = vmul.f32 %v2473, %v2473
      %v2703 = vmul.f32 %v2474, %v2474
      %v2704 = vmul.f32 %v2475, %v2475
      %v2705 = vmul.f32 %v2476, %v2476
      %v2706 = vmul.f32 %v2477, %v2477
      %v2707 = vmul.f32 %v2478, %v2478
      %v2708 = vmul.f32 %v2479, %v2479
      %v2709 = vmul.f32 %v2480, %v2480
      %v2710 = vmul.f32 %v2481, %v2481
      %v2711 = vmul.f32 %v2482, %v2482
      %v2712 = vmul.f32 %v2483, %v2483
      %v2713 = vmul.f32 %v2484, %v2484
      %v2714 = vmul.f32 %v2485, %v2485
      %v2715 = vmul.f32 %v2486, %v2486
      %v2716 = vmul.f32 %v2487, %v2487
      %v2717 = vmul.f32 %v2488, %v2488
      %v2718 = vmul.f32 %v2489, %v2489
      %v2719 = vmul.f32 %v2490, %v2490
      %v2720 = vmul.f32 %v2491, %v2491
      %v2721 = vadd.f32 %v2689, %v2690
      %v2722 = vadd.f32 %v2721, %v2691
      %v2723 = vadd.f32 %v2722, %v2692
      %v2724 = vadd.f32 %v2723, %v2693
      %v2725 = vadd.f32 %v2724, %v2694
      %v2726 = vadd.f32 %v2725, %v2695
      %v2727 = vadd.f32 %v2726, %v2696
      %v2728 = vadd.f32 %v2727, %v2697
      %v2729 = vadd.f32 %v2728, %v2698
      %v2730 = vadd.f32 %v2729, %v2699
      %v2731 = vadd.f32 %v2730, %v2700
      %v2732 = vadd.f32 %v2731, %v2701
      %v2733 = vadd.f32 %v2732, %v2702
      %v2734 = vadd.f32 %v2733, %v2703
      %v2735 = vadd.f32 %v2734, %v2704
      %v2736 = vadd.f32 %v2735, %v2705
      %v2737 = vadd.f32 %v2736, %v2706
      %v2738 = vadd.f32 %v2737, %v2707
      %v2739 = vadd.f32 %v2738, %v2708
      %v2740 = vadd.f32 %v2739, %v2709
      %v2741 = vadd.f32 %v2740, %v2710
      %v2742 = vadd.f32 %v2741, %v2711
      %v2743 = vadd.f32 %v2742, %v2712
      %v2744 = vadd.f32 %v2743, %v2713
      %v2745 = vadd.f32 %v2744, %v2714
      %v2746 = vadd.f32 %v2745, %v2715
      %v2747 = vadd.f32 %v2746, %v2716
      %v2748 = vadd.f32 %v2747, %v2717
      %v2749 = vadd.f32 %v2748, %v2718
      %v2750 = vadd.f32 %v2749, %v2719
      %v2751 = vadd.f32 %v2750, %v2720
      %v2752 = vrot.slane %v2751, 4
      %v2753 = vadd.f32 %v2751, %v2752
      %v2754 = vrot.slane %v2753, 2
      %v2755 = vadd.f32 %v2753, %v2754
      %v2756 = vrot.slane %v2755, 1
      %v2757 = vadd.f32 %v2755, %v2756
      %vm2758 = vcmask 1040384
      %v2759 = vsel %vm2758, %v2688, %v2757
      %2760 = vst [vmem:[%s235] sm:$0x3] %v2759
      %p2761 = scmp.lt.s32.totalorder %s17, 1
      %s2762 = scalar_select %p2761, %s17, 1
      %s2763 = smul.addr %s2762, 32
      %s2764 = smul.addr %s2763, 4
      %s2765 = scalar_lea.vmem %s4, %s2764
      %p2766 = scmp.lt.s32.totalorder %s17, 1
      %s2767 = scalar_select %p2766, %s17, 1
      %s2768 = smul.addr %s2767, 2
      %s2769 = scalar_lea.vmem %s5, %s2768
      // Predicated region
      $region37: #{residual_block_forward.4} parent=35 // pred_check
        %p2770 = pneg %p124
      $region38: #{residual_block_forward.4} parent=35 // pred_check_branch
        %2772 = sbr.rel (%p2770) target = $region40
      $region39: #{residual_block_forward.4} parent=35 // pred_region
        _
      $region40: #{residual_block_forward.4} parent=35 // pred_fallthru
        _
      // Predicated region
      $region41: #{residual_block_forward.4} parent=35 // pred_check
        %p2773 = pneg %p150
      $region42: #{residual_block_forward.4} parent=35 // pred_check_branch
        %2775 = sbr.rel (%p2773) target = $region44
      $region43: #{residual_block_forward.4} parent=35 // pred_region
        _
      $region44: #{residual_block_forward.4} parent=35 // pred_fallthru
        _
    $region36: #{residual_block_forward.4} parent=5 // pred_fallthru
      _
    %p2776 = scmp.le.s32.totalorder 2, %s12
    // Predicated region
    $region45: #{residual_block_forward.4} parent=5 // pred_check
      %p2777 = pneg %p2776
    $region46: #{residual_block_forward.4} parent=5 // pred_check_branch
      %2779 = sbr.rel (%p2777) target = $region48
    $region47: #{residual_block_forward.4} parent=5 // pred_region
      %s2780 = ssub.s32 %s12, 2
      // Predicated region
      $region49: #{residual_block_forward.4} parent=47 // pred_check
        %p2781 = pneg %p130
      $region50: #{residual_block_forward.4} parent=47 // pred_check_branch
        %2783 = sbr.rel (%p2781) target = $region52
      $region51: #{residual_block_forward.4} parent=47 // pred_region
        %p2784 = scmp.lt.s32.totalorder %s18, 1
        %s2785 = scalar_select %p2784, %s18, 1
        %s2786 = smul.addr %s2785, 32
        %s2787 = smul.addr %s2786, 4
        %s2788 = scalar_lea.vmem %s4, %s2787
      $region52: #{residual_block_forward.4} parent=47 // pred_fallthru
        _
      // Predicated region
      $region53: #{residual_block_forward.4} parent=47 // pred_check
        %p2789 = pneg %p156
      $region54: #{residual_block_forward.4} parent=47 // pred_check_branch
        %2791 = sbr.rel (%p2789) target = $region56
      $region55: #{residual_block_forward.4} parent=47 // pred_region
        %p2792 = scmp.lt.s32.totalorder %s18, 1
        %s2793 = scalar_select %p2792, %s18, 1
        %s2794 = smul.addr %s2793, 2
        %s2795 = scalar_lea.vmem %s5, %s2794
      $region56: #{residual_block_forward.4} parent=47 // pred_fallthru
        _
    $region48: #{residual_block_forward.4} parent=5 // pred_fallthru
      _
  $region6: #{residual_block_forward.4} parent=0 // loop_footer
    %s16 = sadd.s32 1, %s12
  $region7: #{residual_block_forward.4} parent=0 // loop_footer_branch
    %11 = sbr.rel target = $region3
  $region8: #{residual_block_forward.4} parent=0 // loop_exit
    _

</llo_original>
